<compile_context>
chip_gen: v7x
topology: tpu7x:2x2x1
jax: 0.10.0
libtpu: 0.0.40
codegen_flags: <defaults>
</compile_context>

<pallas_src>
import functools

import jax
import jax.numpy as jnp
from jax.experimental import pallas as pl
from jax.experimental.pallas import tpu as pltpu


# ----------------------------------------------------------------------------
# Tiling helpers
# ----------------------------------------------------------------------------
def _pick_mult8_divisor(total, cap):
    """Largest divisor of `total` that is a multiple of 8 and <= cap (bounded fallback)."""
    mult8 = [d for d in range(8, total + 1, 8) if total % d == 0]
    ok = [d for d in mult8 if d <= cap]
    if ok:
        return max(ok)
    if mult8:
        return min(mult8)          # smallest mult-of-8 divisor: bounded VMEM
    # TODO(synk): pad the group axis to a multiple of 8 instead of full-array fallback.
    return total


def _pick_group_tile(bg, n, rows_target=1024):
    # Target ~1024 rows per grid step (VMEM-safe on v7x's 64 MiB; v5e/v6e could take
    # 2048), keep >=2 grid steps for megacore, group tile a multiple of 8 for dense
    # sublane blocks.
    target = max(1, rows_target // max(n, 1))
    if bg // target < 2 and bg >= 2:
        target = max(1, bg // 2)
    return _pick_mult8_divisor(bg, target)


# ----------------------------------------------------------------------------
# Fused kNN kernel:  squared distances + k-smallest selection, emitting only indices.
#   dist = -2 * c @ x^T + |c|^2 + |x|^2   (coords zero-padded 3 -> 8 on the host)
# The (gt, N) distance tile never leaves VMEM; output is (gt, k) int32 indices.
# ----------------------------------------------------------------------------
def _knn_kernel(c_ref, xt_ref, idx_ref, *, k, n_total):
    c = c_ref[0]                                                     # (gt, 8) f32
    xt = xt_ref[0]                                                   # (8, N)  f32
    cross = jnp.dot(c, xt, preferred_element_type=jnp.float32)       # (gt, N)
    c2 = jnp.sum(c * c, axis=-1, keepdims=True)                      # (gt, 1)
    x2 = jnp.sum(xt * xt, axis=0, keepdims=True)                     # (1, N)
    d = -2.0 * cross + c2 + x2                                       # (gt, N) squared dist

    # Iterative k-smallest (k = group_size, small & static).  Indices kept in f32
    # (exact for N < 2^24) so only float lane-reductions are needed.
    lane = jax.lax.broadcasted_iota(jnp.int32, d.shape, 1).astype(jnp.float32)
    cols = []
    for _ in range(k):
        m = jnp.min(d, axis=-1, keepdims=True)                       # row min
        idx = jnp.min(jnp.where(d <= m, lane, float(n_total)),       # first lane attaining it
                      axis=-1, keepdims=True)
        cols.append(idx.astype(jnp.int32))
        d = jnp.where(lane == idx, jnp.inf, d)                       # knock out, repeat
    idx_ref[0] = jnp.concatenate(cols, axis=-1)                      # (gt, k) int32


def knn_indices(center, xyz, k):
    B, G, _ = center.shape
    N = xyz.shape[1]
    gt = _pick_mult8_divisor(G, 128)
    c = jnp.pad(center, ((0, 0), (0, 0), (0, 5)))                             # (B, G, 8)
    xt = jnp.pad(jnp.transpose(xyz, (0, 2, 1)), ((0, 0), (0, 5), (0, 0)))     # (B, 8, N)
    return pl.pallas_call(
        functools.partial(_knn_kernel, k=k, n_total=N),
        out_shape=jax.ShapeDtypeStruct((B, G, k), jnp.int32),
        grid=(B, G // gt),
        in_specs=[pl.BlockSpec((1, gt, 8), lambda b, g: (b, g, 0)),
                  pl.BlockSpec((1, 8, N), lambda b, g: (b, 0, 0))],
        out_specs=pl.BlockSpec((1, gt, k), lambda b, g: (b, g, 0)),
        compiler_params=pltpu.CompilerParams(
            dimension_semantics=("parallel", "parallel"),
            vmem_limit_bytes=48 * 1024 * 1024),
    )(c, xt)


# ----------------------------------------------------------------------------
# Fused point-group Encoder kernel:
#   conv1->bn->relu->conv2 -> per-group max -> (split-w3 instead of concat)
#   conv3->bn->relu->conv4 -> per-group max -> encoder2trans  [+ pos_embed MLP]
# Processes GT groups per grid step (GT*n ~ 1024 rows per matmul).
# ----------------------------------------------------------------------------
def _encoder_kernel(feat_ref, ctr_ref,
                    w1, b1, s1, t1, w2, b2,
                    w3g, w3f, b3, s2, t2, w4, b4,
                    we, be, wp1, bp1, wp2, bp2,
                    out_ref, *, gt, n):
    x = feat_ref[...].astype(jnp.bfloat16)                                    # (gt*n, 6)
    h = jnp.dot(x, w1[...], preferred_element_type=jnp.float32) + b1[...]     # (gt*n, 128)
    h = jnp.maximum(h * s1[...] + t1[...], 0.0)                               # BN + ReLU (f32)
    f = jnp.dot(h.astype(jnp.bfloat16), w2[...],
                preferred_element_type=jnp.float32) + b2[...]                 # (gt*n, 256)

    c_mid = f.shape[-1]
    fg = jnp.max(f.reshape(gt, n, c_mid), axis=1)                             # (gt, 256) group max

    # cat([global, local]) @ w3  ==  global @ w3[:256]  +  local @ w3[256:]
    g_row = jnp.dot(fg.astype(jnp.bfloat16), w3g[...],
                    preferred_element_type=jnp.float32)                       # (gt, 512)
    loc = jnp.dot(f.astype(jnp.bfloat16), w3f[...],
                  preferred_element_type=jnp.float32)                         # (gt*n, 512)
    c3 = loc.shape[-1]
    # 3-D broadcast add: no materialized (gt*n, 512) f32 broadcast temporary.
    h2 = jnp.maximum((loc.reshape(gt, n, c3) + g_row[:, None, :] + b3[...])
                     * s2[...] + t2[...], 0.0)                                # (gt, n, 512)
    o = jnp.dot(h2.reshape(gt * n, c3).astype(jnp.bfloat16), w4[...],
                preferred_element_type=jnp.float32) + b4[...]                 # (gt*n, Cenc)
    og = jnp.max(o.reshape(gt, n, o.shape[-1]), axis=1)                       # (gt, Cenc)

    # fused encoder2trans
    tok = jnp.dot(og.astype(jnp.bfloat16), we[...],
                  preferred_element_type=jnp.float32) + be[...]               # (gt, D)

    # fused pos_embed MLP on zero-padded centers: Linear(3,128) -> GELU -> Linear(128,D)
    c = ctr_ref[...].astype(jnp.bfloat16)                                     # (gt, 8)
    p1 = jnp.dot(c, wp1[...], preferred_element_type=jnp.float32) + bp1[...]
    # TODO(synk): torch nn.GELU default is the exact erf form; tanh approx for robust lowering.
    p1 = jax.nn.gelu(p1, approximate=True)
    pos = jnp.dot(p1.astype(jnp.bfloat16), wp2[...],
                  preferred_element_type=jnp.float32) + bp2[...]              # (gt, D)

    out_ref[...] = tok + pos


def encoder_pallas(feat_flat, center_pad, params, bg, n):
    enc = params["encoder"]
    d_out = params["enc2trans_w"].shape[1]
    gt = _pick_group_tile(bg, n)
    weights = [enc["w1"], enc["b1"], enc["s1"], enc["t1"], enc["w2"], enc["b2"],
               enc["w3g"], enc["w3f"], enc["b3"], enc["s2"], enc["t2"],
               enc["w4"], enc["b4"],
               params["enc2trans_w"], params["enc2trans_b"],
               params["pos_w1"], params["pos_b1"], params["pos_w2"], params["pos_b2"]]
    in_specs = [pl.BlockSpec((gt * n, 6), lambda i: (i, 0)),
                pl.BlockSpec((gt, 8), lambda i: (i, 0))]
    in_specs += [pl.BlockSpec(w.shape, lambda i: (0, 0)) for w in weights]
    return pl.pallas_call(
        functools.partial(_encoder_kernel, gt=gt, n=n),
        out_shape=jax.ShapeDtypeStruct((bg, d_out), jnp.float32),
        grid=(bg // gt,),
        in_specs=in_specs,
        out_specs=pl.BlockSpec((gt, d_out), lambda i: (i, 0)),
        compiler_params=pltpu.CompilerParams(
            dimension_semantics=("parallel",),
            vmem_limit_bytes=48 * 1024 * 1024),
    )(feat_flat, center_pad, *weights)


# ----------------------------------------------------------------------------
# Fused transformer kernel: ALL depth layers + final LayerNorm + trans2embed in one
# pallas_call.  grid = (split, depth, batch/split); x lives in a VMEM scratch across
# layer steps; per-layer weights are fetched once per layer per core.
# ----------------------------------------------------------------------------
def _transformer_kernel(x_ref, g1, be1, wqkv, bqkv, wo, bo, g2, be2,
                        w1, b1, w2, b2,
                        ng, nb, wt2e, bt2e, out_ref, x_sc, *, num_heads):
    l = pl.program_id(1)
    b = pl.program_id(2)

    @pl.when(l == 0)
    def _():
        x_sc[b] = x_ref[0]

    x = x_sc[b]
    T, D = x.shape
    dh = D // num_heads

    def ln(v, g, bb):
        mu = jnp.mean(v, axis=-1, keepdims=True)
        var = jnp.mean((v - mu) ** 2, axis=-1, keepdims=True)
        return (v - mu) * jax.lax.rsqrt(var + 1e-5) * g + bb

    # --- attention: fused qkv matmul, per-head (T, dh) contractions ---
    xn = ln(x, g1[0], be1[0]).astype(jnp.bfloat16)
    qkv = jnp.dot(xn, wqkv[0], preferred_element_type=jnp.float32) + bqkv[0]   # (T, 3D)
    q = qkv[:, :D]
    k = qkv[:, D:2 * D]
    v = qkv[:, 2 * D:]

    scale = 1.0 / float(dh) ** 0.5
    outs = []
    # Static, short head loop over dh-wide lane slices (num_heads <= 16); each head's
    # QK^T contracts only dh (not D), and the transpose is folded into dot_general.
    for h in range(num_heads):
        sl = slice(h * dh, (h + 1) * dh)
        qh = q[:, sl].astype(jnp.bfloat16)
        kh = k[:, sl].astype(jnp.bfloat16)
        vh = v[:, sl].astype(jnp.bfloat16)
        logits = jax.lax.dot_general(qh, kh, (((1,), (1,)), ((), ())),
                                     preferred_element_type=jnp.float32) * scale
        p = jax.nn.softmax(logits, axis=-1).astype(jnp.bfloat16)      # f32 softmax, bf16 PV
        outs.append(jnp.dot(p, vh, preferred_element_type=jnp.float32))
    attn = jnp.concatenate(outs, axis=-1)                              # (T, D)
    attn = jnp.dot(attn.astype(jnp.bfloat16), wo[0],
                   preferred_element_type=jnp.float32) + bo[0]
    x = x + attn

    # --- MLP ---
    xn2 = ln(x, g2[0], be2[0]).astype(jnp.bfloat16)
    h1 = jnp.dot(xn2, w1[0], preferred_element_type=jnp.float32) + b1[0]
    h1 = jax.nn.gelu(h1, approximate=True).astype(jnp.bfloat16)
    h2 = jnp.dot(h1, w2[0], preferred_element_type=jnp.float32) + b2[0]
    x = x + h2
    x_sc[b] = x

    # Fused head on the last layer: visual.norm on the CLS token + trans2embed.
    # (visual.fc_norm treated as Identity, matching the frozen eval config.)
    @pl.when(l == pl.num_programs(1) - 1)
    def _():
        cls = x[0:1, :]
        mu = jnp.mean(cls, axis=-1, keepdims=True)
        var = jnp.mean((cls - mu) ** 2, axis=-1, keepdims=True)
        cn = (cls - mu) * jax.lax.rsqrt(var + 1e-5) * ng[...] + nb[...]
        out_ref[0] = jnp.dot(cn.astype(jnp.bfloat16), wt2e[...],
                             preferred_element_type=jnp.float32) + bt2e[...]


def transformer_pallas(x, params, num_heads):
    B, T, D = x.shape
    blk = params["blk"]
    L = blk["wqkv"].shape[0]
    E = params["trans2embed_w"].shape[1]

    # Leading size-2 "parallel" split keeps both v7x TensorCores busy for even B while
    # each core streams per-layer weights only once per layer (never worse than old B*L).
    ns = 2 if (B >= 2 and B % 2 == 0) else 1
    bh = B // ns

    names = ("g1", "be1", "wqkv", "bqkv", "wo", "bo",
             "g2", "be2", "w1", "b1", "w2", "b2")
    layer_args = [blk[nm] for nm in names]
    head_args = [params["norm_g"], params["norm_b"],
                 params["trans2embed_w"], params["trans2embed_b"]]

    def x_map(s, l, b):
        # x is only read at layer 0; afterwards pin the block index so activations are
        # not re-streamed from HBM every layer.
        return (jnp.where(l == 0, s * bh + b, 0), 0, 0)

    in_specs = [pl.BlockSpec((1, T, D), x_map)]
    in_specs += [pl.BlockSpec((1,) + a.shape[1:], lambda s, l, b: (l, 0, 0))
                 for a in layer_args]
    in_specs += [pl.BlockSpec(a.shape, lambda s, l, b: (0, 0)) for a in head_args]

    return pl.pallas_call(
        functools.partial(_transformer_kernel, num_heads=num_heads),
        out_shape=jax.ShapeDtypeStruct((B, 1, E), jnp.float32),
        grid=(ns, L, bh),
        in_specs=in_specs,
        out_specs=pl.BlockSpec((1, 1, E), lambda s, l, b: (s * bh + b, 0, 0)),
        scratch_shapes=[pltpu.VMEM((bh, T, D), jnp.float32)],
        compiler_params=pltpu.CompilerParams(
            dimension_semantics=("parallel", "arbitrary", "arbitrary"),
            vmem_limit_bytes=56 * 1024 * 1024),
    )(x, *layer_args, *head_args)


# ----------------------------------------------------------------------------
# Glue: furthest point sampling, kNN gather (plain JAX index selection)
# ----------------------------------------------------------------------------
def furthest_point_sample(xyz, npoint):
    # TODO(synk): reference FPS often starts from a random index; deterministic index 0 here.
    B, N, _ = xyz.shape

    def body(i, state):
        idxs, dist, farthest = state
        idxs = idxs.at[:, i].set(farthest)
        centroid = jnp.take_along_axis(xyz, farthest[:, None, None], axis=1)  # (B,1,3)
        d = jnp.sum((xyz - centroid) ** 2, axis=-1)
        dist = jnp.minimum(dist, d)
        farthest = jnp.argmax(dist, axis=-1).astype(jnp.int32)
        return idxs, dist, farthest

    init = (jnp.zeros((B, npoint), jnp.int32),
            jnp.full((B, N), 1e10, jnp.float32),
            jnp.zeros((B,), jnp.int32))
    idxs, _, _ = jax.lax.fori_loop(0, npoint, body, init)
    return idxs


def group_divider(xyz, color, num_group, group_size):
    fps_idx = furthest_point_sample(xyz, num_group)                      # (B, G)
    center = jnp.take_along_axis(xyz, fps_idx[..., None], axis=1)        # (B, G, 3)
    idx = knn_indices(center, xyz, group_size)                           # (B, G, k) Pallas
    gather = jax.vmap(lambda pts_b, idx_b: pts_b[idx_b])
    nbr = gather(xyz, idx)                                               # (B, G, k, 3)
    nbr_col = gather(color, idx)                                         # (B, G, k, 3)
    nbr_centered = nbr - center[:, :, None, :]
    features = jnp.concatenate([nbr_centered, nbr_col], axis=-1)         # (B, G, k, 6)
    return center, features


# ----------------------------------------------------------------------------
# Deterministic parameter initialization (synthetic; shapes follow __init__).
# Matmul weights are stored bf16; biases / BN / LN params stay f32.
# ----------------------------------------------------------------------------
def init_params(key, trans_dim, encoder_dim, embed_dim, depth, num_heads, mlp_ratio):
    keys = iter(jax.random.split(key, 256))
    bf16 = jnp.bfloat16

    def w(shape, scale=0.02):
        return (scale * jax.random.normal(next(keys), shape)).astype(jnp.float32)

    def bn_folded(c):
        gamma = 1.0 + 0.1 * jax.random.normal(next(keys), (c,))
        beta = 0.1 * jax.random.normal(next(keys), (c,))
        mean = 0.05 * jax.random.normal(next(keys), (c,))
        var = jnp.abs(1.0 + 0.1 * jax.random.normal(next(keys), (c,)))
        scale = gamma * jax.lax.rsqrt(var + 1e-5)
        shift = beta - mean * scale
        return (scale.reshape(1, c).astype(jnp.float32),
                shift.reshape(1, c).astype(jnp.float32))

    p = {}
    enc = {}
    enc["w1"], enc["b1"] = w((6, 128)).astype(bf16), w((1, 128))
    enc["s1"], enc["t1"] = bn_folded(128)
    enc["w2"], enc["b2"] = w((128, 256)).astype(bf16), w((1, 256))
    w3 = w((512, 512))
    enc["w3g"], enc["w3f"] = w3[:256].astype(bf16), w3[256:].astype(bf16)
    enc["b3"] = w((1, 512))
    enc["s2"], enc["t2"] = bn_folded(512)
    enc["w4"], enc["b4"] = w((512, encoder_dim)).astype(bf16), w((1, encoder_dim))
    p["encoder"] = enc

    p["enc2trans_w"] = w((encoder_dim, trans_dim)).astype(bf16)
    p["enc2trans_b"] = w((1, trans_dim))
    p["pos_w1"] = jnp.pad(w((3, 128)), ((0, 5), (0, 0))).astype(bf16)   # contraction padded 3 -> 8
    p["pos_b1"] = w((1, 128))
    p["pos_w2"] = w((128, trans_dim)).astype(bf16)
    p["pos_b2"] = w((1, trans_dim))
    p["cls_token"] = jnp.zeros((1, 1, trans_dim), jnp.float32)
    p["cls_pos"] = jax.random.normal(next(keys), (1, 1, trans_dim)).astype(jnp.float32)

    D = trans_dim
    H = int(D * mlp_ratio)
    L = depth
    p["blk"] = {
        "g1": jnp.ones((L, 1, D), jnp.float32), "be1": jnp.zeros((L, 1, D), jnp.float32),
        "wqkv": w((L, D, 3 * D)).astype(bf16), "bqkv": w((L, 1, 3 * D)),
        "wo": w((L, D, D)).astype(bf16), "bo": w((L, 1, D)),
        "g2": jnp.ones((L, 1, D), jnp.float32), "be2": jnp.zeros((L, 1, D), jnp.float32),
        "w1": w((L, D, H)).astype(bf16), "b1": w((L, 1, H)),
        "w2": w((L, H, D)).astype(bf16), "b2": w((L, 1, D)),
    }
    p["norm_g"] = jnp.ones((1, D), jnp.float32)
    p["norm_b"] = jnp.zeros((1, D), jnp.float32)
    p["trans2embed_w"] = w((D, embed_dim)).astype(bf16)
    p["trans2embed_b"] = w((1, embed_dim))
    return p


# ----------------------------------------------------------------------------
# Full forward pass (PointcloudEncoder.forward)
# ----------------------------------------------------------------------------
def pointcloud_encoder_forward(params, pts, colors, *, num_group, group_size, num_heads):
    B = pts.shape[0]
    center, features = group_divider(pts, colors, num_group, group_size)
    BG = B * num_group
    n = group_size

    feat_flat = features.reshape(BG * n, 6)
    center_pad = jnp.pad(center.reshape(BG, 3), ((0, 0), (0, 5)))        # (BG, 8)

    # Fused: Encoder -> encoder2trans (+ pos_embed on centers) -> token + pos  (BG, D)
    tokens = encoder_pallas(feat_flat, center_pad, params, BG, n)
    D = tokens.shape[-1]
    tokens = tokens.reshape(B, num_group, D)

    cls_row = jnp.broadcast_to(params["cls_token"] + params["cls_pos"], (B, 1, D))
    x = jnp.concatenate([cls_row, tokens], axis=1)                       # (B, G+1, D)

    # patch_dropout (prob=0 under freeze_weights) and visual.pos_drop (eval) are identity.
    # Fused: all transformer blocks + visual.norm(CLS) + trans2embed.
    out = transformer_pallas(x, params, num_heads)                       # (B, 1, embed_dim)
    return out[:, 0, :]


if __name__ == "__main__":
    B, N = 2, 64
    NUM_GROUP, GROUP_SIZE = 8, 16
    TRANS_DIM, ENCODER_DIM, EMBED_DIM = 64, 512, 1024
    DEPTH, NUM_HEADS, MLP_RATIO = 2, 4, 4.0

    key = jax.random.PRNGKey(0)
    kp, kx, kc = jax.random.split(key, 3)
    pts = jax.random.normal(kx, (B, N, 3), jnp.float32)
    colors = jax.random.uniform(kc, (B, N, 3), jnp.float32)
    params = init_params(kp, TRANS_DIM, ENCODER_DIM, EMBED_DIM, DEPTH, NUM_HEADS, MLP_RATIO)

    fwd = jax.jit(functools.partial(pointcloud_encoder_forward,
                                    num_group=NUM_GROUP,
                                    group_size=GROUP_SIZE,
                                    num_heads=NUM_HEADS))
    out = fwd(params, pts, colors)
    jax.block_until_ready(out)
    assert out.shape == (B, EMBED_DIM) and out.dtype == jnp.float32
    print("KERNEL_OK")
</pallas_src>

<mosaic_0001>
module attributes {stable_mosaic.version = 11 : i64} {
  func.func @_knn_kernel(%arg0: i32, %arg1: i32, %arg2: memref<1x8x8xf32, #tpu.memory_space<vmem>>, %arg3: memref<1x8x64xf32, #tpu.memory_space<vmem>>, %arg4: memref<1x8x16xi32, #tpu.memory_space<vmem>>) attributes {dimension_semantics = [#tpu.dimension_semantics<parallel>, #tpu.dimension_semantics<parallel>], iteration_bounds = array<i64: 2, 1>, scalar_prefetch = 0 : i64, scratch_operands = 0 : i64, tpu.core_type = #tpu.core_type<tc>, window_params = [{transform_indices = @transform_0, window_bounds = array<i64: 1, 8, 8>}, {transform_indices = @transform_1, window_bounds = array<i64: 1, 8, 64>}, {transform_indices = @transform_2, window_bounds = array<i64: 1, 8, 16>}]} {
    %c0 = arith.constant 0 : index
    %c0_0 = arith.constant 0 : index
    %c0_1 = arith.constant 0 : index
    %0 = vector.load %arg2[%c0, %c0_0, %c0_1] : memref<1x8x8xf32, #tpu.memory_space<vmem>>, vector<1x8x8xf32>
    %1 = vector.shape_cast %0 : vector<1x8x8xf32> to vector<8x8xf32>
    %c0_2 = arith.constant 0 : index
    %c0_3 = arith.constant 0 : index
    %c0_4 = arith.constant 0 : index
    %2 = vector.load %arg3[%c0_2, %c0_3, %c0_4] : memref<1x8x64xf32, #tpu.memory_space<vmem>>, vector<1x8x64xf32>
    %3 = vector.shape_cast %2 : vector<1x8x64xf32> to vector<8x64xf32>
    %cst = arith.constant dense<0.000000e+00> : vector<8x64xf32>
    %4 = tpu.matmul %1, %3, %cst {dimension_numbers = #tpu.dot_dimension_numbers<[1], [0], [0], [1], [0, 0, 1, 1], [], []>} : vector<8x8xf32>, vector<8x64xf32>, vector<8x64xf32> -> vector<8x64xf32>
    %5 = arith.mulf %1, %1 : vector<8x8xf32>
    %cst_5 = arith.constant dense<0.000000e+00> : vector<8xf32>
    %6 = vector.multi_reduction <add>, %5, %cst_5 [1] : vector<8x8xf32> to vector<8xf32>
    %7 = vector.shape_cast %6 : vector<8xf32> to vector<8x1xf32>
    %8 = arith.mulf %3, %3 : vector<8x64xf32>
    %cst_6 = arith.constant dense<0.000000e+00> : vector<64xf32>
    %9 = vector.multi_reduction <add>, %8, %cst_6 [0] : vector<8x64xf32> to vector<64xf32>
    %10 = vector.shape_cast %9 : vector<64xf32> to vector<1x64xf32>
    %cst_7 = arith.constant -2.000000e+00 : f32
    %11 = vector.broadcast %cst_7 : f32 to vector<8x64xf32>
    %12 = arith.mulf %11, %4 : vector<8x64xf32>
    %13 = vector.broadcast %7 : vector<8x1xf32> to vector<8x64xf32>
    %14 = arith.addf %12, %13 : vector<8x64xf32>
    %15 = vector.broadcast %10 : vector<1x64xf32> to vector<8x64xf32>
    %16 = arith.addf %14, %15 : vector<8x64xf32>
    %17 = tpu.iota {dimensions = array<i32: 1>} : vector<8x64xi32>
    %18 = arith.sitofp %17 : vector<8x64xi32> to vector<8x64xf32>
    %cst_8 = arith.constant dense<0x7F800000> : vector<8xf32>
    %19 = vector.multi_reduction <minimumf>, %16, %cst_8 [1] : vector<8x64xf32> to vector<8xf32>
    %20 = vector.shape_cast %19 : vector<8xf32> to vector<8x1xf32>
    %21 = vector.broadcast %20 : vector<8x1xf32> to vector<8x64xf32>
    %22 = arith.cmpf ole, %16, %21 : vector<8x64xf32>
    %cst_9 = arith.constant 6.400000e+01 : f32
    %23 = vector.broadcast %cst_9 : f32 to vector<8x64xf32>
    %24 = arith.select %22, %18, %23 : vector<8x64xi1>, vector<8x64xf32>
    %cst_10 = arith.constant dense<0x7F800000> : vector<8xf32>
    %25 = vector.multi_reduction <minimumf>, %24, %cst_10 [1] : vector<8x64xf32> to vector<8xf32>
    %26 = vector.shape_cast %25 : vector<8xf32> to vector<8x1xf32>
    %27 = arith.fptosi %26 : vector<8x1xf32> to vector<8x1xi32>
    %28 = vector.broadcast %26 : vector<8x1xf32> to vector<8x64xf32>
    %29 = arith.cmpf oeq, %18, %28 : vector<8x64xf32>
    %cst_11 = arith.constant 0x7F800000 : f32
    %30 = vector.broadcast %cst_11 : f32 to vector<8x64xf32>
    %31 = arith.select %29, %30, %16 : vector<8x64xi1>, vector<8x64xf32>
    %cst_12 = arith.constant dense<0x7F800000> : vector<8xf32>
    %32 = vector.multi_reduction <minimumf>, %31, %cst_12 [1] : vector<8x64xf32> to vector<8xf32>
    %33 = vector.shape_cast %32 : vector<8xf32> to vector<8x1xf32>
    %34 = vector.broadcast %33 : vector<8x1xf32> to vector<8x64xf32>
    %35 = arith.cmpf ole, %31, %34 : vector<8x64xf32>
    %cst_13 = arith.constant 6.400000e+01 : f32
    %36 = vector.broadcast %cst_13 : f32 to vector<8x64xf32>
    %37 = arith.select %35, %18, %36 : vector<8x64xi1>, vector<8x64xf32>
    %cst_14 = arith.constant dense<0x7F800000> : vector<8xf32>
    %38 = vector.multi_reduction <minimumf>, %37, %cst_14 [1] : vector<8x64xf32> to vector<8xf32>
    %39 = vector.shape_cast %38 : vector<8xf32> to vector<8x1xf32>
    %40 = arith.fptosi %39 : vector<8x1xf32> to vector<8x1xi32>
    %41 = vector.broadcast %39 : vector<8x1xf32> to vector<8x64xf32>
    %42 = arith.cmpf oeq, %18, %41 : vector<8x64xf32>
    %cst_15 = arith.constant 0x7F800000 : f32
    %43 = vector.broadcast %cst_15 : f32 to vector<8x64xf32>
    %44 = arith.select %42, %43, %31 : vector<8x64xi1>, vector<8x64xf32>
    %cst_16 = arith.constant dense<0x7F800000> : vector<8xf32>
    %45 = vector.multi_reduction <minimumf>, %44, %cst_16 [1] : vector<8x64xf32> to vector<8xf32>
    %46 = vector.shape_cast %45 : vector<8xf32> to vector<8x1xf32>
    %47 = vector.broadcast %46 : vector<8x1xf32> to vector<8x64xf32>
    %48 = arith.cmpf ole, %44, %47 : vector<8x64xf32>
    %cst_17 = arith.constant 6.400000e+01 : f32
    %49 = vector.broadcast %cst_17 : f32 to vector<8x64xf32>
    %50 = arith.select %48, %18, %49 : vector<8x64xi1>, vector<8x64xf32>
    %cst_18 = arith.constant dense<0x7F800000> : vector<8xf32>
    %51 = vector.multi_reduction <minimumf>, %50, %cst_18 [1] : vector<8x64xf32> to vector<8xf32>
    %52 = vector.shape_cast %51 : vector<8xf32> to vector<8x1xf32>
    %53 = arith.fptosi %52 : vector<8x1xf32> to vector<8x1xi32>
    %54 = vector.broadcast %52 : vector<8x1xf32> to vector<8x64xf32>
    %55 = arith.cmpf oeq, %18, %54 : vector<8x64xf32>
    %cst_19 = arith.constant 0x7F800000 : f32
    %56 = vector.broadcast %cst_19 : f32 to vector<8x64xf32>
    %57 = arith.select %55, %56, %44 : vector<8x64xi1>, vector<8x64xf32>
    %cst_20 = arith.constant dense<0x7F800000> : vector<8xf32>
    %58 = vector.multi_reduction <minimumf>, %57, %cst_20 [1] : vector<8x64xf32> to vector<8xf32>
    %59 = vector.shape_cast %58 : vector<8xf32> to vector<8x1xf32>
    %60 = vector.broadcast %59 : vector<8x1xf32> to vector<8x64xf32>
    %61 = arith.cmpf ole, %57, %60 : vector<8x64xf32>
    %cst_21 = arith.constant 6.400000e+01 : f32
    %62 = vector.broadcast %cst_21 : f32 to vector<8x64xf32>
    %63 = arith.select %61, %18, %62 : vector<8x64xi1>, vector<8x64xf32>
    %cst_22 = arith.constant dense<0x7F800000> : vector<8xf32>
    %64 = vector.multi_reduction <minimumf>, %63, %cst_22 [1] : vector<8x64xf32> to vector<8xf32>
    %65 = vector.shape_cast %64 : vector<8xf32> to vector<8x1xf32>
    %66 = arith.fptosi %65 : vector<8x1xf32> to vector<8x1xi32>
    %67 = vector.broadcast %65 : vector<8x1xf32> to vector<8x64xf32>
    %68 = arith.cmpf oeq, %18, %67 : vector<8x64xf32>
    %cst_23 = arith.constant 0x7F800000 : f32
    %69 = vector.broadcast %cst_23 : f32 to vector<8x64xf32>
    %70 = arith.select %68, %69, %57 : vector<8x64xi1>, vector<8x64xf32>
    %cst_24 = arith.constant dense<0x7F800000> : vector<8xf32>
    %71 = vector.multi_reduction <minimumf>, %70, %cst_24 [1] : vector<8x64xf32> to vector<8xf32>
    %72 = vector.shape_cast %71 : vector<8xf32> to vector<8x1xf32>
    %73 = vector.broadcast %72 : vector<8x1xf32> to vector<8x64xf32>
    %74 = arith.cmpf ole, %70, %73 : vector<8x64xf32>
    %cst_25 = arith.constant 6.400000e+01 : f32
    %75 = vector.broadcast %cst_25 : f32 to vector<8x64xf32>
    %76 = arith.select %74, %18, %75 : vector<8x64xi1>, vector<8x64xf32>
    %cst_26 = arith.constant dense<0x7F800000> : vector<8xf32>
    %77 = vector.multi_reduction <minimumf>, %76, %cst_26 [1] : vector<8x64xf32> to vector<8xf32>
    %78 = vector.shape_cast %77 : vector<8xf32> to vector<8x1xf32>
    %79 = arith.fptosi %78 : vector<8x1xf32> to vector<8x1xi32>
    %80 = vector.broadcast %78 : vector<8x1xf32> to vector<8x64xf32>
    %81 = arith.cmpf oeq, %18, %80 : vector<8x64xf32>
    %cst_27 = arith.constant 0x7F800000 : f32
    %82 = vector.broadcast %cst_27 : f32 to vector<8x64xf32>
    %83 = arith.select %81, %82, %70 : vector<8x64xi1>, vector<8x64xf32>
    %cst_28 = arith.constant dense<0x7F800000> : vector<8xf32>
    %84 = vector.multi_reduction <minimumf>, %83, %cst_28 [1] : vector<8x64xf32> to vector<8xf32>
    %85 = vector.shape_cast %84 : vector<8xf32> to vector<8x1xf32>
    %86 = vector.broadcast %85 : vector<8x1xf32> to vector<8x64xf32>
    %87 = arith.cmpf ole, %83, %86 : vector<8x64xf32>
    %cst_29 = arith.constant 6.400000e+01 : f32
    %88 = vector.broadcast %cst_29 : f32 to vector<8x64xf32>
    %89 = arith.select %87, %18, %88 : vector<8x64xi1>, vector<8x64xf32>
    %cst_30 = arith.constant dense<0x7F800000> : vector<8xf32>
    %90 = vector.multi_reduction <minimumf>, %89, %cst_30 [1] : vector<8x64xf32> to vector<8xf32>
    %91 = vector.shape_cast %90 : vector<8xf32> to vector<8x1xf32>
    %92 = arith.fptosi %91 : vector<8x1xf32> to vector<8x1xi32>
    %93 = vector.broadcast %91 : vector<8x1xf32> to vector<8x64xf32>
    %94 = arith.cmpf oeq, %18, %93 : vector<8x64xf32>
    %cst_31 = arith.constant 0x7F800000 : f32
    %95 = vector.broadcast %cst_31 : f32 to vector<8x64xf32>
    %96 = arith.select %94, %95, %83 : vector<8x64xi1>, vector<8x64xf32>
    %cst_32 = arith.constant dense<0x7F800000> : vector<8xf32>
    %97 = vector.multi_reduction <minimumf>, %96, %cst_32 [1] : vector<8x64xf32> to vector<8xf32>
    %98 = vector.shape_cast %97 : vector<8xf32> to vector<8x1xf32>
    %99 = vector.broadcast %98 : vector<8x1xf32> to vector<8x64xf32>
    %100 = arith.cmpf ole, %96, %99 : vector<8x64xf32>
    %cst_33 = arith.constant 6.400000e+01 : f32
    %101 = vector.broadcast %cst_33 : f32 to vector<8x64xf32>
    %102 = arith.select %100, %18, %101 : vector<8x64xi1>, vector<8x64xf32>
    %cst_34 = arith.constant dense<0x7F800000> : vector<8xf32>
    %103 = vector.multi_reduction <minimumf>, %102, %cst_34 [1] : vector<8x64xf32> to vector<8xf32>
    %104 = vector.shape_cast %103 : vector<8xf32> to vector<8x1xf32>
    %105 = arith.fptosi %104 : vector<8x1xf32> to vector<8x1xi32>
    %106 = vector.broadcast %104 : vector<8x1xf32> to vector<8x64xf32>
    %107 = arith.cmpf oeq, %18, %106 : vector<8x64xf32>
    %cst_35 = arith.constant 0x7F800000 : f32
    %108 = vector.broadcast %cst_35 : f32 to vector<8x64xf32>
    %109 = arith.select %107, %108, %96 : vector<8x64xi1>, vector<8x64xf32>
    %cst_36 = arith.constant dense<0x7F800000> : vector<8xf32>
    %110 = vector.multi_reduction <minimumf>, %109, %cst_36 [1] : vector<8x64xf32> to vector<8xf32>
    %111 = vector.shape_cast %110 : vector<8xf32> to vector<8x1xf32>
    %112 = vector.broadcast %111 : vector<8x1xf32> to vector<8x64xf32>
    %113 = arith.cmpf ole, %109, %112 : vector<8x64xf32>
    %cst_37 = arith.constant 6.400000e+01 : f32
    %114 = vector.broadcast %cst_37 : f32 to vector<8x64xf32>
    %115 = arith.select %113, %18, %114 : vector<8x64xi1>, vector<8x64xf32>
    %cst_38 = arith.constant dense<0x7F800000> : vector<8xf32>
    %116 = vector.multi_reduction <minimumf>, %115, %cst_38 [1] : vector<8x64xf32> to vector<8xf32>
    %117 = vector.shape_cast %116 : vector<8xf32> to vector<8x1xf32>
    %118 = arith.fptosi %117 : vector<8x1xf32> to vector<8x1xi32>
    %119 = vector.broadcast %117 : vector<8x1xf32> to vector<8x64xf32>
    %120 = arith.cmpf oeq, %18, %119 : vector<8x64xf32>
    %cst_39 = arith.constant 0x7F800000 : f32
    %121 = vector.broadcast %cst_39 : f32 to vector<8x64xf32>
    %122 = arith.select %120, %121, %109 : vector<8x64xi1>, vector<8x64xf32>
    %cst_40 = arith.constant dense<0x7F800000> : vector<8xf32>
    %123 = vector.multi_reduction <minimumf>, %122, %cst_40 [1] : vector<8x64xf32> to vector<8xf32>
    %124 = vector.shape_cast %123 : vector<8xf32> to vector<8x1xf32>
    %125 = vector.broadcast %124 : vector<8x1xf32> to vector<8x64xf32>
    %126 = arith.cmpf ole, %122, %125 : vector<8x64xf32>
    %cst_41 = arith.constant 6.400000e+01 : f32
    %127 = vector.broadcast %cst_41 : f32 to vector<8x64xf32>
    %128 = arith.select %126, %18, %127 : vector<8x64xi1>, vector<8x64xf32>
    %cst_42 = arith.constant dense<0x7F800000> : vector<8xf32>
    %129 = vector.multi_reduction <minimumf>, %128, %cst_42 [1] : vector<8x64xf32> to vector<8xf32>
    %130 = vector.shape_cast %129 : vector<8xf32> to vector<8x1xf32>
    %131 = arith.fptosi %130 : vector<8x1xf32> to vector<8x1xi32>
    %132 = vector.broadcast %130 : vector<8x1xf32> to vector<8x64xf32>
    %133 = arith.cmpf oeq, %18, %132 : vector<8x64xf32>
    %cst_43 = arith.constant 0x7F800000 : f32
    %134 = vector.broadcast %cst_43 : f32 to vector<8x64xf32>
    %135 = arith.select %133, %134, %122 : vector<8x64xi1>, vector<8x64xf32>
    %cst_44 = arith.constant dense<0x7F800000> : vector<8xf32>
    %136 = vector.multi_reduction <minimumf>, %135, %cst_44 [1] : vector<8x64xf32> to vector<8xf32>
    %137 = vector.shape_cast %136 : vector<8xf32> to vector<8x1xf32>
    %138 = vector.broadcast %137 : vector<8x1xf32> to vector<8x64xf32>
    %139 = arith.cmpf ole, %135, %138 : vector<8x64xf32>
    %cst_45 = arith.constant 6.400000e+01 : f32
    %140 = vector.broadcast %cst_45 : f32 to vector<8x64xf32>
    %141 = arith.select %139, %18, %140 : vector<8x64xi1>, vector<8x64xf32>
    %cst_46 = arith.constant dense<0x7F800000> : vector<8xf32>
    %142 = vector.multi_reduction <minimumf>, %141, %cst_46 [1] : vector<8x64xf32> to vector<8xf32>
    %143 = vector.shape_cast %142 : vector<8xf32> to vector<8x1xf32>
    %144 = arith.fptosi %143 : vector<8x1xf32> to vector<8x1xi32>
    %145 = vector.broadcast %143 : vector<8x1xf32> to vector<8x64xf32>
    %146 = arith.cmpf oeq, %18, %145 : vector<8x64xf32>
    %cst_47 = arith.constant 0x7F800000 : f32
    %147 = vector.broadcast %cst_47 : f32 to vector<8x64xf32>
    %148 = arith.select %146, %147, %135 : vector<8x64xi1>, vector<8x64xf32>
    %cst_48 = arith.constant dense<0x7F800000> : vector<8xf32>
    %149 = vector.multi_reduction <minimumf>, %148, %cst_48 [1] : vector<8x64xf32> to vector<8xf32>
    %150 = vector.shape_cast %149 : vector<8xf32> to vector<8x1xf32>
    %151 = vector.broadcast %150 : vector<8x1xf32> to vector<8x64xf32>
    %152 = arith.cmpf ole, %148, %151 : vector<8x64xf32>
    %cst_49 = arith.constant 6.400000e+01 : f32
    %153 = vector.broadcast %cst_49 : f32 to vector<8x64xf32>
    %154 = arith.select %152, %18, %153 : vector<8x64xi1>, vector<8x64xf32>
    %cst_50 = arith.constant dense<0x7F800000> : vector<8xf32>
    %155 = vector.multi_reduction <minimumf>, %154, %cst_50 [1] : vector<8x64xf32> to vector<8xf32>
    %156 = vector.shape_cast %155 : vector<8xf32> to vector<8x1xf32>
    %157 = arith.fptosi %156 : vector<8x1xf32> to vector<8x1xi32>
    %158 = vector.broadcast %156 : vector<8x1xf32> to vector<8x64xf32>
    %159 = arith.cmpf oeq, %18, %158 : vector<8x64xf32>
    %cst_51 = arith.constant 0x7F800000 : f32
    %160 = vector.broadcast %cst_51 : f32 to vector<8x64xf32>
    %161 = arith.select %159, %160, %148 : vector<8x64xi1>, vector<8x64xf32>
    %cst_52 = arith.constant dense<0x7F800000> : vector<8xf32>
    %162 = vector.multi_reduction <minimumf>, %161, %cst_52 [1] : vector<8x64xf32> to vector<8xf32>
    %163 = vector.shape_cast %162 : vector<8xf32> to vector<8x1xf32>
    %164 = vector.broadcast %163 : vector<8x1xf32> to vector<8x64xf32>
    %165 = arith.cmpf ole, %161, %164 : vector<8x64xf32>
    %cst_53 = arith.constant 6.400000e+01 : f32
    %166 = vector.broadcast %cst_53 : f32 to vector<8x64xf32>
    %167 = arith.select %165, %18, %166 : vector<8x64xi1>, vector<8x64xf32>
    %cst_54 = arith.constant dense<0x7F800000> : vector<8xf32>
    %168 = vector.multi_reduction <minimumf>, %167, %cst_54 [1] : vector<8x64xf32> to vector<8xf32>
    %169 = vector.shape_cast %168 : vector<8xf32> to vector<8x1xf32>
    %170 = arith.fptosi %169 : vector<8x1xf32> to vector<8x1xi32>
    %171 = vector.broadcast %169 : vector<8x1xf32> to vector<8x64xf32>
    %172 = arith.cmpf oeq, %18, %171 : vector<8x64xf32>
    %cst_55 = arith.constant 0x7F800000 : f32
    %173 = vector.broadcast %cst_55 : f32 to vector<8x64xf32>
    %174 = arith.select %172, %173, %161 : vector<8x64xi1>, vector<8x64xf32>
    %cst_56 = arith.constant dense<0x7F800000> : vector<8xf32>
    %175 = vector.multi_reduction <minimumf>, %174, %cst_56 [1] : vector<8x64xf32> to vector<8xf32>
    %176 = vector.shape_cast %175 : vector<8xf32> to vector<8x1xf32>
    %177 = vector.broadcast %176 : vector<8x1xf32> to vector<8x64xf32>
    %178 = arith.cmpf ole, %174, %177 : vector<8x64xf32>
    %cst_57 = arith.constant 6.400000e+01 : f32
    %179 = vector.broadcast %cst_57 : f32 to vector<8x64xf32>
    %180 = arith.select %178, %18, %179 : vector<8x64xi1>, vector<8x64xf32>
    %cst_58 = arith.constant dense<0x7F800000> : vector<8xf32>
    %181 = vector.multi_reduction <minimumf>, %180, %cst_58 [1] : vector<8x64xf32> to vector<8xf32>
    %182 = vector.shape_cast %181 : vector<8xf32> to vector<8x1xf32>
    %183 = arith.fptosi %182 : vector<8x1xf32> to vector<8x1xi32>
    %184 = vector.broadcast %182 : vector<8x1xf32> to vector<8x64xf32>
    %185 = arith.cmpf oeq, %18, %184 : vector<8x64xf32>
    %cst_59 = arith.constant 0x7F800000 : f32
    %186 = vector.broadcast %cst_59 : f32 to vector<8x64xf32>
    %187 = arith.select %185, %186, %174 : vector<8x64xi1>, vector<8x64xf32>
    %cst_60 = arith.constant dense<0x7F800000> : vector<8xf32>
    %188 = vector.multi_reduction <minimumf>, %187, %cst_60 [1] : vector<8x64xf32> to vector<8xf32>
    %189 = vector.shape_cast %188 : vector<8xf32> to vector<8x1xf32>
    %190 = vector.broadcast %189 : vector<8x1xf32> to vector<8x64xf32>
    %191 = arith.cmpf ole, %187, %190 : vector<8x64xf32>
    %cst_61 = arith.constant 6.400000e+01 : f32
    %192 = vector.broadcast %cst_61 : f32 to vector<8x64xf32>
    %193 = arith.select %191, %18, %192 : vector<8x64xi1>, vector<8x64xf32>
    %cst_62 = arith.constant dense<0x7F800000> : vector<8xf32>
    %194 = vector.multi_reduction <minimumf>, %193, %cst_62 [1] : vector<8x64xf32> to vector<8xf32>
    %195 = vector.shape_cast %194 : vector<8xf32> to vector<8x1xf32>
    %196 = arith.fptosi %195 : vector<8x1xf32> to vector<8x1xi32>
    %197 = vector.broadcast %195 : vector<8x1xf32> to vector<8x64xf32>
    %198 = arith.cmpf oeq, %18, %197 : vector<8x64xf32>
    %cst_63 = arith.constant 0x7F800000 : f32
    %199 = vector.broadcast %cst_63 : f32 to vector<8x64xf32>
    %200 = arith.select %198, %199, %187 : vector<8x64xi1>, vector<8x64xf32>
    %cst_64 = arith.constant dense<0x7F800000> : vector<8xf32>
    %201 = vector.multi_reduction <minimumf>, %200, %cst_64 [1] : vector<8x64xf32> to vector<8xf32>
    %202 = vector.shape_cast %201 : vector<8xf32> to vector<8x1xf32>
    %203 = vector.broadcast %202 : vector<8x1xf32> to vector<8x64xf32>
    %204 = arith.cmpf ole, %200, %203 : vector<8x64xf32>
    %cst_65 = arith.constant 6.400000e+01 : f32
    %205 = vector.broadcast %cst_65 : f32 to vector<8x64xf32>
    %206 = arith.select %204, %18, %205 : vector<8x64xi1>, vector<8x64xf32>
    %cst_66 = arith.constant dense<0x7F800000> : vector<8xf32>
    %207 = vector.multi_reduction <minimumf>, %206, %cst_66 [1] : vector<8x64xf32> to vector<8xf32>
    %208 = vector.shape_cast %207 : vector<8xf32> to vector<8x1xf32>
    %209 = arith.fptosi %208 : vector<8x1xf32> to vector<8x1xi32>
    %210 = vector.broadcast %208 : vector<8x1xf32> to vector<8x64xf32>
    %211 = arith.cmpf oeq, %18, %210 : vector<8x64xf32>
    %cst_67 = arith.constant 0x7F800000 : f32
    %212 = vector.broadcast %cst_67 : f32 to vector<8x64xf32>
    %213 = arith.select %211, %212, %200 : vector<8x64xi1>, vector<8x64xf32>
    %cst_68 = arith.constant dense<0x7F800000> : vector<8xf32>
    %214 = vector.multi_reduction <minimumf>, %213, %cst_68 [1] : vector<8x64xf32> to vector<8xf32>
    %215 = vector.shape_cast %214 : vector<8xf32> to vector<8x1xf32>
    %216 = vector.broadcast %215 : vector<8x1xf32> to vector<8x64xf32>
    %217 = arith.cmpf ole, %213, %216 : vector<8x64xf32>
    %cst_69 = arith.constant 6.400000e+01 : f32
    %218 = vector.broadcast %cst_69 : f32 to vector<8x64xf32>
    %219 = arith.select %217, %18, %218 : vector<8x64xi1>, vector<8x64xf32>
    %cst_70 = arith.constant dense<0x7F800000> : vector<8xf32>
    %220 = vector.multi_reduction <minimumf>, %219, %cst_70 [1] : vector<8x64xf32> to vector<8xf32>
    %221 = vector.shape_cast %220 : vector<8xf32> to vector<8x1xf32>
    %222 = arith.fptosi %221 : vector<8x1xf32> to vector<8x1xi32>
    %223 = tpu.concatenate %27, %40, %53, %66, %79, %92, %105, %118, %131, %144, %157, %170, %183, %196, %209, %222 in 1 : vector<8x1xi32>, vector<8x1xi32>, vector<8x1xi32>, vector<8x1xi32>, vector<8x1xi32>, vector<8x1xi32>, vector<8x1xi32>, vector<8x1xi32>, vector<8x1xi32>, vector<8x1xi32>, vector<8x1xi32>, vector<8x1xi32>, vector<8x1xi32>, vector<8x1xi32>, vector<8x1xi32>, vector<8x1xi32> -> vector<8x16xi32>
    %c0_71 = arith.constant 0 : index
    %c0_72 = arith.constant 0 : index
    %c0_73 = arith.constant 0 : index
    %224 = vector.load %arg4[%c0_71, %c0_72, %c0_73] : memref<1x8x16xi32, #tpu.memory_space<vmem>>, vector<1x8x16xi32>
    %225 = vector.shape_cast %224 : vector<1x8x16xi32> to vector<8x16xi32>
    %226 = vector.shape_cast %223 : vector<8x16xi32> to vector<1x8x16xi32>
    tpu.vector_store %arg4[%c0_71, %c0_72, %c0_73], %226 {strides = array<i32>} : memref<1x8x16xi32, #tpu.memory_space<vmem>>, vector<1x8x16xi32>,
    return
  }
  func.func @transform_0(%arg0: i32, %arg1: i32) -> (i32, i32, i32) {
    %c0_i32 = arith.constant 0 : i32
    %c0_i32_0 = arith.constant 0 : i32
    return %arg0, %arg1, %c0_i32 : i32, i32, i32
  }
  func.func @transform_1(%arg0: i32, %arg1: i32) -> (i32, i32, i32) {
    %c0_i32 = arith.constant 0 : i32
    %c0_i32_0 = arith.constant 0 : i32
    %c0_i32_1 = arith.constant 0 : i32
    return %arg0, %c0_i32, %c0_i32_0 : i32, i32, i32
  }
  func.func @transform_2(%arg0: i32, %arg1: i32) -> (i32, i32, i32) {
    %c0_i32 = arith.constant 0 : i32
    %c0_i32_0 = arith.constant 0 : i32
    return %arg0, %arg1, %c0_i32 : i32, i32, i32
  }
}

module attributes {stable_mosaic.version = 11 : i64} {
  func.func @_encoder_kernel(%arg0: i32, %arg1: memref<128x6xf32, #tpu.memory_space<vmem>>, %arg2: memref<8x8xf32, #tpu.memory_space<vmem>>, %arg3: memref<6x128xbf16, #tpu.memory_space<vmem>>, %arg4: memref<1x128xf32, #tpu.memory_space<vmem>>, %arg5: memref<1x128xf32, #tpu.memory_space<vmem>>, %arg6: memref<1x128xf32, #tpu.memory_space<vmem>>, %arg7: memref<128x256xbf16, #tpu.memory_space<vmem>>, %arg8: memref<1x256xf32, #tpu.memory_space<vmem>>, %arg9: memref<256x512xbf16, #tpu.memory_space<vmem>>, %arg10: memref<256x512xbf16, #tpu.memory_space<vmem>>, %arg11: memref<1x512xf32, #tpu.memory_space<vmem>>, %arg12: memref<1x512xf32, #tpu.memory_space<vmem>>, %arg13: memref<1x512xf32, #tpu.memory_space<vmem>>, %arg14: memref<512x512xbf16, #tpu.memory_space<vmem>>, %arg15: memref<1x512xf32, #tpu.memory_space<vmem>>, %arg16: memref<512x64xbf16, #tpu.memory_space<vmem>>, %arg17: memref<1x64xf32, #tpu.memory_space<vmem>>, %arg18: memref<8x128xbf16, #tpu.memory_space<vmem>>, %arg19: memref<1x128xf32, #tpu.memory_space<vmem>>, %arg20: memref<128x64xbf16, #tpu.memory_space<vmem>>, %arg21: memref<1x64xf32, #tpu.memory_space<vmem>>, %arg22: memref<8x64xf32, #tpu.memory_space<vmem>>) attributes {dimension_semantics = [#tpu.dimension_semantics<parallel>], iteration_bounds = array<i64: 2>, scalar_prefetch = 0 : i64, scratch_operands = 0 : i64, tpu.core_type = #tpu.core_type<tc>, window_params = [{transform_indices = @transform_0, window_bounds = array<i64: 128, 6>}, {transform_indices = @transform_1, window_bounds = array<i64: 8, 8>}, {pipeline_mode = #tpu.pipeline_mode<synchronous>, transform_indices = @transform_2, window_bounds = array<i64: 6, 128>}, {pipeline_mode = #tpu.pipeline_mode<synchronous>, transform_indices = @transform_3, window_bounds = array<i64: 1, 128>}, {pipeline_mode = #tpu.pipeline_mode<synchronous>, transform_indices = @transform_4, window_bounds = array<i64: 1, 128>}, {pipeline_mode = #tpu.pipeline_mode<synchronous>, transform_indices = @transform_5, window_bounds = array<i64: 1, 128>}, {pipeline_mode = #tpu.pipeline_mode<synchronous>, transform_indices = @transform_6, window_bounds = array<i64: 128, 256>}, {pipeline_mode = #tpu.pipeline_mode<synchronous>, transform_indices = @transform_7, window_bounds = array<i64: 1, 256>}, {pipeline_mode = #tpu.pipeline_mode<synchronous>, transform_indices = @transform_8, window_bounds = array<i64: 256, 512>}, {pipeline_mode = #tpu.pipeline_mode<synchronous>, transform_indices = @transform_9, window_bounds = array<i64: 256, 512>}, {pipeline_mode = #tpu.pipeline_mode<synchronous>, transform_indices = @transform_10, window_bounds = array<i64: 1, 512>}, {pipeline_mode = #tpu.pipeline_mode<synchronous>, transform_indices = @transform_11, window_bounds = array<i64: 1, 512>}, {pipeline_mode = #tpu.pipeline_mode<synchronous>, transform_indices = @transform_12, window_bounds = array<i64: 1, 512>}, {pipeline_mode = #tpu.pipeline_mode<synchronous>, transform_indices = @transform_13, window_bounds = array<i64: 512, 512>}, {pipeline_mode = #tpu.pipeline_mode<synchronous>, transform_indices = @transform_14, window_bounds = array<i64: 1, 512>}, {pipeline_mode = #tpu.pipeline_mode<synchronous>, transform_indices = @transform_15, window_bounds = array<i64: 512, 64>}, {pipeline_mode = #tpu.pipeline_mode<synchronous>, transform_indices = @transform_16, window_bounds = array<i64: 1, 64>}, {pipeline_mode = #tpu.pipeline_mode<synchronous>, transform_indices = @transform_17, window_bounds = array<i64: 8, 128>}, {pipeline_mode = #tpu.pipeline_mode<synchronous>, transform_indices = @transform_18, window_bounds = array<i64: 1, 128>}, {pipeline_mode = #tpu.pipeline_mode<synchronous>, transform_indices = @transform_19, window_bounds = array<i64: 128, 64>}, {pipeline_mode = #tpu.pipeline_mode<synchronous>, transform_indices = @transform_20, window_bounds = array<i64: 1, 64>}, {transform_indices = @transform_21, window_bounds = array<i64: 8, 64>}]} {
    %c0 = arith.constant 0 : index
    %c0_0 = arith.constant 0 : index
    %0 = vector.load %arg1[%c0, %c0_0] : memref<128x6xf32, #tpu.memory_space<vmem>>, vector<128x6xf32>
    %1 = arith.truncf %0 : vector<128x6xf32> to vector<128x6xbf16>
    %c0_1 = arith.constant 0 : index
    %c0_2 = arith.constant 0 : index
    %2 = vector.load %arg3[%c0_1, %c0_2] : memref<6x128xbf16, #tpu.memory_space<vmem>>, vector<6x128xbf16>
    %cst = arith.constant dense<0.000000e+00> : vector<128x128xf32>
    %3 = tpu.matmul %1, %2, %cst {dimension_numbers = #tpu.dot_dimension_numbers<[1], [0], [0], [1], [0, 0, 1, 1], [], []>} : vector<128x6xbf16>, vector<6x128xbf16>, vector<128x128xf32> -> vector<128x128xf32>
    %c0_3 = arith.constant 0 : index
    %c0_4 = arith.constant 0 : index
    %4 = vector.load %arg4[%c0_3, %c0_4] : memref<1x128xf32, #tpu.memory_space<vmem>>, vector<1x128xf32>
    %5 = vector.broadcast %4 : vector<1x128xf32> to vector<128x128xf32>
    %6 = arith.addf %3, %5 : vector<128x128xf32>
    %c0_5 = arith.constant 0 : index
    %c0_6 = arith.constant 0 : index
    %7 = vector.load %arg5[%c0_5, %c0_6] : memref<1x128xf32, #tpu.memory_space<vmem>>, vector<1x128xf32>
    %8 = vector.broadcast %7 : vector<1x128xf32> to vector<128x128xf32>
    %9 = arith.mulf %6, %8 : vector<128x128xf32>
    %c0_7 = arith.constant 0 : index
    %c0_8 = arith.constant 0 : index
    %10 = vector.load %arg6[%c0_7, %c0_8] : memref<1x128xf32, #tpu.memory_space<vmem>>, vector<1x128xf32>
    %11 = vector.broadcast %10 : vector<1x128xf32> to vector<128x128xf32>
    %12 = arith.addf %9, %11 : vector<128x128xf32>
    %cst_9 = arith.constant 0.000000e+00 : f32
    %13 = vector.broadcast %cst_9 : f32 to vector<128x128xf32>
    %14 = arith.maximumf %12, %13 : vector<128x128xf32>
    %15 = arith.truncf %14 : vector<128x128xf32> to vector<128x128xbf16>
    %c0_10 = arith.constant 0 : index
    %c0_11 = arith.constant 0 : index
    %16 = vector.load %arg7[%c0_10, %c0_11] : memref<128x256xbf16, #tpu.memory_space<vmem>>, vector<128x256xbf16>
    %cst_12 = arith.constant dense<0.000000e+00> : vector<128x256xf32>
    %17 = tpu.matmul %15, %16, %cst_12 {dimension_numbers = #tpu.dot_dimension_numbers<[1], [0], [0], [1], [0, 0, 1, 1], [], []>} : vector<128x128xbf16>, vector<128x256xbf16>, vector<128x256xf32> -> vector<128x256xf32>
    %c0_13 = arith.constant 0 : index
    %c0_14 = arith.constant 0 : index
    %18 = vector.load %arg8[%c0_13, %c0_14] : memref<1x256xf32, #tpu.memory_space<vmem>>, vector<1x256xf32>
    %19 = vector.broadcast %18 : vector<1x256xf32> to vector<128x256xf32>
    %20 = arith.addf %17, %19 : vector<128x256xf32>
    %21 = vector.shape_cast %20 : vector<128x256xf32> to vector<8x16x256xf32>
    %cst_15 = arith.constant dense<0xFF800000> : vector<8x256xf32>
    %22 = vector.multi_reduction <maximumf>, %21, %cst_15 [1] : vector<8x16x256xf32> to vector<8x256xf32>
    %23 = arith.truncf %22 : vector<8x256xf32> to vector<8x256xbf16>
    %c0_16 = arith.constant 0 : index
    %c0_17 = arith.constant 0 : index
    %24 = vector.load %arg9[%c0_16, %c0_17] : memref<256x512xbf16, #tpu.memory_space<vmem>>, vector<256x512xbf16>
    %cst_18 = arith.constant dense<0.000000e+00> : vector<8x512xf32>
    %25 = tpu.matmul %23, %24, %cst_18 {dimension_numbers = #tpu.dot_dimension_numbers<[1], [0], [0], [1], [0, 0, 1, 1], [], []>} : vector<8x256xbf16>, vector<256x512xbf16>, vector<8x512xf32> -> vector<8x512xf32>
    %26 = arith.truncf %20 : vector<128x256xf32> to vector<128x256xbf16>
    %c0_19 = arith.constant 0 : index
    %c0_20 = arith.constant 0 : index
    %27 = vector.load %arg10[%c0_19, %c0_20] : memref<256x512xbf16, #tpu.memory_space<vmem>>, vector<256x512xbf16>
    %cst_21 = arith.constant dense<0.000000e+00> : vector<128x512xf32>
    %28 = tpu.matmul %26, %27, %cst_21 {dimension_numbers = #tpu.dot_dimension_numbers<[1], [0], [0], [1], [0, 0, 1, 1], [], []>} : vector<128x256xbf16>, vector<256x512xbf16>, vector<128x512xf32> -> vector<128x512xf32>
    %29 = vector.shape_cast %28 : vector<128x512xf32> to vector<8x16x512xf32>
    %30 = vector.shape_cast %25 : vector<8x512xf32> to vector<8x1x512xf32>
    %31 = vector.broadcast %30 : vector<8x1x512xf32> to vector<8x16x512xf32>
    %32 = arith.addf %29, %31 : vector<8x16x512xf32>
    %c0_22 = arith.constant 0 : index
    %c0_23 = arith.constant 0 : index
    %33 = vector.load %arg11[%c0_22, %c0_23] : memref<1x512xf32, #tpu.memory_space<vmem>>, vector<1x512xf32>
    %34 = vector.shape_cast %33 : vector<1x512xf32> to vector<1x1x512xf32>
    %35 = vector.broadcast %34 : vector<1x1x512xf32> to vector<8x16x512xf32>
    %36 = arith.addf %32, %35 : vector<8x16x512xf32>
    %c0_24 = arith.constant 0 : index
    %c0_25 = arith.constant 0 : index
    %37 = vector.load %arg12[%c0_24, %c0_25] : memref<1x512xf32, #tpu.memory_space<vmem>>, vector<1x512xf32>
    %38 = vector.shape_cast %37 : vector<1x512xf32> to vector<1x1x512xf32>
    %39 = vector.broadcast %38 : vector<1x1x512xf32> to vector<8x16x512xf32>
    %40 = arith.mulf %36, %39 : vector<8x16x512xf32>
    %c0_26 = arith.constant 0 : index
    %c0_27 = arith.constant 0 : index
    %41 = vector.load %arg13[%c0_26, %c0_27] : memref<1x512xf32, #tpu.memory_space<vmem>>, vector<1x512xf32>
    %42 = vector.shape_cast %41 : vector<1x512xf32> to vector<1x1x512xf32>
    %43 = vector.broadcast %42 : vector<1x1x512xf32> to vector<8x16x512xf32>
    %44 = arith.addf %40, %43 : vector<8x16x512xf32>
    %cst_28 = arith.constant 0.000000e+00 : f32
    %45 = vector.broadcast %cst_28 : f32 to vector<8x16x512xf32>
    %46 = arith.maximumf %44, %45 : vector<8x16x512xf32>
    %47 = vector.shape_cast %46 : vector<8x16x512xf32> to vector<128x512xf32>
    %48 = arith.truncf %47 : vector<128x512xf32> to vector<128x512xbf16>
    %c0_29 = arith.constant 0 : index
    %c0_30 = arith.constant 0 : index
    %49 = vector.load %arg14[%c0_29, %c0_30] : memref<512x512xbf16, #tpu.memory_space<vmem>>, vector<512x512xbf16>
    %cst_31 = arith.constant dense<0.000000e+00> : vector<128x512xf32>
    %50 = tpu.matmul %48, %49, %cst_31 {dimension_numbers = #tpu.dot_dimension_numbers<[1], [0], [0], [1], [0, 0, 1, 1], [], []>} : vector<128x512xbf16>, vector<512x512xbf16>, vector<128x512xf32> -> vector<128x512xf32>
    %c0_32 = arith.constant 0 : index
    %c0_33 = arith.constant 0 : index
    %51 = vector.load %arg15[%c0_32, %c0_33] : memref<1x512xf32, #tpu.memory_space<vmem>>, vector<1x512xf32>
    %52 = vector.broadcast %51 : vector<1x512xf32> to vector<128x512xf32>
    %53 = arith.addf %50, %52 : vector<128x512xf32>
    %54 = vector.shape_cast %53 : vector<128x512xf32> to vector<8x16x512xf32>
    %cst_34 = arith.constant dense<0xFF800000> : vector<8x512xf32>
    %55 = vector.multi_reduction <maximumf>, %54, %cst_34 [1] : vector<8x16x512xf32> to vector<8x512xf32>
    %56 = arith.truncf %55 : vector<8x512xf32> to vector<8x512xbf16>
    %c0_35 = arith.constant 0 : index
    %c0_36 = arith.constant 0 : index
    %57 = vector.load %arg16[%c0_35, %c0_36] : memref<512x64xbf16, #tpu.memory_space<vmem>>, vector<512x64xbf16>
    %cst_37 = arith.constant dense<0.000000e+00> : vector<8x64xf32>
    %58 = tpu.matmul %56, %57, %cst_37 {dimension_numbers = #tpu.dot_dimension_numbers<[1], [0], [0], [1], [0, 0, 1, 1], [], []>} : vector<8x512xbf16>, vector<512x64xbf16>, vector<8x64xf32> -> vector<8x64xf32>
    %c0_38 = arith.constant 0 : index
    %c0_39 = arith.constant 0 : index
    %59 = vector.load %arg17[%c0_38, %c0_39] : memref<1x64xf32, #tpu.memory_space<vmem>>, vector<1x64xf32>
    %60 = vector.broadcast %59 : vector<1x64xf32> to vector<8x64xf32>
    %61 = arith.addf %58, %60 : vector<8x64xf32>
    %c0_40 = arith.constant 0 : index
    %c0_41 = arith.constant 0 : index
    %62 = vector.load %arg2[%c0_40, %c0_41] : memref<8x8xf32, #tpu.memory_space<vmem>>, vector<8x8xf32>
    %63 = arith.truncf %62 : vector<8x8xf32> to vector<8x8xbf16>
    %c0_42 = arith.constant 0 : index
    %c0_43 = arith.constant 0 : index
    %64 = vector.load %arg18[%c0_42, %c0_43] : memref<8x128xbf16, #tpu.memory_space<vmem>>, vector<8x128xbf16>
    %cst_44 = arith.constant dense<0.000000e+00> : vector<8x128xf32>
    %65 = tpu.matmul %63, %64, %cst_44 {dimension_numbers = #tpu.dot_dimension_numbers<[1], [0], [0], [1], [0, 0, 1, 1], [], []>} : vector<8x8xbf16>, vector<8x128xbf16>, vector<8x128xf32> -> vector<8x128xf32>
    %c0_45 = arith.constant 0 : index
    %c0_46 = arith.constant 0 : index
    %66 = vector.load %arg19[%c0_45, %c0_46] : memref<1x128xf32, #tpu.memory_space<vmem>>, vector<1x128xf32>
    %67 = vector.broadcast %66 : vector<1x128xf32> to vector<8x128xf32>
    %68 = arith.addf %65, %67 : vector<8x128xf32>
    %69 = arith.mulf %68, %68 : vector<8x128xf32>
    %70 = arith.mulf %68, %69 : vector<8x128xf32>
    %cst_47 = arith.constant 4.471500e-02 : f32
    %71 = vector.broadcast %cst_47 : f32 to vector<8x128xf32>
    %72 = arith.mulf %71, %70 : vector<8x128xf32>
    %73 = arith.addf %68, %72 : vector<8x128xf32>
    %cst_48 = arith.constant 0.797884583 : f32
    %74 = vector.broadcast %cst_48 : f32 to vector<8x128xf32>
    %75 = arith.mulf %74, %73 : vector<8x128xf32>
    %76 = math.tanh %75 : vector<8x128xf32>
    %cst_49 = arith.constant 1.000000e+00 : f32
    %77 = vector.broadcast %cst_49 : f32 to vector<8x128xf32>
    %78 = arith.addf %77, %76 : vector<8x128xf32>
    %cst_50 = arith.constant 5.000000e-01 : f32
    %79 = vector.broadcast %cst_50 : f32 to vector<8x128xf32>
    %80 = arith.mulf %79, %78 : vector<8x128xf32>
    %81 = arith.mulf %68, %80 : vector<8x128xf32>
    %82 = arith.truncf %81 : vector<8x128xf32> to vector<8x128xbf16>
    %c0_51 = arith.constant 0 : index
    %c0_52 = arith.constant 0 : index
    %83 = vector.load %arg20[%c0_51, %c0_52] : memref<128x64xbf16, #tpu.memory_space<vmem>>, vector<128x64xbf16>
    %cst_53 = arith.constant dense<0.000000e+00> : vector<8x64xf32>
    %84 = tpu.matmul %82, %83, %cst_53 {dimension_numbers = #tpu.dot_dimension_numbers<[1], [0], [0], [1], [0, 0, 1, 1], [], []>} : vector<8x128xbf16>, vector<128x64xbf16>, vector<8x64xf32> -> vector<8x64xf32>
    %c0_54 = arith.constant 0 : index
    %c0_55 = arith.constant 0 : index
    %85 = vector.load %arg21[%c0_54, %c0_55] : memref<1x64xf32, #tpu.memory_space<vmem>>, vector<1x64xf32>
    %86 = vector.broadcast %85 : vector<1x64xf32> to vector<8x64xf32>
    %87 = arith.addf %84, %86 : vector<8x64xf32>
    %88 = arith.addf %61, %87 : vector<8x64xf32>
    %c0_56 = arith.constant 0 : index
    %c0_57 = arith.constant 0 : index
    %89 = vector.load %arg22[%c0_56, %c0_57] : memref<8x64xf32, #tpu.memory_space<vmem>>, vector<8x64xf32>
    tpu.vector_store %arg22[%c0_56, %c0_57], %88 {strides = array<i32>} : memref<8x64xf32, #tpu.memory_space<vmem>>, vector<8x64xf32>,
    return
  }
  func.func @transform_0(%arg0: i32) -> (i32, i32) {
    %c0_i32 = arith.constant 0 : i32
    %c0_i32_0 = arith.constant 0 : i32
    return %arg0, %c0_i32 : i32, i32
  }
  func.func @transform_1(%arg0: i32) -> (i32, i32) {
    %c0_i32 = arith.constant 0 : i32
    %c0_i32_0 = arith.constant 0 : i32
    return %arg0, %c0_i32 : i32, i32
  }
  func.func @transform_2(%arg0: i32) -> (i32, i32) {
    %c0_i32 = arith.constant 0 : i32
    %c0_i32_0 = arith.constant 0 : i32
    %c0_i32_1 = arith.constant 0 : i32
    return %c0_i32, %c0_i32_0 : i32, i32
  }
  func.func @transform_3(%arg0: i32) -> (i32, i32) {
    %c0_i32 = arith.constant 0 : i32
    %c0_i32_0 = arith.constant 0 : i32
    %c0_i32_1 = arith.constant 0 : i32
    return %c0_i32, %c0_i32_0 : i32, i32
  }
  func.func @transform_4(%arg0: i32) -> (i32, i32) {
    %c0_i32 = arith.constant 0 : i32
    %c0_i32_0 = arith.constant 0 : i32
    %c0_i32_1 = arith.constant 0 : i32
    return %c0_i32, %c0_i32_0 : i32, i32
  }
  func.func @transform_5(%arg0: i32) -> (i32, i32) {
    %c0_i32 = arith.constant 0 : i32
    %c0_i32_0 = arith.constant 0 : i32
    %c0_i32_1 = arith.constant 0 : i32
    return %c0_i32, %c0_i32_0 : i32, i32
  }
  func.func @transform_6(%arg0: i32) -> (i32, i32) {
    %c0_i32 = arith.constant 0 : i32
    %c0_i32_0 = arith.constant 0 : i32
    %c0_i32_1 = arith.constant 0 : i32
    return %c0_i32, %c0_i32_0 : i32, i32
  }
  func.func @transform_7(%arg0: i32) -> (i32, i32) {
    %c0_i32 = arith.constant 0 : i32
    %c0_i32_0 = arith.constant 0 : i32
    %c0_i32_1 = arith.constant 0 : i32
    return %c0_i32, %c0_i32_0 : i32, i32
  }
  func.func @transform_8(%arg0: i32) -> (i32, i32) {
    %c0_i32 = arith.constant 0 : i32
    %c0_i32_0 = arith.constant 0 : i32
    %c0_i32_1 = arith.constant 0 : i32
    return %c0_i32, %c0_i32_0 : i32, i32
  }
  func.func @transform_9(%arg0: i32) -> (i32, i32) {
    %c0_i32 = arith.constant 0 : i32
    %c0_i32_0 = arith.constant 0 : i32
    %c0_i32_1 = arith.constant 0 : i32
    return %c0_i32, %c0_i32_0 : i32, i32
  }
  func.func @transform_10(%arg0: i32) -> (i32, i32) {
    %c0_i32 = arith.constant 0 : i32
    %c0_i32_0 = arith.constant 0 : i32
    %c0_i32_1 = arith.constant 0 : i32
    return %c0_i32, %c0_i32_0 : i32, i32
  }
  func.func @transform_11(%arg0: i32) -> (i32, i32) {
    %c0_i32 = arith.constant 0 : i32
    %c0_i32_0 = arith.constant 0 : i32
    %c0_i32_1 = arith.constant 0 : i32
    return %c0_i32, %c0_i32_0 : i32, i32
  }
  func.func @transform_12(%arg0: i32) -> (i32, i32) {
    %c0_i32 = arith.constant 0 : i32
    %c0_i32_0 = arith.constant 0 : i32
    %c0_i32_1 = arith.constant 0 : i32
    return %c0_i32, %c0_i32_0 : i32, i32
  }
  func.func @transform_13(%arg0: i32) -> (i32, i32) {
    %c0_i32 = arith.constant 0 : i32
    %c0_i32_0 = arith.constant 0 : i32
    %c0_i32_1 = arith.constant 0 : i32
    return %c0_i32, %c0_i32_0 : i32, i32
  }
  func.func @transform_14(%arg0: i32) -> (i32, i32) {
    %c0_i32 = arith.constant 0 : i32
    %c0_i32_0 = arith.constant 0 : i32
    %c0_i32_1 = arith.constant 0 : i32
    return %c0_i32, %c0_i32_0 : i32, i32
  }
  func.func @transform_15(%arg0: i32) -> (i32, i32) {
    %c0_i32 = arith.constant 0 : i32
    %c0_i32_0 = arith.constant 0 : i32
    %c0_i32_1 = arith.constant 0 : i32
    return %c0_i32, %c0_i32_0 : i32, i32
  }
  func.func @transform_16(%arg0: i32) -> (i32, i32) {
    %c0_i32 = arith.constant 0 : i32
    %c0_i32_0 = arith.constant 0 : i32
    %c0_i32_1 = arith.constant 0 : i32
    return %c0_i32, %c0_i32_0 : i32, i32
  }
  func.func @transform_17(%arg0: i32) -> (i32, i32) {
    %c0_i32 = arith.constant 0 : i32
    %c0_i32_0 = arith.constant 0 : i32
    %c0_i32_1 = arith.constant 0 : i32
    return %c0_i32, %c0_i32_0 : i32, i32
  }
  func.func @transform_18(%arg0: i32) -> (i32, i32) {
    %c0_i32 = arith.constant 0 : i32
    %c0_i32_0 = arith.constant 0 : i32
    %c0_i32_1 = arith.constant 0 : i32
    return %c0_i32, %c0_i32_0 : i32, i32
  }
  func.func @transform_19(%arg0: i32) -> (i32, i32) {
    %c0_i32 = arith.constant 0 : i32
    %c0_i32_0 = arith.constant 0 : i32
    %c0_i32_1 = arith.constant 0 : i32
    return %c0_i32, %c0_i32_0 : i32, i32
  }
  func.func @transform_20(%arg0: i32) -> (i32, i32) {
    %c0_i32 = arith.constant 0 : i32
    %c0_i32_0 = arith.constant 0 : i32
    %c0_i32_1 = arith.constant 0 : i32
    return %c0_i32, %c0_i32_0 : i32, i32
  }
  func.func @transform_21(%arg0: i32) -> (i32, i32) {
    %c0_i32 = arith.constant 0 : i32
    %c0_i32_0 = arith.constant 0 : i32
    return %arg0, %c0_i32 : i32, i32
  }
}

module attributes {stable_mosaic.version = 11 : i64} {
  func.func @_transformer_kernel(%arg0: i32, %arg1: i32, %arg2: i32, %arg3: memref<1x9x64xf32, #tpu.memory_space<vmem>>, %arg4: memref<1x1x64xf32, #tpu.memory_space<vmem>>, %arg5: memref<1x1x64xf32, #tpu.memory_space<vmem>>, %arg6: memref<1x64x192xbf16, #tpu.memory_space<vmem>>, %arg7: memref<1x1x192xf32, #tpu.memory_space<vmem>>, %arg8: memref<1x64x64xbf16, #tpu.memory_space<vmem>>, %arg9: memref<1x1x64xf32, #tpu.memory_space<vmem>>, %arg10: memref<1x1x64xf32, #tpu.memory_space<vmem>>, %arg11: memref<1x1x64xf32, #tpu.memory_space<vmem>>, %arg12: memref<1x64x256xbf16, #tpu.memory_space<vmem>>, %arg13: memref<1x1x256xf32, #tpu.memory_space<vmem>>, %arg14: memref<1x256x64xbf16, #tpu.memory_space<vmem>>, %arg15: memref<1x1x64xf32, #tpu.memory_space<vmem>>, %arg16: memref<1x64xf32, #tpu.memory_space<vmem>>, %arg17: memref<1x64xf32, #tpu.memory_space<vmem>>, %arg18: memref<64x1024xbf16, #tpu.memory_space<vmem>>, %arg19: memref<1x1024xf32, #tpu.memory_space<vmem>>, %arg20: memref<1x1x1024xf32, #tpu.memory_space<vmem>>, %arg21: memref<1x9x64xf32, #tpu.memory_space<vmem>>) attributes {dimension_semantics = [#tpu.dimension_semantics<parallel>, #tpu.dimension_semantics<arbitrary>, #tpu.dimension_semantics<arbitrary>], iteration_bounds = array<i64: 2, 2, 1>, scalar_prefetch = 0 : i64, scratch_operands = 1 : i64, tpu.core_type = #tpu.core_type<tc>, window_params = [{transform_indices = @transform_0, window_bounds = array<i64: 1, 9, 64>}, {transform_indices = @transform_1, window_bounds = array<i64: 1, 1, 64>}, {transform_indices = @transform_2, window_bounds = array<i64: 1, 1, 64>}, {transform_indices = @transform_3, window_bounds = array<i64: 1, 64, 192>}, {transform_indices = @transform_4, window_bounds = array<i64: 1, 1, 192>}, {transform_indices = @transform_5, window_bounds = array<i64: 1, 64, 64>}, {transform_indices = @transform_6, window_bounds = array<i64: 1, 1, 64>}, {transform_indices = @transform_7, window_bounds = array<i64: 1, 1, 64>}, {transform_indices = @transform_8, window_bounds = array<i64: 1, 1, 64>}, {transform_indices = @transform_9, window_bounds = array<i64: 1, 64, 256>}, {transform_indices = @transform_10, window_bounds = array<i64: 1, 1, 256>}, {transform_indices = @transform_11, window_bounds = array<i64: 1, 256, 64>}, {transform_indices = @transform_12, window_bounds = array<i64: 1, 1, 64>}, {pipeline_mode = #tpu.pipeline_mode<synchronous>, transform_indices = @transform_13, window_bounds = array<i64: 1, 64>}, {pipeline_mode = #tpu.pipeline_mode<synchronous>, transform_indices = @transform_14, window_bounds = array<i64: 1, 64>}, {pipeline_mode = #tpu.pipeline_mode<synchronous>, transform_indices = @transform_15, window_bounds = array<i64: 64, 1024>}, {pipeline_mode = #tpu.pipeline_mode<synchronous>, transform_indices = @transform_16, window_bounds = array<i64: 1, 1024>}, {transform_indices = @transform_17, window_bounds = array<i64: 1, 1, 1024>}]} {
    %c0_i32 = arith.constant 0 : i32
    %0 = arith.cmpi eq, %arg1, %c0_i32 : i32
    %1 = arith.extui %0 : i1 to i32
    %c0_i32_0 = arith.constant 0 : i32
    %2 = arith.cmpi ne, %1, %c0_i32_0 : i32
    scf.if %2 {
      %c0_82 = arith.constant 0 : index
      %c0_83 = arith.constant 0 : index
      %c0_84 = arith.constant 0 : index
      %204 = vector.load %arg3[%c0_82, %c0_83, %c0_84] : memref<1x9x64xf32, #tpu.memory_space<vmem>>, vector<1x9x64xf32>
      %205 = vector.shape_cast %204 : vector<1x9x64xf32> to vector<9x64xf32>
      %206 = arith.index_cast %arg2 : i32 to index
      %c0_85 = arith.constant 0 : index
      %c0_86 = arith.constant 0 : index
      %207 = vector.load %arg21[%206, %c0_85, %c0_86] : memref<1x9x64xf32, #tpu.memory_space<vmem>>, vector<1x9x64xf32>
      %208 = vector.shape_cast %207 : vector<1x9x64xf32> to vector<9x64xf32>
      %209 = vector.shape_cast %205 : vector<9x64xf32> to vector<1x9x64xf32>
      tpu.vector_store %arg21[%206, %c0_85, %c0_86], %209 {strides = array<i32>} : memref<1x9x64xf32, #tpu.memory_space<vmem>>, vector<1x9x64xf32>,
    } else {
    }
    %3 = arith.index_cast %arg2 : i32 to index
    %c0 = arith.constant 0 : index
    %c0_1 = arith.constant 0 : index
    %4 = vector.load %arg21[%3, %c0, %c0_1] : memref<1x9x64xf32, #tpu.memory_space<vmem>>, vector<1x9x64xf32>
    %5 = vector.shape_cast %4 : vector<1x9x64xf32> to vector<9x64xf32>
    %c0_2 = arith.constant 0 : index
    %c0_3 = arith.constant 0 : index
    %c0_4 = arith.constant 0 : index
    %6 = vector.load %arg4[%c0_2, %c0_3, %c0_4] : memref<1x1x64xf32, #tpu.memory_space<vmem>>, vector<1x1x64xf32>
    %7 = vector.shape_cast %6 : vector<1x1x64xf32> to vector<1x64xf32>
    %c0_5 = arith.constant 0 : index
    %c0_6 = arith.constant 0 : index
    %c0_7 = arith.constant 0 : index
    %8 = vector.load %arg5[%c0_5, %c0_6, %c0_7] : memref<1x1x64xf32, #tpu.memory_space<vmem>>, vector<1x1x64xf32>
    %9 = vector.shape_cast %8 : vector<1x1x64xf32> to vector<1x64xf32>
    %cst = arith.constant dense<0.000000e+00> : vector<9xf32>
    %10 = vector.multi_reduction <add>, %5, %cst [1] : vector<9x64xf32> to vector<9xf32>
    %11 = vector.shape_cast %10 : vector<9xf32> to vector<9x1xf32>
    %cst_8 = arith.constant 6.400000e+01 : f32
    %12 = vector.broadcast %cst_8 : f32 to vector<9x1xf32>
    %13 = arith.divf %11, %12 : vector<9x1xf32>
    %14 = vector.broadcast %13 : vector<9x1xf32> to vector<9x64xf32>
    %15 = arith.subf %5, %14 : vector<9x64xf32>
    %16 = arith.mulf %15, %15 : vector<9x64xf32>
    %cst_9 = arith.constant dense<0.000000e+00> : vector<9xf32>
    %17 = vector.multi_reduction <add>, %16, %cst_9 [1] : vector<9x64xf32> to vector<9xf32>
    %18 = vector.shape_cast %17 : vector<9xf32> to vector<9x1xf32>
    %cst_10 = arith.constant 6.400000e+01 : f32
    %19 = vector.broadcast %cst_10 : f32 to vector<9x1xf32>
    %20 = arith.divf %18, %19 : vector<9x1xf32>
    %21 = vector.broadcast %13 : vector<9x1xf32> to vector<9x64xf32>
    %22 = arith.subf %5, %21 : vector<9x64xf32>
    %cst_11 = arith.constant 9.99999974E-6 : f32
    %23 = vector.broadcast %cst_11 : f32 to vector<9x1xf32>
    %24 = arith.addf %20, %23 : vector<9x1xf32>
    %25 = math.rsqrt %24 : vector<9x1xf32>
    %26 = vector.broadcast %25 : vector<9x1xf32> to vector<9x64xf32>
    %27 = arith.mulf %22, %26 : vector<9x64xf32>
    %28 = vector.broadcast %7 : vector<1x64xf32> to vector<9x64xf32>
    %29 = arith.mulf %27, %28 : vector<9x64xf32>
    %30 = vector.broadcast %9 : vector<1x64xf32> to vector<9x64xf32>
    %31 = arith.addf %29, %30 : vector<9x64xf32>
    %32 = arith.truncf %31 : vector<9x64xf32> to vector<9x64xbf16>
    %c0_12 = arith.constant 0 : index
    %c0_13 = arith.constant 0 : index
    %c0_14 = arith.constant 0 : index
    %33 = vector.load %arg6[%c0_12, %c0_13, %c0_14] : memref<1x64x192xbf16, #tpu.memory_space<vmem>>, vector<1x64x192xbf16>
    %34 = vector.shape_cast %33 : vector<1x64x192xbf16> to vector<64x192xbf16>
    %cst_15 = arith.constant dense<0.000000e+00> : vector<9x192xf32>
    %35 = tpu.matmul %32, %34, %cst_15 {dimension_numbers = #tpu.dot_dimension_numbers<[1], [0], [0], [1], [0, 0, 1, 1], [], []>} : vector<9x64xbf16>, vector<64x192xbf16>, vector<9x192xf32> -> vector<9x192xf32>
    %c0_16 = arith.constant 0 : index
    %c0_17 = arith.constant 0 : index
    %c0_18 = arith.constant 0 : index
    %36 = vector.load %arg7[%c0_16, %c0_17, %c0_18] : memref<1x1x192xf32, #tpu.memory_space<vmem>>, vector<1x1x192xf32>
    %37 = vector.shape_cast %36 : vector<1x1x192xf32> to vector<1x192xf32>
    %38 = vector.broadcast %37 : vector<1x192xf32> to vector<9x192xf32>
    %39 = arith.addf %35, %38 : vector<9x192xf32>
    %40 = vector.extract_strided_slice %39 {offsets = [0, 0], sizes = [9, 64], strides = [1, 1]} : vector<9x192xf32> to vector<9x64xf32>
    %41 = vector.extract_strided_slice %39 {offsets = [0, 64], sizes = [9, 64], strides = [1, 1]} : vector<9x192xf32> to vector<9x64xf32>
    %42 = vector.extract_strided_slice %39 {offsets = [0, 128], sizes = [9, 64], strides = [1, 1]} : vector<9x192xf32> to vector<9x64xf32>
    %43 = vector.extract_strided_slice %40 {offsets = [0, 0], sizes = [9, 16], strides = [1, 1]} : vector<9x64xf32> to vector<9x16xf32>
    %44 = arith.truncf %43 : vector<9x16xf32> to vector<9x16xbf16>
    %45 = vector.extract_strided_slice %41 {offsets = [0, 0], sizes = [9, 16], strides = [1, 1]} : vector<9x64xf32> to vector<9x16xf32>
    %46 = arith.truncf %45 : vector<9x16xf32> to vector<9x16xbf16>
    %47 = vector.extract_strided_slice %42 {offsets = [0, 0], sizes = [9, 16], strides = [1, 1]} : vector<9x64xf32> to vector<9x16xf32>
    %48 = arith.truncf %47 : vector<9x16xf32> to vector<9x16xbf16>
    %cst_19 = arith.constant dense<0.000000e+00> : vector<9x9xf32>
    %49 = tpu.matmul %44, %46, %cst_19 {dimension_numbers = #tpu.dot_dimension_numbers<[1], [1], [0], [0], [0, 0, 1, 0], [], []>} : vector<9x16xbf16>, vector<9x16xbf16>, vector<9x9xf32> -> vector<9x9xf32>
    %cst_20 = arith.constant 2.500000e-01 : f32
    %50 = vector.broadcast %cst_20 : f32 to vector<9x9xf32>
    %51 = arith.mulf %49, %50 : vector<9x9xf32>
    %cst_21 = arith.constant dense<0xFF800000> : vector<9xf32>
    %52 = vector.multi_reduction <maximumf>, %51, %cst_21 [1] : vector<9x9xf32> to vector<9xf32>
    %cst_22 = arith.constant 0xFF800000 : f32
    %53 = vector.broadcast %cst_22 : f32 to vector<9xf32>
    %54 = arith.maximumf %53, %52 : vector<9xf32>
    %55 = vector.shape_cast %54 : vector<9xf32> to vector<9x1xf32>
    %56 = vector.broadcast %55 : vector<9x1xf32> to vector<9x9xf32>
    %57 = arith.subf %51, %56 : vector<9x9xf32>
    %58 = math.exp %57 : vector<9x9xf32>
    %cst_23 = arith.constant dense<0.000000e+00> : vector<9xf32>
    %59 = vector.multi_reduction <add>, %58, %cst_23 [1] : vector<9x9xf32> to vector<9xf32>
    %60 = vector.shape_cast %59 : vector<9xf32> to vector<9x1xf32>
    %61 = vector.broadcast %60 : vector<9x1xf32> to vector<9x9xf32>
    %62 = arith.divf %58, %61 : vector<9x9xf32>
    %63 = arith.truncf %62 : vector<9x9xf32> to vector<9x9xbf16>
    %cst_24 = arith.constant dense<0.000000e+00> : vector<9x16xf32>
    %64 = tpu.matmul %63, %48, %cst_24 {dimension_numbers = #tpu.dot_dimension_numbers<[1], [0], [0], [1], [0, 0, 1, 1], [], []>} : vector<9x9xbf16>, vector<9x16xbf16>, vector<9x16xf32> -> vector<9x16xf32>
    %65 = vector.extract_strided_slice %40 {offsets = [0, 16], sizes = [9, 16], strides = [1, 1]} : vector<9x64xf32> to vector<9x16xf32>
    %66 = arith.truncf %65 : vector<9x16xf32> to vector<9x16xbf16>
    %67 = vector.extract_strided_slice %41 {offsets = [0, 16], sizes = [9, 16], strides = [1, 1]} : vector<9x64xf32> to vector<9x16xf32>
    %68 = arith.truncf %67 : vector<9x16xf32> to vector<9x16xbf16>
    %69 = vector.extract_strided_slice %42 {offsets = [0, 16], sizes = [9, 16], strides = [1, 1]} : vector<9x64xf32> to vector<9x16xf32>
    %70 = arith.truncf %69 : vector<9x16xf32> to vector<9x16xbf16>
    %cst_25 = arith.constant dense<0.000000e+00> : vector<9x9xf32>
    %71 = tpu.matmul %66, %68, %cst_25 {dimension_numbers = #tpu.dot_dimension_numbers<[1], [1], [0], [0], [0, 0, 1, 0], [], []>} : vector<9x16xbf16>, vector<9x16xbf16>, vector<9x9xf32> -> vector<9x9xf32>
    %cst_26 = arith.constant 2.500000e-01 : f32
    %72 = vector.broadcast %cst_26 : f32 to vector<9x9xf32>
    %73 = arith.mulf %71, %72 : vector<9x9xf32>
    %cst_27 = arith.constant dense<0xFF800000> : vector<9xf32>
    %74 = vector.multi_reduction <maximumf>, %73, %cst_27 [1] : vector<9x9xf32> to vector<9xf32>
    %cst_28 = arith.constant 0xFF800000 : f32
    %75 = vector.broadcast %cst_28 : f32 to vector<9xf32>
    %76 = arith.maximumf %75, %74 : vector<9xf32>
    %77 = vector.shape_cast %76 : vector<9xf32> to vector<9x1xf32>
    %78 = vector.broadcast %77 : vector<9x1xf32> to vector<9x9xf32>
    %79 = arith.subf %73, %78 : vector<9x9xf32>
    %80 = math.exp %79 : vector<9x9xf32>
    %cst_29 = arith.constant dense<0.000000e+00> : vector<9xf32>
    %81 = vector.multi_reduction <add>, %80, %cst_29 [1] : vector<9x9xf32> to vector<9xf32>
    %82 = vector.shape_cast %81 : vector<9xf32> to vector<9x1xf32>
    %83 = vector.broadcast %82 : vector<9x1xf32> to vector<9x9xf32>
    %84 = arith.divf %80, %83 : vector<9x9xf32>
    %85 = arith.truncf %84 : vector<9x9xf32> to vector<9x9xbf16>
    %cst_30 = arith.constant dense<0.000000e+00> : vector<9x16xf32>
    %86 = tpu.matmul %85, %70, %cst_30 {dimension_numbers = #tpu.dot_dimension_numbers<[1], [0], [0], [1], [0, 0, 1, 1], [], []>} : vector<9x9xbf16>, vector<9x16xbf16>, vector<9x16xf32> -> vector<9x16xf32>
    %87 = vector.extract_strided_slice %40 {offsets = [0, 32], sizes = [9, 16], strides = [1, 1]} : vector<9x64xf32> to vector<9x16xf32>
    %88 = arith.truncf %87 : vector<9x16xf32> to vector<9x16xbf16>
    %89 = vector.extract_strided_slice %41 {offsets = [0, 32], sizes = [9, 16], strides = [1, 1]} : vector<9x64xf32> to vector<9x16xf32>
    %90 = arith.truncf %89 : vector<9x16xf32> to vector<9x16xbf16>
    %91 = vector.extract_strided_slice %42 {offsets = [0, 32], sizes = [9, 16], strides = [1, 1]} : vector<9x64xf32> to vector<9x16xf32>
    %92 = arith.truncf %91 : vector<9x16xf32> to vector<9x16xbf16>
    %cst_31 = arith.constant dense<0.000000e+00> : vector<9x9xf32>
    %93 = tpu.matmul %88, %90, %cst_31 {dimension_numbers = #tpu.dot_dimension_numbers<[1], [1], [0], [0], [0, 0, 1, 0], [], []>} : vector<9x16xbf16>, vector<9x16xbf16>, vector<9x9xf32> -> vector<9x9xf32>
    %cst_32 = arith.constant 2.500000e-01 : f32
    %94 = vector.broadcast %cst_32 : f32 to vector<9x9xf32>
    %95 = arith.mulf %93, %94 : vector<9x9xf32>
    %cst_33 = arith.constant dense<0xFF800000> : vector<9xf32>
    %96 = vector.multi_reduction <maximumf>, %95, %cst_33 [1] : vector<9x9xf32> to vector<9xf32>
    %cst_34 = arith.constant 0xFF800000 : f32
    %97 = vector.broadcast %cst_34 : f32 to vector<9xf32>
    %98 = arith.maximumf %97, %96 : vector<9xf32>
    %99 = vector.shape_cast %98 : vector<9xf32> to vector<9x1xf32>
    %100 = vector.broadcast %99 : vector<9x1xf32> to vector<9x9xf32>
    %101 = arith.subf %95, %100 : vector<9x9xf32>
    %102 = math.exp %101 : vector<9x9xf32>
    %cst_35 = arith.constant dense<0.000000e+00> : vector<9xf32>
    %103 = vector.multi_reduction <add>, %102, %cst_35 [1] : vector<9x9xf32> to vector<9xf32>
    %104 = vector.shape_cast %103 : vector<9xf32> to vector<9x1xf32>
    %105 = vector.broadcast %104 : vector<9x1xf32> to vector<9x9xf32>
    %106 = arith.divf %102, %105 : vector<9x9xf32>
    %107 = arith.truncf %106 : vector<9x9xf32> to vector<9x9xbf16>
    %cst_36 = arith.constant dense<0.000000e+00> : vector<9x16xf32>
    %108 = tpu.matmul %107, %92, %cst_36 {dimension_numbers = #tpu.dot_dimension_numbers<[1], [0], [0], [1], [0, 0, 1, 1], [], []>} : vector<9x9xbf16>, vector<9x16xbf16>, vector<9x16xf32> -> vector<9x16xf32>
    %109 = vector.extract_strided_slice %40 {offsets = [0, 48], sizes = [9, 16], strides = [1, 1]} : vector<9x64xf32> to vector<9x16xf32>
    %110 = arith.truncf %109 : vector<9x16xf32> to vector<9x16xbf16>
    %111 = vector.extract_strided_slice %41 {offsets = [0, 48], sizes = [9, 16], strides = [1, 1]} : vector<9x64xf32> to vector<9x16xf32>
    %112 = arith.truncf %111 : vector<9x16xf32> to vector<9x16xbf16>
    %113 = vector.extract_strided_slice %42 {offsets = [0, 48], sizes = [9, 16], strides = [1, 1]} : vector<9x64xf32> to vector<9x16xf32>
    %114 = arith.truncf %113 : vector<9x16xf32> to vector<9x16xbf16>
    %cst_37 = arith.constant dense<0.000000e+00> : vector<9x9xf32>
    %115 = tpu.matmul %110, %112, %cst_37 {dimension_numbers = #tpu.dot_dimension_numbers<[1], [1], [0], [0], [0, 0, 1, 0], [], []>} : vector<9x16xbf16>, vector<9x16xbf16>, vector<9x9xf32> -> vector<9x9xf32>
    %cst_38 = arith.constant 2.500000e-01 : f32
    %116 = vector.broadcast %cst_38 : f32 to vector<9x9xf32>
    %117 = arith.mulf %115, %116 : vector<9x9xf32>
    %cst_39 = arith.constant dense<0xFF800000> : vector<9xf32>
    %118 = vector.multi_reduction <maximumf>, %117, %cst_39 [1] : vector<9x9xf32> to vector<9xf32>
    %cst_40 = arith.constant 0xFF800000 : f32
    %119 = vector.broadcast %cst_40 : f32 to vector<9xf32>
    %120 = arith.maximumf %119, %118 : vector<9xf32>
    %121 = vector.shape_cast %120 : vector<9xf32> to vector<9x1xf32>
    %122 = vector.broadcast %121 : vector<9x1xf32> to vector<9x9xf32>
    %123 = arith.subf %117, %122 : vector<9x9xf32>
    %124 = math.exp %123 : vector<9x9xf32>
    %cst_41 = arith.constant dense<0.000000e+00> : vector<9xf32>
    %125 = vector.multi_reduction <add>, %124, %cst_41 [1] : vector<9x9xf32> to vector<9xf32>
    %126 = vector.shape_cast %125 : vector<9xf32> to vector<9x1xf32>
    %127 = vector.broadcast %126 : vector<9x1xf32> to vector<9x9xf32>
    %128 = arith.divf %124, %127 : vector<9x9xf32>
    %129 = arith.truncf %128 : vector<9x9xf32> to vector<9x9xbf16>
    %cst_42 = arith.constant dense<0.000000e+00> : vector<9x16xf32>
    %130 = tpu.matmul %129, %114, %cst_42 {dimension_numbers = #tpu.dot_dimension_numbers<[1], [0], [0], [1], [0, 0, 1, 1], [], []>} : vector<9x9xbf16>, vector<9x16xbf16>, vector<9x16xf32> -> vector<9x16xf32>
    %131 = tpu.concatenate %64, %86, %108, %130 in 1 : vector<9x16xf32>, vector<9x16xf32>, vector<9x16xf32>, vector<9x16xf32> -> vector<9x64xf32>
    %132 = arith.truncf %131 : vector<9x64xf32> to vector<9x64xbf16>
    %c0_43 = arith.constant 0 : index
    %c0_44 = arith.constant 0 : index
    %c0_45 = arith.constant 0 : index
    %133 = vector.load %arg8[%c0_43, %c0_44, %c0_45] : memref<1x64x64xbf16, #tpu.memory_space<vmem>>, vector<1x64x64xbf16>
    %134 = vector.shape_cast %133 : vector<1x64x64xbf16> to vector<64x64xbf16>
    %cst_46 = arith.constant dense<0.000000e+00> : vector<9x64xf32>
    %135 = tpu.matmul %132, %134, %cst_46 {dimension_numbers = #tpu.dot_dimension_numbers<[1], [0], [0], [1], [0, 0, 1, 1], [], []>} : vector<9x64xbf16>, vector<64x64xbf16>, vector<9x64xf32> -> vector<9x64xf32>
    %c0_47 = arith.constant 0 : index
    %c0_48 = arith.constant 0 : index
    %c0_49 = arith.constant 0 : index
    %136 = vector.load %arg9[%c0_47, %c0_48, %c0_49] : memref<1x1x64xf32, #tpu.memory_space<vmem>>, vector<1x1x64xf32>
    %137 = vector.shape_cast %136 : vector<1x1x64xf32> to vector<1x64xf32>
    %138 = vector.broadcast %137 : vector<1x64xf32> to vector<9x64xf32>
    %139 = arith.addf %135, %138 : vector<9x64xf32>
    %140 = arith.addf %5, %139 : vector<9x64xf32>
    %c0_50 = arith.constant 0 : index
    %c0_51 = arith.constant 0 : index
    %c0_52 = arith.constant 0 : index
    %141 = vector.load %arg10[%c0_50, %c0_51, %c0_52] : memref<1x1x64xf32, #tpu.memory_space<vmem>>, vector<1x1x64xf32>
    %142 = vector.shape_cast %141 : vector<1x1x64xf32> to vector<1x64xf32>
    %c0_53 = arith.constant 0 : index
    %c0_54 = arith.constant 0 : index
    %c0_55 = arith.constant 0 : index
    %143 = vector.load %arg11[%c0_53, %c0_54, %c0_55] : memref<1x1x64xf32, #tpu.memory_space<vmem>>, vector<1x1x64xf32>
    %144 = vector.shape_cast %143 : vector<1x1x64xf32> to vector<1x64xf32>
    %cst_56 = arith.constant dense<0.000000e+00> : vector<9xf32>
    %145 = vector.multi_reduction <add>, %140, %cst_56 [1] : vector<9x64xf32> to vector<9xf32>
    %146 = vector.shape_cast %145 : vector<9xf32> to vector<9x1xf32>
    %cst_57 = arith.constant 6.400000e+01 : f32
    %147 = vector.broadcast %cst_57 : f32 to vector<9x1xf32>
    %148 = arith.divf %146, %147 : vector<9x1xf32>
    %149 = vector.broadcast %148 : vector<9x1xf32> to vector<9x64xf32>
    %150 = arith.subf %140, %149 : vector<9x64xf32>
    %151 = arith.mulf %150, %150 : vector<9x64xf32>
    %cst_58 = arith.constant dense<0.000000e+00> : vector<9xf32>
    %152 = vector.multi_reduction <add>, %151, %cst_58 [1] : vector<9x64xf32> to vector<9xf32>
    %153 = vector.shape_cast %152 : vector<9xf32> to vector<9x1xf32>
    %cst_59 = arith.constant 6.400000e+01 : f32
    %154 = vector.broadcast %cst_59 : f32 to vector<9x1xf32>
    %155 = arith.divf %153, %154 : vector<9x1xf32>
    %156 = vector.broadcast %148 : vector<9x1xf32> to vector<9x64xf32>
    %157 = arith.subf %140, %156 : vector<9x64xf32>
    %cst_60 = arith.constant 9.99999974E-6 : f32
    %158 = vector.broadcast %cst_60 : f32 to vector<9x1xf32>
    %159 = arith.addf %155, %158 : vector<9x1xf32>
    %160 = math.rsqrt %159 : vector<9x1xf32>
    %161 = vector.broadcast %160 : vector<9x1xf32> to vector<9x64xf32>
    %162 = arith.mulf %157, %161 : vector<9x64xf32>
    %163 = vector.broadcast %142 : vector<1x64xf32> to vector<9x64xf32>
    %164 = arith.mulf %162, %163 : vector<9x64xf32>
    %165 = vector.broadcast %144 : vector<1x64xf32> to vector<9x64xf32>
    %166 = arith.addf %164, %165 : vector<9x64xf32>
    %167 = arith.truncf %166 : vector<9x64xf32> to vector<9x64xbf16>
    %c0_61 = arith.constant 0 : index
    %c0_62 = arith.constant 0 : index
    %c0_63 = arith.constant 0 : index
    %168 = vector.load %arg12[%c0_61, %c0_62, %c0_63] : memref<1x64x256xbf16, #tpu.memory_space<vmem>>, vector<1x64x256xbf16>
    %169 = vector.shape_cast %168 : vector<1x64x256xbf16> to vector<64x256xbf16>
    %cst_64 = arith.constant dense<0.000000e+00> : vector<9x256xf32>
    %170 = tpu.matmul %167, %169, %cst_64 {dimension_numbers = #tpu.dot_dimension_numbers<[1], [0], [0], [1], [0, 0, 1, 1], [], []>} : vector<9x64xbf16>, vector<64x256xbf16>, vector<9x256xf32> -> vector<9x256xf32>
    %c0_65 = arith.constant 0 : index
    %c0_66 = arith.constant 0 : index
    %c0_67 = arith.constant 0 : index
    %171 = vector.load %arg13[%c0_65, %c0_66, %c0_67] : memref<1x1x256xf32, #tpu.memory_space<vmem>>, vector<1x1x256xf32>
    %172 = vector.shape_cast %171 : vector<1x1x256xf32> to vector<1x256xf32>
    %173 = vector.broadcast %172 : vector<1x256xf32> to vector<9x256xf32>
    %174 = arith.addf %170, %173 : vector<9x256xf32>
    %175 = arith.mulf %174, %174 : vector<9x256xf32>
    %176 = arith.mulf %174, %175 : vector<9x256xf32>
    %cst_68 = arith.constant 4.471500e-02 : f32
    %177 = vector.broadcast %cst_68 : f32 to vector<9x256xf32>
    %178 = arith.mulf %177, %176 : vector<9x256xf32>
    %179 = arith.addf %174, %178 : vector<9x256xf32>
    %cst_69 = arith.constant 0.797884583 : f32
    %180 = vector.broadcast %cst_69 : f32 to vector<9x256xf32>
    %181 = arith.mulf %180, %179 : vector<9x256xf32>
    %182 = math.tanh %181 : vector<9x256xf32>
    %cst_70 = arith.constant 1.000000e+00 : f32
    %183 = vector.broadcast %cst_70 : f32 to vector<9x256xf32>
    %184 = arith.addf %183, %182 : vector<9x256xf32>
    %cst_71 = arith.constant 5.000000e-01 : f32
    %185 = vector.broadcast %cst_71 : f32 to vector<9x256xf32>
    %186 = arith.mulf %185, %184 : vector<9x256xf32>
    %187 = arith.mulf %174, %186 : vector<9x256xf32>
    %188 = arith.truncf %187 : vector<9x256xf32> to vector<9x256xbf16>
    %c0_72 = arith.constant 0 : index
    %c0_73 = arith.constant 0 : index
    %c0_74 = arith.constant 0 : index
    %189 = vector.load %arg14[%c0_72, %c0_73, %c0_74] : memref<1x256x64xbf16, #tpu.memory_space<vmem>>, vector<1x256x64xbf16>
    %190 = vector.shape_cast %189 : vector<1x256x64xbf16> to vector<256x64xbf16>
    %cst_75 = arith.constant dense<0.000000e+00> : vector<9x64xf32>
    %191 = tpu.matmul %188, %190, %cst_75 {dimension_numbers = #tpu.dot_dimension_numbers<[1], [0], [0], [1], [0, 0, 1, 1], [], []>} : vector<9x256xbf16>, vector<256x64xbf16>, vector<9x64xf32> -> vector<9x64xf32>
    %c0_76 = arith.constant 0 : index
    %c0_77 = arith.constant 0 : index
    %c0_78 = arith.constant 0 : index
    %192 = vector.load %arg15[%c0_76, %c0_77, %c0_78] : memref<1x1x64xf32, #tpu.memory_space<vmem>>, vector<1x1x64xf32>
    %193 = vector.shape_cast %192 : vector<1x1x64xf32> to vector<1x64xf32>
    %194 = vector.broadcast %193 : vector<1x64xf32> to vector<9x64xf32>
    %195 = arith.addf %191, %194 : vector<9x64xf32>
    %196 = arith.addf %140, %195 : vector<9x64xf32>
    %197 = arith.index_cast %arg2 : i32 to index
    %c0_79 = arith.constant 0 : index
    %c0_80 = arith.constant 0 : index
    %198 = vector.load %arg21[%197, %c0_79, %c0_80] : memref<1x9x64xf32, #tpu.memory_space<vmem>>, vector<1x9x64xf32>
    %199 = vector.shape_cast %198 : vector<1x9x64xf32> to vector<9x64xf32>
    %200 = vector.shape_cast %196 : vector<9x64xf32> to vector<1x9x64xf32>
    tpu.vector_store %arg21[%197, %c0_79, %c0_80], %200 {strides = array<i32>} : memref<1x9x64xf32, #tpu.memory_space<vmem>>, vector<1x9x64xf32>,
    %c1_i32 = arith.constant 1 : i32
    %201 = arith.cmpi eq, %arg1, %c1_i32 : i32
    %202 = arith.extui %201 : i1 to i32
    %c0_i32_81 = arith.constant 0 : i32
    %203 = arith.cmpi ne, %202, %c0_i32_81 : i32
    scf.if %203 {
      %204 = vector.extract_strided_slice %196 {offsets = [0, 0], sizes = [1, 64], strides = [1, 1]} : vector<9x64xf32> to vector<1x64xf32>
      %cst_82 = arith.constant dense<0.000000e+00> : vector<1xf32>
      %205 = vector.multi_reduction <add>, %204, %cst_82 [1] : vector<1x64xf32> to vector<1xf32>
      %206 = vector.shape_cast %205 : vector<1xf32> to vector<1x1xf32>
      %cst_83 = arith.constant 6.400000e+01 : f32
      %207 = vector.broadcast %cst_83 : f32 to vector<1x1xf32>
      %208 = arith.divf %206, %207 : vector<1x1xf32>
      %209 = vector.broadcast %208 : vector<1x1xf32> to vector<1x64xf32>
      %210 = arith.subf %204, %209 : vector<1x64xf32>
      %211 = arith.mulf %210, %210 : vector<1x64xf32>
      %cst_84 = arith.constant dense<0.000000e+00> : vector<1xf32>
      %212 = vector.multi_reduction <add>, %211, %cst_84 [1] : vector<1x64xf32> to vector<1xf32>
      %213 = vector.shape_cast %212 : vector<1xf32> to vector<1x1xf32>
      %cst_85 = arith.constant 6.400000e+01 : f32
      %214 = vector.broadcast %cst_85 : f32 to vector<1x1xf32>
      %215 = arith.divf %213, %214 : vector<1x1xf32>
      %216 = vector.broadcast %208 : vector<1x1xf32> to vector<1x64xf32>
      %217 = arith.subf %204, %216 : vector<1x64xf32>
      %cst_86 = arith.constant 9.99999974E-6 : f32
      %218 = vector.broadcast %cst_86 : f32 to vector<1x1xf32>
      %219 = arith.addf %215, %218 : vector<1x1xf32>
      %220 = math.rsqrt %219 : vector<1x1xf32>
      %221 = vector.broadcast %220 : vector<1x1xf32> to vector<1x64xf32>
      %222 = arith.mulf %217, %221 : vector<1x64xf32>
      %c0_87 = arith.constant 0 : index
      %c0_88 = arith.constant 0 : index
      %223 = vector.load %arg16[%c0_87, %c0_88] : memref<1x64xf32, #tpu.memory_space<vmem>>, vector<1x64xf32>
      %224 = arith.mulf %222, %223 : vector<1x64xf32>
      %c0_89 = arith.constant 0 : index
      %c0_90 = arith.constant 0 : index
      %225 = vector.load %arg17[%c0_89, %c0_90] : memref<1x64xf32, #tpu.memory_space<vmem>>, vector<1x64xf32>
      %226 = arith.addf %224, %225 : vector<1x64xf32>
      %227 = arith.truncf %226 : vector<1x64xf32> to vector<1x64xbf16>
      %c0_91 = arith.constant 0 : index
      %c0_92 = arith.constant 0 : index
      %228 = vector.load %arg18[%c0_91, %c0_92] : memref<64x1024xbf16, #tpu.memory_space<vmem>>, vector<64x1024xbf16>
      %cst_93 = arith.constant dense<0.000000e+00> : vector<1x1024xf32>
      %229 = tpu.matmul %227, %228, %cst_93 {dimension_numbers = #tpu.dot_dimension_numbers<[1], [0], [0], [1], [0, 0, 1, 1], [], []>} : vector<1x64xbf16>, vector<64x1024xbf16>, vector<1x1024xf32> -> vector<1x1024xf32>
      %c0_94 = arith.constant 0 : index
      %c0_95 = arith.constant 0 : index
      %230 = vector.load %arg19[%c0_94, %c0_95] : memref<1x1024xf32, #tpu.memory_space<vmem>>, vector<1x1024xf32>
      %231 = arith.addf %229, %230 : vector<1x1024xf32>
      %c0_96 = arith.constant 0 : index
      %c0_97 = arith.constant 0 : index
      %c0_98 = arith.constant 0 : index
      %232 = vector.load %arg20[%c0_96, %c0_97, %c0_98] : memref<1x1x1024xf32, #tpu.memory_space<vmem>>, vector<1x1x1024xf32>
      %233 = vector.shape_cast %232 : vector<1x1x1024xf32> to vector<1x1024xf32>
      %234 = vector.shape_cast %231 : vector<1x1024xf32> to vector<1x1x1024xf32>
      tpu.vector_store %arg20[%c0_96, %c0_97, %c0_98], %234 {strides = array<i32>} : memref<1x1x1024xf32, #tpu.memory_space<vmem>>, vector<1x1x1024xf32>,
    } else {
    }
    return
  }
  func.func @transform_0(%arg0: i32, %arg1: i32, %arg2: i32) -> (i32, i32, i32) {
    %c0_i32 = arith.constant 0 : i32
    %0 = arith.cmpi eq, %arg1, %c0_i32 : i32
    %c1_i32 = arith.constant 1 : i32
    %1 = arith.muli %arg0, %c1_i32 : i32
    %2 = arith.addi %1, %arg2 : i32
    %c0_i32_0 = arith.constant 0 : i32
    %3 = arith.select %0, %2, %c0_i32_0 : i32
    %c0_i32_1 = arith.constant 0 : i32
    %c0_i32_2 = arith.constant 0 : i32
    %c0_i32_3 = arith.constant 0 : i32
    return %3, %c0_i32_1, %c0_i32_2 : i32, i32, i32
  }
  func.func @transform_1(%arg0: i32, %arg1: i32, %arg2: i32) -> (i32, i32, i32) {
    %c0_i32 = arith.constant 0 : i32
    %c0_i32_0 = arith.constant 0 : i32
    %c0_i32_1 = arith.constant 0 : i32
    return %arg1, %c0_i32, %c0_i32_0 : i32, i32, i32
  }
  func.func @transform_2(%arg0: i32, %arg1: i32, %arg2: i32) -> (i32, i32, i32) {
    %c0_i32 = arith.constant 0 : i32
    %c0_i32_0 = arith.constant 0 : i32
    %c0_i32_1 = arith.constant 0 : i32
    return %arg1, %c0_i32, %c0_i32_0 : i32, i32, i32
  }
  func.func @transform_3(%arg0: i32, %arg1: i32, %arg2: i32) -> (i32, i32, i32) {
    %c0_i32 = arith.constant 0 : i32
    %c0_i32_0 = arith.constant 0 : i32
    %c0_i32_1 = arith.constant 0 : i32
    return %arg1, %c0_i32, %c0_i32_0 : i32, i32, i32
  }
  func.func @transform_4(%arg0: i32, %arg1: i32, %arg2: i32) -> (i32, i32, i32) {
    %c0_i32 = arith.constant 0 : i32
    %c0_i32_0 = arith.constant 0 : i32
    %c0_i32_1 = arith.constant 0 : i32
    return %arg1, %c0_i32, %c0_i32_0 : i32, i32, i32
  }
  func.func @transform_5(%arg0: i32, %arg1: i32, %arg2: i32) -> (i32, i32, i32) {
    %c0_i32 = arith.constant 0 : i32
    %c0_i32_0 = arith.constant 0 : i32
    %c0_i32_1 = arith.constant 0 : i32
    return %arg1, %c0_i32, %c0_i32_0 : i32, i32, i32
  }
  func.func @transform_6(%arg0: i32, %arg1: i32, %arg2: i32) -> (i32, i32, i32) {
    %c0_i32 = arith.constant 0 : i32
    %c0_i32_0 = arith.constant 0 : i32
    %c0_i32_1 = arith.constant 0 : i32
    return %arg1, %c0_i32, %c0_i32_0 : i32, i32, i32
  }
  func.func @transform_7(%arg0: i32, %arg1: i32, %arg2: i32) -> (i32, i32, i32) {
    %c0_i32 = arith.constant 0 : i32
    %c0_i32_0 = arith.constant 0 : i32
    %c0_i32_1 = arith.constant 0 : i32
    return %arg1, %c0_i32, %c0_i32_0 : i32, i32, i32
  }
  func.func @transform_8(%arg0: i32, %arg1: i32, %arg2: i32) -> (i32, i32, i32) {
    %c0_i32 = arith.constant 0 : i32
    %c0_i32_0 = arith.constant 0 : i32
    %c0_i32_1 = arith.constant 0 : i32
    return %arg1, %c0_i32, %c0_i32_0 : i32, i32, i32
  }
  func.func @transform_9(%arg0: i32, %arg1: i32, %arg2: i32) -> (i32, i32, i32) {
    %c0_i32 = arith.constant 0 : i32
    %c0_i32_0 = arith.constant 0 : i32
    %c0_i32_1 = arith.constant 0 : i32
    return %arg1, %c0_i32, %c0_i32_0 : i32, i32, i32
  }
  func.func @transform_10(%arg0: i32, %arg1: i32, %arg2: i32) -> (i32, i32, i32) {
    %c0_i32 = arith.constant 0 : i32
    %c0_i32_0 = arith.constant 0 : i32
    %c0_i32_1 = arith.constant 0 : i32
    return %arg1, %c0_i32, %c0_i32_0 : i32, i32, i32
  }
  func.func @transform_11(%arg0: i32, %arg1: i32, %arg2: i32) -> (i32, i32, i32) {
    %c0_i32 = arith.constant 0 : i32
    %c0_i32_0 = arith.constant 0 : i32
    %c0_i32_1 = arith.constant 0 : i32
    return %arg1, %c0_i32, %c0_i32_0 : i32, i32, i32
  }
  func.func @transform_12(%arg0: i32, %arg1: i32, %arg2: i32) -> (i32, i32, i32) {
    %c0_i32 = arith.constant 0 : i32
    %c0_i32_0 = arith.constant 0 : i32
    %c0_i32_1 = arith.constant 0 : i32
    return %arg1, %c0_i32, %c0_i32_0 : i32, i32, i32
  }
  func.func @transform_13(%arg0: i32, %arg1: i32, %arg2: i32) -> (i32, i32) {
    %c0_i32 = arith.constant 0 : i32
    %c0_i32_0 = arith.constant 0 : i32
    %c0_i32_1 = arith.constant 0 : i32
    return %c0_i32, %c0_i32_0 : i32, i32
  }
  func.func @transform_14(%arg0: i32, %arg1: i32, %arg2: i32) -> (i32, i32) {
    %c0_i32 = arith.constant 0 : i32
    %c0_i32_0 = arith.constant 0 : i32
    %c0_i32_1 = arith.constant 0 : i32
    return %c0_i32, %c0_i32_0 : i32, i32
  }
  func.func @transform_15(%arg0: i32, %arg1: i32, %arg2: i32) -> (i32, i32) {
    %c0_i32 = arith.constant 0 : i32
    %c0_i32_0 = arith.constant 0 : i32
    %c0_i32_1 = arith.constant 0 : i32
    return %c0_i32, %c0_i32_0 : i32, i32
  }
  func.func @transform_16(%arg0: i32, %arg1: i32, %arg2: i32) -> (i32, i32) {
    %c0_i32 = arith.constant 0 : i32
    %c0_i32_0 = arith.constant 0 : i32
    %c0_i32_1 = arith.constant 0 : i32
    return %c0_i32, %c0_i32_0 : i32, i32
  }
  func.func @transform_17(%arg0: i32, %arg1: i32, %arg2: i32) -> (i32, i32, i32) {
    %c1_i32 = arith.constant 1 : i32
    %0 = arith.muli %arg0, %c1_i32 : i32
    %1 = arith.addi %0, %arg2 : i32
    %c0_i32 = arith.constant 0 : i32
    %c0_i32_0 = arith.constant 0 : i32
    %c0_i32_1 = arith.constant 0 : i32
    return %1, %c0_i32, %c0_i32_0 : i32, i32, i32
  }
}

</mosaic_0001>

<llo_original>
// kernel: custom-call.8
$region0: #{custom-call.8}
  %s0 = inlined_call_operand.vmem [shape: f32[2,64], index: 0, kind: output, shape index: {}]

// kernel: pointcloud_encoder_forward.3
$region0: #{pointcloud_encoder_forward.3}
  #allocation0 [shape = 'u32[]', space=smem, size = 0x4, offset = 0x4, fixed_abs, tag = 'smem constant byte address 0x4 - core index']
  #allocation1 [shape = 'u32[144,128]{1,0:T(1,128)}', space=vmem, size = 0x12000, scoped, tag = 'internal scratch']
  %s0 = inlined_call_operand.vmem [shape: f32[2,8,8], index: 0, kind: input, shape index: {}]
  %s1 = inlined_call_operand.vmem [shape: f32[2,8,64], index: 1, kind: input, shape index: {}]
  %s2 = inlined_call_operand.vmem [shape: s32[2,8,16], index: 2, kind: output, shape index: {}]
  %s3 = sld [smem:[#allocation0]]
  $region41: #{pointcloud_encoder_forward.3} parent=0
    _
  %s5 = ssub.s32 1, %s3
  %s6 = scalar_select 0, %s5, %s3
  loop: start=0, step=1, limit=4
  $region2: #{pointcloud_encoder_forward.3} parent=0 // loop_pre_header
    _
  $region3: #{pointcloud_encoder_forward.3} parent=0 // loop_header
    %s8 = sphi 0, %s12
    %p9 = scmp.ge.s32.totalorder %s8, 4
    %s15 = sphi 0, %s27
    %s16 = sphi 0, %s23
    %s17 = sphi 0, %s15
    %s18 = sphi 0, %s16
    %s19 = sphi 0, %s17
    %s20 = sphi 0, %s18
    %s32 = sphi 0, %s34
    %s35 = sphi 0, %s32
    %s36 = sphi 0, %s35
    %s52 = sphi 0, %s36
    %s58 = sphi 0, %s60
    %s61 = sphi 0, %s58
    %s62 = sphi 0, %s61
    %s78 = sphi 0, %s62
    %s86 = sphi 0, %s88
    %s89 = sphi 0, %s86
    %s90 = sphi 0, %s89
    %s106 = sphi 0, %s90
  $region4: #{pointcloud_encoder_forward.3} parent=0 // loop_header_branch
    %11 = sbr.rel (%p9) target = $region8
  $region5: #{pointcloud_encoder_forward.3} parent=0 // loop_body
    %s13 = ssub.s32 %s8, 1
    %s14 = ssub.s32 %s8, 2
    %s21 = sadd.s32 1, %s16
    %p22 = scmp.ge.s32.totalorder %s21, 1
    %s23 = scalar_select %p22, 0, %s21
    %s24 = sadd.s32 1, %s15
    %s25 = scalar_select %p22, %s24, %s15
    %p26 = scmp.ge.s32.totalorder %s25, 2
    %s27 = scalar_select %p26, 0, %s25
    %s28 = ssub.s32 %s15, %s27
    %s29 = ssub.s32 %s16, %s23
    %s30 = sor.u32 %s28, %s29
    %p31 = scmp.eq.s32.totalorder %s30, 0
    %s33 = sadd.s32 %s32, 1
    %s34 = scalar_select %p31, %s32, %s33
    %p37 = pneg %p31
    %p38 = scmp.eq.s32.totalorder %s8, 1
    %p39 = por %p37, %p38
    %p40 = scmp.ne.s32.totalorder %s32, %s35
    %p41 = scmp.eq.s32.totalorder %s8, 0
    %p42 = por %p40, %p41
    %p43 = scmp.ne.s32.totalorder %s32, %s35
    %p44 = scmp.eq.s32.totalorder %s13, 1
    %p45 = por %p43, %p44
    %p46 = scmp.ne.s32.totalorder %s35, %s36
    %p47 = scmp.eq.s32.totalorder %s13, 0
    %p48 = por %p46, %p47
    %p49 = scmp.ne.s32.totalorder %s35, %s36
    %p50 = scmp.eq.s32.totalorder %s14, 1
    %p51 = por %p49, %p50
    %p53 = scmp.ne.s32.totalorder %s36, %s52
    %p54 = scmp.eq.s32.totalorder %s14, 0
    %p55 = por %p53, %p54
    %s56 = ssub.s32 %s15, %s27
    %p57 = scmp.eq.s32.totalorder %s56, 0
    %s59 = sadd.s32 %s58, 1
    %s60 = scalar_select %p57, %s58, %s59
    %p63 = pneg %p57
    %p64 = scmp.eq.s32.totalorder %s8, 1
    %p65 = por %p63, %p64
    %p66 = scmp.ne.s32.totalorder %s58, %s61
    %p67 = scmp.eq.s32.totalorder %s8, 0
    %p68 = por %p66, %p67
    %p69 = scmp.ne.s32.totalorder %s58, %s61
    %p70 = scmp.eq.s32.totalorder %s13, 1
    %p71 = por %p69, %p70
    %p72 = scmp.ne.s32.totalorder %s61, %s62
    %p73 = scmp.eq.s32.totalorder %s13, 0
    %p74 = por %p72, %p73
    %p75 = scmp.ne.s32.totalorder %s61, %s62
    %p76 = scmp.eq.s32.totalorder %s14, 1
    %p77 = por %p75, %p76
    %p79 = scmp.ne.s32.totalorder %s62, %s78
    %p80 = scmp.eq.s32.totalorder %s14, 0
    %p81 = por %p79, %p80
    %s82 = ssub.s32 %s15, %s27
    %s83 = ssub.s32 %s16, %s23
    %s84 = sor.u32 %s82, %s83
    %p85 = scmp.eq.s32.totalorder %s84, 0
    %s87 = sadd.s32 %s86, 1
    %s88 = scalar_select %p85, %s86, %s87
    %p91 = pneg %p85
    %p92 = scmp.eq.s32.totalorder %s8, 1
    %p93 = por %p91, %p92
    %p94 = scmp.ne.s32.totalorder %s86, %s89
    %p95 = scmp.eq.s32.totalorder %s8, 0
    %p96 = por %p94, %p95
    %p97 = scmp.ne.s32.totalorder %s86, %s89
    %p98 = scmp.eq.s32.totalorder %s13, 1
    %p99 = por %p97, %p98
    %p100 = scmp.ne.s32.totalorder %s89, %s90
    %p101 = scmp.eq.s32.totalorder %s13, 0
    %p102 = por %p100, %p101
    %p103 = scmp.ne.s32.totalorder %s89, %s90
    %p104 = scmp.eq.s32.totalorder %s14, 1
    %p105 = por %p103, %p104
    %p107 = scmp.ne.s32.totalorder %s90, %s106
    %p108 = scmp.eq.s32.totalorder %s14, 0
    %p109 = por %p107, %p108
    %p110 = scmp.le.s32.totalorder 1, %s8
    %p111 = scmp.lt.s32.totalorder %s8, 3
    %p112 = pnand %p110, %p111
    %p113 = pneg %p112
    // Predicated region
    $region9: #{pointcloud_encoder_forward.3} parent=5 // pred_check
      _
    $region10: #{pointcloud_encoder_forward.3} parent=5 // pred_check_branch
      %115 = sbr.rel (%p112) target = $region12
    $region11: #{pointcloud_encoder_forward.3} parent=5 // pred_region
      %s116 = ssub.s32 %s8, 1
    $region12: #{pointcloud_encoder_forward.3} parent=5 // pred_fallthru
      _
    %p117 = scmp.lt.s32.totalorder %s8, 2
    // Predicated region
    $region13: #{pointcloud_encoder_forward.3} parent=5 // pred_check
      %p118 = pneg %p117
    $region14: #{pointcloud_encoder_forward.3} parent=5 // pred_check_branch
      %120 = sbr.rel (%p118) target = $region16
    $region15: #{pointcloud_encoder_forward.3} parent=5 // pred_region
      // Predicated region
      $region17: #{pointcloud_encoder_forward.3} parent=15 // pred_check
        %p121 = pneg %p42
      $region18: #{pointcloud_encoder_forward.3} parent=15 // pred_check_branch
        %123 = sbr.rel (%p121) target = $region20
      $region19: #{pointcloud_encoder_forward.3} parent=15 // pred_region
        %p124 = scmp.lt.s32.totalorder %s15, 1
        %s125 = scalar_select %p124, %s15, 1
        %p126 = scmp.lt.s32.totalorder %s16, 0
        %s127 = scalar_select %p126, %s16, 0
        %s128 = sadd.s32 %s127, %s125
        %s129 = smul.addr %s128, 8
        %s130 = scalar_lea.vmem %s0, %s129
      $region20: #{pointcloud_encoder_forward.3} parent=15 // pred_fallthru
        _
      // Predicated region
      $region21: #{pointcloud_encoder_forward.3} parent=15 // pred_check
        %p131 = pneg %p68
      $region22: #{pointcloud_encoder_forward.3} parent=15 // pred_check_branch
        %133 = sbr.rel (%p131) target = $region24
      $region23: #{pointcloud_encoder_forward.3} parent=15 // pred_region
        %p134 = scmp.lt.s32.totalorder %s15, 1
        %s135 = scalar_select %p134, %s15, 1
        %s136 = smul.addr %s135, 8
        %s137 = scalar_lea.vmem %s1, %s136
      $region24: #{pointcloud_encoder_forward.3} parent=15 // pred_fallthru
        _
    $region16: #{pointcloud_encoder_forward.3} parent=5 // pred_fallthru
      _
    %p138 = scmp.le.s32.totalorder 1, %s8
    %p139 = scmp.lt.s32.totalorder %s8, 3
    %p140 = pnand %p138, %p139
    %p141 = pneg %p140
    // Predicated region
    $region25: #{pointcloud_encoder_forward.3} parent=5 // pred_check
      _
    $region26: #{pointcloud_encoder_forward.3} parent=5 // pred_check_branch
      %143 = sbr.rel (%p140) target = $region28
    $region27: #{pointcloud_encoder_forward.3} parent=5 // pred_region
      %s144 = ssub.s32 %s8, 1
      %p145 = scmp.lt.s32.totalorder %s17, 1
      %s146 = scalar_select %p145, %s17, 1
      %p147 = scmp.lt.s32.totalorder %s18, 0
      %s148 = scalar_select %p147, %s18, 0
      %s149 = sadd.s32 %s148, %s146
      %s150 = smul.addr %s149, 8
      %s151 = scalar_lea.vmem %s0, %s150
      %p152 = pneg %p48
      %p153 = pneg %p45
      %p154 = scmp.lt.s32.totalorder %s17, 1
      %s155 = scalar_select %p154, %s17, 1
      %s156 = smul.addr %s155, 8
      %s157 = scalar_lea.vmem %s1, %s156
      %p158 = pneg %p74
      %p159 = pneg %p71
      %p160 = pneg %p102
      %p161 = pneg %p99
      %p162 = scmp.lt.s32.totalorder %s17, 1
      %s163 = scalar_select %p162, %s17, 1
      %p164 = scmp.lt.s32.totalorder %s18, 0
      %s165 = scalar_select %p164, %s18, 0
      %s166 = sadd.s32 %s165, %s163
      %s167 = smul.addr %s166, 8
      %s168 = scalar_lea.vmem %s2, %s167
      %p169 = scmp.lt.s32.totalorder %s17, 1
      %s170 = scalar_select %p169, %s17, 1
      %p171 = scmp.lt.s32.totalorder %s18, 0
      %s172 = scalar_select %p171, %s18, 0
      %s173 = sadd.s32 %s172, %s170
      %s174 = smul.addr %s173, 8
      %s175 = scalar_lea.vmem %s0, %s174
      %p176 = scmp.lt.s32.totalorder %s17, 1
      %s177 = scalar_select %p176, %s17, 1
      %s178 = smul.addr %s177, 8
      %s179 = scalar_lea.vmem %s1, %s178
      %p180 = scmp.lt.s32.totalorder %s17, 1
      %s181 = scalar_select %p180, %s17, 1
      %p182 = scmp.lt.s32.totalorder %s18, 0
      %s183 = scalar_select %p182, %s18, 0
      %s184 = sadd.s32 %s183, %s181
      %s185 = smul.addr %s184, 8
      %s186 = scalar_lea.vmem %s2, %s185
      %v187 = vld [vmem:[%s175] sm:$0xff]
      %v188 = vld [vmem:[%s179] sm:$0xff]
      %vm189 = vcmask 64512
      %v191 = vsel %vm189, %v187, 0
      %193 = vmatprep.subr.mxu0 0.0
      %194 = vmatpush1.msra.mxu0 %v188
      %195 = vmatprep.subr.mxu0 0.0
      %196 = vmatpush1.msra.mxu0 0.0
      %197 = vmatprep.subr.mxu0 0.0
      %198 = vmatpush1.msra.mxu0 0.0
      %199 = vmatprep.subr.mxu0 0.0
      %200 = vmatpush1.msra.mxu0 0.0
      %201 = vmatprep.subr.mxu0 0.0
      %202 = vmatpush1.msra.mxu0 0.0
      %203 = vmatprep.subr.mxu0 0.0
      %204 = vmatpush1.msra.mxu0 0.0
      %205 = vmatprep.subr.mxu0 0.0
      %206 = vmatpush1.msra.mxu0 0.0
      %207 = vmatprep.subr.mxu0 0.0
      %208 = vmatpush1.msra.mxu0 0.0
      %209 = vmatprep.subr.mxu0 0.0
      %210 = vmatpush1.msra.mxu0 0.0
      %211 = vmatprep.subr.mxu0 0.0
      %212 = vmatpush1.msra.mxu0 0.0
      %213 = vmatprep.subr.mxu0 0.0
      %214 = vmatpush1.msra.mxu0 0.0
      %215 = vmatprep.subr.mxu0 0.0
      %216 = vmatpush1.msra.mxu0 0.0
      %217 = vmatprep.subr.mxu0 0.0
      %218 = vmatpush1.msra.mxu0 0.0
      %219 = vmatprep.subr.mxu0 0.0
      %220 = vmatpush1.msra.mxu0 0.0
      %221 = vmatprep.subr.mxu0 0.0
      %222 = vmatpush1.msra.mxu0 0.0
      %223 = vmatprep.subr.mxu0 0.0
      %224 = vmatpush1.msra.mxu0 0.0
      %225 = vmatprep.subr.mxu0 0.0
      %226 = vmatpush1.msra.mxu0 0.0
      %227 = vmatprep.subr.mxu0 0.0
      %228 = vmatpush1.msra.mxu0 0.0
      %229 = vmatprep.subr.mxu0 0.0
      %230 = vmatpush1.msra.mxu0 0.0
      %231 = vmatprep.subr.mxu0 0.0
      %232 = vmatpush1.msra.mxu0 0.0
      %233 = vmatprep.subr.mxu0 0.0
      %234 = vmatpush1.msra.mxu0 0.0
      %235 = vmatprep.subr.mxu0 0.0
      %236 = vmatpush1.msra.mxu0 0.0
      %237 = vmatprep.subr.mxu0 0.0
      %238 = vmatpush1.msra.mxu0 0.0
      %239 = vmatprep.subr.mxu0 0.0
      %240 = vmatpush1.msra.mxu0 0.0
      %241 = vmatprep.subr.mxu0 0.0
      %242 = vmatpush1.msra.mxu0 0.0
      %243 = vmatprep.subr.mxu0 0.0
      %244 = vmatpush1.msra.mxu0 0.0
      %245 = vmatprep.subr.mxu0 0.0
      %246 = vmatpush1.msra.mxu0 0.0
      %247 = vmatprep.subr.mxu0 0.0
      %248 = vmatpush1.msra.mxu0 0.0
      %249 = vmatprep.subr.mxu0 0.0
      %250 = vmatpush1.msra.mxu0 0.0
      %251 = vmatprep.subr.mxu0 0.0
      %252 = vmatpush1.msra.mxu0 0.0
      %253 = vmatprep.subr.mxu0 0.0
      %254 = vmatpush1.msra.mxu0 0.0
      %255 = vmatprep.subr.mxu0 0.0
      %256 = vmatpush1.msra.mxu0 0.0
      %257 = vmatprep.mubr.f32.mxu0 0.0
      %258 = vmatmul.mubr.f32.gmra.mrb[0].mxu0 %v191
      %v259 = vpop.f32.mrb[0].mxu0
      %v260 = vadd.f32 0.0, %v259
      %v261 = vpop.f32.mrb[0].mxu0
      %262 = vdwg.mxu0
      %v263 = vmul.f32 %v187, %v187
      %v264 = vsel %vm189, %v263, 0.0
      %265 = vadd.xlane.f32.xlu0 %v264
      %v266 = vpop.xlane.xlu0 %265
      %v267 = vmul.f32 %v188, %v188
      %vm268 = vcmask 523264
      %v269 = vsel %vm268, %v267, 0.0
      %v270 = vrot.slane %v269, 4
      %v271 = vadd.f32 %v269, %v270
      %v272 = vrot.slane %v271, 2
      %v273 = vadd.f32 %v271, %v272
      %v274 = vrot.slane %v273, 1
      %v275 = vadd.f32 %v273, %v274
      %v276 = vmul.f32 %v260, -2.0
      %v277 = vadd.f32 %v276, %v266
      %v278 = vadd.f32 %v277, %v275
      %v279 = vlaneseq
      %v280 = vand.u32 %v279, 127
      %v281 = vcvt.s32.f32 %v280
      %v282 = vsel %vm268, %v278, inf
      %283 = vmin.xlane.f32.xlu0 %v282
      %v284 = vpop.xlane.xlu0 %283
      %vm285 = vcmp.le.f32.partialorder %v278, %v284
      %v286 = vsel %vm285, %v281, 64.0
      %v287 = vsel %vm268, %v286, inf
      %288 = vmin.xlane.f32.xlu0 %v287
      %v289 = vpop.xlane.xlu0 %288
      %v290 = vcvt.f32.s32.to.zero.pseudo %v289
      %vm291 = vcmp.eq.f32.partialorder %v281, %v289
      %v292 = vsel %vm291, inf, %v278
      %v293 = vsel %vm268, %v292, inf
      %294 = vmin.xlane.f32.xlu0 %v293
      %v295 = vpop.xlane.xlu0 %294
      %vm296 = vcmp.le.f32.partialorder %v292, %v295
      %v297 = vsel %vm296, %v281, 64.0
      %v298 = vsel %vm268, %v297, inf
      %299 = vmin.xlane.f32.xlu0 %v298
      %v300 = vpop.xlane.xlu0 %299
      %v301 = vcvt.f32.s32.to.zero.pseudo %v300
      %vm302 = vcmp.eq.f32.partialorder %v281, %v300
      %v303 = vsel %vm302, inf, %v292
      %v304 = vsel %vm268, %v303, inf
      %305 = vmin.xlane.f32.xlu0 %v304
      %v306 = vpop.xlane.xlu0 %305
      %vm307 = vcmp.le.f32.partialorder %v303, %v306
      %v308 = vsel %vm307, %v281, 64.0
      %v309 = vsel %vm268, %v308, inf
      %310 = vmin.xlane.f32.xlu0 %v309
      %v311 = vpop.xlane.xlu0 %310
      %v312 = vcvt.f32.s32.to.zero.pseudo %v311
      %vm313 = vcmp.eq.f32.partialorder %v281, %v311
      %v314 = vsel %vm313, inf, %v303
      %v315 = vsel %vm268, %v314, inf
      %316 = vmin.xlane.f32.xlu0 %v315
      %v317 = vpop.xlane.xlu0 %316
      %vm318 = vcmp.le.f32.partialorder %v314, %v317
      %v319 = vsel %vm318, %v281, 64.0
      %v320 = vsel %vm268, %v319, inf
      %321 = vmin.xlane.f32.xlu0 %v320
      %v322 = vpop.xlane.xlu0 %321
      %v323 = vcvt.f32.s32.to.zero.pseudo %v322
      %vm324 = vcmp.eq.f32.partialorder %v281, %v322
      %v325 = vsel %vm324, inf, %v314
      %v326 = vsel %vm268, %v325, inf
      %327 = vmin.xlane.f32.xlu0 %v326
      %v328 = vpop.xlane.xlu0 %327
      %vm329 = vcmp.le.f32.partialorder %v325, %v328
      %v330 = vsel %vm329, %v281, 64.0
      %v331 = vsel %vm268, %v330, inf
      %332 = vmin.xlane.f32.xlu0 %v331
      %v333 = vpop.xlane.xlu0 %332
      %v334 = vcvt.f32.s32.to.zero.pseudo %v333
      %vm335 = vcmp.eq.f32.partialorder %v281, %v333
      %v336 = vsel %vm335, inf, %v325
      %v337 = vsel %vm268, %v336, inf
      %338 = vmin.xlane.f32.xlu0 %v337
      %v339 = vpop.xlane.xlu0 %338
      %vm340 = vcmp.le.f32.partialorder %v336, %v339
      %v341 = vsel %vm340, %v281, 64.0
      %v342 = vsel %vm268, %v341, inf
      %343 = vmin.xlane.f32.xlu0 %v342
      %v344 = vpop.xlane.xlu0 %343
      %v345 = vcvt.f32.s32.to.zero.pseudo %v344
      %vm346 = vcmp.eq.f32.partialorder %v281, %v344
      %v347 = vsel %vm346, inf, %v336
      %v348 = vsel %vm268, %v347, inf
      %349 = vmin.xlane.f32.xlu0 %v348
      %v350 = vpop.xlane.xlu0 %349
      %vm351 = vcmp.le.f32.partialorder %v347, %v350
      %v352 = vsel %vm351, %v281, 64.0
      %v353 = vsel %vm268, %v352, inf
      %354 = vmin.xlane.f32.xlu0 %v353
      %v355 = vpop.xlane.xlu0 %354
      %v356 = vcvt.f32.s32.to.zero.pseudo %v355
      %vm357 = vcmp.eq.f32.partialorder %v281, %v355
      %v358 = vsel %vm357, inf, %v347
      %v359 = vsel %vm268, %v358, inf
      %360 = vmin.xlane.f32.xlu0 %v359
      %v361 = vpop.xlane.xlu0 %360
      %vm362 = vcmp.le.f32.partialorder %v358, %v361
      %v363 = vsel %vm362, %v281, 64.0
      %v364 = vsel %vm268, %v363, inf
      %365 = vmin.xlane.f32.xlu0 %v364
      %v366 = vpop.xlane.xlu0 %365
      %v367 = vcvt.f32.s32.to.zero.pseudo %v366
      %vm368 = vcmp.eq.f32.partialorder %v281, %v366
      %v369 = vsel %vm368, inf, %v358
      %v370 = vsel %vm268, %v369, inf
      %371 = vmin.xlane.f32.xlu0 %v370
      %v372 = vpop.xlane.xlu0 %371
      %vm373 = vcmp.le.f32.partialorder %v369, %v372
      %v374 = vsel %vm373, %v281, 64.0
      %v375 = vsel %vm268, %v374, inf
      %376 = vmin.xlane.f32.xlu0 %v375
      %v377 = vpop.xlane.xlu0 %376
      %v378 = vcvt.f32.s32.to.zero.pseudo %v377
      %vm379 = vcmp.eq.f32.partialorder %v281, %v377
      %v380 = vsel %vm379, inf, %v369
      %v381 = vsel %vm268, %v380, inf
      %382 = vmin.xlane.f32.xlu0 %v381
      %v383 = vpop.xlane.xlu0 %382
      %vm384 = vcmp.le.f32.partialorder %v380, %v383
      %v385 = vsel %vm384, %v281, 64.0
      %v386 = vsel %vm268, %v385, inf
      %387 = vmin.xlane.f32.xlu0 %v386
      %v388 = vpop.xlane.xlu0 %387
      %v389 = vcvt.f32.s32.to.zero.pseudo %v388
      %vm390 = vcmp.eq.f32.partialorder %v281, %v388
      %v391 = vsel %vm390, inf, %v380
      %v392 = vsel %vm268, %v391, inf
      %393 = vmin.xlane.f32.xlu0 %v392
      %v394 = vpop.xlane.xlu0 %393
      %vm395 = vcmp.le.f32.partialorder %v391, %v394
      %v396 = vsel %vm395, %v281, 64.0
      %v397 = vsel %vm268, %v396, inf
      %398 = vmin.xlane.f32.xlu0 %v397
      %v399 = vpop.xlane.xlu0 %398
      %v400 = vcvt.f32.s32.to.zero.pseudo %v399
      %vm401 = vcmp.eq.f32.partialorder %v281, %v399
      %v402 = vsel %vm401, inf, %v391
      %v403 = vsel %vm268, %v402, inf
      %404 = vmin.xlane.f32.xlu0 %v403
      %v405 = vpop.xlane.xlu0 %404
      %vm406 = vcmp.le.f32.partialorder %v402, %v405
      %v407 = vsel %vm406, %v281, 64.0
      %v408 = vsel %vm268, %v407, inf
      %409 = vmin.xlane.f32.xlu0 %v408
      %v410 = vpop.xlane.xlu0 %409
      %v411 = vcvt.f32.s32.to.zero.pseudo %v410
      %vm412 = vcmp.eq.f32.partialorder %v281, %v410
      %v413 = vsel %vm412, inf, %v402
      %v414 = vsel %vm268, %v413, inf
      %415 = vmin.xlane.f32.xlu0 %v414
      %v416 = vpop.xlane.xlu0 %415
      %vm417 = vcmp.le.f32.partialorder %v413, %v416
      %v418 = vsel %vm417, %v281, 64.0
      %v419 = vsel %vm268, %v418, inf
      %420 = vmin.xlane.f32.xlu0 %v419
      %v421 = vpop.xlane.xlu0 %420
      %v422 = vcvt.f32.s32.to.zero.pseudo %v421
      %vm423 = vcmp.eq.f32.partialorder %v281, %v421
      %v424 = vsel %vm423, inf, %v413
      %v425 = vsel %vm268, %v424, inf
      %426 = vmin.xlane.f32.xlu0 %v425
      %v427 = vpop.xlane.xlu0 %426
      %vm428 = vcmp.le.f32.partialorder %v424, %v427
      %v429 = vsel %vm428, %v281, 64.0
      %v430 = vsel %vm268, %v429, inf
      %431 = vmin.xlane.f32.xlu0 %v430
      %v432 = vpop.xlane.xlu0 %431
      %v433 = vcvt.f32.s32.to.zero.pseudo %v432
      %vm434 = vcmp.eq.f32.partialorder %v281, %v432
      %v435 = vsel %vm434, inf, %v424
      %v436 = vsel %vm268, %v435, inf
      %437 = vmin.xlane.f32.xlu0 %v436
      %v438 = vpop.xlane.xlu0 %437
      %vm439 = vcmp.le.f32.partialorder %v435, %v438
      %v440 = vsel %vm439, %v281, 64.0
      %v441 = vsel %vm268, %v440, inf
      %442 = vmin.xlane.f32.xlu0 %v441
      %v443 = vpop.xlane.xlu0 %442
      %v444 = vcvt.f32.s32.to.zero.pseudo %v443
      %vm445 = vcmp.eq.f32.partialorder %v281, %v443
      %v446 = vsel %vm445, inf, %v435
      %v447 = vsel %vm268, %v446, inf
      %448 = vmin.xlane.f32.xlu0 %v447
      %v449 = vpop.xlane.xlu0 %448
      %vm450 = vcmp.le.f32.partialorder %v446, %v449
      %v451 = vsel %vm450, %v281, 64.0
      %v452 = vsel %vm268, %v451, inf
      %453 = vmin.xlane.f32.xlu0 %v452
      %v454 = vpop.xlane.xlu0 %453
      %v455 = vcvt.f32.s32.to.zero.pseudo %v454
      %vm456 = vcmask 7168
      %v457 = vsel %vm456, %v290, %v301
      %vm458 = vcmask 15360
      %v459 = vsel %vm458, %v457, %v312
      %vm460 = vcmask 23552
      %v461 = vsel %vm460, %v459, %v323
      %vm462 = vcmask 31744
      %v463 = vsel %vm462, %v461, %v334
      %vm464 = vcmask 39936
      %v465 = vsel %vm464, %v463, %v345
      %vm466 = vcmask 48128
      %v467 = vsel %vm466, %v465, %v356
      %vm468 = vcmask 56320
      %v469 = vsel %vm468, %v467, %v367
      %v470 = vsel %vm189, %v469, %v378
      %vm471 = vcmask 72704
      %v472 = vsel %vm471, %v470, %v389
      %vm473 = vcmask 80896
      %v474 = vsel %vm473, %v472, %v400
      %vm475 = vcmask 89088
      %v476 = vsel %vm475, %v474, %v411
      %vm477 = vcmask 97280
      %v478 = vsel %vm477, %v476, %v422
      %vm479 = vcmask 105472
      %v480 = vsel %vm479, %v478, %v433
      %vm481 = vcmask 113664
      %v482 = vsel %vm481, %v480, %v444
      %vm483 = vcmask 121856
      %v484 = vsel %vm483, %v482, %v455
      %vm485 = vcmask 130048
      %486 = vst.msk [vmem:[%s186] sm:$0xff] %vm485, %v484
      %p487 = scmp.lt.s32.totalorder %s17, 1
      %s488 = scalar_select %p487, %s17, 1
      %p489 = scmp.lt.s32.totalorder %s18, 0
      %s490 = scalar_select %p489, %s18, 0
      %s491 = sadd.s32 %s490, %s488
      %s492 = smul.addr %s491, 8
      %s493 = scalar_lea.vmem %s2, %s492
      // Predicated region
      $region29: #{pointcloud_encoder_forward.3} parent=27 // pred_check
        %p494 = pneg %p99
      $region30: #{pointcloud_encoder_forward.3} parent=27 // pred_check_branch
        %496 = sbr.rel (%p494) target = $region32
      $region31: #{pointcloud_encoder_forward.3} parent=27 // pred_region
        _
      $region32: #{pointcloud_encoder_forward.3} parent=27 // pred_fallthru
        _
    $region28: #{pointcloud_encoder_forward.3} parent=5 // pred_fallthru
      _
    %p497 = scmp.le.s32.totalorder 2, %s8
    // Predicated region
    $region33: #{pointcloud_encoder_forward.3} parent=5 // pred_check
      %p498 = pneg %p497
    $region34: #{pointcloud_encoder_forward.3} parent=5 // pred_check_branch
      %500 = sbr.rel (%p498) target = $region36
    $region35: #{pointcloud_encoder_forward.3} parent=5 // pred_region
      %s501 = ssub.s32 %s8, 2
      // Predicated region
      $region37: #{pointcloud_encoder_forward.3} parent=35 // pred_check
        %p502 = pneg %p105
      $region38: #{pointcloud_encoder_forward.3} parent=35 // pred_check_branch
        %504 = sbr.rel (%p502) target = $region40
      $region39: #{pointcloud_encoder_forward.3} parent=35 // pred_region
        %p505 = scmp.lt.s32.totalorder %s19, 1
        %s506 = scalar_select %p505, %s19, 1
        %p507 = scmp.lt.s32.totalorder %s20, 0
        %s508 = scalar_select %p507, %s20, 0
        %s509 = sadd.s32 %s508, %s506
        %s510 = smul.addr %s509, 8
        %s511 = scalar_lea.vmem %s2, %s510
      $region40: #{pointcloud_encoder_forward.3} parent=35 // pred_fallthru
        _
    $region36: #{pointcloud_encoder_forward.3} parent=5 // pred_fallthru
      _
  $region6: #{pointcloud_encoder_forward.3} parent=0 // loop_footer
    %s12 = sadd.s32 1, %s8
  $region7: #{pointcloud_encoder_forward.3} parent=0 // loop_footer_branch
    %7 = sbr.rel target = $region3
  $region8: #{pointcloud_encoder_forward.3} parent=0 // loop_exit
    _

// kernel: pointcloud_encoder_forward.5
$region0: #{pointcloud_encoder_forward.5}
  #allocation0 [shape = 'u32[]', space=smem, size = 0x4, offset = 0x4, fixed_abs, tag = 'smem constant byte address 0x4 - core index']
  #allocation1 [shape = 'u32[144,128]{1,0:T(1,128)}', space=vmem, size = 0x12000, scoped, tag = 'internal scratch']
  #allocation2 [shape = 'f32[1,9,64]{2,1,0:T(8,128)}', space=vmem, size = 0x2000, scoped, tag = 'scratch operand']
  %s0 = inlined_call_operand.vmem [shape: f32[2,9,64], index: 0, kind: input, shape index: {}]
  %s1 = inlined_call_operand.vmem [shape: f32[2,1,64], index: 1, kind: input, shape index: {}]
  %s2 = inlined_call_operand.vmem [shape: f32[2,1,64], index: 2, kind: input, shape index: {}]
  %s3 = inlined_call_operand.vmem [shape: bf16[2,64,192], index: 3, kind: input, shape index: {}]
  %s4 = inlined_call_operand.vmem [shape: f32[2,1,192], index: 4, kind: input, shape index: {}]
  %s5 = inlined_call_operand.vmem [shape: bf16[2,64,64], index: 5, kind: input, shape index: {}]
  %s6 = inlined_call_operand.vmem [shape: f32[2,1,64], index: 6, kind: input, shape index: {}]
  %s7 = inlined_call_operand.vmem [shape: f32[2,1,64], index: 7, kind: input, shape index: {}]
  %s8 = inlined_call_operand.vmem [shape: f32[2,1,64], index: 8, kind: input, shape index: {}]
  %s9 = inlined_call_operand.vmem [shape: bf16[2,64,256], index: 9, kind: input, shape index: {}]
  %s10 = inlined_call_operand.vmem [shape: f32[2,1,256], index: 10, kind: input, shape index: {}]
  %s11 = inlined_call_operand.vmem [shape: bf16[2,256,64], index: 11, kind: input, shape index: {}]
  %s12 = inlined_call_operand.vmem [shape: f32[2,1,64], index: 12, kind: input, shape index: {}]
  %s13 = inlined_call_operand.vmem [shape: f32[1,64], index: 13, kind: input, shape index: {}]
  %s14 = inlined_call_operand.vmem [shape: f32[1,64], index: 14, kind: input, shape index: {}]
  %s15 = inlined_call_operand.vmem [shape: bf16[64,1024], index: 15, kind: input, shape index: {}]
  %s16 = inlined_call_operand.vmem [shape: f32[1,1024], index: 16, kind: input, shape index: {}]
  %s17 = inlined_call_operand.vmem [shape: f32[2,1,1024], index: 17, kind: output, shape index: {}]
  %s18 = sld [smem:[#allocation0]]
  $region109: #{pointcloud_encoder_forward.5} parent=0
    _
  %s20 = ssub.s32 1, %s18
  %s21 = scalar_select 0, %s20, %s18
  loop: start=0, step=1, limit=6
  $region2: #{pointcloud_encoder_forward.5} parent=0 // loop_pre_header
    _
  $region3: #{pointcloud_encoder_forward.5} parent=0 // loop_header
    %s23 = sphi 0, %s27
    %p24 = scmp.ge.s32.totalorder %s23, 6
    %s30 = sphi 0, %s49
    %s31 = sphi 0, %s45
    %s32 = sphi 0, %s41
    %s33 = sphi 0, %s30
    %s34 = sphi 0, %s31
    %s35 = sphi 0, %s32
    %s36 = sphi 0, %s33
    %s37 = sphi 0, %s34
    %s38 = sphi 0, %s35
    %s58 = sphi 0, %s60
    %s61 = sphi 0, %s58
    %s62 = sphi 0, %s61
    %s78 = sphi 0, %s62
    %s84 = sphi 0, %s86
    %s87 = sphi 0, %s84
    %s88 = sphi 0, %s87
    %s104 = sphi 0, %s88
    %s110 = sphi 0, %s112
    %s113 = sphi 0, %s110
    %s114 = sphi 0, %s113
    %s130 = sphi 0, %s114
    %s136 = sphi 0, %s138
    %s139 = sphi 0, %s136
    %s140 = sphi 0, %s139
    %s156 = sphi 0, %s140
    %s162 = sphi 0, %s164
    %s165 = sphi 0, %s162
    %s166 = sphi 0, %s165
    %s182 = sphi 0, %s166
    %s188 = sphi 0, %s190
    %s191 = sphi 0, %s188
    %s192 = sphi 0, %s191
    %s208 = sphi 0, %s192
    %s214 = sphi 0, %s216
    %s217 = sphi 0, %s214
    %s218 = sphi 0, %s217
    %s234 = sphi 0, %s218
    %s240 = sphi 0, %s242
    %s243 = sphi 0, %s240
    %s244 = sphi 0, %s243
    %s260 = sphi 0, %s244
    %s266 = sphi 0, %s268
    %s269 = sphi 0, %s266
    %s270 = sphi 0, %s269
    %s286 = sphi 0, %s270
    %s292 = sphi 0, %s294
    %s295 = sphi 0, %s292
    %s296 = sphi 0, %s295
    %s312 = sphi 0, %s296
    %s318 = sphi 0, %s320
    %s321 = sphi 0, %s318
    %s322 = sphi 0, %s321
    %s338 = sphi 0, %s322
    %s344 = sphi 0, %s346
    %s347 = sphi 0, %s344
    %s348 = sphi 0, %s347
    %s364 = sphi 0, %s348
    %s370 = sphi 0, %s372
    %s373 = sphi 0, %s370
    %s374 = sphi 0, %s373
    %s390 = sphi 0, %s374
    %s394 = sphi 0, %s394
    %s396 = sphi 0, %s394
    %s397 = sphi 0, %s396
    %s411 = sphi 0, %s397
    %s415 = sphi 0, %s415
    %s417 = sphi 0, %s415
    %s418 = sphi 0, %s417
    %s432 = sphi 0, %s418
    %s436 = sphi 0, %s436
    %s438 = sphi 0, %s436
    %s439 = sphi 0, %s438
    %s453 = sphi 0, %s439
    %s457 = sphi 0, %s457
    %s459 = sphi 0, %s457
    %s460 = sphi 0, %s459
    %s474 = sphi 0, %s460
    %s482 = sphi 0, %s484
    %s485 = sphi 0, %s482
    %s486 = sphi 0, %s485
    %s502 = sphi 0, %s486
  $region4: #{pointcloud_encoder_forward.5} parent=0 // loop_header_branch
    %26 = sbr.rel (%p24) target = $region8
  $region5: #{pointcloud_encoder_forward.5} parent=0 // loop_body
    %s28 = ssub.s32 %s23, 1
    %s29 = ssub.s32 %s23, 2
    %s39 = sadd.s32 1, %s32
    %p40 = scmp.ge.s32.totalorder %s39, 1
    %s41 = scalar_select %p40, 0, %s39
    %s42 = sadd.s32 1, %s31
    %s43 = scalar_select %p40, %s42, %s31
    %p44 = scmp.ge.s32.totalorder %s43, 2
    %s45 = scalar_select %p44, 0, %s43
    %s46 = sadd.s32 1, %s30
    %s47 = scalar_select %p44, %s46, %s30
    %p48 = scmp.ge.s32.totalorder %s47, 2
    %s49 = scalar_select %p48, 0, %s47
    %p50 = scmp.eq.s32.totalorder %s31, 0
    %s51 = sadd.s32 %s30, %s32
    %s52 = scalar_select %p50, %s51, 0
    %p53 = scmp.eq.s32.totalorder %s45, 0
    %s54 = sadd.s32 %s49, %s41
    %s55 = scalar_select %p53, %s54, 0
    %s56 = ssub.s32 %s52, %s55
    %p57 = scmp.eq.s32.totalorder %s56, 0
    %s59 = sadd.s32 %s58, 1
    %s60 = scalar_select %p57, %s58, %s59
    %p63 = pneg %p57
    %p64 = scmp.eq.s32.totalorder %s23, 3
    %p65 = por %p63, %p64
    %p66 = scmp.ne.s32.totalorder %s58, %s61
    %p67 = scmp.eq.s32.totalorder %s23, 0
    %p68 = por %p66, %p67
    %p69 = scmp.ne.s32.totalorder %s58, %s61
    %p70 = scmp.eq.s32.totalorder %s28, 3
    %p71 = por %p69, %p70
    %p72 = scmp.ne.s32.totalorder %s61, %s62
    %p73 = scmp.eq.s32.totalorder %s28, 0
    %p74 = por %p72, %p73
    %p75 = scmp.ne.s32.totalorder %s61, %s62
    %p76 = scmp.eq.s32.totalorder %s29, 3
    %p77 = por %p75, %p76
    %p79 = scmp.ne.s32.totalorder %s62, %s78
    %p80 = scmp.eq.s32.totalorder %s29, 0
    %p81 = por %p79, %p80
    %s82 = ssub.s32 %s31, %s45
    %p83 = scmp.eq.s32.totalorder %s82, 0
    %s85 = sadd.s32 %s84, 1
    %s86 = scalar_select %p83, %s84, %s85
    %p89 = pneg %p83
    %p90 = scmp.eq.s32.totalorder %s23, 3
    %p91 = por %p89, %p90
    %p92 = scmp.ne.s32.totalorder %s84, %s87
    %p93 = scmp.eq.s32.totalorder %s23, 0
    %p94 = por %p92, %p93
    %p95 = scmp.ne.s32.totalorder %s84, %s87
    %p96 = scmp.eq.s32.totalorder %s28, 3
    %p97 = por %p95, %p96
    %p98 = scmp.ne.s32.totalorder %s87, %s88
    %p99 = scmp.eq.s32.totalorder %s28, 0
    %p100 = por %p98, %p99
    %p101 = scmp.ne.s32.totalorder %s87, %s88
    %p102 = scmp.eq.s32.totalorder %s29, 3
    %p103 = por %p101, %p102
    %p105 = scmp.ne.s32.totalorder %s88, %s104
    %p106 = scmp.eq.s32.totalorder %s29, 0
    %p107 = por %p105, %p106
    %s108 = ssub.s32 %s31, %s45
    %p109 = scmp.eq.s32.totalorder %s108, 0
    %s111 = sadd.s32 %s110, 1
    %s112 = scalar_select %p109, %s110, %s111
    %p115 = pneg %p109
    %p116 = scmp.eq.s32.totalorder %s23, 3
    %p117 = por %p115, %p116
    %p118 = scmp.ne.s32.totalorder %s110, %s113
    %p119 = scmp.eq.s32.totalorder %s23, 0
    %p120 = por %p118, %p119
    %p121 = scmp.ne.s32.totalorder %s110, %s113
    %p122 = scmp.eq.s32.totalorder %s28, 3
    %p123 = por %p121, %p122
    %p124 = scmp.ne.s32.totalorder %s113, %s114
    %p125 = scmp.eq.s32.totalorder %s28, 0
    %p126 = por %p124, %p125
    %p127 = scmp.ne.s32.totalorder %s113, %s114
    %p128 = scmp.eq.s32.totalorder %s29, 3
    %p129 = por %p127, %p128
    %p131 = scmp.ne.s32.totalorder %s114, %s130
    %p132 = scmp.eq.s32.totalorder %s29, 0
    %p133 = por %p131, %p132
    %s134 = ssub.s32 %s31, %s45
    %p135 = scmp.eq.s32.totalorder %s134, 0
    %s137 = sadd.s32 %s136, 1
    %s138 = scalar_select %p135, %s136, %s137
    %p141 = pneg %p135
    %p142 = scmp.eq.s32.totalorder %s23, 3
    %p143 = por %p141, %p142
    %p144 = scmp.ne.s32.totalorder %s136, %s139
    %p145 = scmp.eq.s32.totalorder %s23, 0
    %p146 = por %p144, %p145
    %p147 = scmp.ne.s32.totalorder %s136, %s139
    %p148 = scmp.eq.s32.totalorder %s28, 3
    %p149 = por %p147, %p148
    %p150 = scmp.ne.s32.totalorder %s139, %s140
    %p151 = scmp.eq.s32.totalorder %s28, 0
    %p152 = por %p150, %p151
    %p153 = scmp.ne.s32.totalorder %s139, %s140
    %p154 = scmp.eq.s32.totalorder %s29, 3
    %p155 = por %p153, %p154
    %p157 = scmp.ne.s32.totalorder %s140, %s156
    %p158 = scmp.eq.s32.totalorder %s29, 0
    %p159 = por %p157, %p158
    %s160 = ssub.s32 %s31, %s45
    %p161 = scmp.eq.s32.totalorder %s160, 0
    %s163 = sadd.s32 %s162, 1
    %s164 = scalar_select %p161, %s162, %s163
    %p167 = pneg %p161
    %p168 = scmp.eq.s32.totalorder %s23, 3
    %p169 = por %p167, %p168
    %p170 = scmp.ne.s32.totalorder %s162, %s165
    %p171 = scmp.eq.s32.totalorder %s23, 0
    %p172 = por %p170, %p171
    %p173 = scmp.ne.s32.totalorder %s162, %s165
    %p174 = scmp.eq.s32.totalorder %s28, 3
    %p175 = por %p173, %p174
    %p176 = scmp.ne.s32.totalorder %s165, %s166
    %p177 = scmp.eq.s32.totalorder %s28, 0
    %p178 = por %p176, %p177
    %p179 = scmp.ne.s32.totalorder %s165, %s166
    %p180 = scmp.eq.s32.totalorder %s29, 3
    %p181 = por %p179, %p180
    %p183 = scmp.ne.s32.totalorder %s166, %s182
    %p184 = scmp.eq.s32.totalorder %s29, 0
    %p185 = por %p183, %p184
    %s186 = ssub.s32 %s31, %s45
    %p187 = scmp.eq.s32.totalorder %s186, 0
    %s189 = sadd.s32 %s188, 1
    %s190 = scalar_select %p187, %s188, %s189
    %p193 = pneg %p187
    %p194 = scmp.eq.s32.totalorder %s23, 3
    %p195 = por %p193, %p194
    %p196 = scmp.ne.s32.totalorder %s188, %s191
    %p197 = scmp.eq.s32.totalorder %s23, 0
    %p198 = por %p196, %p197
    %p199 = scmp.ne.s32.totalorder %s188, %s191
    %p200 = scmp.eq.s32.totalorder %s28, 3
    %p201 = por %p199, %p200
    %p202 = scmp.ne.s32.totalorder %s191, %s192
    %p203 = scmp.eq.s32.totalorder %s28, 0
    %p204 = por %p202, %p203
    %p205 = scmp.ne.s32.totalorder %s191, %s192
    %p206 = scmp.eq.s32.totalorder %s29, 3
    %p207 = por %p205, %p206
    %p209 = scmp.ne.s32.totalorder %s192, %s208
    %p210 = scmp.eq.s32.totalorder %s29, 0
    %p211 = por %p209, %p210
    %s212 = ssub.s32 %s31, %s45
    %p213 = scmp.eq.s32.totalorder %s212, 0
    %s215 = sadd.s32 %s214, 1
    %s216 = scalar_select %p213, %s214, %s215
    %p219 = pneg %p213
    %p220 = scmp.eq.s32.totalorder %s23, 3
    %p221 = por %p219, %p220
    %p222 = scmp.ne.s32.totalorder %s214, %s217
    %p223 = scmp.eq.s32.totalorder %s23, 0
    %p224 = por %p222, %p223
    %p225 = scmp.ne.s32.totalorder %s214, %s217
    %p226 = scmp.eq.s32.totalorder %s28, 3
    %p227 = por %p225, %p226
    %p228 = scmp.ne.s32.totalorder %s217, %s218
    %p229 = scmp.eq.s32.totalorder %s28, 0
    %p230 = por %p228, %p229
    %p231 = scmp.ne.s32.totalorder %s217, %s218
    %p232 = scmp.eq.s32.totalorder %s29, 3
    %p233 = por %p231, %p232
    %p235 = scmp.ne.s32.totalorder %s218, %s234
    %p236 = scmp.eq.s32.totalorder %s29, 0
    %p237 = por %p235, %p236
    %s238 = ssub.s32 %s31, %s45
    %p239 = scmp.eq.s32.totalorder %s238, 0
    %s241 = sadd.s32 %s240, 1
    %s242 = scalar_select %p239, %s240, %s241
    %p245 = pneg %p239
    %p246 = scmp.eq.s32.totalorder %s23, 3
    %p247 = por %p245, %p246
    %p248 = scmp.ne.s32.totalorder %s240, %s243
    %p249 = scmp.eq.s32.totalorder %s23, 0
    %p250 = por %p248, %p249
    %p251 = scmp.ne.s32.totalorder %s240, %s243
    %p252 = scmp.eq.s32.totalorder %s28, 3
    %p253 = por %p251, %p252
    %p254 = scmp.ne.s32.totalorder %s243, %s244
    %p255 = scmp.eq.s32.totalorder %s28, 0
    %p256 = por %p254, %p255
    %p257 = scmp.ne.s32.totalorder %s243, %s244
    %p258 = scmp.eq.s32.totalorder %s29, 3
    %p259 = por %p257, %p258
    %p261 = scmp.ne.s32.totalorder %s244, %s260
    %p262 = scmp.eq.s32.totalorder %s29, 0
    %p263 = por %p261, %p262
    %s264 = ssub.s32 %s31, %s45
    %p265 = scmp.eq.s32.totalorder %s264, 0
    %s267 = sadd.s32 %s266, 1
    %s268 = scalar_select %p265, %s266, %s267
    %p271 = pneg %p265
    %p272 = scmp.eq.s32.totalorder %s23, 3
    %p273 = por %p271, %p272
    %p274 = scmp.ne.s32.totalorder %s266, %s269
    %p275 = scmp.eq.s32.totalorder %s23, 0
    %p276 = por %p274, %p275
    %p277 = scmp.ne.s32.totalorder %s266, %s269
    %p278 = scmp.eq.s32.totalorder %s28, 3
    %p279 = por %p277, %p278
    %p280 = scmp.ne.s32.totalorder %s269, %s270
    %p281 = scmp.eq.s32.totalorder %s28, 0
    %p282 = por %p280, %p281
    %p283 = scmp.ne.s32.totalorder %s269, %s270
    %p284 = scmp.eq.s32.totalorder %s29, 3
    %p285 = por %p283, %p284
    %p287 = scmp.ne.s32.totalorder %s270, %s286
    %p288 = scmp.eq.s32.totalorder %s29, 0
    %p289 = por %p287, %p288
    %s290 = ssub.s32 %s31, %s45
    %p291 = scmp.eq.s32.totalorder %s290, 0
    %s293 = sadd.s32 %s292, 1
    %s294 = scalar_select %p291, %s292, %s293
    %p297 = pneg %p291
    %p298 = scmp.eq.s32.totalorder %s23, 3
    %p299 = por %p297, %p298
    %p300 = scmp.ne.s32.totalorder %s292, %s295
    %p301 = scmp.eq.s32.totalorder %s23, 0
    %p302 = por %p300, %p301
    %p303 = scmp.ne.s32.totalorder %s292, %s295
    %p304 = scmp.eq.s32.totalorder %s28, 3
    %p305 = por %p303, %p304
    %p306 = scmp.ne.s32.totalorder %s295, %s296
    %p307 = scmp.eq.s32.totalorder %s28, 0
    %p308 = por %p306, %p307
    %p309 = scmp.ne.s32.totalorder %s295, %s296
    %p310 = scmp.eq.s32.totalorder %s29, 3
    %p311 = por %p309, %p310
    %p313 = scmp.ne.s32.totalorder %s296, %s312
    %p314 = scmp.eq.s32.totalorder %s29, 0
    %p315 = por %p313, %p314
    %s316 = ssub.s32 %s31, %s45
    %p317 = scmp.eq.s32.totalorder %s316, 0
    %s319 = sadd.s32 %s318, 1
    %s320 = scalar_select %p317, %s318, %s319
    %p323 = pneg %p317
    %p324 = scmp.eq.s32.totalorder %s23, 3
    %p325 = por %p323, %p324
    %p326 = scmp.ne.s32.totalorder %s318, %s321
    %p327 = scmp.eq.s32.totalorder %s23, 0
    %p328 = por %p326, %p327
    %p329 = scmp.ne.s32.totalorder %s318, %s321
    %p330 = scmp.eq.s32.totalorder %s28, 3
    %p331 = por %p329, %p330
    %p332 = scmp.ne.s32.totalorder %s321, %s322
    %p333 = scmp.eq.s32.totalorder %s28, 0
    %p334 = por %p332, %p333
    %p335 = scmp.ne.s32.totalorder %s321, %s322
    %p336 = scmp.eq.s32.totalorder %s29, 3
    %p337 = por %p335, %p336
    %p339 = scmp.ne.s32.totalorder %s322, %s338
    %p340 = scmp.eq.s32.totalorder %s29, 0
    %p341 = por %p339, %p340
    %s342 = ssub.s32 %s31, %s45
    %p343 = scmp.eq.s32.totalorder %s342, 0
    %s345 = sadd.s32 %s344, 1
    %s346 = scalar_select %p343, %s344, %s345
    %p349 = pneg %p343
    %p350 = scmp.eq.s32.totalorder %s23, 3
    %p351 = por %p349, %p350
    %p352 = scmp.ne.s32.totalorder %s344, %s347
    %p353 = scmp.eq.s32.totalorder %s23, 0
    %p354 = por %p352, %p353
    %p355 = scmp.ne.s32.totalorder %s344, %s347
    %p356 = scmp.eq.s32.totalorder %s28, 3
    %p357 = por %p355, %p356
    %p358 = scmp.ne.s32.totalorder %s347, %s348
    %p359 = scmp.eq.s32.totalorder %s28, 0
    %p360 = por %p358, %p359
    %p361 = scmp.ne.s32.totalorder %s347, %s348
    %p362 = scmp.eq.s32.totalorder %s29, 3
    %p363 = por %p361, %p362
    %p365 = scmp.ne.s32.totalorder %s348, %s364
    %p366 = scmp.eq.s32.totalorder %s29, 0
    %p367 = por %p365, %p366
    %s368 = ssub.s32 %s31, %s45
    %p369 = scmp.eq.s32.totalorder %s368, 0
    %s371 = sadd.s32 %s370, 1
    %s372 = scalar_select %p369, %s370, %s371
    %p375 = pneg %p369
    %p376 = scmp.eq.s32.totalorder %s23, 3
    %p377 = por %p375, %p376
    %p378 = scmp.ne.s32.totalorder %s370, %s373
    %p379 = scmp.eq.s32.totalorder %s23, 0
    %p380 = por %p378, %p379
    %p381 = scmp.ne.s32.totalorder %s370, %s373
    %p382 = scmp.eq.s32.totalorder %s28, 3
    %p383 = por %p381, %p382
    %p384 = scmp.ne.s32.totalorder %s373, %s374
    %p385 = scmp.eq.s32.totalorder %s28, 0
    %p386 = por %p384, %p385
    %p387 = scmp.ne.s32.totalorder %s373, %s374
    %p388 = scmp.eq.s32.totalorder %s29, 3
    %p389 = por %p387, %p388
    %p391 = scmp.ne.s32.totalorder %s374, %s390
    %p392 = scmp.eq.s32.totalorder %s29, 0
    %p393 = por %p391, %p392
    %s395 = sadd.s32 %s394, 1
    %p398 = scmp.eq.s32.totalorder %s23, 3
    %p399 = scmp.ne.s32.totalorder %s394, %s396
    %p400 = scmp.eq.s32.totalorder %s23, 0
    %p401 = por %p399, %p400
    %p402 = scmp.ne.s32.totalorder %s394, %s396
    %p403 = scmp.eq.s32.totalorder %s28, 3
    %p404 = por %p402, %p403
    %p405 = scmp.ne.s32.totalorder %s396, %s397
    %p406 = scmp.eq.s32.totalorder %s28, 0
    %p407 = por %p405, %p406
    %p408 = scmp.ne.s32.totalorder %s396, %s397
    %p409 = scmp.eq.s32.totalorder %s29, 3
    %p410 = por %p408, %p409
    %p412 = scmp.ne.s32.totalorder %s397, %s411
    %p413 = scmp.eq.s32.totalorder %s29, 0
    %p414 = por %p412, %p413
    %s416 = sadd.s32 %s415, 1
    %p419 = scmp.eq.s32.totalorder %s23, 3
    %p420 = scmp.ne.s32.totalorder %s415, %s417
    %p421 = scmp.eq.s32.totalorder %s23, 0
    %p422 = por %p420, %p421
    %p423 = scmp.ne.s32.totalorder %s415, %s417
    %p424 = scmp.eq.s32.totalorder %s28, 3
    %p425 = por %p423, %p424
    %p426 = scmp.ne.s32.totalorder %s417, %s418
    %p427 = scmp.eq.s32.totalorder %s28, 0
    %p428 = por %p426, %p427
    %p429 = scmp.ne.s32.totalorder %s417, %s418
    %p430 = scmp.eq.s32.totalorder %s29, 3
    %p431 = por %p429, %p430
    %p433 = scmp.ne.s32.totalorder %s418, %s432
    %p434 = scmp.eq.s32.totalorder %s29, 0
    %p435 = por %p433, %p434
    %s437 = sadd.s32 %s436, 1
    %p440 = scmp.eq.s32.totalorder %s23, 3
    %p441 = scmp.ne.s32.totalorder %s436, %s438
    %p442 = scmp.eq.s32.totalorder %s23, 0
    %p443 = por %p441, %p442
    %p444 = scmp.ne.s32.totalorder %s436, %s438
    %p445 = scmp.eq.s32.totalorder %s28, 3
    %p446 = por %p444, %p445
    %p447 = scmp.ne.s32.totalorder %s438, %s439
    %p448 = scmp.eq.s32.totalorder %s28, 0
    %p449 = por %p447, %p448
    %p450 = scmp.ne.s32.totalorder %s438, %s439
    %p451 = scmp.eq.s32.totalorder %s29, 3
    %p452 = por %p450, %p451
    %p454 = scmp.ne.s32.totalorder %s439, %s453
    %p455 = scmp.eq.s32.totalorder %s29, 0
    %p456 = por %p454, %p455
    %s458 = sadd.s32 %s457, 1
    %p461 = scmp.eq.s32.totalorder %s23, 3
    %p462 = scmp.ne.s32.totalorder %s457, %s459
    %p463 = scmp.eq.s32.totalorder %s23, 0
    %p464 = por %p462, %p463
    %p465 = scmp.ne.s32.totalorder %s457, %s459
    %p466 = scmp.eq.s32.totalorder %s28, 3
    %p467 = por %p465, %p466
    %p468 = scmp.ne.s32.totalorder %s459, %s460
    %p469 = scmp.eq.s32.totalorder %s28, 0
    %p470 = por %p468, %p469
    %p471 = scmp.ne.s32.totalorder %s459, %s460
    %p472 = scmp.eq.s32.totalorder %s29, 3
    %p473 = por %p471, %p472
    %p475 = scmp.ne.s32.totalorder %s460, %s474
    %p476 = scmp.eq.s32.totalorder %s29, 0
    %p477 = por %p475, %p476
    %s478 = sadd.s32 %s30, %s32
    %s479 = sadd.s32 %s49, %s41
    %s480 = ssub.s32 %s478, %s479
    %p481 = scmp.eq.s32.totalorder %s480, 0
    %s483 = sadd.s32 %s482, 1
    %s484 = scalar_select %p481, %s482, %s483
    %p487 = pneg %p481
    %p488 = scmp.eq.s32.totalorder %s23, 3
    %p489 = por %p487, %p488
    %p490 = scmp.ne.s32.totalorder %s482, %s485
    %p491 = scmp.eq.s32.totalorder %s23, 0
    %p492 = por %p490, %p491
    %p493 = scmp.ne.s32.totalorder %s482, %s485
    %p494 = scmp.eq.s32.totalorder %s28, 3
    %p495 = por %p493, %p494
    %p496 = scmp.ne.s32.totalorder %s485, %s486
    %p497 = scmp.eq.s32.totalorder %s28, 0
    %p498 = por %p496, %p497
    %p499 = scmp.ne.s32.totalorder %s485, %s486
    %p500 = scmp.eq.s32.totalorder %s29, 3
    %p501 = por %p499, %p500
    %p503 = scmp.ne.s32.totalorder %s486, %s502
    %p504 = scmp.eq.s32.totalorder %s29, 0
    %p505 = por %p503, %p504
    %p506 = scmp.le.s32.totalorder 1, %s23
    %p507 = scmp.lt.s32.totalorder %s23, 5
    %p508 = pnand %p506, %p507
    %p509 = pneg %p508
    // Predicated region
    $region9: #{pointcloud_encoder_forward.5} parent=5 // pred_check
      _
    $region10: #{pointcloud_encoder_forward.5} parent=5 // pred_check_branch
      %511 = sbr.rel (%p508) target = $region12
    $region11: #{pointcloud_encoder_forward.5} parent=5 // pred_region
      %s512 = ssub.s32 %s23, 1
      // Predicated region
      $region13: #{pointcloud_encoder_forward.5} parent=11 // pred_check
        %p513 = pneg %p407
      $region14: #{pointcloud_encoder_forward.5} parent=11 // pred_check_branch
        %515 = sbr.rel (%p513) target = $region16
      $region15: #{pointcloud_encoder_forward.5} parent=11 // pred_region
        _
      $region16: #{pointcloud_encoder_forward.5} parent=11 // pred_fallthru
        _
      // Predicated region
      $region17: #{pointcloud_encoder_forward.5} parent=11 // pred_check
        %p516 = pneg %p428
      $region18: #{pointcloud_encoder_forward.5} parent=11 // pred_check_branch
        %518 = sbr.rel (%p516) target = $region20
      $region19: #{pointcloud_encoder_forward.5} parent=11 // pred_region
        _
      $region20: #{pointcloud_encoder_forward.5} parent=11 // pred_fallthru
        _
      // Predicated region
      $region21: #{pointcloud_encoder_forward.5} parent=11 // pred_check
        %p519 = pneg %p449
      $region22: #{pointcloud_encoder_forward.5} parent=11 // pred_check_branch
        %521 = sbr.rel (%p519) target = $region24
      $region23: #{pointcloud_encoder_forward.5} parent=11 // pred_region
        _
      $region24: #{pointcloud_encoder_forward.5} parent=11 // pred_fallthru
        _
      // Predicated region
      $region25: #{pointcloud_encoder_forward.5} parent=11 // pred_check
        %p522 = pneg %p470
      $region26: #{pointcloud_encoder_forward.5} parent=11 // pred_check_branch
        %524 = sbr.rel (%p522) target = $region28
      $region27: #{pointcloud_encoder_forward.5} parent=11 // pred_region
        _
      $region28: #{pointcloud_encoder_forward.5} parent=11 // pred_fallthru
        _
    $region12: #{pointcloud_encoder_forward.5} parent=5 // pred_fallthru
      _
    %p525 = scmp.lt.s32.totalorder %s23, 4
    // Predicated region
    $region29: #{pointcloud_encoder_forward.5} parent=5 // pred_check
      %p526 = pneg %p525
    $region30: #{pointcloud_encoder_forward.5} parent=5 // pred_check_branch
      %528 = sbr.rel (%p526) target = $region32
    $region31: #{pointcloud_encoder_forward.5} parent=5 // pred_region
      // Predicated region
      $region33: #{pointcloud_encoder_forward.5} parent=31 // pred_check
        %p529 = pneg %p68
      $region34: #{pointcloud_encoder_forward.5} parent=31 // pred_check_branch
        %531 = sbr.rel (%p529) target = $region36
      $region35: #{pointcloud_encoder_forward.5} parent=31 // pred_region
        %p532 = scmp.eq.s32.totalorder %s31, 0
        %s533 = sadd.s32 %s30, %s32
        %s534 = scalar_select %p532, %s533, 0
        %p535 = scmp.lt.s32.totalorder %s534, 1
        %s536 = scalar_select %p535, %s534, 1
        %s537 = smul.addr %s536, 2
        %s538 = smul.addr %s537, 8
        %s539 = scalar_lea.vmem %s0, %s538
        %p540 = scmp.eq.s32.totalorder %s31, 0
        %s541 = sadd.s32 %s30, %s32
        %s542 = scalar_select %p540, %s541, 0
      $region36: #{pointcloud_encoder_forward.5} parent=31 // pred_fallthru
        _
      // Predicated region
      $region37: #{pointcloud_encoder_forward.5} parent=31 // pred_check
        %p543 = pneg %p94
      $region38: #{pointcloud_encoder_forward.5} parent=31 // pred_check_branch
        %545 = sbr.rel (%p543) target = $region40
      $region39: #{pointcloud_encoder_forward.5} parent=31 // pred_region
        %p546 = scmp.lt.s32.totalorder %s31, 1
        %s547 = scalar_select %p546, %s31, 1
        %s548 = scalar_lea.vmem %s1, %s547
      $region40: #{pointcloud_encoder_forward.5} parent=31 // pred_fallthru
        _
      // Predicated region
      $region41: #{pointcloud_encoder_forward.5} parent=31 // pred_check
        %p549 = pneg %p120
      $region42: #{pointcloud_encoder_forward.5} parent=31 // pred_check_branch
        %551 = sbr.rel (%p549) target = $region44
      $region43: #{pointcloud_encoder_forward.5} parent=31 // pred_region
        %p552 = scmp.lt.s32.totalorder %s31, 1
        %s553 = scalar_select %p552, %s31, 1
        %s554 = scalar_lea.vmem %s2, %s553
      $region44: #{pointcloud_encoder_forward.5} parent=31 // pred_fallthru
        _
      // Predicated region
      $region45: #{pointcloud_encoder_forward.5} parent=31 // pred_check
        %p555 = pneg %p146
      $region46: #{pointcloud_encoder_forward.5} parent=31 // pred_check_branch
        %557 = sbr.rel (%p555) target = $region48
      $region47: #{pointcloud_encoder_forward.5} parent=31 // pred_region
        %p558 = scmp.lt.s32.totalorder %s31, 1
        %s559 = scalar_select %p558, %s31, 1
        %s560 = smul.addr %s559, 16
        %s561 = smul.addr %s560, 4
        %s562 = scalar_lea.vmem %s3, %s561
      $region48: #{pointcloud_encoder_forward.5} parent=31 // pred_fallthru
        _
      // Predicated region
      $region49: #{pointcloud_encoder_forward.5} parent=31 // pred_check
        %p563 = pneg %p172
      $region50: #{pointcloud_encoder_forward.5} parent=31 // pred_check_branch
        %565 = sbr.rel (%p563) target = $region52
      $region51: #{pointcloud_encoder_forward.5} parent=31 // pred_region
        %p566 = scmp.lt.s32.totalorder %s31, 1
        %s567 = scalar_select %p566, %s31, 1
        %s568 = smul.addr %s567, 2
        %s569 = scalar_lea.vmem %s4, %s568
      $region52: #{pointcloud_encoder_forward.5} parent=31 // pred_fallthru
        _
      // Predicated region
      $region53: #{pointcloud_encoder_forward.5} parent=31 // pred_check
        %p570 = pneg %p198
      $region54: #{pointcloud_encoder_forward.5} parent=31 // pred_check_branch
        %572 = sbr.rel (%p570) target = $region56
      $region55: #{pointcloud_encoder_forward.5} parent=31 // pred_region
        %p573 = scmp.lt.s32.totalorder %s31, 1
        %s574 = scalar_select %p573, %s31, 1
        %s575 = smul.addr %s574, 8
        %s576 = smul.addr %s575, 4
        %s577 = scalar_lea.vmem %s5, %s576
      $region56: #{pointcloud_encoder_forward.5} parent=31 // pred_fallthru
        _
      // Predicated region
      $region57: #{pointcloud_encoder_forward.5} parent=31 // pred_check
        %p578 = pneg %p224
      $region58: #{pointcloud_encoder_forward.5} parent=31 // pred_check_branch
        %580 = sbr.rel (%p578) target = $region60
      $region59: #{pointcloud_encoder_forward.5} parent=31 // pred_region
        %p581 = scmp.lt.s32.totalorder %s31, 1
        %s582 = scalar_select %p581, %s31, 1
        %s583 = scalar_lea.vmem %s6, %s582
      $region60: #{pointcloud_encoder_forward.5} parent=31 // pred_fallthru
        _
      // Predicated region
      $region61: #{pointcloud_encoder_forward.5} parent=31 // pred_check
        %p584 = pneg %p250
      $region62: #{pointcloud_encoder_forward.5} parent=31 // pred_check_branch
        %586 = sbr.rel (%p584) target = $region64
      $region63: #{pointcloud_encoder_forward.5} parent=31 // pred_region
        %p587 = scmp.lt.s32.totalorder %s31, 1
        %s588 = scalar_select %p587, %s31, 1
        %s589 = scalar_lea.vmem %s7, %s588
      $region64: #{pointcloud_encoder_forward.5} parent=31 // pred_fallthru
        _
      // Predicated region
      $region65: #{pointcloud_encoder_forward.5} parent=31 // pred_check
        %p590 = pneg %p276
      $region66: #{pointcloud_encoder_forward.5} parent=31 // pred_check_branch
        %592 = sbr.rel (%p590) target = $region68
      $region67: #{pointcloud_encoder_forward.5} parent=31 // pred_region
        %p593 = scmp.lt.s32.totalorder %s31, 1
        %s594 = scalar_select %p593, %s31, 1
        %s595 = scalar_lea.vmem %s8, %s594
      $region68: #{pointcloud_encoder_forward.5} parent=31 // pred_fallthru
        _
      // Predicated region
      $region69: #{pointcloud_encoder_forward.5} parent=31 // pred_check
        %p596 = pneg %p302
      $region70: #{pointcloud_encoder_forward.5} parent=31 // pred_check_branch
        %598 = sbr.rel (%p596) target = $region72
      $region71: #{pointcloud_encoder_forward.5} parent=31 // pred_region
        %p599 = scmp.lt.s32.totalorder %s31, 1
        %s600 = scalar_select %p599, %s31, 1
        %s601 = smul.addr %s600, 16
        %s602 = smul.addr %s601, 4
        %s603 = scalar_lea.vmem %s9, %s602
      $region72: #{pointcloud_encoder_forward.5} parent=31 // pred_fallthru
        _
      // Predicated region
      $region73: #{pointcloud_encoder_forward.5} parent=31 // pred_check
        %p604 = pneg %p328
      $region74: #{pointcloud_encoder_forward.5} parent=31 // pred_check_branch
        %606 = sbr.rel (%p604) target = $region76
      $region75: #{pointcloud_encoder_forward.5} parent=31 // pred_region
        %p607 = scmp.lt.s32.totalorder %s31, 1
        %s608 = scalar_select %p607, %s31, 1
        %s609 = smul.addr %s608, 2
        %s610 = scalar_lea.vmem %s10, %s609
      $region76: #{pointcloud_encoder_forward.5} parent=31 // pred_fallthru
        _
      // Predicated region
      $region77: #{pointcloud_encoder_forward.5} parent=31 // pred_check
        %p611 = pneg %p354
      $region78: #{pointcloud_encoder_forward.5} parent=31 // pred_check_branch
        %613 = sbr.rel (%p611) target = $region80
      $region79: #{pointcloud_encoder_forward.5} parent=31 // pred_region
        %p614 = scmp.lt.s32.totalorder %s31, 1
        %s615 = scalar_select %p614, %s31, 1
        %s616 = smul.addr %s615, 32
        %s617 = smul.addr %s616, 4
        %s618 = scalar_lea.vmem %s11, %s617
      $region80: #{pointcloud_encoder_forward.5} parent=31 // pred_fallthru
        _
      // Predicated region
      $region81: #{pointcloud_encoder_forward.5} parent=31 // pred_check
        %p619 = pneg %p380
      $region82: #{pointcloud_encoder_forward.5} parent=31 // pred_check_branch
        %621 = sbr.rel (%p619) target = $region84
      $region83: #{pointcloud_encoder_forward.5} parent=31 // pred_region
        %p622 = scmp.lt.s32.totalorder %s31, 1
        %s623 = scalar_select %p622, %s31, 1
        %s624 = scalar_lea.vmem %s12, %s623
      $region84: #{pointcloud_encoder_forward.5} parent=31 // pred_fallthru
        _
    $region32: #{pointcloud_encoder_forward.5} parent=5 // pred_fallthru
      _
    %p625 = scmp.le.s32.totalorder 1, %s23
    %p626 = scmp.lt.s32.totalorder %s23, 5
    %p627 = pnand %p625, %p626
    %p628 = pneg %p627
    // Predicated region
    $region85: #{pointcloud_encoder_forward.5} parent=5 // pred_check
      _
    $region86: #{pointcloud_encoder_forward.5} parent=5 // pred_check_branch
      %630 = sbr.rel (%p627) target = $region88
    $region87: #{pointcloud_encoder_forward.5} parent=5 // pred_region
      %s631 = ssub.s32 %s23, 1
      %p632 = scmp.eq.s32.totalorder %s34, 0
      %s633 = sadd.s32 %s33, %s35
      %s634 = scalar_select %p632, %s633, 0
      %p635 = scmp.lt.s32.totalorder %s634, 1
      %s636 = scalar_select %p635, %s634, 1
      %s637 = smul.addr %s636, 2
      %s638 = smul.addr %s637, 8
      %s639 = scalar_lea.vmem %s0, %s638
      %p640 = pneg %p74
      %p641 = pneg %p71
      %p642 = scmp.lt.s32.totalorder %s34, 1
      %s643 = scalar_select %p642, %s34, 1
      %s644 = scalar_lea.vmem %s1, %s643
      %p645 = pneg %p100
      %p646 = pneg %p97
      %p647 = scmp.lt.s32.totalorder %s34, 1
      %s648 = scalar_select %p647, %s34, 1
      %s649 = scalar_lea.vmem %s2, %s648
      %p650 = pneg %p126
      %p651 = pneg %p123
      %p652 = scmp.lt.s32.totalorder %s34, 1
      %s653 = scalar_select %p652, %s34, 1
      %s654 = smul.addr %s653, 16
      %s655 = smul.addr %s654, 4
      %s656 = scalar_lea.vmem %s3, %s655
      %p657 = pneg %p152
      %p658 = pneg %p149
      %p659 = scmp.lt.s32.totalorder %s34, 1
      %s660 = scalar_select %p659, %s34, 1
      %s661 = smul.addr %s660, 2
      %s662 = scalar_lea.vmem %s4, %s661
      %p663 = pneg %p178
      %p664 = pneg %p175
      %p665 = scmp.lt.s32.totalorder %s34, 1
      %s666 = scalar_select %p665, %s34, 1
      %s667 = smul.addr %s666, 8
      %s668 = smul.addr %s667, 4
      %s669 = scalar_lea.vmem %s5, %s668
      %p670 = pneg %p204
      %p671 = pneg %p201
      %p672 = scmp.lt.s32.totalorder %s34, 1
      %s673 = scalar_select %p672, %s34, 1
      %s674 = scalar_lea.vmem %s6, %s673
      %p675 = pneg %p230
      %p676 = pneg %p227
      %p677 = scmp.lt.s32.totalorder %s34, 1
      %s678 = scalar_select %p677, %s34, 1
      %s679 = scalar_lea.vmem %s7, %s678
      %p680 = pneg %p256
      %p681 = pneg %p253
      %p682 = scmp.lt.s32.totalorder %s34, 1
      %s683 = scalar_select %p682, %s34, 1
      %s684 = scalar_lea.vmem %s8, %s683
      %p685 = pneg %p282
      %p686 = pneg %p279
      %p687 = scmp.lt.s32.totalorder %s34, 1
      %s688 = scalar_select %p687, %s34, 1
      %s689 = smul.addr %s688, 16
      %s690 = smul.addr %s689, 4
      %s691 = scalar_lea.vmem %s9, %s690
      %p692 = pneg %p308
      %p693 = pneg %p305
      %p694 = scmp.lt.s32.totalorder %s34, 1
      %s695 = scalar_select %p694, %s34, 1
      %s696 = smul.addr %s695, 2
      %s697 = scalar_lea.vmem %s10, %s696
      %p698 = pneg %p334
      %p699 = pneg %p331
      %p700 = scmp.lt.s32.totalorder %s34, 1
      %s701 = scalar_select %p700, %s34, 1
      %s702 = smul.addr %s701, 32
      %s703 = smul.addr %s702, 4
      %s704 = scalar_lea.vmem %s11, %s703
      %p705 = pneg %p360
      %p706 = pneg %p357
      %p707 = scmp.lt.s32.totalorder %s34, 1
      %s708 = scalar_select %p707, %s34, 1
      %s709 = scalar_lea.vmem %s12, %s708
      %p710 = pneg %p386
      %p711 = pneg %p383
      %p712 = pneg %p407
      %p713 = pneg %p404
      %p714 = pneg %p428
      %p715 = pneg %p425
      %p716 = pneg %p449
      %p717 = pneg %p446
      %p718 = pneg %p470
      %p719 = pneg %p467
      %p720 = pneg %p498
      %p721 = pneg %p495
      %s722 = sadd.s32 %s33, %s35
      %p723 = scmp.lt.s32.totalorder %s722, 1
      %s724 = scalar_select %p723, %s722, 1
      %s725 = smul.addr %s724, 8
      %s726 = scalar_lea.vmem %s17, %s725
      %p727 = scmp.eq.s32.totalorder %s34, 0
      %s728 = sadd.s32 %s33, %s35
      %s729 = scalar_select %p727, %s728, 0
      %p730 = scmp.lt.s32.totalorder %s729, 1
      %s731 = scalar_select %p730, %s729, 1
      %s732 = smul.addr %s731, 2
      %s733 = smul.addr %s732, 8
      %s734 = scalar_lea.vmem %s0, %s733
      %p735 = scmp.eq.s32.totalorder %s34, 0
      %s736 = sadd.s32 %s33, %s35
      %s737 = scalar_select %p735, %s736, 0
      %p738 = scmp.lt.s32.totalorder %s34, 1
      %s739 = scalar_select %p738, %s34, 1
      %s740 = scalar_lea.vmem %s1, %s739
      %p741 = scmp.lt.s32.totalorder %s34, 1
      %s742 = scalar_select %p741, %s34, 1
      %s743 = scalar_lea.vmem %s2, %s742
      %p744 = scmp.lt.s32.totalorder %s34, 1
      %s745 = scalar_select %p744, %s34, 1
      %s746 = smul.addr %s745, 16
      %s747 = smul.addr %s746, 4
      %s748 = scalar_lea.vmem %s3, %s747
      %p749 = scmp.lt.s32.totalorder %s34, 1
      %s750 = scalar_select %p749, %s34, 1
      %s751 = smul.addr %s750, 2
      %s752 = scalar_lea.vmem %s4, %s751
      %p753 = scmp.lt.s32.totalorder %s34, 1
      %s754 = scalar_select %p753, %s34, 1
      %s755 = smul.addr %s754, 8
      %s756 = smul.addr %s755, 4
      %s757 = scalar_lea.vmem %s5, %s756
      %p758 = scmp.lt.s32.totalorder %s34, 1
      %s759 = scalar_select %p758, %s34, 1
      %s760 = scalar_lea.vmem %s6, %s759
      %p761 = scmp.lt.s32.totalorder %s34, 1
      %s762 = scalar_select %p761, %s34, 1
      %s763 = scalar_lea.vmem %s7, %s762
      %p764 = scmp.lt.s32.totalorder %s34, 1
      %s765 = scalar_select %p764, %s34, 1
      %s766 = scalar_lea.vmem %s8, %s765
      %p767 = scmp.lt.s32.totalorder %s34, 1
      %s768 = scalar_select %p767, %s34, 1
      %s769 = smul.addr %s768, 16
      %s770 = smul.addr %s769, 4
      %s771 = scalar_lea.vmem %s9, %s770
      %p772 = scmp.lt.s32.totalorder %s34, 1
      %s773 = scalar_select %p772, %s34, 1
      %s774 = smul.addr %s773, 2
      %s775 = scalar_lea.vmem %s10, %s774
      %p776 = scmp.lt.s32.totalorder %s34, 1
      %s777 = scalar_select %p776, %s34, 1
      %s778 = smul.addr %s777, 32
      %s779 = smul.addr %s778, 4
      %s780 = scalar_lea.vmem %s11, %s779
      %p781 = scmp.lt.s32.totalorder %s34, 1
      %s782 = scalar_select %p781, %s34, 1
      %s783 = scalar_lea.vmem %s12, %s782
      %s784 = sadd.s32 %s33, %s35
      %p785 = scmp.lt.s32.totalorder %s784, 1
      %s786 = scalar_select %p785, %s784, 1
      %s787 = smul.addr %s786, 8
      %s788 = scalar_lea.vmem %s17, %s787
      %s789 = sadd.s32 %s33, %s35
      %p791 = scmp.eq.s32.totalorder %s34, 0
      // Predicated region
      $region89: #{pointcloud_encoder_forward.5} parent=87 // pred_check
        %p792 = pneg %p791
      $region90: #{pointcloud_encoder_forward.5} parent=87 // pred_check_branch
        %794 = sbr.rel (%p792) target = $region92
      $region91: #{pointcloud_encoder_forward.5} parent=87 // pred_region
        %v795 = vld [vmem:[%s734] sm:$0xff]
        %v796 = vld [vmem:[%s734 + $0x8] sm:$0x1]
        %s797 = smul.u32 %s35, 16
        %s798 = scalar_lea.vmem [#allocation2], %s797
        %vm799 = vcmask 523264
        %800 = vst.msk [vmem:[%s798] sm:$0xff] %vm799, %v795
        %vm801 = vcmask 516096
        %802 = vst.msk [vmem:[%s798 + $0x8] sm:$0x1] %vm801, %v796
      $region92: #{pointcloud_encoder_forward.5} parent=87 // pred_fallthru
        _
      %s803 = smul.u32 %s35, 16
      %s804 = scalar_lea.vmem [#allocation2], %s803
      %v805 = vld [vmem:[%s804] sm:$0xff]
      %v806 = vld [vmem:[%s804 + $0x8] sm:$0x1]
      %v807 = vld [vmem:[%s740] sm:$0x1]
      %v808 = vld [vmem:[%s743] sm:$0x1]
      %vm809 = vcmask 523264
      %v810 = vsel %vm809, %v805, 0.0
      %811 = vadd.xlane.f32.xlu0 %v810
      %v812 = vpop.xlane.xlu0 %811
      %vm813 = vcmask 516096
      %v814 = vsel %vm813, %v806, 0.0
      %815 = vadd.xlane.f32.xlu0 %v814
      %v816 = vpop.xlane.xlu0 %815
      %v817 = vrcp.pop 64.0
      %v818 = vmul.f32 %v812, %v817
      %v819 = vmul.f32 %v816, %v817
      %v820 = vsub.f32 %v805, %v818
      %v821 = vsub.f32 %v806, %v819
      %v822 = vmul.f32 %v820, %v820
      %v823 = vmul.f32 %v821, %v821
      %v824 = vsel %vm809, %v822, 0.0
      %825 = vadd.xlane.f32.xlu0 %v824
      %v826 = vpop.xlane.xlu0 %825
      %v827 = vsel %vm813, %v823, 0.0
      %828 = vadd.xlane.f32.xlu0 %v827
      %v829 = vpop.xlane.xlu0 %828
      %v830 = vmul.f32 %v826, %v817
      %v831 = vmul.f32 %v829, %v817
      %v832 = vadd.f32 %v830, 1e-05
      %v833 = vadd.f32 %v831, 1e-05
      %v834 = vrsqrt.pop %v832
      %v835 = vrsqrt.pop %v833
      %v836 = vmul.f32 %v820, %v834
      %v837 = vmul.f32 %v821, %v835
      %v839 = vlaneseq
      %v840 = vshrl.u32 %v839, 7
      %v841 = vsub.s32 0, %v840
      %v842 = vrot.slane %v807, %v841
      %v844 = vmul.f32 %v836, %v842
      %v845 = vmul.f32 %v837, %v842
      %v847 = vlaneseq
      %v848 = vshrl.u32 %v847, 7
      %v849 = vsub.s32 0, %v848
      %v850 = vrot.slane %v808, %v849
      %v852 = vadd.f32 %v844, %v850
      %v853 = vadd.f32 %v845, %v850
      %v854 = vpack.c.bf16 %v853, %v852
      %v855 = vld [vmem:[%s748] sm:$0xff]
      %v856 = vld [vmem:[%s748 + $0x8] sm:$0xff]
      %v857 = vld [vmem:[%s748 + $0x10] sm:$0xff]
      %v858 = vld [vmem:[%s748 + $0x18] sm:$0xff]
      %v859 = vld [vmem:[%s748 + $0x20] sm:$0xff]
      %v860 = vld [vmem:[%s748 + $0x28] sm:$0xff]
      %v861 = vld [vmem:[%s748 + $0x30] sm:$0xff]
      %v862 = vld [vmem:[%s748 + $0x38] sm:$0xff]
      %v863 = vld [vmem:[%s752] sm:$0x3]
      %v865 = vlaneseq
      %v866 = vshrl.u32 %v865, 7
      %v867 = vsub.s32 0, %v866
      %v868 = vrot.slane %v863, %v867
      %v869 = vlaneseq
      %v870 = vshrl.u32 %v869, 7
      %v871 = vsub.s32 1, %v870
      %v872 = vrot.slane %v863, %v871
      %v883 = vunpack.c.l.b16 %v855
      %v884 = vunpack.c.h.b16 %v855
      %v885 = vunpack.c.l.b16 %v856
      %v886 = vunpack.c.h.b16 %v856
      %v887 = vunpack.c.l.b16 %v857
      %v888 = vunpack.c.h.b16 %v857
      %v889 = vunpack.c.l.b16 %v858
      %v890 = vunpack.c.h.b16 %v858
      %v891 = vunpack.c.l.b16 %v859
      %v892 = vunpack.c.h.b16 %v859
      %v893 = vunpack.c.l.b16 %v860
      %v894 = vunpack.c.h.b16 %v860
      %v895 = vunpack.c.l.b16 %v861
      %v896 = vunpack.c.h.b16 %v861
      %v897 = vunpack.c.l.b16 %v862
      %v898 = vunpack.c.h.b16 %v862
      %v899 = vpack.c.b16 %v885, %v883
      %v900 = vpack.c.b16 %v886, %v884
      %v901 = vpack.c.b16 %v889, %v887
      %v902 = vpack.c.b16 %v890, %v888
      %v903 = vpack.c.b16 %v893, %v891
      %v904 = vpack.c.b16 %v894, %v892
      %v905 = vpack.c.b16 %v897, %v895
      %v906 = vpack.c.b16 %v898, %v896
      %v916 = vsel %vm809, %v854, 0
      %918 = vmatprep.subr.bf16.mxu0 %v900
      %919 = vmatpush1.bf16.msra.mxu0 %v899
      %920 = vmatprep.subr.bf16.mxu0 %v902
      %921 = vmatpush1.bf16.msra.mxu0 %v901
      %922 = vmatprep.subr.bf16.mxu0 %v904
      %923 = vmatpush1.bf16.msra.mxu0 %v903
      %924 = vmatprep.subr.bf16.mxu0 %v906
      %925 = vmatpush1.bf16.msra.mxu0 %v905
      %926 = vmatprep.subr.bf16.mxu0 0
      %927 = vmatpush1.bf16.msra.mxu0 0
      %928 = vmatprep.subr.bf16.mxu0 0
      %929 = vmatpush1.bf16.msra.mxu0 0
      %930 = vmatprep.subr.bf16.mxu0 0
      %931 = vmatpush1.bf16.msra.mxu0 0
      %932 = vmatprep.subr.bf16.mxu0 0
      %933 = vmatpush1.bf16.msra.mxu0 0
      %934 = vmatprep.subr.bf16.mxu0 0
      %935 = vmatpush1.bf16.msra.mxu0 0
      %936 = vmatprep.subr.bf16.mxu0 0
      %937 = vmatpush1.bf16.msra.mxu0 0
      %938 = vmatprep.subr.bf16.mxu0 0
      %939 = vmatpush1.bf16.msra.mxu0 0
      %940 = vmatprep.subr.bf16.mxu0 0
      %941 = vmatpush1.bf16.msra.mxu0 0
      %942 = vmatprep.subr.bf16.mxu0 0
      %943 = vmatpush1.bf16.msra.mxu0 0
      %944 = vmatprep.subr.bf16.mxu0 0
      %945 = vmatpush1.bf16.msra.mxu0 0
      %946 = vmatprep.subr.bf16.mxu0 0
      %947 = vmatpush1.bf16.msra.mxu0 0
      %948 = vmatprep.subr.bf16.mxu0 0
      %949 = vmatpush1.bf16.msra.mxu0 0
      %950 = vmatprep.mubr.bf16.mxu0 0
      %951 = vmatmul.mubr.bf16.gmra.mrb[0].mxu0 %v916
      %v952 = vpop.f32.mrb[0].mxu0
      %v953 = vadd.f32 %v868, %v952
      %v954 = vpop.f32.mrb[0].mxu0
      %v955 = vadd.f32 %v872, %v954
      %v956 = vpop.f32.mrb[0].mxu0
      %v957 = vadd.f32 %v868, %v956
      %v958 = vpop.f32.mrb[0].mxu0
      %v959 = vadd.f32 %v872, %v958
      %960 = vdwg.mxu0
      %v961 = vpack.c.bf16 %v957, %v953
      %v962 = vpack.c.bf16 %v959, %v955
      %964 = vrot.lane.b32.xlu0 %v961, 64
      %v965 = vpop.permute.xlu0 %964
      %vm966 = vcmask 130048
      %v968 = vsel %vm966, %v961, 0
      %v971 = vsel %vm966, %v965, 0
      %973 = vmatprep.subr.bf16.mxu0 0
      %974 = vmatpush1.bf16.xpose.msra.mxu0 %v971
      %975 = vmatprep.subr.bf16.mxu0 0
      %976 = vmatpush1.bf16.xpose.msra.mxu0 0
      %977 = vmatprep.subr.bf16.mxu0 0
      %978 = vmatpush1.bf16.xpose.msra.mxu0 0
      %979 = vmatprep.subr.bf16.mxu0 0
      %980 = vmatpush1.bf16.xpose.msra.mxu0 0
      %981 = vmatprep.subr.bf16.mxu0 0
      %982 = vmatpush1.bf16.xpose.msra.mxu0 0
      %983 = vmatprep.subr.bf16.mxu0 0
      %984 = vmatpush1.bf16.xpose.msra.mxu0 0
      %985 = vmatprep.subr.bf16.mxu0 0
      %986 = vmatpush1.bf16.xpose.msra.mxu0 0
      %987 = vmatprep.subr.bf16.mxu0 0
      %988 = vmatpush1.bf16.xpose.msra.mxu0 0
      %989 = vmatprep.subr.bf16.mxu0 0
      %990 = vmatpush1.bf16.xpose.msra.mxu0 0
      %991 = vmatprep.subr.bf16.mxu0 0
      %992 = vmatpush1.bf16.xpose.msra.mxu0 0
      %993 = vmatprep.subr.bf16.mxu0 0
      %994 = vmatpush1.bf16.xpose.msra.mxu0 0
      %995 = vmatprep.subr.bf16.mxu0 0
      %996 = vmatpush1.bf16.xpose.msra.mxu0 0
      %997 = vmatprep.subr.bf16.mxu0 0
      %998 = vmatpush1.bf16.xpose.msra.mxu0 0
      %999 = vmatprep.subr.bf16.mxu0 0
      %1000 = vmatpush1.bf16.xpose.msra.mxu0 0
      %1001 = vmatprep.subr.bf16.mxu0 0
      %1002 = vmatpush1.bf16.xpose.msra.mxu0 0
      %1003 = vmatprep.subr.bf16.mxu0 0
      %1004 = vmatpush1.bf16.xpose.msra.mxu0 0
      %1005 = vmatprep.mubr.bf16.mxu0 0
      %1006 = vmatmul.mubr.bf16.gmra.mrb[0].mxu0 %v968
      %v1007 = vpop.f32.mrb[0].mxu0
      %v1008 = vadd.f32 0.0, %v1007
      %v1009 = vpop.f32.mrb[0].mxu0
      %v1010 = vpop.f32.mrb[0].mxu0
      %v1011 = vadd.f32 0.0, %v1010
      %v1012 = vpop.f32.mrb[0].mxu0
      %1013 = vdwg.mxu0
      %v1014 = vmul.f32 %v1008, 0.25
      %v1015 = vmul.f32 %v1011, 0.25
      %vm1016 = vcmask 72704
      %v1017 = vsel %vm1016, %v1014, -inf
      %1018 = vmax.xlane.f32.xlu0 %v1017
      %v1019 = vpop.xlane.xlu0 %1018
      %vm1020 = vcmask 65536
      %v1021 = vsel %vm1020, %v1015, -inf
      %1022 = vmax.xlane.f32.xlu0 %v1021
      %v1023 = vpop.xlane.xlu0 %1022
      %v1024 = vsub.f32 %v1014, %v1019
      %v1025 = vsub.f32 %v1015, %v1023
      %v1026 = vmul.f32 %v1024, 1.442695
      %v1027 = vpow.pop %v1026
      %v1028 = vmul.f32 %v1025, 1.442695
      %v1029 = vpow.pop %v1028
      %v1030 = vsel %vm1016, %v1027, 0.0
      %1031 = vadd.xlane.f32.xlu0 %v1030
      %v1032 = vpop.xlane.xlu0 %1031
      %v1033 = vsel %vm1020, %v1029, 0.0
      %1034 = vadd.xlane.f32.xlu0 %v1033
      %v1035 = vpop.xlane.xlu0 %1034
      %v1036 = vrcp.pop %v1032
      %v1037 = vmul.f32 %v1027, %v1036
      %v1038 = vrcp.pop %v1035
      %v1039 = vmul.f32 %v1029, %v1038
      %v1040 = vpack.c.bf16 %v1039, %v1037
      %v1042 = vsel %vm1016, %v1040, 0
      %vm1044 = vcmask 1043456
      %vm1045 = vcmask 1044480
      %v1046 = vsel %vm1044, 4294967295, 65535
      %v1047 = vsel %vm1045, %v1046, 0
      %v1049 = vand.u32 %v962, %v1047
      %1051 = vmatprep.subr.bf16.mxu0 0
      %1052 = vmatpush1.bf16.msra.mxu0 %v1049
      %1053 = vmatprep.subr.bf16.mxu0 0
      %1054 = vmatpush1.bf16.msra.mxu0 0
      %1055 = vmatprep.subr.bf16.mxu0 0
      %1056 = vmatpush1.bf16.msra.mxu0 0
      %1057 = vmatprep.subr.bf16.mxu0 0
      %1058 = vmatpush1.bf16.msra.mxu0 0
      %1059 = vmatprep.subr.bf16.mxu0 0
      %1060 = vmatpush1.bf16.msra.mxu0 0
      %1061 = vmatprep.subr.bf16.mxu0 0
      %1062 = vmatpush1.bf16.msra.mxu0 0
      %1063 = vmatprep.subr.bf16.mxu0 0
      %1064 = vmatpush1.bf16.msra.mxu0 0
      %1065 = vmatprep.subr.bf16.mxu0 0
      %1066 = vmatpush1.bf16.msra.mxu0 0
      %1067 = vmatprep.subr.bf16.mxu0 0
      %1068 = vmatpush1.bf16.msra.mxu0 0
      %1069 = vmatprep.subr.bf16.mxu0 0
      %1070 = vmatpush1.bf16.msra.mxu0 0
      %1071 = vmatprep.subr.bf16.mxu0 0
      %1072 = vmatpush1.bf16.msra.mxu0 0
      %1073 = vmatprep.subr.bf16.mxu0 0
      %1074 = vmatpush1.bf16.msra.mxu0 0
      %1075 = vmatprep.subr.bf16.mxu0 0
      %1076 = vmatpush1.bf16.msra.mxu0 0
      %1077 = vmatprep.subr.bf16.mxu0 0
      %1078 = vmatpush1.bf16.msra.mxu0 0
      %1079 = vmatprep.subr.bf16.mxu0 0
      %1080 = vmatpush1.bf16.msra.mxu0 0
      %1081 = vmatprep.subr.bf16.mxu0 0
      %1082 = vmatpush1.bf16.msra.mxu0 0
      %1083 = vmatprep.mubr.bf16.mxu0 0
      %1084 = vmatmul.mubr.bf16.gmra.mrb[0].mxu0 %v1042
      %v1085 = vpop.f32.mrb[0].mxu0
      %v1086 = vadd.f32 0.0, %v1085
      %v1087 = vpop.f32.mrb[0].mxu0
      %v1088 = vpop.f32.mrb[0].mxu0
      %v1089 = vadd.f32 0.0, %v1088
      %v1090 = vpop.f32.mrb[0].mxu0
      %1091 = vdwg.mxu0
      %1092 = vrot.lane.b32.xlu0 %v961, 112
      %v1093 = vpop.permute.xlu0 %1092
      %1094 = vrot.lane.b32.xlu0 %v961, 48
      %v1095 = vpop.permute.xlu0 %1094
      %v1097 = vsel %vm966, %v1093, 0
      %v1100 = vsel %vm966, %v1095, 0
      %1102 = vmatprep.subr.bf16.mxu0 0
      %1103 = vmatpush1.bf16.xpose.msra.mxu0 %v1100
      %1104 = vmatprep.subr.bf16.mxu0 0
      %1105 = vmatpush1.bf16.xpose.msra.mxu0 0
      %1106 = vmatprep.subr.bf16.mxu0 0
      %1107 = vmatpush1.bf16.xpose.msra.mxu0 0
      %1108 = vmatprep.subr.bf16.mxu0 0
      %1109 = vmatpush1.bf16.xpose.msra.mxu0 0
      %1110 = vmatprep.subr.bf16.mxu0 0
      %1111 = vmatpush1.bf16.xpose.msra.mxu0 0
      %1112 = vmatprep.subr.bf16.mxu0 0
      %1113 = vmatpush1.bf16.xpose.msra.mxu0 0
      %1114 = vmatprep.subr.bf16.mxu0 0
      %1115 = vmatpush1.bf16.xpose.msra.mxu0 0
      %1116 = vmatprep.subr.bf16.mxu0 0
      %1117 = vmatpush1.bf16.xpose.msra.mxu0 0
      %1118 = vmatprep.subr.bf16.mxu0 0
      %1119 = vmatpush1.bf16.xpose.msra.mxu0 0
      %1120 = vmatprep.subr.bf16.mxu0 0
      %1121 = vmatpush1.bf16.xpose.msra.mxu0 0
      %1122 = vmatprep.subr.bf16.mxu0 0
      %1123 = vmatpush1.bf16.xpose.msra.mxu0 0
      %1124 = vmatprep.subr.bf16.mxu0 0
      %1125 = vmatpush1.bf16.xpose.msra.mxu0 0
      %1126 = vmatprep.subr.bf16.mxu0 0
      %1127 = vmatpush1.bf16.xpose.msra.mxu0 0
      %1128 = vmatprep.subr.bf16.mxu0 0
      %1129 = vmatpush1.bf16.xpose.msra.mxu0 0
      %1130 = vmatprep.subr.bf16.mxu0 0
      %1131 = vmatpush1.bf16.xpose.msra.mxu0 0
      %1132 = vmatprep.subr.bf16.mxu0 0
      %1133 = vmatpush1.bf16.xpose.msra.mxu0 0
      %1134 = vmatprep.mubr.bf16.mxu0 0
      %1135 = vmatmul.mubr.bf16.gmra.mrb[0].mxu0 %v1097
      %v1136 = vpop.f32.mrb[0].mxu0
      %v1137 = vadd.f32 0.0, %v1136
      %v1138 = vpop.f32.mrb[0].mxu0
      %v1139 = vpop.f32.mrb[0].mxu0
      %v1140 = vadd.f32 0.0, %v1139
      %v1141 = vpop.f32.mrb[0].mxu0
      %1142 = vdwg.mxu0
      %v1143 = vmul.f32 %v1137, 0.25
      %v1144 = vmul.f32 %v1140, 0.25
      %v1145 = vsel %vm1016, %v1143, -inf
      %1146 = vmax.xlane.f32.xlu0 %v1145
      %v1147 = vpop.xlane.xlu0 %1146
      %v1148 = vsel %vm1020, %v1144, -inf
      %1149 = vmax.xlane.f32.xlu0 %v1148
      %v1150 = vpop.xlane.xlu0 %1149
      %v1151 = vsub.f32 %v1143, %v1147
      %v1152 = vsub.f32 %v1144, %v1150
      %v1153 = vmul.f32 %v1151, 1.442695
      %v1154 = vpow.pop %v1153
      %v1155 = vmul.f32 %v1152, 1.442695
      %v1156 = vpow.pop %v1155
      %v1157 = vsel %vm1016, %v1154, 0.0
      %1158 = vadd.xlane.f32.xlu0 %v1157
      %v1159 = vpop.xlane.xlu0 %1158
      %v1160 = vsel %vm1020, %v1156, 0.0
      %1161 = vadd.xlane.f32.xlu0 %v1160
      %v1162 = vpop.xlane.xlu0 %1161
      %v1163 = vrcp.pop %v1159
      %v1164 = vmul.f32 %v1154, %v1163
      %v1165 = vrcp.pop %v1162
      %v1166 = vmul.f32 %v1156, %v1165
      %v1167 = vpack.c.bf16 %v1166, %v1164
      %1169 = vrot.lane.b32.xlu0 %v962, 112
      %v1170 = vpop.permute.xlu0 %1169
      %v1172 = vsel %vm1016, %v1167, 0
      %v1175 = vand.u32 %v1170, %v1047
      %1177 = vmatprep.subr.bf16.mxu0 0
      %1178 = vmatpush1.bf16.msra.mxu0 %v1175
      %1179 = vmatprep.subr.bf16.mxu0 0
      %1180 = vmatpush1.bf16.msra.mxu0 0
      %1181 = vmatprep.subr.bf16.mxu0 0
      %1182 = vmatpush1.bf16.msra.mxu0 0
      %1183 = vmatprep.subr.bf16.mxu0 0
      %1184 = vmatpush1.bf16.msra.mxu0 0
      %1185 = vmatprep.subr.bf16.mxu0 0
      %1186 = vmatpush1.bf16.msra.mxu0 0
      %1187 = vmatprep.subr.bf16.mxu0 0
      %1188 = vmatpush1.bf16.msra.mxu0 0
      %1189 = vmatprep.subr.bf16.mxu0 0
      %1190 = vmatpush1.bf16.msra.mxu0 0
      %1191 = vmatprep.subr.bf16.mxu0 0
      %1192 = vmatpush1.bf16.msra.mxu0 0
      %1193 = vmatprep.subr.bf16.mxu0 0
      %1194 = vmatpush1.bf16.msra.mxu0 0
      %1195 = vmatprep.subr.bf16.mxu0 0
      %1196 = vmatpush1.bf16.msra.mxu0 0
      %1197 = vmatprep.subr.bf16.mxu0 0
      %1198 = vmatpush1.bf16.msra.mxu0 0
      %1199 = vmatprep.subr.bf16.mxu0 0
      %1200 = vmatpush1.bf16.msra.mxu0 0
      %1201 = vmatprep.subr.bf16.mxu0 0
      %1202 = vmatpush1.bf16.msra.mxu0 0
      %1203 = vmatprep.subr.bf16.mxu0 0
      %1204 = vmatpush1.bf16.msra.mxu0 0
      %1205 = vmatprep.subr.bf16.mxu0 0
      %1206 = vmatpush1.bf16.msra.mxu0 0
      %1207 = vmatprep.subr.bf16.mxu0 0
      %1208 = vmatpush1.bf16.msra.mxu0 0
      %1209 = vmatprep.mubr.bf16.mxu0 0
      %1210 = vmatmul.mubr.bf16.gmra.mrb[0].mxu0 %v1172
      %v1211 = vpop.f32.mrb[0].mxu0
      %v1212 = vadd.f32 0.0, %v1211
      %v1213 = vpop.f32.mrb[0].mxu0
      %v1214 = vpop.f32.mrb[0].mxu0
      %v1215 = vadd.f32 0.0, %v1214
      %v1216 = vpop.f32.mrb[0].mxu0
      %1217 = vdwg.mxu0
      %1218 = vrot.lane.b32.xlu0 %v961, 96
      %v1219 = vpop.permute.xlu0 %1218
      %1220 = vrot.lane.b32.xlu0 %v961, 32
      %v1221 = vpop.permute.xlu0 %1220
      %v1223 = vsel %vm966, %v1219, 0
      %v1226 = vsel %vm966, %v1221, 0
      %1228 = vmatprep.subr.bf16.mxu0 0
      %1229 = vmatpush1.bf16.xpose.msra.mxu0 %v1226
      %1230 = vmatprep.subr.bf16.mxu0 0
      %1231 = vmatpush1.bf16.xpose.msra.mxu0 0
      %1232 = vmatprep.subr.bf16.mxu0 0
      %1233 = vmatpush1.bf16.xpose.msra.mxu0 0
      %1234 = vmatprep.subr.bf16.mxu0 0
      %1235 = vmatpush1.bf16.xpose.msra.mxu0 0
      %1236 = vmatprep.subr.bf16.mxu0 0
      %1237 = vmatpush1.bf16.xpose.msra.mxu0 0
      %1238 = vmatprep.subr.bf16.mxu0 0
      %1239 = vmatpush1.bf16.xpose.msra.mxu0 0
      %1240 = vmatprep.subr.bf16.mxu0 0
      %1241 = vmatpush1.bf16.xpose.msra.mxu0 0
      %1242 = vmatprep.subr.bf16.mxu0 0
      %1243 = vmatpush1.bf16.xpose.msra.mxu0 0
      %1244 = vmatprep.subr.bf16.mxu0 0
      %1245 = vmatpush1.bf16.xpose.msra.mxu0 0
      %1246 = vmatprep.subr.bf16.mxu0 0
      %1247 = vmatpush1.bf16.xpose.msra.mxu0 0
      %1248 = vmatprep.subr.bf16.mxu0 0
      %1249 = vmatpush1.bf16.xpose.msra.mxu0 0
      %1250 = vmatprep.subr.bf16.mxu0 0
      %1251 = vmatpush1.bf16.xpose.msra.mxu0 0
      %1252 = vmatprep.subr.bf16.mxu0 0
      %1253 = vmatpush1.bf16.xpose.msra.mxu0 0
      %1254 = vmatprep.subr.bf16.mxu0 0
      %1255 = vmatpush1.bf16.xpose.msra.mxu0 0
      %1256 = vmatprep.subr.bf16.mxu0 0
      %1257 = vmatpush1.bf16.xpose.msra.mxu0 0
      %1258 = vmatprep.subr.bf16.mxu0 0
      %1259 = vmatpush1.bf16.xpose.msra.mxu0 0
      %1260 = vmatprep.mubr.bf16.mxu0 0
      %1261 = vmatmul.mubr.bf16.gmra.mrb[0].mxu0 %v1223
      %v1262 = vpop.f32.mrb[0].mxu0
      %v1263 = vadd.f32 0.0, %v1262
      %v1264 = vpop.f32.mrb[0].mxu0
      %v1265 = vpop.f32.mrb[0].mxu0
      %v1266 = vadd.f32 0.0, %v1265
      %v1267 = vpop.f32.mrb[0].mxu0
      %1268 = vdwg.mxu0
      %v1269 = vmul.f32 %v1263, 0.25
      %v1270 = vmul.f32 %v1266, 0.25
      %v1271 = vsel %vm1016, %v1269, -inf
      %1272 = vmax.xlane.f32.xlu0 %v1271
      %v1273 = vpop.xlane.xlu0 %1272
      %v1274 = vsel %vm1020, %v1270, -inf
      %1275 = vmax.xlane.f32.xlu0 %v1274
      %v1276 = vpop.xlane.xlu0 %1275
      %v1277 = vsub.f32 %v1269, %v1273
      %v1278 = vsub.f32 %v1270, %v1276
      %v1279 = vmul.f32 %v1277, 1.442695
      %v1280 = vpow.pop %v1279
      %v1281 = vmul.f32 %v1278, 1.442695
      %v1282 = vpow.pop %v1281
      %v1283 = vsel %vm1016, %v1280, 0.0
      %1284 = vadd.xlane.f32.xlu0 %v1283
      %v1285 = vpop.xlane.xlu0 %1284
      %v1286 = vsel %vm1020, %v1282, 0.0
      %1287 = vadd.xlane.f32.xlu0 %v1286
      %v1288 = vpop.xlane.xlu0 %1287
      %v1289 = vrcp.pop %v1285
      %v1290 = vmul.f32 %v1280, %v1289
      %v1291 = vrcp.pop %v1288
      %v1292 = vmul.f32 %v1282, %v1291
      %v1293 = vpack.c.bf16 %v1292, %v1290
      %1294 = vrot.lane.b32.xlu0 %v962, 96
      %v1295 = vpop.permute.xlu0 %1294
      %v1297 = vsel %vm1016, %v1293, 0
      %v1300 = vand.u32 %v1295, %v1047
      %1302 = vmatprep.subr.bf16.mxu0 0
      %1303 = vmatpush1.bf16.msra.mxu0 %v1300
      %1304 = vmatprep.subr.bf16.mxu0 0
      %1305 = vmatpush1.bf16.msra.mxu0 0
      %1306 = vmatprep.subr.bf16.mxu0 0
      %1307 = vmatpush1.bf16.msra.mxu0 0
      %1308 = vmatprep.subr.bf16.mxu0 0
      %1309 = vmatpush1.bf16.msra.mxu0 0
      %1310 = vmatprep.subr.bf16.mxu0 0
      %1311 = vmatpush1.bf16.msra.mxu0 0
      %1312 = vmatprep.subr.bf16.mxu0 0
      %1313 = vmatpush1.bf16.msra.mxu0 0
      %1314 = vmatprep.subr.bf16.mxu0 0
      %1315 = vmatpush1.bf16.msra.mxu0 0
      %1316 = vmatprep.subr.bf16.mxu0 0
      %1317 = vmatpush1.bf16.msra.mxu0 0
      %1318 = vmatprep.subr.bf16.mxu0 0
      %1319 = vmatpush1.bf16.msra.mxu0 0
      %1320 = vmatprep.subr.bf16.mxu0 0
      %1321 = vmatpush1.bf16.msra.mxu0 0
      %1322 = vmatprep.subr.bf16.mxu0 0
      %1323 = vmatpush1.bf16.msra.mxu0 0
      %1324 = vmatprep.subr.bf16.mxu0 0
      %1325 = vmatpush1.bf16.msra.mxu0 0
      %1326 = vmatprep.subr.bf16.mxu0 0
      %1327 = vmatpush1.bf16.msra.mxu0 0
      %1328 = vmatprep.subr.bf16.mxu0 0
      %1329 = vmatpush1.bf16.msra.mxu0 0
      %1330 = vmatprep.subr.bf16.mxu0 0
      %1331 = vmatpush1.bf16.msra.mxu0 0
      %1332 = vmatprep.subr.bf16.mxu0 0
      %1333 = vmatpush1.bf16.msra.mxu0 0
      %1334 = vmatprep.mubr.bf16.mxu0 0
      %1335 = vmatmul.mubr.bf16.gmra.mrb[0].mxu0 %v1297
      %v1336 = vpop.f32.mrb[0].mxu0
      %v1337 = vadd.f32 0.0, %v1336
      %v1338 = vpop.f32.mrb[0].mxu0
      %v1339 = vpop.f32.mrb[0].mxu0
      %v1340 = vadd.f32 0.0, %v1339
      %v1341 = vpop.f32.mrb[0].mxu0
      %1342 = vdwg.mxu0
      %1343 = vrot.lane.b32.xlu0 %v961, 80
      %v1344 = vpop.permute.xlu0 %1343
      %1345 = vrot.lane.b32.xlu0 %v961, 16
      %v1346 = vpop.permute.xlu0 %1345
      %v1348 = vsel %vm966, %v1344, 0
      %v1351 = vsel %vm966, %v1346, 0
      %1353 = vmatprep.subr.bf16.mxu0 0
      %1354 = vmatpush1.bf16.xpose.msra.mxu0 %v1351
      %1355 = vmatprep.subr.bf16.mxu0 0
      %1356 = vmatpush1.bf16.xpose.msra.mxu0 0
      %1357 = vmatprep.subr.bf16.mxu0 0
      %1358 = vmatpush1.bf16.xpose.msra.mxu0 0
      %1359 = vmatprep.subr.bf16.mxu0 0
      %1360 = vmatpush1.bf16.xpose.msra.mxu0 0
      %1361 = vmatprep.subr.bf16.mxu0 0
      %1362 = vmatpush1.bf16.xpose.msra.mxu0 0
      %1363 = vmatprep.subr.bf16.mxu0 0
      %1364 = vmatpush1.bf16.xpose.msra.mxu0 0
      %1365 = vmatprep.subr.bf16.mxu0 0
      %1366 = vmatpush1.bf16.xpose.msra.mxu0 0
      %1367 = vmatprep.subr.bf16.mxu0 0
      %1368 = vmatpush1.bf16.xpose.msra.mxu0 0
      %1369 = vmatprep.subr.bf16.mxu0 0
      %1370 = vmatpush1.bf16.xpose.msra.mxu0 0
      %1371 = vmatprep.subr.bf16.mxu0 0
      %1372 = vmatpush1.bf16.xpose.msra.mxu0 0
      %1373 = vmatprep.subr.bf16.mxu0 0
      %1374 = vmatpush1.bf16.xpose.msra.mxu0 0
      %1375 = vmatprep.subr.bf16.mxu0 0
      %1376 = vmatpush1.bf16.xpose.msra.mxu0 0
      %1377 = vmatprep.subr.bf16.mxu0 0
      %1378 = vmatpush1.bf16.xpose.msra.mxu0 0
      %1379 = vmatprep.subr.bf16.mxu0 0
      %1380 = vmatpush1.bf16.xpose.msra.mxu0 0
      %1381 = vmatprep.subr.bf16.mxu0 0
      %1382 = vmatpush1.bf16.xpose.msra.mxu0 0
      %1383 = vmatprep.subr.bf16.mxu0 0
      %1384 = vmatpush1.bf16.xpose.msra.mxu0 0
      %1385 = vmatprep.mubr.bf16.mxu0 0
      %1386 = vmatmul.mubr.bf16.gmra.mrb[0].mxu0 %v1348
      %v1387 = vpop.f32.mrb[0].mxu0
      %v1388 = vadd.f32 0.0, %v1387
      %v1389 = vpop.f32.mrb[0].mxu0
      %v1390 = vpop.f32.mrb[0].mxu0
      %v1391 = vadd.f32 0.0, %v1390
      %v1392 = vpop.f32.mrb[0].mxu0
      %1393 = vdwg.mxu0
      %v1394 = vmul.f32 %v1388, 0.25
      %v1395 = vmul.f32 %v1391, 0.25
      %v1396 = vsel %vm1016, %v1394, -inf
      %1397 = vmax.xlane.f32.xlu0 %v1396
      %v1398 = vpop.xlane.xlu0 %1397
      %v1399 = vsel %vm1020, %v1395, -inf
      %1400 = vmax.xlane.f32.xlu0 %v1399
      %v1401 = vpop.xlane.xlu0 %1400
      %v1402 = vsub.f32 %v1394, %v1398
      %v1403 = vsub.f32 %v1395, %v1401
      %v1404 = vmul.f32 %v1402, 1.442695
      %v1405 = vpow.pop %v1404
      %v1406 = vmul.f32 %v1403, 1.442695
      %v1407 = vpow.pop %v1406
      %v1408 = vsel %vm1016, %v1405, 0.0
      %1409 = vadd.xlane.f32.xlu0 %v1408
      %v1410 = vpop.xlane.xlu0 %1409
      %v1411 = vsel %vm1020, %v1407, 0.0
      %1412 = vadd.xlane.f32.xlu0 %v1411
      %v1413 = vpop.xlane.xlu0 %1412
      %v1414 = vrcp.pop %v1410
      %v1415 = vmul.f32 %v1405, %v1414
      %v1416 = vrcp.pop %v1413
      %v1417 = vmul.f32 %v1407, %v1416
      %v1418 = vpack.c.bf16 %v1417, %v1415
      %1419 = vrot.lane.b32.xlu0 %v962, 80
      %v1420 = vpop.permute.xlu0 %1419
      %v1422 = vsel %vm1016, %v1418, 0
      %v1425 = vand.u32 %v1420, %v1047
      %1427 = vmatprep.subr.bf16.mxu0 0
      %1428 = vmatpush1.bf16.msra.mxu0 %v1425
      %1429 = vmatprep.subr.bf16.mxu0 0
      %1430 = vmatpush1.bf16.msra.mxu0 0
      %1431 = vmatprep.subr.bf16.mxu0 0
      %1432 = vmatpush1.bf16.msra.mxu0 0
      %1433 = vmatprep.subr.bf16.mxu0 0
      %1434 = vmatpush1.bf16.msra.mxu0 0
      %1435 = vmatprep.subr.bf16.mxu0 0
      %1436 = vmatpush1.bf16.msra.mxu0 0
      %1437 = vmatprep.subr.bf16.mxu0 0
      %1438 = vmatpush1.bf16.msra.mxu0 0
      %1439 = vmatprep.subr.bf16.mxu0 0
      %1440 = vmatpush1.bf16.msra.mxu0 0
      %1441 = vmatprep.subr.bf16.mxu0 0
      %1442 = vmatpush1.bf16.msra.mxu0 0
      %1443 = vmatprep.subr.bf16.mxu0 0
      %1444 = vmatpush1.bf16.msra.mxu0 0
      %1445 = vmatprep.subr.bf16.mxu0 0
      %1446 = vmatpush1.bf16.msra.mxu0 0
      %1447 = vmatprep.subr.bf16.mxu0 0
      %1448 = vmatpush1.bf16.msra.mxu0 0
      %1449 = vmatprep.subr.bf16.mxu0 0
      %1450 = vmatpush1.bf16.msra.mxu0 0
      %1451 = vmatprep.subr.bf16.mxu0 0
      %1452 = vmatpush1.bf16.msra.mxu0 0
      %1453 = vmatprep.subr.bf16.mxu0 0
      %1454 = vmatpush1.bf16.msra.mxu0 0
      %1455 = vmatprep.subr.bf16.mxu0 0
      %1456 = vmatpush1.bf16.msra.mxu0 0
      %1457 = vmatprep.subr.bf16.mxu0 0
      %1458 = vmatpush1.bf16.msra.mxu0 0
      %1459 = vmatprep.mubr.bf16.mxu0 0
      %1460 = vmatmul.mubr.bf16.gmra.mrb[0].mxu0 %v1422
      %v1461 = vpop.f32.mrb[0].mxu0
      %v1462 = vadd.f32 0.0, %v1461
      %v1463 = vpop.f32.mrb[0].mxu0
      %v1464 = vpop.f32.mrb[0].mxu0
      %v1465 = vadd.f32 0.0, %v1464
      %v1466 = vpop.f32.mrb[0].mxu0
      %1467 = vdwg.mxu0
      %1470 = vrot.lane.b32.xlu0 %v1212, 16
      %v1471 = vpop.permute.xlu0 %1470
      %1472 = vrot.lane.b32.xlu0 %v1215, 16
      %v1473 = vpop.permute.xlu0 %1472
      %1478 = vrot.lane.b32.xlu0 %v1337, 32
      %v1479 = vpop.permute.xlu0 %1478
      %1480 = vrot.lane.b32.xlu0 %v1340, 32
      %v1481 = vpop.permute.xlu0 %1480
      %1486 = vrot.lane.b32.xlu0 %v1462, 48
      %v1487 = vpop.permute.xlu0 %1486
      %1488 = vrot.lane.b32.xlu0 %v1465, 48
      %v1489 = vpop.permute.xlu0 %1488
      %v1492 = vsel %vm966, %v1086, %v1471
      %v1493 = vsel %vm966, %v1089, %v1473
      %vm1494 = vcmask 261120
      %v1495 = vsel %vm1494, %v1492, %v1479
      %v1496 = vsel %vm1494, %v1493, %v1481
      %vm1497 = vcmask 392192
      %v1498 = vsel %vm1497, %v1495, %v1487
      %v1499 = vsel %vm1497, %v1496, %v1489
      %v1500 = vpack.c.bf16 %v1499, %v1498
      %v1501 = vld [vmem:[%s757] sm:$0xf]
      %v1502 = vld [vmem:[%s757 + $0x4] sm:$0xf]
      %v1503 = vld [vmem:[%s757 + $0x8] sm:$0xf]
      %v1504 = vld [vmem:[%s757 + $0xc] sm:$0xf]
      %v1505 = vld [vmem:[%s757 + $0x10] sm:$0xf]
      %v1506 = vld [vmem:[%s757 + $0x14] sm:$0xf]
      %v1507 = vld [vmem:[%s757 + $0x18] sm:$0xf]
      %v1508 = vld [vmem:[%s757 + $0x1c] sm:$0xf]
      %v1509 = vld [vmem:[%s760] sm:$0x1]
      %v1511 = vlaneseq
      %v1512 = vshrl.u32 %v1511, 7
      %v1513 = vsub.s32 0, %v1512
      %v1514 = vrot.slane %v1509, %v1513
      %v1524 = vunpack.c.l.b16 %v1501
      %v1525 = vunpack.c.l.b16 %v1502
      %v1526 = vunpack.c.l.b16 %v1503
      %v1527 = vunpack.c.l.b16 %v1504
      %v1528 = vunpack.c.l.b16 %v1505
      %v1529 = vunpack.c.l.b16 %v1506
      %v1530 = vunpack.c.l.b16 %v1507
      %v1531 = vunpack.c.l.b16 %v1508
      %v1532 = vpack.c.b16 %v1525, %v1524
      %v1533 = vpack.c.b16 %v1527, %v1526
      %v1534 = vpack.c.b16 %v1529, %v1528
      %v1535 = vpack.c.b16 %v1531, %v1530
      %v1541 = vsel %vm809, %v1500, 0
      %1543 = vmatprep.subr.bf16.mxu0 0
      %1544 = vmatpush1.bf16.msra.mxu0 %v1532
      %1545 = vmatprep.subr.bf16.mxu0 0
      %1546 = vmatpush1.bf16.msra.mxu0 %v1533
      %1547 = vmatprep.subr.bf16.mxu0 0
      %1548 = vmatpush1.bf16.msra.mxu0 %v1534
      %1549 = vmatprep.subr.bf16.mxu0 0
      %1550 = vmatpush1.bf16.msra.mxu0 %v1535
      %1551 = vmatprep.subr.bf16.mxu0 0
      %1552 = vmatpush1.bf16.msra.mxu0 0
      %1553 = vmatprep.subr.bf16.mxu0 0
      %1554 = vmatpush1.bf16.msra.mxu0 0
      %1555 = vmatprep.subr.bf16.mxu0 0
      %1556 = vmatpush1.bf16.msra.mxu0 0
      %1557 = vmatprep.subr.bf16.mxu0 0
      %1558 = vmatpush1.bf16.msra.mxu0 0
      %1559 = vmatprep.subr.bf16.mxu0 0
      %1560 = vmatpush1.bf16.msra.mxu0 0
      %1561 = vmatprep.subr.bf16.mxu0 0
      %1562 = vmatpush1.bf16.msra.mxu0 0
      %1563 = vmatprep.subr.bf16.mxu0 0
      %1564 = vmatpush1.bf16.msra.mxu0 0
      %1565 = vmatprep.subr.bf16.mxu0 0
      %1566 = vmatpush1.bf16.msra.mxu0 0
      %1567 = vmatprep.subr.bf16.mxu0 0
      %1568 = vmatpush1.bf16.msra.mxu0 0
      %1569 = vmatprep.subr.bf16.mxu0 0
      %1570 = vmatpush1.bf16.msra.mxu0 0
      %1571 = vmatprep.subr.bf16.mxu0 0
      %1572 = vmatpush1.bf16.msra.mxu0 0
      %1573 = vmatprep.subr.bf16.mxu0 0
      %1574 = vmatpush1.bf16.msra.mxu0 0
      %1575 = vmatprep.mubr.bf16.mxu0 0
      %1576 = vmatmul.mubr.bf16.gmra.mrb[0].mxu0 %v1541
      %v1577 = vpop.f32.mrb[0].mxu0
      %v1578 = vadd.f32 %v1514, %v1577
      %v1579 = vpop.f32.mrb[0].mxu0
      %v1580 = vpop.f32.mrb[0].mxu0
      %v1581 = vadd.f32 %v1514, %v1580
      %v1582 = vpop.f32.mrb[0].mxu0
      %1583 = vdwg.mxu0
      %v1584 = vadd.f32 %v805, %v1578
      %v1585 = vadd.f32 %v806, %v1581
      %v1586 = vld [vmem:[%s763] sm:$0x1]
      %v1587 = vld [vmem:[%s766] sm:$0x1]
      %v1588 = vsel %vm809, %v1584, 0.0
      %1589 = vadd.xlane.f32.xlu0 %v1588
      %v1590 = vpop.xlane.xlu0 %1589
      %v1591 = vsel %vm813, %v1585, 0.0
      %1592 = vadd.xlane.f32.xlu0 %v1591
      %v1593 = vpop.xlane.xlu0 %1592
      %v1594 = vmul.f32 %v1590, %v817
      %v1595 = vmul.f32 %v1593, %v817
      %v1596 = vsub.f32 %v1584, %v1594
      %v1597 = vsub.f32 %v1585, %v1595
      %v1598 = vmul.f32 %v1596, %v1596
      %v1599 = vmul.f32 %v1597, %v1597
      %v1600 = vsel %vm809, %v1598, 0.0
      %1601 = vadd.xlane.f32.xlu0 %v1600
      %v1602 = vpop.xlane.xlu0 %1601
      %v1603 = vsel %vm813, %v1599, 0.0
      %1604 = vadd.xlane.f32.xlu0 %v1603
      %v1605 = vpop.xlane.xlu0 %1604
      %v1606 = vmul.f32 %v1602, %v817
      %v1607 = vmul.f32 %v1605, %v817
      %v1608 = vadd.f32 %v1606, 1e-05
      %v1609 = vadd.f32 %v1607, 1e-05
      %v1610 = vrsqrt.pop %v1608
      %v1611 = vrsqrt.pop %v1609
      %v1612 = vmul.f32 %v1596, %v1610
      %v1613 = vmul.f32 %v1597, %v1611
      %v1615 = vlaneseq
      %v1616 = vshrl.u32 %v1615, 7
      %v1617 = vsub.s32 0, %v1616
      %v1618 = vrot.slane %v1586, %v1617
      %v1620 = vmul.f32 %v1612, %v1618
      %v1621 = vmul.f32 %v1613, %v1618
      %v1623 = vlaneseq
      %v1624 = vshrl.u32 %v1623, 7
      %v1625 = vsub.s32 0, %v1624
      %v1626 = vrot.slane %v1587, %v1625
      %v1628 = vadd.f32 %v1620, %v1626
      %v1629 = vadd.f32 %v1621, %v1626
      %v1630 = vpack.c.bf16 %v1629, %v1628
      %v1631 = vld [vmem:[%s771] sm:$0xff]
      %v1632 = vld [vmem:[%s771 + $0x8] sm:$0xff]
      %v1633 = vld [vmem:[%s771 + $0x10] sm:$0xff]
      %v1634 = vld [vmem:[%s771 + $0x18] sm:$0xff]
      %v1635 = vld [vmem:[%s771 + $0x20] sm:$0xff]
      %v1636 = vld [vmem:[%s771 + $0x28] sm:$0xff]
      %v1637 = vld [vmem:[%s771 + $0x30] sm:$0xff]
      %v1638 = vld [vmem:[%s771 + $0x38] sm:$0xff]
      %v1639 = vld [vmem:[%s775] sm:$0x3]
      %v1641 = vlaneseq
      %v1642 = vshrl.u32 %v1641, 7
      %v1643 = vsub.s32 0, %v1642
      %v1644 = vrot.slane %v1639, %v1643
      %v1645 = vlaneseq
      %v1646 = vshrl.u32 %v1645, 7
      %v1647 = vsub.s32 1, %v1646
      %v1648 = vrot.slane %v1639, %v1647
      %v1659 = vunpack.c.l.b16 %v1631
      %v1660 = vunpack.c.h.b16 %v1631
      %v1661 = vunpack.c.l.b16 %v1632
      %v1662 = vunpack.c.h.b16 %v1632
      %v1663 = vunpack.c.l.b16 %v1633
      %v1664 = vunpack.c.h.b16 %v1633
      %v1665 = vunpack.c.l.b16 %v1634
      %v1666 = vunpack.c.h.b16 %v1634
      %v1667 = vunpack.c.l.b16 %v1635
      %v1668 = vunpack.c.h.b16 %v1635
      %v1669 = vunpack.c.l.b16 %v1636
      %v1670 = vunpack.c.h.b16 %v1636
      %v1671 = vunpack.c.l.b16 %v1637
      %v1672 = vunpack.c.h.b16 %v1637
      %v1673 = vunpack.c.l.b16 %v1638
      %v1674 = vunpack.c.h.b16 %v1638
      %v1675 = vpack.c.b16 %v1661, %v1659
      %v1676 = vpack.c.b16 %v1662, %v1660
      %v1677 = vpack.c.b16 %v1665, %v1663
      %v1678 = vpack.c.b16 %v1666, %v1664
      %v1679 = vpack.c.b16 %v1669, %v1667
      %v1680 = vpack.c.b16 %v1670, %v1668
      %v1681 = vpack.c.b16 %v1673, %v1671
      %v1682 = vpack.c.b16 %v1674, %v1672
      %v1692 = vsel %vm809, %v1630, 0
      %1694 = vmatprep.subr.bf16.mxu0 %v1676
      %1695 = vmatpush1.bf16.msra.mxu0 %v1675
      %1696 = vmatprep.subr.bf16.mxu0 %v1678
      %1697 = vmatpush1.bf16.msra.mxu0 %v1677
      %1698 = vmatprep.subr.bf16.mxu0 %v1680
      %1699 = vmatpush1.bf16.msra.mxu0 %v1679
      %1700 = vmatprep.subr.bf16.mxu0 %v1682
      %1701 = vmatpush1.bf16.msra.mxu0 %v1681
      %1702 = vmatprep.subr.bf16.mxu0 0
      %1703 = vmatpush1.bf16.msra.mxu0 0
      %1704 = vmatprep.subr.bf16.mxu0 0
      %1705 = vmatpush1.bf16.msra.mxu0 0
      %1706 = vmatprep.subr.bf16.mxu0 0
      %1707 = vmatpush1.bf16.msra.mxu0 0
      %1708 = vmatprep.subr.bf16.mxu0 0
      %1709 = vmatpush1.bf16.msra.mxu0 0
      %1710 = vmatprep.subr.bf16.mxu0 0
      %1711 = vmatpush1.bf16.msra.mxu0 0
      %1712 = vmatprep.subr.bf16.mxu0 0
      %1713 = vmatpush1.bf16.msra.mxu0 0
      %1714 = vmatprep.subr.bf16.mxu0 0
      %1715 = vmatpush1.bf16.msra.mxu0 0
      %1716 = vmatprep.subr.bf16.mxu0 0
      %1717 = vmatpush1.bf16.msra.mxu0 0
      %1718 = vmatprep.subr.bf16.mxu0 0
      %1719 = vmatpush1.bf16.msra.mxu0 0
      %1720 = vmatprep.subr.bf16.mxu0 0
      %1721 = vmatpush1.bf16.msra.mxu0 0
      %1722 = vmatprep.subr.bf16.mxu0 0
      %1723 = vmatpush1.bf16.msra.mxu0 0
      %1724 = vmatprep.subr.bf16.mxu0 0
      %1725 = vmatpush1.bf16.msra.mxu0 0
      %1726 = vmatprep.mubr.bf16.mxu0 0
      %1727 = vmatmul.mubr.bf16.gmra.mrb[0].mxu0 %v1692
      %v1728 = vpop.f32.mrb[0].mxu0
      %v1729 = vadd.f32 %v1644, %v1728
      %v1730 = vpop.f32.mrb[0].mxu0
      %v1731 = vadd.f32 %v1648, %v1730
      %v1732 = vpop.f32.mrb[0].mxu0
      %v1733 = vadd.f32 %v1644, %v1732
      %v1734 = vpop.f32.mrb[0].mxu0
      %v1735 = vadd.f32 %v1648, %v1734
      %1736 = vdwg.mxu0
      %v1737 = vmul.f32 %v1729, %v1729
      %v1738 = vmul.f32 %v1731, %v1731
      %v1739 = vmul.f32 %v1733, %v1733
      %v1740 = vmul.f32 %v1735, %v1735
      %v1741 = vmul.f32 %v1729, %v1737
      %v1742 = vmul.f32 %v1731, %v1738
      %v1743 = vmul.f32 %v1733, %v1739
      %v1744 = vmul.f32 %v1735, %v1740
      %v1745 = vmul.f32 %v1741, 0.044715
      %v1746 = vmul.f32 %v1742, 0.044715
      %v1747 = vmul.f32 %v1743, 0.044715
      %v1748 = vmul.f32 %v1744, 0.044715
      %v1749 = vadd.f32 %v1729, %v1745
      %v1750 = vadd.f32 %v1731, %v1746
      %v1751 = vadd.f32 %v1733, %v1747
      %v1752 = vadd.f32 %v1735, %v1748
      %v1753 = vmul.f32 %v1749, 0.7978846
      %v1754 = vmul.f32 %v1750, 0.7978846
      %v1755 = vmul.f32 %v1751, 0.7978846
      %v1756 = vmul.f32 %v1752, 0.7978846
      %v1757 = vtanh.pop %v1753
      %v1758 = vtanh.pop %v1754
      %v1759 = vtanh.pop %v1755
      %v1760 = vtanh.pop %v1756
      %v1761 = vadd.f32 %v1757, 1.0
      %v1762 = vadd.f32 %v1758, 1.0
      %v1763 = vadd.f32 %v1759, 1.0
      %v1764 = vadd.f32 %v1760, 1.0
      %v1765 = vmul.f32 %v1761, 0.5
      %v1766 = vmul.f32 %v1762, 0.5
      %v1767 = vmul.f32 %v1763, 0.5
      %v1768 = vmul.f32 %v1764, 0.5
      %v1769 = vmul.f32 %v1729, %v1765
      %v1770 = vmul.f32 %v1731, %v1766
      %v1771 = vmul.f32 %v1733, %v1767
      %v1772 = vmul.f32 %v1735, %v1768
      %v1773 = vpack.c.bf16 %v1771, %v1769
      %v1774 = vpack.c.bf16 %v1772, %v1770
      %v1775 = vld [vmem:[%s780] sm:$0xf]
      %v1776 = vld [vmem:[%s780 + $0x4] sm:$0xf]
      %v1777 = vld [vmem:[%s780 + $0x8] sm:$0xf]
      %v1778 = vld [vmem:[%s780 + $0xc] sm:$0xf]
      %v1779 = vld [vmem:[%s780 + $0x10] sm:$0xf]
      %v1780 = vld [vmem:[%s780 + $0x14] sm:$0xf]
      %v1781 = vld [vmem:[%s780 + $0x18] sm:$0xf]
      %v1782 = vld [vmem:[%s780 + $0x1c] sm:$0xf]
      %v1783 = vld [vmem:[%s780 + $0x20] sm:$0xf]
      %v1784 = vld [vmem:[%s780 + $0x24] sm:$0xf]
      %v1785 = vld [vmem:[%s780 + $0x28] sm:$0xf]
      %v1786 = vld [vmem:[%s780 + $0x2c] sm:$0xf]
      %v1787 = vld [vmem:[%s780 + $0x30] sm:$0xf]
      %v1788 = vld [vmem:[%s780 + $0x34] sm:$0xf]
      %v1789 = vld [vmem:[%s780 + $0x38] sm:$0xf]
      %v1790 = vld [vmem:[%s780 + $0x3c] sm:$0xf]
      %v1791 = vld [vmem:[%s780 + $0x40] sm:$0xf]
      %v1792 = vld [vmem:[%s780 + $0x44] sm:$0xf]
      %v1793 = vld [vmem:[%s780 + $0x48] sm:$0xf]
      %v1794 = vld [vmem:[%s780 + $0x4c] sm:$0xf]
      %v1795 = vld [vmem:[%s780 + $0x50] sm:$0xf]
      %v1796 = vld [vmem:[%s780 + $0x54] sm:$0xf]
      %v1797 = vld [vmem:[%s780 + $0x58] sm:$0xf]
      %v1798 = vld [vmem:[%s780 + $0x5c] sm:$0xf]
      %v1799 = vld [vmem:[%s780 + $0x60] sm:$0xf]
      %v1800 = vld [vmem:[%s780 + $0x64] sm:$0xf]
      %v1801 = vld [vmem:[%s780 + $0x68] sm:$0xf]
      %v1802 = vld [vmem:[%s780 + $0x6c] sm:$0xf]
      %v1803 = vld [vmem:[%s780 + $0x70] sm:$0xf]
      %v1804 = vld [vmem:[%s780 + $0x74] sm:$0xf]
      %v1805 = vld [vmem:[%s780 + $0x78] sm:$0xf]
      %v1806 = vld [vmem:[%s780 + $0x7c] sm:$0xf]
      %v1807 = vld [vmem:[%s783] sm:$0x1]
      %v1809 = vlaneseq
      %v1810 = vshrl.u32 %v1809, 7
      %v1811 = vsub.s32 0, %v1810
      %v1812 = vrot.slane %v1807, %v1811
      %v1846 = vunpack.c.l.b16 %v1775
      %v1847 = vunpack.c.l.b16 %v1776
      %v1848 = vunpack.c.l.b16 %v1777
      %v1849 = vunpack.c.l.b16 %v1778
      %v1850 = vunpack.c.l.b16 %v1779
      %v1851 = vunpack.c.l.b16 %v1780
      %v1852 = vunpack.c.l.b16 %v1781
      %v1853 = vunpack.c.l.b16 %v1782
      %v1854 = vunpack.c.l.b16 %v1783
      %v1855 = vunpack.c.l.b16 %v1784
      %v1856 = vunpack.c.l.b16 %v1785
      %v1857 = vunpack.c.l.b16 %v1786
      %v1858 = vunpack.c.l.b16 %v1787
      %v1859 = vunpack.c.l.b16 %v1788
      %v1860 = vunpack.c.l.b16 %v1789
      %v1861 = vunpack.c.l.b16 %v1790
      %v1862 = vunpack.c.l.b16 %v1791
      %v1863 = vunpack.c.l.b16 %v1792
      %v1864 = vunpack.c.l.b16 %v1793
      %v1865 = vunpack.c.l.b16 %v1794
      %v1866 = vunpack.c.l.b16 %v1795
      %v1867 = vunpack.c.l.b16 %v1796
      %v1868 = vunpack.c.l.b16 %v1797
      %v1869 = vunpack.c.l.b16 %v1798
      %v1870 = vunpack.c.l.b16 %v1799
      %v1871 = vunpack.c.l.b16 %v1800
      %v1872 = vunpack.c.l.b16 %v1801
      %v1873 = vunpack.c.l.b16 %v1802
      %v1874 = vunpack.c.l.b16 %v1803
      %v1875 = vunpack.c.l.b16 %v1804
      %v1876 = vunpack.c.l.b16 %v1805
      %v1877 = vunpack.c.l.b16 %v1806
      %v1878 = vpack.c.b16 %v1847, %v1846
      %v1879 = vpack.c.b16 %v1849, %v1848
      %v1880 = vpack.c.b16 %v1851, %v1850
      %v1881 = vpack.c.b16 %v1853, %v1852
      %v1882 = vpack.c.b16 %v1855, %v1854
      %v1883 = vpack.c.b16 %v1857, %v1856
      %v1884 = vpack.c.b16 %v1859, %v1858
      %v1885 = vpack.c.b16 %v1861, %v1860
      %v1886 = vpack.c.b16 %v1863, %v1862
      %v1887 = vpack.c.b16 %v1865, %v1864
      %v1888 = vpack.c.b16 %v1867, %v1866
      %v1889 = vpack.c.b16 %v1869, %v1868
      %v1890 = vpack.c.b16 %v1871, %v1870
      %v1891 = vpack.c.b16 %v1873, %v1872
      %v1892 = vpack.c.b16 %v1875, %v1874
      %v1893 = vpack.c.b16 %v1877, %v1876
      %1910 = vmatprep.subr.bf16.mxu0 0
      %1911 = vmatpush1.bf16.msra.mxu0 %v1878
      %1912 = vmatprep.subr.bf16.mxu0 0
      %1913 = vmatpush1.bf16.msra.mxu0 %v1879
      %1914 = vmatprep.subr.bf16.mxu0 0
      %1915 = vmatpush1.bf16.msra.mxu0 %v1880
      %1916 = vmatprep.subr.bf16.mxu0 0
      %1917 = vmatpush1.bf16.msra.mxu0 %v1881
      %1918 = vmatprep.subr.bf16.mxu0 0
      %1919 = vmatpush1.bf16.msra.mxu0 %v1882
      %1920 = vmatprep.subr.bf16.mxu0 0
      %1921 = vmatpush1.bf16.msra.mxu0 %v1883
      %1922 = vmatprep.subr.bf16.mxu0 0
      %1923 = vmatpush1.bf16.msra.mxu0 %v1884
      %1924 = vmatprep.subr.bf16.mxu0 0
      %1925 = vmatpush1.bf16.msra.mxu0 %v1885
      %1926 = vmatprep.subr.bf16.mxu0 0
      %1927 = vmatpush1.bf16.msra.mxu0 %v1886
      %1928 = vmatprep.subr.bf16.mxu0 0
      %1929 = vmatpush1.bf16.msra.mxu0 %v1887
      %1930 = vmatprep.subr.bf16.mxu0 0
      %1931 = vmatpush1.bf16.msra.mxu0 %v1888
      %1932 = vmatprep.subr.bf16.mxu0 0
      %1933 = vmatpush1.bf16.msra.mxu0 %v1889
      %1934 = vmatprep.subr.bf16.mxu0 0
      %1935 = vmatpush1.bf16.msra.mxu0 %v1890
      %1936 = vmatprep.subr.bf16.mxu0 0
      %1937 = vmatpush1.bf16.msra.mxu0 %v1891
      %1938 = vmatprep.subr.bf16.mxu0 0
      %1939 = vmatpush1.bf16.msra.mxu0 %v1892
      %1940 = vmatprep.subr.bf16.mxu0 0
      %1941 = vmatpush1.bf16.msra.mxu0 %v1893
      %1942 = vmatprep.mubr.bf16.mxu0 %v1774
      %1943 = vmatmul.mubr.bf16.gmra.mrb[0].mxu0 %v1773
      %v1944 = vpop.f32.mrb[0].mxu0
      %v1945 = vadd.f32 %v1812, %v1944
      %v1946 = vpop.f32.mrb[0].mxu0
      %v1947 = vpop.f32.mrb[0].mxu0
      %v1948 = vadd.f32 %v1812, %v1947
      %v1949 = vpop.f32.mrb[0].mxu0
      %1950 = vdwg.mxu0
      %v1951 = vadd.f32 %v1584, %v1945
      %v1952 = vadd.f32 %v1585, %v1948
      %1953 = vst.msk [vmem:[%s804] sm:$0xff] %vm809, %v1951
      %1954 = vst.msk [vmem:[%s804 + $0x8] sm:$0x1] %vm813, %v1952
      %p1955 = scmp.eq.s32.totalorder %s34, 1
      // Predicated region
      $region93: #{pointcloud_encoder_forward.5} parent=87 // pred_check
        %p1956 = pneg %p1955
      $region94: #{pointcloud_encoder_forward.5} parent=87 // pred_check_branch
        %1958 = sbr.rel (%p1956) target = $region96
      $region95: #{pointcloud_encoder_forward.5} parent=87 // pred_region
        %v1959 = vsel %vm813, %v1951, 0.0
        %1960 = vadd.xlane.f32.xlu0 %v1959
        %v1961 = vpop.xlane.xlu0 %1960
        %v1962 = vmul.f32 %v1961, %v817
        %v1963 = vsub.f32 %v1951, %v1962
        %v1964 = vmul.f32 %v1963, %v1963
        %v1965 = vsel %vm813, %v1964, 0.0
        %1966 = vadd.xlane.f32.xlu0 %v1965
        %v1967 = vpop.xlane.xlu0 %1966
        %v1968 = vmul.f32 %v1967, %v817
        %v1969 = vadd.f32 %v1968, 1e-05
        %v1970 = vrsqrt.pop %v1969
        %v1971 = vmul.f32 %v1963, %v1970
        %v1972 = vld [vmem:[%s13] sm:$0x1]
        %v1973 = vmul.f32 %v1971, %v1972
        %v1974 = vld [vmem:[%s14] sm:$0x1]
        %v1975 = vadd.f32 %v1973, %v1974
        %v1976 = vpack.c.bf16 %v1975, %v1975
        %v1977 = vld [vmem:[%s15] sm:$0xff]
        %v1978 = vld [vmem:[%s15 + $0x8] sm:$0xff]
        %v1979 = vld [vmem:[%s15 + $0x10] sm:$0xff]
        %v1980 = vld [vmem:[%s15 + $0x18] sm:$0xff]
        %v1981 = vld [vmem:[%s15 + $0x20] sm:$0xff]
        %v1982 = vld [vmem:[%s15 + $0x28] sm:$0xff]
        %v1983 = vld [vmem:[%s15 + $0x30] sm:$0xff]
        %v1984 = vld [vmem:[%s15 + $0x38] sm:$0xff]
        %v1985 = vld [vmem:[%s15 + $0x40] sm:$0xff]
        %v1986 = vld [vmem:[%s15 + $0x48] sm:$0xff]
        %v1987 = vld [vmem:[%s15 + $0x50] sm:$0xff]
        %v1988 = vld [vmem:[%s15 + $0x58] sm:$0xff]
        %v1989 = vld [vmem:[%s15 + $0x60] sm:$0xff]
        %v1990 = vld [vmem:[%s15 + $0x68] sm:$0xff]
        %v1991 = vld [vmem:[%s15 + $0x70] sm:$0xff]
        %v1992 = vld [vmem:[%s15 + $0x78] sm:$0xff]
        %v1993 = vld [vmem:[%s15 + $0x80] sm:$0xff]
        %v1994 = vld [vmem:[%s15 + $0x88] sm:$0xff]
        %v1995 = vld [vmem:[%s15 + $0x90] sm:$0xff]
        %v1996 = vld [vmem:[%s15 + $0x98] sm:$0xff]
        %v1997 = vld [vmem:[%s15 + $0xa0] sm:$0xff]
        %v1998 = vld [vmem:[%s15 + $0xa8] sm:$0xff]
        %v1999 = vld [vmem:[%s15 + $0xb0] sm:$0xff]
        %v2000 = vld [vmem:[%s15 + $0xb8] sm:$0xff]
        %v2001 = vld [vmem:[%s15 + $0xc0] sm:$0xff]
        %v2002 = vld [vmem:[%s15 + $0xc8] sm:$0xff]
        %v2003 = vld [vmem:[%s15 + $0xd0] sm:$0xff]
        %v2004 = vld [vmem:[%s15 + $0xd8] sm:$0xff]
        %v2005 = vld [vmem:[%s15 + $0xe0] sm:$0xff]
        %v2006 = vld [vmem:[%s15 + $0xe8] sm:$0xff]
        %v2007 = vld [vmem:[%s15 + $0xf0] sm:$0xff]
        %v2008 = vld [vmem:[%s15 + $0xf8] sm:$0xff]
        %v2009 = vld [vmem:[%s16] sm:$0xff]
        %v2042 = vunpack.c.l.b16 %v1977
        %v2043 = vunpack.c.h.b16 %v1977
        %v2044 = vunpack.c.l.b16 %v1978
        %v2045 = vunpack.c.h.b16 %v1978
        %v2046 = vunpack.c.l.b16 %v1979
        %v2047 = vunpack.c.h.b16 %v1979
        %v2048 = vunpack.c.l.b16 %v1980
        %v2049 = vunpack.c.h.b16 %v1980
        %v2050 = vunpack.c.l.b16 %v1981
        %v2051 = vunpack.c.h.b16 %v1981
        %v2052 = vunpack.c.l.b16 %v1982
        %v2053 = vunpack.c.h.b16 %v1982
        %v2054 = vunpack.c.l.b16 %v1983
        %v2055 = vunpack.c.h.b16 %v1983
        %v2056 = vunpack.c.l.b16 %v1984
        %v2057 = vunpack.c.h.b16 %v1984
        %v2058 = vunpack.c.l.b16 %v1985
        %v2059 = vunpack.c.h.b16 %v1985
        %v2060 = vunpack.c.l.b16 %v1986
        %v2061 = vunpack.c.h.b16 %v1986
        %v2062 = vunpack.c.l.b16 %v1987
        %v2063 = vunpack.c.h.b16 %v1987
        %v2064 = vunpack.c.l.b16 %v1988
        %v2065 = vunpack.c.h.b16 %v1988
        %v2066 = vunpack.c.l.b16 %v1989
        %v2067 = vunpack.c.h.b16 %v1989
        %v2068 = vunpack.c.l.b16 %v1990
        %v2069 = vunpack.c.h.b16 %v1990
        %v2070 = vunpack.c.l.b16 %v1991
        %v2071 = vunpack.c.h.b16 %v1991
        %v2072 = vunpack.c.l.b16 %v1992
        %v2073 = vunpack.c.h.b16 %v1992
        %v2074 = vunpack.c.l.b16 %v1993
        %v2075 = vunpack.c.h.b16 %v1993
        %v2076 = vunpack.c.l.b16 %v1994
        %v2077 = vunpack.c.h.b16 %v1994
        %v2078 = vunpack.c.l.b16 %v1995
        %v2079 = vunpack.c.h.b16 %v1995
        %v2080 = vunpack.c.l.b16 %v1996
        %v2081 = vunpack.c.h.b16 %v1996
        %v2082 = vunpack.c.l.b16 %v1997
        %v2083 = vunpack.c.h.b16 %v1997
        %v2084 = vunpack.c.l.b16 %v1998
        %v2085 = vunpack.c.h.b16 %v1998
        %v2086 = vunpack.c.l.b16 %v1999
        %v2087 = vunpack.c.h.b16 %v1999
        %v2088 = vunpack.c.l.b16 %v2000
        %v2089 = vunpack.c.h.b16 %v2000
        %v2090 = vunpack.c.l.b16 %v2001
        %v2091 = vunpack.c.h.b16 %v2001
        %v2092 = vunpack.c.l.b16 %v2002
        %v2093 = vunpack.c.h.b16 %v2002
        %v2094 = vunpack.c.l.b16 %v2003
        %v2095 = vunpack.c.h.b16 %v2003
        %v2096 = vunpack.c.l.b16 %v2004
        %v2097 = vunpack.c.h.b16 %v2004
        %v2098 = vunpack.c.l.b16 %v2005
        %v2099 = vunpack.c.h.b16 %v2005
        %v2100 = vunpack.c.l.b16 %v2006
        %v2101 = vunpack.c.h.b16 %v2006
        %v2102 = vunpack.c.l.b16 %v2007
        %v2103 = vunpack.c.h.b16 %v2007
        %v2104 = vunpack.c.l.b16 %v2008
        %v2105 = vunpack.c.h.b16 %v2008
        %v2106 = vpack.c.b16 %v2050, %v2042
        %v2107 = vpack.c.b16 %v2051, %v2043
        %v2108 = vpack.c.b16 %v2052, %v2044
        %v2109 = vpack.c.b16 %v2053, %v2045
        %v2110 = vpack.c.b16 %v2054, %v2046
        %v2111 = vpack.c.b16 %v2055, %v2047
        %v2112 = vpack.c.b16 %v2056, %v2048
        %v2113 = vpack.c.b16 %v2057, %v2049
        %v2114 = vpack.c.b16 %v2066, %v2058
        %v2115 = vpack.c.b16 %v2067, %v2059
        %v2116 = vpack.c.b16 %v2068, %v2060
        %v2117 = vpack.c.b16 %v2069, %v2061
        %v2118 = vpack.c.b16 %v2070, %v2062
        %v2119 = vpack.c.b16 %v2071, %v2063
        %v2120 = vpack.c.b16 %v2072, %v2064
        %v2121 = vpack.c.b16 %v2073, %v2065
        %v2122 = vpack.c.b16 %v2082, %v2074
        %v2123 = vpack.c.b16 %v2083, %v2075
        %v2124 = vpack.c.b16 %v2084, %v2076
        %v2125 = vpack.c.b16 %v2085, %v2077
        %v2126 = vpack.c.b16 %v2086, %v2078
        %v2127 = vpack.c.b16 %v2087, %v2079
        %v2128 = vpack.c.b16 %v2088, %v2080
        %v2129 = vpack.c.b16 %v2089, %v2081
        %v2130 = vpack.c.b16 %v2098, %v2090
        %v2131 = vpack.c.b16 %v2099, %v2091
        %v2132 = vpack.c.b16 %v2100, %v2092
        %v2133 = vpack.c.b16 %v2101, %v2093
        %v2134 = vpack.c.b16 %v2102, %v2094
        %v2135 = vpack.c.b16 %v2103, %v2095
        %v2136 = vpack.c.b16 %v2104, %v2096
        %v2137 = vpack.c.b16 %v2105, %v2097
        %v2171 = vlaneseq
        %v2172 = vshrl.u32 %v2171, 7
        %v2173 = vsub.s32 0, %v2172
        %v2174 = vrot.slane %v2009, %v2173
        %v2175 = vlaneseq
        %v2176 = vshrl.u32 %v2175, 7
        %v2177 = vsub.s32 1, %v2176
        %v2178 = vrot.slane %v2009, %v2177
        %v2179 = vlaneseq
        %v2180 = vshrl.u32 %v2179, 7
        %v2181 = vsub.s32 2, %v2180
        %v2182 = vrot.slane %v2009, %v2181
        %v2183 = vlaneseq
        %v2184 = vshrl.u32 %v2183, 7
        %v2185 = vsub.s32 3, %v2184
        %v2186 = vrot.slane %v2009, %v2185
        %v2187 = vlaneseq
        %v2188 = vshrl.u32 %v2187, 7
        %v2189 = vsub.s32 4, %v2188
        %v2190 = vrot.slane %v2009, %v2189
        %v2191 = vlaneseq
        %v2192 = vshrl.u32 %v2191, 7
        %v2193 = vsub.s32 5, %v2192
        %v2194 = vrot.slane %v2009, %v2193
        %v2195 = vlaneseq
        %v2196 = vshrl.u32 %v2195, 7
        %v2197 = vsub.s32 6, %v2196
        %v2198 = vrot.slane %v2009, %v2197
        %v2199 = vlaneseq
        %v2200 = vshrl.u32 %v2199, 7
        %v2201 = vsub.s32 7, %v2200
        %v2202 = vrot.slane %v2009, %v2201
        %v2212 = vsel %vm809, %v1976, 0
        %2214 = vmatprep.subr.bf16.mxu0 %v2107
        %2215 = vmatpush1.bf16.msra.mxu0 %v2106
        %2216 = vmatprep.subr.bf16.mxu0 %v2115
        %2217 = vmatpush1.bf16.msra.mxu0 %v2114
        %2218 = vmatprep.subr.bf16.mxu0 %v2123
        %2219 = vmatpush1.bf16.msra.mxu0 %v2122
        %2220 = vmatprep.subr.bf16.mxu0 %v2131
        %2221 = vmatpush1.bf16.msra.mxu0 %v2130
        %2222 = vmatprep.subr.bf16.mxu0 0
        %2223 = vmatpush1.bf16.msra.mxu0 0
        %2224 = vmatprep.subr.bf16.mxu0 0
        %2225 = vmatpush1.bf16.msra.mxu0 0
        %2226 = vmatprep.subr.bf16.mxu0 0
        %2227 = vmatpush1.bf16.msra.mxu0 0
        %2228 = vmatprep.subr.bf16.mxu0 0
        %2229 = vmatpush1.bf16.msra.mxu0 0
        %2230 = vmatprep.subr.bf16.mxu0 0
        %2231 = vmatpush1.bf16.msra.mxu0 0
        %2232 = vmatprep.subr.bf16.mxu0 0
        %2233 = vmatpush1.bf16.msra.mxu0 0
        %2234 = vmatprep.subr.bf16.mxu0 0
        %2235 = vmatpush1.bf16.msra.mxu0 0
        %2236 = vmatprep.subr.bf16.mxu0 0
        %2237 = vmatpush1.bf16.msra.mxu0 0
        %2238 = vmatprep.subr.bf16.mxu0 0
        %2239 = vmatpush1.bf16.msra.mxu0 0
        %2240 = vmatprep.subr.bf16.mxu0 0
        %2241 = vmatpush1.bf16.msra.mxu0 0
        %2242 = vmatprep.subr.bf16.mxu0 0
        %2243 = vmatpush1.bf16.msra.mxu0 0
        %2244 = vmatprep.subr.bf16.mxu0 0
        %2245 = vmatpush1.bf16.msra.mxu0 0
        %2246 = vmatprep.mubr.bf16.mxu0 0
        %2247 = vmatmul.mubr.bf16.gmra.mrb[0].mxu0 %v2212
        %v2248 = vpop.f32.mrb[0].mxu0
        %v2249 = vadd.f32 %v2174, %v2248
        %v2250 = vpop.f32.mrb[0].mxu0
        %v2251 = vadd.f32 %v2178, %v2250
        %v2252 = vpop.f32.mrb[0].mxu0
        %v2253 = vpop.f32.mrb[0].mxu0
        %2254 = vdwg.mxu0
        %2255 = vmatprep.subr.bf16.mxu0 %v2109
        %2256 = vmatpush1.bf16.msra.mxu0 %v2108
        %2257 = vmatprep.subr.bf16.mxu0 %v2117
        %2258 = vmatpush1.bf16.msra.mxu0 %v2116
        %2259 = vmatprep.subr.bf16.mxu0 %v2125
        %2260 = vmatpush1.bf16.msra.mxu0 %v2124
        %2261 = vmatprep.subr.bf16.mxu0 %v2133
        %2262 = vmatpush1.bf16.msra.mxu0 %v2132
        %2263 = vmatprep.subr.bf16.mxu0 0
        %2264 = vmatpush1.bf16.msra.mxu0 0
        %2265 = vmatprep.subr.bf16.mxu0 0
        %2266 = vmatpush1.bf16.msra.mxu0 0
        %2267 = vmatprep.subr.bf16.mxu0 0
        %2268 = vmatpush1.bf16.msra.mxu0 0
        %2269 = vmatprep.subr.bf16.mxu0 0
        %2270 = vmatpush1.bf16.msra.mxu0 0
        %2271 = vmatprep.subr.bf16.mxu0 0
        %2272 = vmatpush1.bf16.msra.mxu0 0
        %2273 = vmatprep.subr.bf16.mxu0 0
        %2274 = vmatpush1.bf16.msra.mxu0 0
        %2275 = vmatprep.subr.bf16.mxu0 0
        %2276 = vmatpush1.bf16.msra.mxu0 0
        %2277 = vmatprep.subr.bf16.mxu0 0
        %2278 = vmatpush1.bf16.msra.mxu0 0
        %2279 = vmatprep.subr.bf16.mxu0 0
        %2280 = vmatpush1.bf16.msra.mxu0 0
        %2281 = vmatprep.subr.bf16.mxu0 0
        %2282 = vmatpush1.bf16.msra.mxu0 0
        %2283 = vmatprep.subr.bf16.mxu0 0
        %2284 = vmatpush1.bf16.msra.mxu0 0
        %2285 = vmatprep.subr.bf16.mxu0 0
        %2286 = vmatpush1.bf16.msra.mxu0 0
        %2287 = vmatprep.mubr.bf16.mxu0 0
        %2288 = vmatmul.mubr.bf16.gmra.mrb[0].mxu0 %v2212
        %v2289 = vpop.f32.mrb[0].mxu0
        %v2290 = vadd.f32 %v2182, %v2289
        %v2291 = vpop.f32.mrb[0].mxu0
        %v2292 = vadd.f32 %v2186, %v2291
        %v2293 = vpop.f32.mrb[0].mxu0
        %v2294 = vpop.f32.mrb[0].mxu0
        %2295 = vdwg.mxu0
        %2296 = vmatprep.subr.bf16.mxu0 %v2111
        %2297 = vmatpush1.bf16.msra.mxu0 %v2110
        %2298 = vmatprep.subr.bf16.mxu0 %v2119
        %2299 = vmatpush1.bf16.msra.mxu0 %v2118
        %2300 = vmatprep.subr.bf16.mxu0 %v2127
        %2301 = vmatpush1.bf16.msra.mxu0 %v2126
        %2302 = vmatprep.subr.bf16.mxu0 %v2135
        %2303 = vmatpush1.bf16.msra.mxu0 %v2134
        %2304 = vmatprep.subr.bf16.mxu0 0
        %2305 = vmatpush1.bf16.msra.mxu0 0
        %2306 = vmatprep.subr.bf16.mxu0 0
        %2307 = vmatpush1.bf16.msra.mxu0 0
        %2308 = vmatprep.subr.bf16.mxu0 0
        %2309 = vmatpush1.bf16.msra.mxu0 0
        %2310 = vmatprep.subr.bf16.mxu0 0
        %2311 = vmatpush1.bf16.msra.mxu0 0
        %2312 = vmatprep.subr.bf16.mxu0 0
        %2313 = vmatpush1.bf16.msra.mxu0 0
        %2314 = vmatprep.subr.bf16.mxu0 0
        %2315 = vmatpush1.bf16.msra.mxu0 0
        %2316 = vmatprep.subr.bf16.mxu0 0
        %2317 = vmatpush1.bf16.msra.mxu0 0
        %2318 = vmatprep.subr.bf16.mxu0 0
        %2319 = vmatpush1.bf16.msra.mxu0 0
        %2320 = vmatprep.subr.bf16.mxu0 0
        %2321 = vmatpush1.bf16.msra.mxu0 0
        %2322 = vmatprep.subr.bf16.mxu0 0
        %2323 = vmatpush1.bf16.msra.mxu0 0
        %2324 = vmatprep.subr.bf16.mxu0 0
        %2325 = vmatpush1.bf16.msra.mxu0 0
        %2326 = vmatprep.subr.bf16.mxu0 0
        %2327 = vmatpush1.bf16.msra.mxu0 0
        %2328 = vmatprep.mubr.bf16.mxu0 0
        %2329 = vmatmul.mubr.bf16.gmra.mrb[0].mxu0 %v2212
        %v2330 = vpop.f32.mrb[0].mxu0
        %v2331 = vadd.f32 %v2190, %v2330
        %v2332 = vpop.f32.mrb[0].mxu0
        %v2333 = vadd.f32 %v2194, %v2332
        %v2334 = vpop.f32.mrb[0].mxu0
        %v2335 = vpop.f32.mrb[0].mxu0
        %2336 = vdwg.mxu0
        %2337 = vmatprep.subr.bf16.mxu0 %v2113
        %2338 = vmatpush1.bf16.msra.mxu0 %v2112
        %2339 = vmatprep.subr.bf16.mxu0 %v2121
        %2340 = vmatpush1.bf16.msra.mxu0 %v2120
        %2341 = vmatprep.subr.bf16.mxu0 %v2129
        %2342 = vmatpush1.bf16.msra.mxu0 %v2128
        %2343 = vmatprep.subr.bf16.mxu0 %v2137
        %2344 = vmatpush1.bf16.msra.mxu0 %v2136
        %2345 = vmatprep.subr.bf16.mxu0 0
        %2346 = vmatpush1.bf16.msra.mxu0 0
        %2347 = vmatprep.subr.bf16.mxu0 0
        %2348 = vmatpush1.bf16.msra.mxu0 0
        %2349 = vmatprep.subr.bf16.mxu0 0
        %2350 = vmatpush1.bf16.msra.mxu0 0
        %2351 = vmatprep.subr.bf16.mxu0 0
        %2352 = vmatpush1.bf16.msra.mxu0 0
        %2353 = vmatprep.subr.bf16.mxu0 0
        %2354 = vmatpush1.bf16.msra.mxu0 0
        %2355 = vmatprep.subr.bf16.mxu0 0
        %2356 = vmatpush1.bf16.msra.mxu0 0
        %2357 = vmatprep.subr.bf16.mxu0 0
        %2358 = vmatpush1.bf16.msra.mxu0 0
        %2359 = vmatprep.subr.bf16.mxu0 0
        %2360 = vmatpush1.bf16.msra.mxu0 0
        %2361 = vmatprep.subr.bf16.mxu0 0
        %2362 = vmatpush1.bf16.msra.mxu0 0
        %2363 = vmatprep.subr.bf16.mxu0 0
        %2364 = vmatpush1.bf16.msra.mxu0 0
        %2365 = vmatprep.subr.bf16.mxu0 0
        %2366 = vmatpush1.bf16.msra.mxu0 0
        %2367 = vmatprep.subr.bf16.mxu0 0
        %2368 = vmatpush1.bf16.msra.mxu0 0
        %2369 = vmatprep.mubr.bf16.mxu0 0
        %2370 = vmatmul.mubr.bf16.gmra.mrb[0].mxu0 %v2212
        %v2371 = vpop.f32.mrb[0].mxu0
        %v2372 = vadd.f32 %v2198, %v2371
        %v2373 = vpop.f32.mrb[0].mxu0
        %v2374 = vadd.f32 %v2202, %v2373
        %v2375 = vpop.f32.mrb[0].mxu0
        %v2376 = vpop.f32.mrb[0].mxu0
        %2377 = vdwg.mxu0
        %v2386 = vcombine.low %v2249, %v2251
        %v2387 = vcombine.low %v2290, %v2292
        %v2388 = vcombine.low %v2331, %v2333
        %v2389 = vcombine.low %v2372, %v2374
        %v2391 = vunpack.c.l.s4 1966171168
        %v2392 = vunpack.c.0.s8 %v2391
        %v2393 = vlaneseq
        %v2394 = vshrl.u32 %v2393, 7
        %v2395 = vsub.s32 %v2392, %v2394
        %v2396 = vrot.slane %v2386, %v2395
        %v2398 = vunpack.c.l.s4 1966171168
        %v2399 = vunpack.c.0.s8 %v2398
        %v2400 = vlaneseq
        %v2401 = vshrl.u32 %v2400, 7
        %v2402 = vsub.s32 %v2399, %v2401
        %v2403 = vrot.slane %v2387, %v2402
        %v2405 = vunpack.c.l.s4 1966171168
        %v2406 = vunpack.c.0.s8 %v2405
        %v2407 = vlaneseq
        %v2408 = vshrl.u32 %v2407, 7
        %v2409 = vsub.s32 %v2406, %v2408
        %v2410 = vrot.slane %v2388, %v2409
        %v2412 = vunpack.c.l.s4 1966171168
        %v2413 = vunpack.c.0.s8 %v2412
        %v2414 = vlaneseq
        %v2415 = vshrl.u32 %v2414, 7
        %v2416 = vsub.s32 %v2413, %v2415
        %v2417 = vrot.slane %v2389, %v2416
        %v2418 = vcombine.low %v2396, %v2403
        %v2419 = vcombine.low %v2410, %v2417
        %v2421 = vunpack.c.l.s4 1966171168
        %v2422 = vunpack.c.0.s8 %v2421
        %v2423 = vlaneseq
        %v2424 = vshrl.u32 %v2423, 7
        %v2425 = vsub.s32 %v2422, %v2424
        %v2426 = vrot.slane %v2418, %v2425
        %v2428 = vunpack.c.l.s4 1966171168
        %v2429 = vunpack.c.0.s8 %v2428
        %v2430 = vlaneseq
        %v2431 = vshrl.u32 %v2430, 7
        %v2432 = vsub.s32 %v2429, %v2431
        %v2433 = vrot.slane %v2419, %v2432
        %v2434 = vcombine.low %v2426, %v2433
        %2436 = vst [vmem:[%s788] sm:$0xff] %v2434
      $region96: #{pointcloud_encoder_forward.5} parent=87 // pred_fallthru
        _
      %s2437 = sadd.s32 %s33, %s35
      %p2438 = scmp.lt.s32.totalorder %s2437, 1
      %s2439 = scalar_select %p2438, %s2437, 1
      %s2440 = smul.addr %s2439, 8
      %s2441 = scalar_lea.vmem %s17, %s2440
      // Predicated region
      $region97: #{pointcloud_encoder_forward.5} parent=87 // pred_check
        %p2442 = pneg %p495
      $region98: #{pointcloud_encoder_forward.5} parent=87 // pred_check_branch
        %2444 = sbr.rel (%p2442) target = $region100
      $region99: #{pointcloud_encoder_forward.5} parent=87 // pred_region
        %s2445 = sadd.s32 %s33, %s35
      $region100: #{pointcloud_encoder_forward.5} parent=87 // pred_fallthru
        _
    $region88: #{pointcloud_encoder_forward.5} parent=5 // pred_fallthru
      _
    %p2446 = scmp.le.s32.totalorder 2, %s23
    // Predicated region
    $region101: #{pointcloud_encoder_forward.5} parent=5 // pred_check
      %p2447 = pneg %p2446
    $region102: #{pointcloud_encoder_forward.5} parent=5 // pred_check_branch
      %2449 = sbr.rel (%p2447) target = $region104
    $region103: #{pointcloud_encoder_forward.5} parent=5 // pred_region
      %s2450 = ssub.s32 %s23, 2
      // Predicated region
      $region105: #{pointcloud_encoder_forward.5} parent=103 // pred_check
        %p2451 = pneg %p501
      $region106: #{pointcloud_encoder_forward.5} parent=103 // pred_check_branch
        %2453 = sbr.rel (%p2451) target = $region108
      $region107: #{pointcloud_encoder_forward.5} parent=103 // pred_region
        %s2454 = sadd.s32 %s36, %s38
        %p2455 = scmp.lt.s32.totalorder %s2454, 1
        %s2456 = scalar_select %p2455, %s2454, 1
        %s2457 = smul.addr %s2456, 8
        %s2458 = scalar_lea.vmem %s17, %s2457
      $region108: #{pointcloud_encoder_forward.5} parent=103 // pred_fallthru
        _
    $region104: #{pointcloud_encoder_forward.5} parent=5 // pred_fallthru
      _
  $region6: #{pointcloud_encoder_forward.5} parent=0 // loop_footer
    %s27 = sadd.s32 1, %s23
  $region7: #{pointcloud_encoder_forward.5} parent=0 // loop_footer_branch
    %22 = sbr.rel target = $region3
  $region8: #{pointcloud_encoder_forward.5} parent=0 // loop_exit
    _

// kernel: pointcloud_encoder_forward.4
$region0: #{pointcloud_encoder_forward.4}
  #allocation0 [shape = 'u32[]', space=smem, size = 0x4, offset = 0x4, fixed_abs, tag = 'smem constant byte address 0x4 - core index']
  #allocation1 [shape = 'u32[144,128]{1,0:T(1,128)}', space=vmem, size = 0x12000, scoped, tag = 'internal scratch']
  %s0 = inlined_call_operand.vmem [shape: f32[256,6], index: 0, kind: input, shape index: {}]
  %s1 = inlined_call_operand.vmem [shape: f32[16,8], index: 1, kind: input, shape index: {}]
  %s2 = inlined_call_operand.vmem [shape: bf16[6,128], index: 2, kind: input, shape index: {}]
  %s3 = inlined_call_operand.vmem [shape: f32[1,128], index: 3, kind: input, shape index: {}]
  %s4 = inlined_call_operand.vmem [shape: f32[1,128], index: 4, kind: input, shape index: {}]
  %s5 = inlined_call_operand.vmem [shape: f32[1,128], index: 5, kind: input, shape index: {}]
  %s6 = inlined_call_operand.vmem [shape: bf16[128,256], index: 6, kind: input, shape index: {}]
  %s7 = inlined_call_operand.vmem [shape: f32[1,256], index: 7, kind: input, shape index: {}]
  %s8 = inlined_call_operand.vmem [shape: bf16[256,512], index: 8, kind: input, shape index: {}]
  %s9 = inlined_call_operand.vmem [shape: bf16[256,512], index: 9, kind: input, shape index: {}]
  %s10 = inlined_call_operand.vmem [shape: f32[1,512], index: 10, kind: input, shape index: {}]
  %s11 = inlined_call_operand.vmem [shape: f32[1,512], index: 11, kind: input, shape index: {}]
  %s12 = inlined_call_operand.vmem [shape: f32[1,512], index: 12, kind: input, shape index: {}]
  %s13 = inlined_call_operand.vmem [shape: bf16[512,512], index: 13, kind: input, shape index: {}]
  %s14 = inlined_call_operand.vmem [shape: f32[1,512], index: 14, kind: input, shape index: {}]
  %s15 = inlined_call_operand.vmem [shape: bf16[512,64], index: 15, kind: input, shape index: {}]
  %s16 = inlined_call_operand.vmem [shape: f32[1,64], index: 16, kind: input, shape index: {}]
  %s17 = inlined_call_operand.vmem [shape: bf16[8,128], index: 17, kind: input, shape index: {}]
  %s18 = inlined_call_operand.vmem [shape: f32[1,128], index: 18, kind: input, shape index: {}]
  %s19 = inlined_call_operand.vmem [shape: bf16[128,64], index: 19, kind: input, shape index: {}]
  %s20 = inlined_call_operand.vmem [shape: f32[1,64], index: 20, kind: input, shape index: {}]
  %s21 = inlined_call_operand.vmem [shape: f32[16,64], index: 21, kind: output, shape index: {}]
  %s22 = sld [smem:[#allocation0]]
  $region117: #{pointcloud_encoder_forward.4} parent=0
    _
  %s24 = ssub.s32 1, %s22
  %s25 = scalar_select 0, %s24, %s22
  loop: start=0, step=1, limit=4
  $region2: #{pointcloud_encoder_forward.4} parent=0 // loop_pre_header
    _
  $region3: #{pointcloud_encoder_forward.4} parent=0 // loop_header
    %s27 = sphi 0, %s31
    %p28 = scmp.ge.s32.totalorder %s27, 4
    %s37 = sphi 0, %s39
    %s40 = sphi 0, %s37
    %s41 = sphi 0, %s40
    %s57 = sphi 0, %s41
    %s63 = sphi 0, %s65
    %s66 = sphi 0, %s63
    %s67 = sphi 0, %s66
    %s83 = sphi 0, %s67
    %s87 = sphi 0, %s87
    %s89 = sphi 0, %s87
    %s90 = sphi 0, %s89
    %s104 = sphi 0, %s90
    %s108 = sphi 0, %s108
    %s110 = sphi 0, %s108
    %s111 = sphi 0, %s110
    %s125 = sphi 0, %s111
    %s129 = sphi 0, %s129
    %s131 = sphi 0, %s129
    %s132 = sphi 0, %s131
    %s146 = sphi 0, %s132
    %s150 = sphi 0, %s150
    %s152 = sphi 0, %s150
    %s153 = sphi 0, %s152
    %s167 = sphi 0, %s153
    %s171 = sphi 0, %s171
    %s173 = sphi 0, %s171
    %s174 = sphi 0, %s173
    %s188 = sphi 0, %s174
    %s192 = sphi 0, %s192
    %s194 = sphi 0, %s192
    %s195 = sphi 0, %s194
    %s209 = sphi 0, %s195
    %s213 = sphi 0, %s213
    %s215 = sphi 0, %s213
    %s216 = sphi 0, %s215
    %s230 = sphi 0, %s216
    %s234 = sphi 0, %s234
    %s236 = sphi 0, %s234
    %s237 = sphi 0, %s236
    %s251 = sphi 0, %s237
    %s255 = sphi 0, %s255
    %s257 = sphi 0, %s255
    %s258 = sphi 0, %s257
    %s272 = sphi 0, %s258
    %s276 = sphi 0, %s276
    %s278 = sphi 0, %s276
    %s279 = sphi 0, %s278
    %s293 = sphi 0, %s279
    %s297 = sphi 0, %s297
    %s299 = sphi 0, %s297
    %s300 = sphi 0, %s299
    %s314 = sphi 0, %s300
    %s318 = sphi 0, %s318
    %s320 = sphi 0, %s318
    %s321 = sphi 0, %s320
    %s335 = sphi 0, %s321
    %s339 = sphi 0, %s339
    %s341 = sphi 0, %s339
    %s342 = sphi 0, %s341
    %s356 = sphi 0, %s342
    %s360 = sphi 0, %s360
    %s362 = sphi 0, %s360
    %s363 = sphi 0, %s362
    %s377 = sphi 0, %s363
    %s381 = sphi 0, %s381
    %s383 = sphi 0, %s381
    %s384 = sphi 0, %s383
    %s398 = sphi 0, %s384
    %s402 = sphi 0, %s402
    %s404 = sphi 0, %s402
    %s405 = sphi 0, %s404
    %s419 = sphi 0, %s405
    %s423 = sphi 0, %s423
    %s425 = sphi 0, %s423
    %s426 = sphi 0, %s425
    %s440 = sphi 0, %s426
    %s444 = sphi 0, %s444
    %s446 = sphi 0, %s444
    %s447 = sphi 0, %s446
    %s461 = sphi 0, %s447
    %s465 = sphi 0, %s465
    %s467 = sphi 0, %s465
    %s468 = sphi 0, %s467
    %s482 = sphi 0, %s468
    %s488 = sphi 0, %s490
    %s491 = sphi 0, %s488
    %s492 = sphi 0, %s491
    %s508 = sphi 0, %s492
  $region4: #{pointcloud_encoder_forward.4} parent=0 // loop_header_branch
    %30 = sbr.rel (%p28) target = $region8
  $region5: #{pointcloud_encoder_forward.4} parent=0 // loop_body
    %s32 = ssub.s32 %s27, 1
    %s33 = ssub.s32 %s27, 2
    %s34 = sadd.s32 %s27, 1
    %s35 = ssub.s32 %s27, %s34
    %p36 = scmp.eq.s32.totalorder %s35, 0
    %s38 = sadd.s32 %s37, 1
    %s39 = scalar_select %p36, %s37, %s38
    %p42 = pneg %p36
    %p43 = scmp.eq.s32.totalorder %s27, 1
    %p44 = por %p42, %p43
    %p45 = scmp.ne.s32.totalorder %s37, %s40
    %p46 = scmp.eq.s32.totalorder %s27, 0
    %p47 = por %p45, %p46
    %p48 = scmp.ne.s32.totalorder %s37, %s40
    %p49 = scmp.eq.s32.totalorder %s32, 1
    %p50 = por %p48, %p49
    %p51 = scmp.ne.s32.totalorder %s40, %s41
    %p52 = scmp.eq.s32.totalorder %s32, 0
    %p53 = por %p51, %p52
    %p54 = scmp.ne.s32.totalorder %s40, %s41
    %p55 = scmp.eq.s32.totalorder %s33, 1
    %p56 = por %p54, %p55
    %p58 = scmp.ne.s32.totalorder %s41, %s57
    %p59 = scmp.eq.s32.totalorder %s33, 0
    %p60 = por %p58, %p59
    %s61 = ssub.s32 %s27, %s34
    %p62 = scmp.eq.s32.totalorder %s61, 0
    %s64 = sadd.s32 %s63, 1
    %s65 = scalar_select %p62, %s63, %s64
    %p68 = pneg %p62
    %p69 = scmp.eq.s32.totalorder %s27, 1
    %p70 = por %p68, %p69
    %p71 = scmp.ne.s32.totalorder %s63, %s66
    %p72 = scmp.eq.s32.totalorder %s27, 0
    %p73 = por %p71, %p72
    %p74 = scmp.ne.s32.totalorder %s63, %s66
    %p75 = scmp.eq.s32.totalorder %s32, 1
    %p76 = por %p74, %p75
    %p77 = scmp.ne.s32.totalorder %s66, %s67
    %p78 = scmp.eq.s32.totalorder %s32, 0
    %p79 = por %p77, %p78
    %p80 = scmp.ne.s32.totalorder %s66, %s67
    %p81 = scmp.eq.s32.totalorder %s33, 1
    %p82 = por %p80, %p81
    %p84 = scmp.ne.s32.totalorder %s67, %s83
    %p85 = scmp.eq.s32.totalorder %s33, 0
    %p86 = por %p84, %p85
    %s88 = sadd.s32 %s87, 1
    %p91 = scmp.eq.s32.totalorder %s27, 1
    %p92 = scmp.ne.s32.totalorder %s87, %s89
    %p93 = scmp.eq.s32.totalorder %s27, 0
    %p94 = por %p92, %p93
    %p95 = scmp.ne.s32.totalorder %s87, %s89
    %p96 = scmp.eq.s32.totalorder %s32, 1
    %p97 = por %p95, %p96
    %p98 = scmp.ne.s32.totalorder %s89, %s90
    %p99 = scmp.eq.s32.totalorder %s32, 0
    %p100 = por %p98, %p99
    %p101 = scmp.ne.s32.totalorder %s89, %s90
    %p102 = scmp.eq.s32.totalorder %s33, 1
    %p103 = por %p101, %p102
    %p105 = scmp.ne.s32.totalorder %s90, %s104
    %p106 = scmp.eq.s32.totalorder %s33, 0
    %p107 = por %p105, %p106
    %s109 = sadd.s32 %s108, 1
    %p112 = scmp.eq.s32.totalorder %s27, 1
    %p113 = scmp.ne.s32.totalorder %s108, %s110
    %p114 = scmp.eq.s32.totalorder %s27, 0
    %p115 = por %p113, %p114
    %p116 = scmp.ne.s32.totalorder %s108, %s110
    %p117 = scmp.eq.s32.totalorder %s32, 1
    %p118 = por %p116, %p117
    %p119 = scmp.ne.s32.totalorder %s110, %s111
    %p120 = scmp.eq.s32.totalorder %s32, 0
    %p121 = por %p119, %p120
    %p122 = scmp.ne.s32.totalorder %s110, %s111
    %p123 = scmp.eq.s32.totalorder %s33, 1
    %p124 = por %p122, %p123
    %p126 = scmp.ne.s32.totalorder %s111, %s125
    %p127 = scmp.eq.s32.totalorder %s33, 0
    %p128 = por %p126, %p127
    %s130 = sadd.s32 %s129, 1
    %p133 = scmp.eq.s32.totalorder %s27, 1
    %p134 = scmp.ne.s32.totalorder %s129, %s131
    %p135 = scmp.eq.s32.totalorder %s27, 0
    %p136 = por %p134, %p135
    %p137 = scmp.ne.s32.totalorder %s129, %s131
    %p138 = scmp.eq.s32.totalorder %s32, 1
    %p139 = por %p137, %p138
    %p140 = scmp.ne.s32.totalorder %s131, %s132
    %p141 = scmp.eq.s32.totalorder %s32, 0
    %p142 = por %p140, %p141
    %p143 = scmp.ne.s32.totalorder %s131, %s132
    %p144 = scmp.eq.s32.totalorder %s33, 1
    %p145 = por %p143, %p144
    %p147 = scmp.ne.s32.totalorder %s132, %s146
    %p148 = scmp.eq.s32.totalorder %s33, 0
    %p149 = por %p147, %p148
    %s151 = sadd.s32 %s150, 1
    %p154 = scmp.eq.s32.totalorder %s27, 1
    %p155 = scmp.ne.s32.totalorder %s150, %s152
    %p156 = scmp.eq.s32.totalorder %s27, 0
    %p157 = por %p155, %p156
    %p158 = scmp.ne.s32.totalorder %s150, %s152
    %p159 = scmp.eq.s32.totalorder %s32, 1
    %p160 = por %p158, %p159
    %p161 = scmp.ne.s32.totalorder %s152, %s153
    %p162 = scmp.eq.s32.totalorder %s32, 0
    %p163 = por %p161, %p162
    %p164 = scmp.ne.s32.totalorder %s152, %s153
    %p165 = scmp.eq.s32.totalorder %s33, 1
    %p166 = por %p164, %p165
    %p168 = scmp.ne.s32.totalorder %s153, %s167
    %p169 = scmp.eq.s32.totalorder %s33, 0
    %p170 = por %p168, %p169
    %s172 = sadd.s32 %s171, 1
    %p175 = scmp.eq.s32.totalorder %s27, 1
    %p176 = scmp.ne.s32.totalorder %s171, %s173
    %p177 = scmp.eq.s32.totalorder %s27, 0
    %p178 = por %p176, %p177
    %p179 = scmp.ne.s32.totalorder %s171, %s173
    %p180 = scmp.eq.s32.totalorder %s32, 1
    %p181 = por %p179, %p180
    %p182 = scmp.ne.s32.totalorder %s173, %s174
    %p183 = scmp.eq.s32.totalorder %s32, 0
    %p184 = por %p182, %p183
    %p185 = scmp.ne.s32.totalorder %s173, %s174
    %p186 = scmp.eq.s32.totalorder %s33, 1
    %p187 = por %p185, %p186
    %p189 = scmp.ne.s32.totalorder %s174, %s188
    %p190 = scmp.eq.s32.totalorder %s33, 0
    %p191 = por %p189, %p190
    %s193 = sadd.s32 %s192, 1
    %p196 = scmp.eq.s32.totalorder %s27, 1
    %p197 = scmp.ne.s32.totalorder %s192, %s194
    %p198 = scmp.eq.s32.totalorder %s27, 0
    %p199 = por %p197, %p198
    %p200 = scmp.ne.s32.totalorder %s192, %s194
    %p201 = scmp.eq.s32.totalorder %s32, 1
    %p202 = por %p200, %p201
    %p203 = scmp.ne.s32.totalorder %s194, %s195
    %p204 = scmp.eq.s32.totalorder %s32, 0
    %p205 = por %p203, %p204
    %p206 = scmp.ne.s32.totalorder %s194, %s195
    %p207 = scmp.eq.s32.totalorder %s33, 1
    %p208 = por %p206, %p207
    %p210 = scmp.ne.s32.totalorder %s195, %s209
    %p211 = scmp.eq.s32.totalorder %s33, 0
    %p212 = por %p210, %p211
    %s214 = sadd.s32 %s213, 1
    %p217 = scmp.eq.s32.totalorder %s27, 1
    %p218 = scmp.ne.s32.totalorder %s213, %s215
    %p219 = scmp.eq.s32.totalorder %s27, 0
    %p220 = por %p218, %p219
    %p221 = scmp.ne.s32.totalorder %s213, %s215
    %p222 = scmp.eq.s32.totalorder %s32, 1
    %p223 = por %p221, %p222
    %p224 = scmp.ne.s32.totalorder %s215, %s216
    %p225 = scmp.eq.s32.totalorder %s32, 0
    %p226 = por %p224, %p225
    %p227 = scmp.ne.s32.totalorder %s215, %s216
    %p228 = scmp.eq.s32.totalorder %s33, 1
    %p229 = por %p227, %p228
    %p231 = scmp.ne.s32.totalorder %s216, %s230
    %p232 = scmp.eq.s32.totalorder %s33, 0
    %p233 = por %p231, %p232
    %s235 = sadd.s32 %s234, 1
    %p238 = scmp.eq.s32.totalorder %s27, 1
    %p239 = scmp.ne.s32.totalorder %s234, %s236
    %p240 = scmp.eq.s32.totalorder %s27, 0
    %p241 = por %p239, %p240
    %p242 = scmp.ne.s32.totalorder %s234, %s236
    %p243 = scmp.eq.s32.totalorder %s32, 1
    %p244 = por %p242, %p243
    %p245 = scmp.ne.s32.totalorder %s236, %s237
    %p246 = scmp.eq.s32.totalorder %s32, 0
    %p247 = por %p245, %p246
    %p248 = scmp.ne.s32.totalorder %s236, %s237
    %p249 = scmp.eq.s32.totalorder %s33, 1
    %p250 = por %p248, %p249
    %p252 = scmp.ne.s32.totalorder %s237, %s251
    %p253 = scmp.eq.s32.totalorder %s33, 0
    %p254 = por %p252, %p253
    %s256 = sadd.s32 %s255, 1
    %p259 = scmp.eq.s32.totalorder %s27, 1
    %p260 = scmp.ne.s32.totalorder %s255, %s257
    %p261 = scmp.eq.s32.totalorder %s27, 0
    %p262 = por %p260, %p261
    %p263 = scmp.ne.s32.totalorder %s255, %s257
    %p264 = scmp.eq.s32.totalorder %s32, 1
    %p265 = por %p263, %p264
    %p266 = scmp.ne.s32.totalorder %s257, %s258
    %p267 = scmp.eq.s32.totalorder %s32, 0
    %p268 = por %p266, %p267
    %p269 = scmp.ne.s32.totalorder %s257, %s258
    %p270 = scmp.eq.s32.totalorder %s33, 1
    %p271 = por %p269, %p270
    %p273 = scmp.ne.s32.totalorder %s258, %s272
    %p274 = scmp.eq.s32.totalorder %s33, 0
    %p275 = por %p273, %p274
    %s277 = sadd.s32 %s276, 1
    %p280 = scmp.eq.s32.totalorder %s27, 1
    %p281 = scmp.ne.s32.totalorder %s276, %s278
    %p282 = scmp.eq.s32.totalorder %s27, 0
    %p283 = por %p281, %p282
    %p284 = scmp.ne.s32.totalorder %s276, %s278
    %p285 = scmp.eq.s32.totalorder %s32, 1
    %p286 = por %p284, %p285
    %p287 = scmp.ne.s32.totalorder %s278, %s279
    %p288 = scmp.eq.s32.totalorder %s32, 0
    %p289 = por %p287, %p288
    %p290 = scmp.ne.s32.totalorder %s278, %s279
    %p291 = scmp.eq.s32.totalorder %s33, 1
    %p292 = por %p290, %p291
    %p294 = scmp.ne.s32.totalorder %s279, %s293
    %p295 = scmp.eq.s32.totalorder %s33, 0
    %p296 = por %p294, %p295
    %s298 = sadd.s32 %s297, 1
    %p301 = scmp.eq.s32.totalorder %s27, 1
    %p302 = scmp.ne.s32.totalorder %s297, %s299
    %p303 = scmp.eq.s32.totalorder %s27, 0
    %p304 = por %p302, %p303
    %p305 = scmp.ne.s32.totalorder %s297, %s299
    %p306 = scmp.eq.s32.totalorder %s32, 1
    %p307 = por %p305, %p306
    %p308 = scmp.ne.s32.totalorder %s299, %s300
    %p309 = scmp.eq.s32.totalorder %s32, 0
    %p310 = por %p308, %p309
    %p311 = scmp.ne.s32.totalorder %s299, %s300
    %p312 = scmp.eq.s32.totalorder %s33, 1
    %p313 = por %p311, %p312
    %p315 = scmp.ne.s32.totalorder %s300, %s314
    %p316 = scmp.eq.s32.totalorder %s33, 0
    %p317 = por %p315, %p316
    %s319 = sadd.s32 %s318, 1
    %p322 = scmp.eq.s32.totalorder %s27, 1
    %p323 = scmp.ne.s32.totalorder %s318, %s320
    %p324 = scmp.eq.s32.totalorder %s27, 0
    %p325 = por %p323, %p324
    %p326 = scmp.ne.s32.totalorder %s318, %s320
    %p327 = scmp.eq.s32.totalorder %s32, 1
    %p328 = por %p326, %p327
    %p329 = scmp.ne.s32.totalorder %s320, %s321
    %p330 = scmp.eq.s32.totalorder %s32, 0
    %p331 = por %p329, %p330
    %p332 = scmp.ne.s32.totalorder %s320, %s321
    %p333 = scmp.eq.s32.totalorder %s33, 1
    %p334 = por %p332, %p333
    %p336 = scmp.ne.s32.totalorder %s321, %s335
    %p337 = scmp.eq.s32.totalorder %s33, 0
    %p338 = por %p336, %p337
    %s340 = sadd.s32 %s339, 1
    %p343 = scmp.eq.s32.totalorder %s27, 1
    %p344 = scmp.ne.s32.totalorder %s339, %s341
    %p345 = scmp.eq.s32.totalorder %s27, 0
    %p346 = por %p344, %p345
    %p347 = scmp.ne.s32.totalorder %s339, %s341
    %p348 = scmp.eq.s32.totalorder %s32, 1
    %p349 = por %p347, %p348
    %p350 = scmp.ne.s32.totalorder %s341, %s342
    %p351 = scmp.eq.s32.totalorder %s32, 0
    %p352 = por %p350, %p351
    %p353 = scmp.ne.s32.totalorder %s341, %s342
    %p354 = scmp.eq.s32.totalorder %s33, 1
    %p355 = por %p353, %p354
    %p357 = scmp.ne.s32.totalorder %s342, %s356
    %p358 = scmp.eq.s32.totalorder %s33, 0
    %p359 = por %p357, %p358
    %s361 = sadd.s32 %s360, 1
    %p364 = scmp.eq.s32.totalorder %s27, 1
    %p365 = scmp.ne.s32.totalorder %s360, %s362
    %p366 = scmp.eq.s32.totalorder %s27, 0
    %p367 = por %p365, %p366
    %p368 = scmp.ne.s32.totalorder %s360, %s362
    %p369 = scmp.eq.s32.totalorder %s32, 1
    %p370 = por %p368, %p369
    %p371 = scmp.ne.s32.totalorder %s362, %s363
    %p372 = scmp.eq.s32.totalorder %s32, 0
    %p373 = por %p371, %p372
    %p374 = scmp.ne.s32.totalorder %s362, %s363
    %p375 = scmp.eq.s32.totalorder %s33, 1
    %p376 = por %p374, %p375
    %p378 = scmp.ne.s32.totalorder %s363, %s377
    %p379 = scmp.eq.s32.totalorder %s33, 0
    %p380 = por %p378, %p379
    %s382 = sadd.s32 %s381, 1
    %p385 = scmp.eq.s32.totalorder %s27, 1
    %p386 = scmp.ne.s32.totalorder %s381, %s383
    %p387 = scmp.eq.s32.totalorder %s27, 0
    %p388 = por %p386, %p387
    %p389 = scmp.ne.s32.totalorder %s381, %s383
    %p390 = scmp.eq.s32.totalorder %s32, 1
    %p391 = por %p389, %p390
    %p392 = scmp.ne.s32.totalorder %s383, %s384
    %p393 = scmp.eq.s32.totalorder %s32, 0
    %p394 = por %p392, %p393
    %p395 = scmp.ne.s32.totalorder %s383, %s384
    %p396 = scmp.eq.s32.totalorder %s33, 1
    %p397 = por %p395, %p396
    %p399 = scmp.ne.s32.totalorder %s384, %s398
    %p400 = scmp.eq.s32.totalorder %s33, 0
    %p401 = por %p399, %p400
    %s403 = sadd.s32 %s402, 1
    %p406 = scmp.eq.s32.totalorder %s27, 1
    %p407 = scmp.ne.s32.totalorder %s402, %s404
    %p408 = scmp.eq.s32.totalorder %s27, 0
    %p409 = por %p407, %p408
    %p410 = scmp.ne.s32.totalorder %s402, %s404
    %p411 = scmp.eq.s32.totalorder %s32, 1
    %p412 = por %p410, %p411
    %p413 = scmp.ne.s32.totalorder %s404, %s405
    %p414 = scmp.eq.s32.totalorder %s32, 0
    %p415 = por %p413, %p414
    %p416 = scmp.ne.s32.totalorder %s404, %s405
    %p417 = scmp.eq.s32.totalorder %s33, 1
    %p418 = por %p416, %p417
    %p420 = scmp.ne.s32.totalorder %s405, %s419
    %p421 = scmp.eq.s32.totalorder %s33, 0
    %p422 = por %p420, %p421
    %s424 = sadd.s32 %s423, 1
    %p427 = scmp.eq.s32.totalorder %s27, 1
    %p428 = scmp.ne.s32.totalorder %s423, %s425
    %p429 = scmp.eq.s32.totalorder %s27, 0
    %p430 = por %p428, %p429
    %p431 = scmp.ne.s32.totalorder %s423, %s425
    %p432 = scmp.eq.s32.totalorder %s32, 1
    %p433 = por %p431, %p432
    %p434 = scmp.ne.s32.totalorder %s425, %s426
    %p435 = scmp.eq.s32.totalorder %s32, 0
    %p436 = por %p434, %p435
    %p437 = scmp.ne.s32.totalorder %s425, %s426
    %p438 = scmp.eq.s32.totalorder %s33, 1
    %p439 = por %p437, %p438
    %p441 = scmp.ne.s32.totalorder %s426, %s440
    %p442 = scmp.eq.s32.totalorder %s33, 0
    %p443 = por %p441, %p442
    %s445 = sadd.s32 %s444, 1
    %p448 = scmp.eq.s32.totalorder %s27, 1
    %p449 = scmp.ne.s32.totalorder %s444, %s446
    %p450 = scmp.eq.s32.totalorder %s27, 0
    %p451 = por %p449, %p450
    %p452 = scmp.ne.s32.totalorder %s444, %s446
    %p453 = scmp.eq.s32.totalorder %s32, 1
    %p454 = por %p452, %p453
    %p455 = scmp.ne.s32.totalorder %s446, %s447
    %p456 = scmp.eq.s32.totalorder %s32, 0
    %p457 = por %p455, %p456
    %p458 = scmp.ne.s32.totalorder %s446, %s447
    %p459 = scmp.eq.s32.totalorder %s33, 1
    %p460 = por %p458, %p459
    %p462 = scmp.ne.s32.totalorder %s447, %s461
    %p463 = scmp.eq.s32.totalorder %s33, 0
    %p464 = por %p462, %p463
    %s466 = sadd.s32 %s465, 1
    %p469 = scmp.eq.s32.totalorder %s27, 1
    %p470 = scmp.ne.s32.totalorder %s465, %s467
    %p471 = scmp.eq.s32.totalorder %s27, 0
    %p472 = por %p470, %p471
    %p473 = scmp.ne.s32.totalorder %s465, %s467
    %p474 = scmp.eq.s32.totalorder %s32, 1
    %p475 = por %p473, %p474
    %p476 = scmp.ne.s32.totalorder %s467, %s468
    %p477 = scmp.eq.s32.totalorder %s32, 0
    %p478 = por %p476, %p477
    %p479 = scmp.ne.s32.totalorder %s467, %s468
    %p480 = scmp.eq.s32.totalorder %s33, 1
    %p481 = por %p479, %p480
    %p483 = scmp.ne.s32.totalorder %s468, %s482
    %p484 = scmp.eq.s32.totalorder %s33, 0
    %p485 = por %p483, %p484
    %s486 = ssub.s32 %s27, %s34
    %p487 = scmp.eq.s32.totalorder %s486, 0
    %s489 = sadd.s32 %s488, 1
    %s490 = scalar_select %p487, %s488, %s489
    %p493 = pneg %p487
    %p494 = scmp.eq.s32.totalorder %s27, 1
    %p495 = por %p493, %p494
    %p496 = scmp.ne.s32.totalorder %s488, %s491
    %p497 = scmp.eq.s32.totalorder %s27, 0
    %p498 = por %p496, %p497
    %p499 = scmp.ne.s32.totalorder %s488, %s491
    %p500 = scmp.eq.s32.totalorder %s32, 1
    %p501 = por %p499, %p500
    %p502 = scmp.ne.s32.totalorder %s491, %s492
    %p503 = scmp.eq.s32.totalorder %s32, 0
    %p504 = por %p502, %p503
    %p505 = scmp.ne.s32.totalorder %s491, %s492
    %p506 = scmp.eq.s32.totalorder %s33, 1
    %p507 = por %p505, %p506
    %p509 = scmp.ne.s32.totalorder %s492, %s508
    %p510 = scmp.eq.s32.totalorder %s33, 0
    %p511 = por %p509, %p510
    %p512 = scmp.le.s32.totalorder 1, %s27
    %p513 = scmp.lt.s32.totalorder %s27, 3
    %p514 = pnand %p512, %p513
    %p515 = pneg %p514
    // Predicated region
    $region9: #{pointcloud_encoder_forward.4} parent=5 // pred_check
      _
    $region10: #{pointcloud_encoder_forward.4} parent=5 // pred_check_branch
      %517 = sbr.rel (%p514) target = $region12
    $region11: #{pointcloud_encoder_forward.4} parent=5 // pred_region
      %s518 = ssub.s32 %s27, 1
      // Predicated region
      $region13: #{pointcloud_encoder_forward.4} parent=11 // pred_check
        %p519 = pneg %p100
      $region14: #{pointcloud_encoder_forward.4} parent=11 // pred_check_branch
        %521 = sbr.rel (%p519) target = $region16
      $region15: #{pointcloud_encoder_forward.4} parent=11 // pred_region
        _
      $region16: #{pointcloud_encoder_forward.4} parent=11 // pred_fallthru
        _
      // Predicated region
      $region17: #{pointcloud_encoder_forward.4} parent=11 // pred_check
        %p522 = pneg %p121
      $region18: #{pointcloud_encoder_forward.4} parent=11 // pred_check_branch
        %524 = sbr.rel (%p522) target = $region20
      $region19: #{pointcloud_encoder_forward.4} parent=11 // pred_region
        _
      $region20: #{pointcloud_encoder_forward.4} parent=11 // pred_fallthru
        _
      // Predicated region
      $region21: #{pointcloud_encoder_forward.4} parent=11 // pred_check
        %p525 = pneg %p142
      $region22: #{pointcloud_encoder_forward.4} parent=11 // pred_check_branch
        %527 = sbr.rel (%p525) target = $region24
      $region23: #{pointcloud_encoder_forward.4} parent=11 // pred_region
        _
      $region24: #{pointcloud_encoder_forward.4} parent=11 // pred_fallthru
        _
      // Predicated region
      $region25: #{pointcloud_encoder_forward.4} parent=11 // pred_check
        %p528 = pneg %p163
      $region26: #{pointcloud_encoder_forward.4} parent=11 // pred_check_branch
        %530 = sbr.rel (%p528) target = $region28
      $region27: #{pointcloud_encoder_forward.4} parent=11 // pred_region
        _
      $region28: #{pointcloud_encoder_forward.4} parent=11 // pred_fallthru
        _
      // Predicated region
      $region29: #{pointcloud_encoder_forward.4} parent=11 // pred_check
        %p531 = pneg %p184
      $region30: #{pointcloud_encoder_forward.4} parent=11 // pred_check_branch
        %533 = sbr.rel (%p531) target = $region32
      $region31: #{pointcloud_encoder_forward.4} parent=11 // pred_region
        _
      $region32: #{pointcloud_encoder_forward.4} parent=11 // pred_fallthru
        _
      // Predicated region
      $region33: #{pointcloud_encoder_forward.4} parent=11 // pred_check
        %p534 = pneg %p205
      $region34: #{pointcloud_encoder_forward.4} parent=11 // pred_check_branch
        %536 = sbr.rel (%p534) target = $region36
      $region35: #{pointcloud_encoder_forward.4} parent=11 // pred_region
        _
      $region36: #{pointcloud_encoder_forward.4} parent=11 // pred_fallthru
        _
      // Predicated region
      $region37: #{pointcloud_encoder_forward.4} parent=11 // pred_check
        %p537 = pneg %p226
      $region38: #{pointcloud_encoder_forward.4} parent=11 // pred_check_branch
        %539 = sbr.rel (%p537) target = $region40
      $region39: #{pointcloud_encoder_forward.4} parent=11 // pred_region
        _
      $region40: #{pointcloud_encoder_forward.4} parent=11 // pred_fallthru
        _
      // Predicated region
      $region41: #{pointcloud_encoder_forward.4} parent=11 // pred_check
        %p540 = pneg %p247
      $region42: #{pointcloud_encoder_forward.4} parent=11 // pred_check_branch
        %542 = sbr.rel (%p540) target = $region44
      $region43: #{pointcloud_encoder_forward.4} parent=11 // pred_region
        _
      $region44: #{pointcloud_encoder_forward.4} parent=11 // pred_fallthru
        _
      // Predicated region
      $region45: #{pointcloud_encoder_forward.4} parent=11 // pred_check
        %p543 = pneg %p268
      $region46: #{pointcloud_encoder_forward.4} parent=11 // pred_check_branch
        %545 = sbr.rel (%p543) target = $region48
      $region47: #{pointcloud_encoder_forward.4} parent=11 // pred_region
        _
      $region48: #{pointcloud_encoder_forward.4} parent=11 // pred_fallthru
        _
      // Predicated region
      $region49: #{pointcloud_encoder_forward.4} parent=11 // pred_check
        %p546 = pneg %p289
      $region50: #{pointcloud_encoder_forward.4} parent=11 // pred_check_branch
        %548 = sbr.rel (%p546) target = $region52
      $region51: #{pointcloud_encoder_forward.4} parent=11 // pred_region
        _
      $region52: #{pointcloud_encoder_forward.4} parent=11 // pred_fallthru
        _
      // Predicated region
      $region53: #{pointcloud_encoder_forward.4} parent=11 // pred_check
        %p549 = pneg %p310
      $region54: #{pointcloud_encoder_forward.4} parent=11 // pred_check_branch
        %551 = sbr.rel (%p549) target = $region56
      $region55: #{pointcloud_encoder_forward.4} parent=11 // pred_region
        _
      $region56: #{pointcloud_encoder_forward.4} parent=11 // pred_fallthru
        _
      // Predicated region
      $region57: #{pointcloud_encoder_forward.4} parent=11 // pred_check
        %p552 = pneg %p331
      $region58: #{pointcloud_encoder_forward.4} parent=11 // pred_check_branch
        %554 = sbr.rel (%p552) target = $region60
      $region59: #{pointcloud_encoder_forward.4} parent=11 // pred_region
        _
      $region60: #{pointcloud_encoder_forward.4} parent=11 // pred_fallthru
        _
      // Predicated region
      $region61: #{pointcloud_encoder_forward.4} parent=11 // pred_check
        %p555 = pneg %p352
      $region62: #{pointcloud_encoder_forward.4} parent=11 // pred_check_branch
        %557 = sbr.rel (%p555) target = $region64
      $region63: #{pointcloud_encoder_forward.4} parent=11 // pred_region
        _
      $region64: #{pointcloud_encoder_forward.4} parent=11 // pred_fallthru
        _
      // Predicated region
      $region65: #{pointcloud_encoder_forward.4} parent=11 // pred_check
        %p558 = pneg %p373
      $region66: #{pointcloud_encoder_forward.4} parent=11 // pred_check_branch
        %560 = sbr.rel (%p558) target = $region68
      $region67: #{pointcloud_encoder_forward.4} parent=11 // pred_region
        _
      $region68: #{pointcloud_encoder_forward.4} parent=11 // pred_fallthru
        _
      // Predicated region
      $region69: #{pointcloud_encoder_forward.4} parent=11 // pred_check
        %p561 = pneg %p394
      $region70: #{pointcloud_encoder_forward.4} parent=11 // pred_check_branch
        %563 = sbr.rel (%p561) target = $region72
      $region71: #{pointcloud_encoder_forward.4} parent=11 // pred_region
        _
      $region72: #{pointcloud_encoder_forward.4} parent=11 // pred_fallthru
        _
      // Predicated region
      $region73: #{pointcloud_encoder_forward.4} parent=11 // pred_check
        %p564 = pneg %p415
      $region74: #{pointcloud_encoder_forward.4} parent=11 // pred_check_branch
        %566 = sbr.rel (%p564) target = $region76
      $region75: #{pointcloud_encoder_forward.4} parent=11 // pred_region
        _
      $region76: #{pointcloud_encoder_forward.4} parent=11 // pred_fallthru
        _
      // Predicated region
      $region77: #{pointcloud_encoder_forward.4} parent=11 // pred_check
        %p567 = pneg %p436
      $region78: #{pointcloud_encoder_forward.4} parent=11 // pred_check_branch
        %569 = sbr.rel (%p567) target = $region80
      $region79: #{pointcloud_encoder_forward.4} parent=11 // pred_region
        _
      $region80: #{pointcloud_encoder_forward.4} parent=11 // pred_fallthru
        _
      // Predicated region
      $region81: #{pointcloud_encoder_forward.4} parent=11 // pred_check
        %p570 = pneg %p457
      $region82: #{pointcloud_encoder_forward.4} parent=11 // pred_check_branch
        %572 = sbr.rel (%p570) target = $region84
      $region83: #{pointcloud_encoder_forward.4} parent=11 // pred_region
        _
      $region84: #{pointcloud_encoder_forward.4} parent=11 // pred_fallthru
        _
      // Predicated region
      $region85: #{pointcloud_encoder_forward.4} parent=11 // pred_check
        %p573 = pneg %p478
      $region86: #{pointcloud_encoder_forward.4} parent=11 // pred_check_branch
        %575 = sbr.rel (%p573) target = $region88
      $region87: #{pointcloud_encoder_forward.4} parent=11 // pred_region
        _
      $region88: #{pointcloud_encoder_forward.4} parent=11 // pred_fallthru
        _
    $region12: #{pointcloud_encoder_forward.4} parent=5 // pred_fallthru
      _
    %p576 = scmp.lt.s32.totalorder %s27, 2
    // Predicated region
    $region89: #{pointcloud_encoder_forward.4} parent=5 // pred_check
      %p577 = pneg %p576
    $region90: #{pointcloud_encoder_forward.4} parent=5 // pred_check_branch
      %579 = sbr.rel (%p577) target = $region92
    $region91: #{pointcloud_encoder_forward.4} parent=5 // pred_region
      // Predicated region
      $region93: #{pointcloud_encoder_forward.4} parent=91 // pred_check
        %p580 = pneg %p47
      $region94: #{pointcloud_encoder_forward.4} parent=91 // pred_check_branch
        %582 = sbr.rel (%p580) target = $region96
      $region95: #{pointcloud_encoder_forward.4} parent=91 // pred_region
        %s583 = smul.u32 16, %s27
        %p584 = scmp.lt.s32.totalorder %s583, 31
        %s585 = scalar_select %p584, %s583, 31
        %s586 = smul.addr %s585, 8
        %s587 = scalar_lea.vmem %s0, %s586
        %s588 = smul.u32 16, %s27
      $region96: #{pointcloud_encoder_forward.4} parent=91 // pred_fallthru
        _
      // Predicated region
      $region97: #{pointcloud_encoder_forward.4} parent=91 // pred_check
        %p589 = pneg %p73
      $region98: #{pointcloud_encoder_forward.4} parent=91 // pred_check_branch
        %591 = sbr.rel (%p589) target = $region100
      $region99: #{pointcloud_encoder_forward.4} parent=91 // pred_region
        %p592 = scmp.lt.s32.totalorder %s27, 1
        %s593 = scalar_select %p592, %s27, 1
        %s594 = smul.addr %s593, 8
        %s595 = scalar_lea.vmem %s1, %s594
      $region100: #{pointcloud_encoder_forward.4} parent=91 // pred_fallthru
        _
    $region92: #{pointcloud_encoder_forward.4} parent=5 // pred_fallthru
      _
    %p596 = scmp.le.s32.totalorder 1, %s27
    %p597 = scmp.lt.s32.totalorder %s27, 3
    %p598 = pnand %p596, %p597
    %p599 = pneg %p598
    // Predicated region
    $region101: #{pointcloud_encoder_forward.4} parent=5 // pred_check
      _
    $region102: #{pointcloud_encoder_forward.4} parent=5 // pred_check_branch
      %601 = sbr.rel (%p598) target = $region104
    $region103: #{pointcloud_encoder_forward.4} parent=5 // pred_region
      %s602 = ssub.s32 %s27, 1
      %s603 = smul.u32 16, %s32
      %p604 = scmp.lt.s32.totalorder %s603, 31
      %s605 = scalar_select %p604, %s603, 31
      %s606 = smul.addr %s605, 8
      %s607 = scalar_lea.vmem %s0, %s606
      %p608 = pneg %p53
      %p609 = pneg %p50
      %p610 = scmp.lt.s32.totalorder %s32, 1
      %s611 = scalar_select %p610, %s32, 1
      %s612 = smul.addr %s611, 8
      %s613 = scalar_lea.vmem %s1, %s612
      %p614 = pneg %p79
      %p615 = pneg %p76
      %p616 = pneg %p100
      %p617 = pneg %p97
      %p618 = pneg %p121
      %p619 = pneg %p118
      %p620 = pneg %p142
      %p621 = pneg %p139
      %p622 = pneg %p163
      %p623 = pneg %p160
      %p624 = pneg %p184
      %p625 = pneg %p181
      %p626 = pneg %p205
      %p627 = pneg %p202
      %p628 = pneg %p226
      %p629 = pneg %p223
      %p630 = pneg %p247
      %p631 = pneg %p244
      %p632 = pneg %p268
      %p633 = pneg %p265
      %p634 = pneg %p289
      %p635 = pneg %p286
      %p636 = pneg %p310
      %p637 = pneg %p307
      %p638 = pneg %p331
      %p639 = pneg %p328
      %p640 = pneg %p352
      %p641 = pneg %p349
      %p642 = pneg %p373
      %p643 = pneg %p370
      %p644 = pneg %p394
      %p645 = pneg %p391
      %p646 = pneg %p415
      %p647 = pneg %p412
      %p648 = pneg %p436
      %p649 = pneg %p433
      %p650 = pneg %p457
      %p651 = pneg %p454
      %p652 = pneg %p478
      %p653 = pneg %p475
      %p654 = pneg %p504
      %p655 = pneg %p501
      %p656 = scmp.lt.s32.totalorder %s32, 1
      %s657 = scalar_select %p656, %s32, 1
      %s658 = smul.addr %s657, 8
      %s659 = scalar_lea.vmem %s21, %s658
      %s660 = smul.u32 16, %s32
      %p661 = scmp.lt.s32.totalorder %s660, 31
      %s662 = scalar_select %p661, %s660, 31
      %s663 = smul.addr %s662, 8
      %s664 = scalar_lea.vmem %s0, %s663
      %s665 = smul.u32 16, %s32
      %p666 = scmp.lt.s32.totalorder %s32, 1
      %s667 = scalar_select %p666, %s32, 1
      %s668 = smul.addr %s667, 8
      %s669 = scalar_lea.vmem %s1, %s668
      %p670 = scmp.lt.s32.totalorder %s32, 1
      %s671 = scalar_select %p670, %s32, 1
      %s672 = smul.addr %s671, 8
      %s673 = scalar_lea.vmem %s21, %s672
      %v675 = vld [vmem:[%s664] sm:$0xff]
      %v676 = vld [vmem:[%s664 + $0x8] sm:$0xff]
      %v677 = vld [vmem:[%s664 + $0x10] sm:$0xff]
      %v678 = vld [vmem:[%s664 + $0x18] sm:$0xff]
      %v679 = vld [vmem:[%s664 + $0x20] sm:$0xff]
      %v680 = vld [vmem:[%s664 + $0x28] sm:$0xff]
      %v681 = vld [vmem:[%s664 + $0x30] sm:$0xff]
      %v682 = vld [vmem:[%s664 + $0x38] sm:$0xff]
      %v683 = vld [vmem:[%s664 + $0x40] sm:$0xff]
      %v684 = vld [vmem:[%s664 + $0x48] sm:$0xff]
      %v685 = vld [vmem:[%s664 + $0x50] sm:$0xff]
      %v686 = vld [vmem:[%s664 + $0x58] sm:$0xff]
      %v687 = vld [vmem:[%s664 + $0x60] sm:$0xff]
      %v688 = vld [vmem:[%s664 + $0x68] sm:$0xff]
      %v689 = vld [vmem:[%s664 + $0x70] sm:$0xff]
      %v690 = vld [vmem:[%s664 + $0x78] sm:$0xff]
      %v691 = vpack.c.bf16 %v676, %v675
      %v692 = vpack.c.bf16 %v678, %v677
      %v693 = vpack.c.bf16 %v680, %v679
      %v694 = vpack.c.bf16 %v682, %v681
      %v695 = vpack.c.bf16 %v684, %v683
      %v696 = vpack.c.bf16 %v686, %v685
      %v697 = vpack.c.bf16 %v688, %v687
      %v698 = vpack.c.bf16 %v690, %v689
      %v699 = vld [vmem:[%s2] sm:$0x7]
      %v700 = vld [vmem:[%s3] sm:$0x1]
      %v702 = vlaneseq
      %v703 = vshrl.u32 %v702, 7
      %v704 = vsub.s32 0, %v703
      %v705 = vrot.slane %v700, %v704
      %vm707 = vcmask 48128
      %v709 = vsel %vm707, %v691, 0
      %v712 = vsel %vm707, %v692, 0
      %v715 = vsel %vm707, %v693, 0
      %v718 = vsel %vm707, %v694, 0
      %v721 = vsel %vm707, %v695, 0
      %v724 = vsel %vm707, %v696, 0
      %v727 = vsel %vm707, %v697, 0
      %v730 = vsel %vm707, %v698, 0
      %vm732 = vcmask 1042432
      %v734 = vsel %vm732, %v699, 0
      %736 = vmatprep.subr.bf16.mxu0 0
      %737 = vmatpush1.bf16.msra.mxu0 %v734
      %738 = vmatprep.subr.bf16.mxu0 0
      %739 = vmatpush1.bf16.msra.mxu0 0
      %740 = vmatprep.subr.bf16.mxu0 0
      %741 = vmatpush1.bf16.msra.mxu0 0
      %742 = vmatprep.subr.bf16.mxu0 0
      %743 = vmatpush1.bf16.msra.mxu0 0
      %744 = vmatprep.subr.bf16.mxu0 0
      %745 = vmatpush1.bf16.msra.mxu0 0
      %746 = vmatprep.subr.bf16.mxu0 0
      %747 = vmatpush1.bf16.msra.mxu0 0
      %748 = vmatprep.subr.bf16.mxu0 0
      %749 = vmatpush1.bf16.msra.mxu0 0
      %750 = vmatprep.subr.bf16.mxu0 0
      %751 = vmatpush1.bf16.msra.mxu0 0
      %752 = vmatprep.subr.bf16.mxu0 0
      %753 = vmatpush1.bf16.msra.mxu0 0
      %754 = vmatprep.subr.bf16.mxu0 0
      %755 = vmatpush1.bf16.msra.mxu0 0
      %756 = vmatprep.subr.bf16.mxu0 0
      %757 = vmatpush1.bf16.msra.mxu0 0
      %758 = vmatprep.subr.bf16.mxu0 0
      %759 = vmatpush1.bf16.msra.mxu0 0
      %760 = vmatprep.subr.bf16.mxu0 0
      %761 = vmatpush1.bf16.msra.mxu0 0
      %762 = vmatprep.subr.bf16.mxu0 0
      %763 = vmatpush1.bf16.msra.mxu0 0
      %764 = vmatprep.subr.bf16.mxu0 0
      %765 = vmatpush1.bf16.msra.mxu0 0
      %766 = vmatprep.subr.bf16.mxu0 0
      %767 = vmatpush1.bf16.msra.mxu0 0
      %768 = vmatprep.mubr.bf16.mxu0 0
      %769 = vmatmul.mubr.bf16.gmra.mrb[0].mxu0 %v709
      %v770 = vpop.f32.mrb[0].mxu0
      %v771 = vadd.f32 %v705, %v770
      %v772 = vpop.f32.mrb[0].mxu0
      %v773 = vpop.f32.mrb[0].mxu0
      %v774 = vadd.f32 %v705, %v773
      %v775 = vpop.f32.mrb[0].mxu0
      %776 = vmatprep.mubr.bf16.mxu0 0
      %777 = vmatmul.mubr.bf16.gmra.mrb[0].mxu0 %v712
      %v778 = vpop.f32.mrb[0].mxu0
      %v779 = vadd.f32 %v705, %v778
      %v780 = vpop.f32.mrb[0].mxu0
      %v781 = vpop.f32.mrb[0].mxu0
      %v782 = vadd.f32 %v705, %v781
      %v783 = vpop.f32.mrb[0].mxu0
      %784 = vmatprep.mubr.bf16.mxu0 0
      %785 = vmatmul.mubr.bf16.gmra.mrb[0].mxu0 %v715
      %v786 = vpop.f32.mrb[0].mxu0
      %v787 = vadd.f32 %v705, %v786
      %v788 = vpop.f32.mrb[0].mxu0
      %v789 = vpop.f32.mrb[0].mxu0
      %v790 = vadd.f32 %v705, %v789
      %v791 = vpop.f32.mrb[0].mxu0
      %792 = vmatprep.mubr.bf16.mxu0 0
      %793 = vmatmul.mubr.bf16.gmra.mrb[0].mxu0 %v718
      %v794 = vpop.f32.mrb[0].mxu0
      %v795 = vadd.f32 %v705, %v794
      %v796 = vpop.f32.mrb[0].mxu0
      %v797 = vpop.f32.mrb[0].mxu0
      %v798 = vadd.f32 %v705, %v797
      %v799 = vpop.f32.mrb[0].mxu0
      %800 = vmatprep.mubr.bf16.mxu0 0
      %801 = vmatmul.mubr.bf16.gmra.mrb[0].mxu0 %v721
      %v802 = vpop.f32.mrb[0].mxu0
      %v803 = vadd.f32 %v705, %v802
      %v804 = vpop.f32.mrb[0].mxu0
      %v805 = vpop.f32.mrb[0].mxu0
      %v806 = vadd.f32 %v705, %v805
      %v807 = vpop.f32.mrb[0].mxu0
      %808 = vmatprep.mubr.bf16.mxu0 0
      %809 = vmatmul.mubr.bf16.gmra.mrb[0].mxu0 %v724
      %v810 = vpop.f32.mrb[0].mxu0
      %v811 = vadd.f32 %v705, %v810
      %v812 = vpop.f32.mrb[0].mxu0
      %v813 = vpop.f32.mrb[0].mxu0
      %v814 = vadd.f32 %v705, %v813
      %v815 = vpop.f32.mrb[0].mxu0
      %816 = vmatprep.mubr.bf16.mxu0 0
      %817 = vmatmul.mubr.bf16.gmra.mrb[0].mxu0 %v727
      %v818 = vpop.f32.mrb[0].mxu0
      %v819 = vadd.f32 %v705, %v818
      %v820 = vpop.f32.mrb[0].mxu0
      %v821 = vpop.f32.mrb[0].mxu0
      %v822 = vadd.f32 %v705, %v821
      %v823 = vpop.f32.mrb[0].mxu0
      %824 = vmatprep.mubr.bf16.mxu0 0
      %825 = vmatmul.mubr.bf16.gmra.mrb[0].mxu0 %v730
      %v826 = vpop.f32.mrb[0].mxu0
      %v827 = vadd.f32 %v705, %v826
      %v828 = vpop.f32.mrb[0].mxu0
      %v829 = vpop.f32.mrb[0].mxu0
      %v830 = vadd.f32 %v705, %v829
      %v831 = vpop.f32.mrb[0].mxu0
      %832 = vdwg.mxu0
      %v833 = vld [vmem:[%s4] sm:$0x1]
      %v835 = vlaneseq
      %v836 = vshrl.u32 %v835, 7
      %v837 = vsub.s32 0, %v836
      %v838 = vrot.slane %v833, %v837
      %v840 = vmul.f32 %v771, %v838
      %v841 = vmul.f32 %v774, %v838
      %v842 = vmul.f32 %v779, %v838
      %v843 = vmul.f32 %v782, %v838
      %v844 = vmul.f32 %v787, %v838
      %v845 = vmul.f32 %v790, %v838
      %v846 = vmul.f32 %v795, %v838
      %v847 = vmul.f32 %v798, %v838
      %v848 = vmul.f32 %v803, %v838
      %v849 = vmul.f32 %v806, %v838
      %v850 = vmul.f32 %v811, %v838
      %v851 = vmul.f32 %v814, %v838
      %v852 = vmul.f32 %v819, %v838
      %v853 = vmul.f32 %v822, %v838
      %v854 = vmul.f32 %v827, %v838
      %v855 = vmul.f32 %v830, %v838
      %v856 = vld [vmem:[%s5] sm:$0x1]
      %v858 = vlaneseq
      %v859 = vshrl.u32 %v858, 7
      %v860 = vsub.s32 0, %v859
      %v861 = vrot.slane %v856, %v860
      %v863 = vadd.f32 %v840, %v861
      %v864 = vadd.f32 %v841, %v861
      %v865 = vadd.f32 %v842, %v861
      %v866 = vadd.f32 %v843, %v861
      %v867 = vadd.f32 %v844, %v861
      %v868 = vadd.f32 %v845, %v861
      %v869 = vadd.f32 %v846, %v861
      %v870 = vadd.f32 %v847, %v861
      %v871 = vadd.f32 %v848, %v861
      %v872 = vadd.f32 %v849, %v861
      %v873 = vadd.f32 %v850, %v861
      %v874 = vadd.f32 %v851, %v861
      %v875 = vadd.f32 %v852, %v861
      %v876 = vadd.f32 %v853, %v861
      %v877 = vadd.f32 %v854, %v861
      %v878 = vadd.f32 %v855, %v861
      %v879 = vmax.f32 %v863, 0.0
      %v880 = vmax.f32 %v864, 0.0
      %v881 = vmax.f32 %v865, 0.0
      %v882 = vmax.f32 %v866, 0.0
      %v883 = vmax.f32 %v867, 0.0
      %v884 = vmax.f32 %v868, 0.0
      %v885 = vmax.f32 %v869, 0.0
      %v886 = vmax.f32 %v870, 0.0
      %v887 = vmax.f32 %v871, 0.0
      %v888 = vmax.f32 %v872, 0.0
      %v889 = vmax.f32 %v873, 0.0
      %v890 = vmax.f32 %v874, 0.0
      %v891 = vmax.f32 %v875, 0.0
      %v892 = vmax.f32 %v876, 0.0
      %v893 = vmax.f32 %v877, 0.0
      %v894 = vmax.f32 %v878, 0.0
      %v895 = vpack.c.bf16 %v880, %v879
      %v896 = vpack.c.bf16 %v882, %v881
      %v897 = vpack.c.bf16 %v884, %v883
      %v898 = vpack.c.bf16 %v886, %v885
      %v899 = vpack.c.bf16 %v888, %v887
      %v900 = vpack.c.bf16 %v890, %v889
      %v901 = vpack.c.bf16 %v892, %v891
      %v902 = vpack.c.bf16 %v894, %v893
      %v903 = vld [vmem:[%s6] sm:$0xff]
      %v904 = vld [vmem:[%s6 + $0x8] sm:$0xff]
      %v905 = vld [vmem:[%s6 + $0x10] sm:$0xff]
      %v906 = vld [vmem:[%s6 + $0x18] sm:$0xff]
      %v907 = vld [vmem:[%s6 + $0x20] sm:$0xff]
      %v908 = vld [vmem:[%s6 + $0x28] sm:$0xff]
      %v909 = vld [vmem:[%s6 + $0x30] sm:$0xff]
      %v910 = vld [vmem:[%s6 + $0x38] sm:$0xff]
      %v911 = vld [vmem:[%s6 + $0x40] sm:$0xff]
      %v912 = vld [vmem:[%s6 + $0x48] sm:$0xff]
      %v913 = vld [vmem:[%s6 + $0x50] sm:$0xff]
      %v914 = vld [vmem:[%s6 + $0x58] sm:$0xff]
      %v915 = vld [vmem:[%s6 + $0x60] sm:$0xff]
      %v916 = vld [vmem:[%s6 + $0x68] sm:$0xff]
      %v917 = vld [vmem:[%s6 + $0x70] sm:$0xff]
      %v918 = vld [vmem:[%s6 + $0x78] sm:$0xff]
      %v919 = vld [vmem:[%s7] sm:$0x3]
      %v921 = vlaneseq
      %v922 = vshrl.u32 %v921, 7
      %v923 = vsub.s32 0, %v922
      %v924 = vrot.slane %v919, %v923
      %v925 = vlaneseq
      %v926 = vshrl.u32 %v925, 7
      %v927 = vsub.s32 1, %v926
      %v928 = vrot.slane %v919, %v927
      %v947 = vunpack.c.l.b16 %v903
      %v948 = vunpack.c.h.b16 %v903
      %v949 = vunpack.c.l.b16 %v904
      %v950 = vunpack.c.h.b16 %v904
      %v951 = vunpack.c.l.b16 %v905
      %v952 = vunpack.c.h.b16 %v905
      %v953 = vunpack.c.l.b16 %v906
      %v954 = vunpack.c.h.b16 %v906
      %v955 = vunpack.c.l.b16 %v907
      %v956 = vunpack.c.h.b16 %v907
      %v957 = vunpack.c.l.b16 %v908
      %v958 = vunpack.c.h.b16 %v908
      %v959 = vunpack.c.l.b16 %v909
      %v960 = vunpack.c.h.b16 %v909
      %v961 = vunpack.c.l.b16 %v910
      %v962 = vunpack.c.h.b16 %v910
      %v963 = vunpack.c.l.b16 %v911
      %v964 = vunpack.c.h.b16 %v911
      %v965 = vunpack.c.l.b16 %v912
      %v966 = vunpack.c.h.b16 %v912
      %v967 = vunpack.c.l.b16 %v913
      %v968 = vunpack.c.h.b16 %v913
      %v969 = vunpack.c.l.b16 %v914
      %v970 = vunpack.c.h.b16 %v914
      %v971 = vunpack.c.l.b16 %v915
      %v972 = vunpack.c.h.b16 %v915
      %v973 = vunpack.c.l.b16 %v916
      %v974 = vunpack.c.h.b16 %v916
      %v975 = vunpack.c.l.b16 %v917
      %v976 = vunpack.c.h.b16 %v917
      %v977 = vunpack.c.l.b16 %v918
      %v978 = vunpack.c.h.b16 %v918
      %v979 = vpack.c.b16 %v949, %v947
      %v980 = vpack.c.b16 %v950, %v948
      %v981 = vpack.c.b16 %v953, %v951
      %v982 = vpack.c.b16 %v954, %v952
      %v983 = vpack.c.b16 %v957, %v955
      %v984 = vpack.c.b16 %v958, %v956
      %v985 = vpack.c.b16 %v961, %v959
      %v986 = vpack.c.b16 %v962, %v960
      %v987 = vpack.c.b16 %v965, %v963
      %v988 = vpack.c.b16 %v966, %v964
      %v989 = vpack.c.b16 %v969, %v967
      %v990 = vpack.c.b16 %v970, %v968
      %v991 = vpack.c.b16 %v973, %v971
      %v992 = vpack.c.b16 %v974, %v972
      %v993 = vpack.c.b16 %v977, %v975
      %v994 = vpack.c.b16 %v978, %v976
      %1011 = vmatprep.subr.bf16.mxu0 %v980
      %1012 = vmatpush1.bf16.msra.mxu0 %v979
      %1013 = vmatprep.subr.bf16.mxu0 %v982
      %1014 = vmatpush1.bf16.msra.mxu0 %v981
      %1015 = vmatprep.subr.bf16.mxu0 %v984
      %1016 = vmatpush1.bf16.msra.mxu0 %v983
      %1017 = vmatprep.subr.bf16.mxu0 %v986
      %1018 = vmatpush1.bf16.msra.mxu0 %v985
      %1019 = vmatprep.subr.bf16.mxu0 %v988
      %1020 = vmatpush1.bf16.msra.mxu0 %v987
      %1021 = vmatprep.subr.bf16.mxu0 %v990
      %1022 = vmatpush1.bf16.msra.mxu0 %v989
      %1023 = vmatprep.subr.bf16.mxu0 %v992
      %1024 = vmatpush1.bf16.msra.mxu0 %v991
      %1025 = vmatprep.subr.bf16.mxu0 %v994
      %1026 = vmatpush1.bf16.msra.mxu0 %v993
      %1027 = vmatprep.subr.bf16.mxu0 0
      %1028 = vmatpush1.bf16.msra.mxu0 0
      %1029 = vmatprep.subr.bf16.mxu0 0
      %1030 = vmatpush1.bf16.msra.mxu0 0
      %1031 = vmatprep.subr.bf16.mxu0 0
      %1032 = vmatpush1.bf16.msra.mxu0 0
      %1033 = vmatprep.subr.bf16.mxu0 0
      %1034 = vmatpush1.bf16.msra.mxu0 0
      %1035 = vmatprep.subr.bf16.mxu0 0
      %1036 = vmatpush1.bf16.msra.mxu0 0
      %1037 = vmatprep.subr.bf16.mxu0 0
      %1038 = vmatpush1.bf16.msra.mxu0 0
      %1039 = vmatprep.subr.bf16.mxu0 0
      %1040 = vmatpush1.bf16.msra.mxu0 0
      %1041 = vmatprep.subr.bf16.mxu0 0
      %1042 = vmatpush1.bf16.msra.mxu0 0
      %1043 = vmatprep.mubr.bf16.mxu0 0
      %1044 = vmatmul.mubr.bf16.gmra.mrb[0].mxu0 %v895
      %v1045 = vpop.f32.mrb[0].mxu0
      %v1046 = vadd.f32 %v924, %v1045
      %v1047 = vpop.f32.mrb[0].mxu0
      %v1048 = vadd.f32 %v928, %v1047
      %v1049 = vpop.f32.mrb[0].mxu0
      %v1050 = vadd.f32 %v924, %v1049
      %v1051 = vpop.f32.mrb[0].mxu0
      %v1052 = vadd.f32 %v928, %v1051
      %1053 = vmatprep.mubr.bf16.mxu0 0
      %1054 = vmatmul.mubr.bf16.gmra.mrb[0].mxu0 %v896
      %v1055 = vpop.f32.mrb[0].mxu0
      %v1056 = vadd.f32 %v924, %v1055
      %v1057 = vpop.f32.mrb[0].mxu0
      %v1058 = vadd.f32 %v928, %v1057
      %v1059 = vpop.f32.mrb[0].mxu0
      %v1060 = vadd.f32 %v924, %v1059
      %v1061 = vpop.f32.mrb[0].mxu0
      %v1062 = vadd.f32 %v928, %v1061
      %1063 = vmatprep.mubr.bf16.mxu0 0
      %1064 = vmatmul.mubr.bf16.gmra.mrb[0].mxu0 %v897
      %v1065 = vpop.f32.mrb[0].mxu0
      %v1066 = vadd.f32 %v924, %v1065
      %v1067 = vpop.f32.mrb[0].mxu0
      %v1068 = vadd.f32 %v928, %v1067
      %v1069 = vpop.f32.mrb[0].mxu0
      %v1070 = vadd.f32 %v924, %v1069
      %v1071 = vpop.f32.mrb[0].mxu0
      %v1072 = vadd.f32 %v928, %v1071
      %1073 = vmatprep.mubr.bf16.mxu0 0
      %1074 = vmatmul.mubr.bf16.gmra.mrb[0].mxu0 %v898
      %v1075 = vpop.f32.mrb[0].mxu0
      %v1076 = vadd.f32 %v924, %v1075
      %v1077 = vpop.f32.mrb[0].mxu0
      %v1078 = vadd.f32 %v928, %v1077
      %v1079 = vpop.f32.mrb[0].mxu0
      %v1080 = vadd.f32 %v924, %v1079
      %v1081 = vpop.f32.mrb[0].mxu0
      %v1082 = vadd.f32 %v928, %v1081
      %1083 = vmatprep.mubr.bf16.mxu0 0
      %1084 = vmatmul.mubr.bf16.gmra.mrb[0].mxu0 %v899
      %v1085 = vpop.f32.mrb[0].mxu0
      %v1086 = vadd.f32 %v924, %v1085
      %v1087 = vpop.f32.mrb[0].mxu0
      %v1088 = vadd.f32 %v928, %v1087
      %v1089 = vpop.f32.mrb[0].mxu0
      %v1090 = vadd.f32 %v924, %v1089
      %v1091 = vpop.f32.mrb[0].mxu0
      %v1092 = vadd.f32 %v928, %v1091
      %1093 = vmatprep.mubr.bf16.mxu0 0
      %1094 = vmatmul.mubr.bf16.gmra.mrb[0].mxu0 %v900
      %v1095 = vpop.f32.mrb[0].mxu0
      %v1096 = vadd.f32 %v924, %v1095
      %v1097 = vpop.f32.mrb[0].mxu0
      %v1098 = vadd.f32 %v928, %v1097
      %v1099 = vpop.f32.mrb[0].mxu0
      %v1100 = vadd.f32 %v924, %v1099
      %v1101 = vpop.f32.mrb[0].mxu0
      %v1102 = vadd.f32 %v928, %v1101
      %1103 = vmatprep.mubr.bf16.mxu0 0
      %1104 = vmatmul.mubr.bf16.gmra.mrb[0].mxu0 %v901
      %v1105 = vpop.f32.mrb[0].mxu0
      %v1106 = vadd.f32 %v924, %v1105
      %v1107 = vpop.f32.mrb[0].mxu0
      %v1108 = vadd.f32 %v928, %v1107
      %v1109 = vpop.f32.mrb[0].mxu0
      %v1110 = vadd.f32 %v924, %v1109
      %v1111 = vpop.f32.mrb[0].mxu0
      %v1112 = vadd.f32 %v928, %v1111
      %1113 = vmatprep.mubr.bf16.mxu0 0
      %1114 = vmatmul.mubr.bf16.gmra.mrb[0].mxu0 %v902
      %v1115 = vpop.f32.mrb[0].mxu0
      %v1116 = vadd.f32 %v924, %v1115
      %v1117 = vpop.f32.mrb[0].mxu0
      %v1118 = vadd.f32 %v928, %v1117
      %v1119 = vpop.f32.mrb[0].mxu0
      %v1120 = vadd.f32 %v924, %v1119
      %v1121 = vpop.f32.mrb[0].mxu0
      %v1122 = vadd.f32 %v928, %v1121
      %1123 = vdwg.mxu0
      %v1124 = vmax.f32 %v1046, %v1050
      %v1125 = vrot.slane %v1124, 4
      %v1126 = vmax.f32 %v1124, %v1125
      %v1127 = vrot.slane %v1126, 2
      %v1128 = vmax.f32 %v1126, %v1127
      %v1129 = vrot.slane %v1128, 1
      %v1130 = vmax.f32 %v1128, %v1129
      %v1131 = vmax.f32 %v1048, %v1052
      %v1132 = vrot.slane %v1131, 4
      %v1133 = vmax.f32 %v1131, %v1132
      %v1134 = vrot.slane %v1133, 2
      %v1135 = vmax.f32 %v1133, %v1134
      %v1136 = vrot.slane %v1135, 1
      %v1137 = vmax.f32 %v1135, %v1136
      %v1138 = vmax.f32 %v1056, %v1060
      %v1139 = vrot.slane %v1138, 4
      %v1140 = vmax.f32 %v1138, %v1139
      %v1141 = vrot.slane %v1140, 2
      %v1142 = vmax.f32 %v1140, %v1141
      %v1143 = vrot.slane %v1142, 1
      %v1144 = vmax.f32 %v1142, %v1143
      %v1145 = vmax.f32 %v1058, %v1062
      %v1146 = vrot.slane %v1145, 4
      %v1147 = vmax.f32 %v1145, %v1146
      %v1148 = vrot.slane %v1147, 2
      %v1149 = vmax.f32 %v1147, %v1148
      %v1150 = vrot.slane %v1149, 1
      %v1151 = vmax.f32 %v1149, %v1150
      %v1152 = vmax.f32 %v1066, %v1070
      %v1153 = vrot.slane %v1152, 4
      %v1154 = vmax.f32 %v1152, %v1153
      %v1155 = vrot.slane %v1154, 2
      %v1156 = vmax.f32 %v1154, %v1155
      %v1157 = vrot.slane %v1156, 1
      %v1158 = vmax.f32 %v1156, %v1157
      %v1159 = vmax.f32 %v1068, %v1072
      %v1160 = vrot.slane %v1159, 4
      %v1161 = vmax.f32 %v1159, %v1160
      %v1162 = vrot.slane %v1161, 2
      %v1163 = vmax.f32 %v1161, %v1162
      %v1164 = vrot.slane %v1163, 1
      %v1165 = vmax.f32 %v1163, %v1164
      %v1166 = vmax.f32 %v1076, %v1080
      %v1167 = vrot.slane %v1166, 4
      %v1168 = vmax.f32 %v1166, %v1167
      %v1169 = vrot.slane %v1168, 2
      %v1170 = vmax.f32 %v1168, %v1169
      %v1171 = vrot.slane %v1170, 1
      %v1172 = vmax.f32 %v1170, %v1171
      %v1173 = vmax.f32 %v1078, %v1082
      %v1174 = vrot.slane %v1173, 4
      %v1175 = vmax.f32 %v1173, %v1174
      %v1176 = vrot.slane %v1175, 2
      %v1177 = vmax.f32 %v1175, %v1176
      %v1178 = vrot.slane %v1177, 1
      %v1179 = vmax.f32 %v1177, %v1178
      %v1180 = vmax.f32 %v1086, %v1090
      %v1181 = vrot.slane %v1180, 4
      %v1182 = vmax.f32 %v1180, %v1181
      %v1183 = vrot.slane %v1182, 2
      %v1184 = vmax.f32 %v1182, %v1183
      %v1185 = vrot.slane %v1184, 1
      %v1186 = vmax.f32 %v1184, %v1185
      %v1187 = vmax.f32 %v1088, %v1092
      %v1188 = vrot.slane %v1187, 4
      %v1189 = vmax.f32 %v1187, %v1188
      %v1190 = vrot.slane %v1189, 2
      %v1191 = vmax.f32 %v1189, %v1190
      %v1192 = vrot.slane %v1191, 1
      %v1193 = vmax.f32 %v1191, %v1192
      %v1194 = vmax.f32 %v1096, %v1100
      %v1195 = vrot.slane %v1194, 4
      %v1196 = vmax.f32 %v1194, %v1195
      %v1197 = vrot.slane %v1196, 2
      %v1198 = vmax.f32 %v1196, %v1197
      %v1199 = vrot.slane %v1198, 1
      %v1200 = vmax.f32 %v1198, %v1199
      %v1201 = vmax.f32 %v1098, %v1102
      %v1202 = vrot.slane %v1201, 4
      %v1203 = vmax.f32 %v1201, %v1202
      %v1204 = vrot.slane %v1203, 2
      %v1205 = vmax.f32 %v1203, %v1204
      %v1206 = vrot.slane %v1205, 1
      %v1207 = vmax.f32 %v1205, %v1206
      %v1208 = vmax.f32 %v1106, %v1110
      %v1209 = vrot.slane %v1208, 4
      %v1210 = vmax.f32 %v1208, %v1209
      %v1211 = vrot.slane %v1210, 2
      %v1212 = vmax.f32 %v1210, %v1211
      %v1213 = vrot.slane %v1212, 1
      %v1214 = vmax.f32 %v1212, %v1213
      %v1215 = vmax.f32 %v1108, %v1112
      %v1216 = vrot.slane %v1215, 4
      %v1217 = vmax.f32 %v1215, %v1216
      %v1218 = vrot.slane %v1217, 2
      %v1219 = vmax.f32 %v1217, %v1218
      %v1220 = vrot.slane %v1219, 1
      %v1221 = vmax.f32 %v1219, %v1220
      %v1222 = vmax.f32 %v1116, %v1120
      %v1223 = vrot.slane %v1222, 4
      %v1224 = vmax.f32 %v1222, %v1223
      %v1225 = vrot.slane %v1224, 2
      %v1226 = vmax.f32 %v1224, %v1225
      %v1227 = vrot.slane %v1226, 1
      %v1228 = vmax.f32 %v1226, %v1227
      %v1229 = vmax.f32 %v1118, %v1122
      %v1230 = vrot.slane %v1229, 4
      %v1231 = vmax.f32 %v1229, %v1230
      %v1232 = vrot.slane %v1231, 2
      %v1233 = vmax.f32 %v1231, %v1232
      %v1234 = vrot.slane %v1233, 1
      %v1235 = vmax.f32 %v1233, %v1234
      %v1236 = vpack.c.bf16 %v1130, %v1130
      %v1237 = vpack.c.bf16 %v1137, %v1137
      %v1238 = vpack.c.bf16 %v1144, %v1144
      %v1239 = vpack.c.bf16 %v1151, %v1151
      %v1240 = vpack.c.bf16 %v1158, %v1158
      %v1241 = vpack.c.bf16 %v1165, %v1165
      %v1242 = vpack.c.bf16 %v1172, %v1172
      %v1243 = vpack.c.bf16 %v1179, %v1179
      %v1244 = vpack.c.bf16 %v1186, %v1186
      %v1245 = vpack.c.bf16 %v1193, %v1193
      %v1246 = vpack.c.bf16 %v1200, %v1200
      %v1247 = vpack.c.bf16 %v1207, %v1207
      %v1248 = vpack.c.bf16 %v1214, %v1214
      %v1249 = vpack.c.bf16 %v1221, %v1221
      %v1250 = vpack.c.bf16 %v1228, %v1228
      %v1251 = vpack.c.bf16 %v1235, %v1235
      %v1252 = vld [vmem:[%s8] sm:$0xff]
      %v1253 = vld [vmem:[%s8 + $0x8] sm:$0xff]
      %v1254 = vld [vmem:[%s8 + $0x10] sm:$0xff]
      %v1255 = vld [vmem:[%s8 + $0x18] sm:$0xff]
      %v1256 = vld [vmem:[%s8 + $0x20] sm:$0xff]
      %v1257 = vld [vmem:[%s8 + $0x28] sm:$0xff]
      %v1258 = vld [vmem:[%s8 + $0x30] sm:$0xff]
      %v1259 = vld [vmem:[%s8 + $0x38] sm:$0xff]
      %v1260 = vld [vmem:[%s8 + $0x40] sm:$0xff]
      %v1261 = vld [vmem:[%s8 + $0x48] sm:$0xff]
      %v1262 = vld [vmem:[%s8 + $0x50] sm:$0xff]
      %v1263 = vld [vmem:[%s8 + $0x58] sm:$0xff]
      %v1264 = vld [vmem:[%s8 + $0x60] sm:$0xff]
      %v1265 = vld [vmem:[%s8 + $0x68] sm:$0xff]
      %v1266 = vld [vmem:[%s8 + $0x70] sm:$0xff]
      %v1267 = vld [vmem:[%s8 + $0x78] sm:$0xff]
      %v1268 = vld [vmem:[%s8 + $0x80] sm:$0xff]
      %v1269 = vld [vmem:[%s8 + $0x88] sm:$0xff]
      %v1270 = vld [vmem:[%s8 + $0x90] sm:$0xff]
      %v1271 = vld [vmem:[%s8 + $0x98] sm:$0xff]
      %v1272 = vld [vmem:[%s8 + $0xa0] sm:$0xff]
      %v1273 = vld [vmem:[%s8 + $0xa8] sm:$0xff]
      %v1274 = vld [vmem:[%s8 + $0xb0] sm:$0xff]
      %v1275 = vld [vmem:[%s8 + $0xb8] sm:$0xff]
      %v1276 = vld [vmem:[%s8 + $0xc0] sm:$0xff]
      %v1277 = vld [vmem:[%s8 + $0xc8] sm:$0xff]
      %v1278 = vld [vmem:[%s8 + $0xd0] sm:$0xff]
      %v1279 = vld [vmem:[%s8 + $0xd8] sm:$0xff]
      %v1280 = vld [vmem:[%s8 + $0xe0] sm:$0xff]
      %v1281 = vld [vmem:[%s8 + $0xe8] sm:$0xff]
      %v1282 = vld [vmem:[%s8 + $0xf0] sm:$0xff]
      %v1283 = vld [vmem:[%s8 + $0xf8] sm:$0xff]
      %v1284 = vld [vmem:[%s8 + $0x100] sm:$0xff]
      %v1285 = vld [vmem:[%s8 + $0x108] sm:$0xff]
      %v1286 = vld [vmem:[%s8 + $0x110] sm:$0xff]
      %v1287 = vld [vmem:[%s8 + $0x118] sm:$0xff]
      %v1288 = vld [vmem:[%s8 + $0x120] sm:$0xff]
      %v1289 = vld [vmem:[%s8 + $0x128] sm:$0xff]
      %v1290 = vld [vmem:[%s8 + $0x130] sm:$0xff]
      %v1291 = vld [vmem:[%s8 + $0x138] sm:$0xff]
      %v1292 = vld [vmem:[%s8 + $0x140] sm:$0xff]
      %v1293 = vld [vmem:[%s8 + $0x148] sm:$0xff]
      %v1294 = vld [vmem:[%s8 + $0x150] sm:$0xff]
      %v1295 = vld [vmem:[%s8 + $0x158] sm:$0xff]
      %v1296 = vld [vmem:[%s8 + $0x160] sm:$0xff]
      %v1297 = vld [vmem:[%s8 + $0x168] sm:$0xff]
      %v1298 = vld [vmem:[%s8 + $0x170] sm:$0xff]
      %v1299 = vld [vmem:[%s8 + $0x178] sm:$0xff]
      %v1300 = vld [vmem:[%s8 + $0x180] sm:$0xff]
      %v1301 = vld [vmem:[%s8 + $0x188] sm:$0xff]
      %v1302 = vld [vmem:[%s8 + $0x190] sm:$0xff]
      %v1303 = vld [vmem:[%s8 + $0x198] sm:$0xff]
      %v1304 = vld [vmem:[%s8 + $0x1a0] sm:$0xff]
      %v1305 = vld [vmem:[%s8 + $0x1a8] sm:$0xff]
      %v1306 = vld [vmem:[%s8 + $0x1b0] sm:$0xff]
      %v1307 = vld [vmem:[%s8 + $0x1b8] sm:$0xff]
      %v1308 = vld [vmem:[%s8 + $0x1c0] sm:$0xff]
      %v1309 = vld [vmem:[%s8 + $0x1c8] sm:$0xff]
      %v1310 = vld [vmem:[%s8 + $0x1d0] sm:$0xff]
      %v1311 = vld [vmem:[%s8 + $0x1d8] sm:$0xff]
      %v1312 = vld [vmem:[%s8 + $0x1e0] sm:$0xff]
      %v1313 = vld [vmem:[%s8 + $0x1e8] sm:$0xff]
      %v1314 = vld [vmem:[%s8 + $0x1f0] sm:$0xff]
      %v1315 = vld [vmem:[%s8 + $0x1f8] sm:$0xff]
      %v1332 = vunpack.c.l.b16 %v1236
      %v1333 = vunpack.c.l.b16 %v1237
      %v1334 = vunpack.c.l.b16 %v1238
      %v1335 = vunpack.c.l.b16 %v1239
      %v1336 = vunpack.c.l.b16 %v1240
      %v1337 = vunpack.c.l.b16 %v1241
      %v1338 = vunpack.c.l.b16 %v1242
      %v1339 = vunpack.c.l.b16 %v1243
      %v1340 = vunpack.c.l.b16 %v1244
      %v1341 = vunpack.c.l.b16 %v1245
      %v1342 = vunpack.c.l.b16 %v1246
      %v1343 = vunpack.c.l.b16 %v1247
      %v1344 = vunpack.c.l.b16 %v1248
      %v1345 = vunpack.c.l.b16 %v1249
      %v1346 = vunpack.c.l.b16 %v1250
      %v1347 = vunpack.c.l.b16 %v1251
      %vm1348 = vcmask 1041409
      %v1349 = vsel %vm1348, %v1334, %v1332
      %vm1350 = vcmask 1042434
      %v1351 = vsel %vm1350, %v1336, %v1349
      %vm1352 = vcmask 1043459
      %v1353 = vsel %vm1352, %v1338, %v1351
      %vm1354 = vcmask 1044484
      %v1355 = vsel %vm1354, %v1340, %v1353
      %vm1356 = vcmask 1045509
      %v1357 = vsel %vm1356, %v1342, %v1355
      %vm1358 = vcmask 1046534
      %v1359 = vsel %vm1358, %v1344, %v1357
      %vm1360 = vcmask 1047559
      %v1361 = vsel %vm1360, %v1346, %v1359
      %v1362 = vsel %vm1348, %v1335, %v1333
      %v1363 = vsel %vm1350, %v1337, %v1362
      %v1364 = vsel %vm1352, %v1339, %v1363
      %v1365 = vsel %vm1354, %v1341, %v1364
      %v1366 = vsel %vm1356, %v1343, %v1365
      %v1367 = vsel %vm1358, %v1345, %v1366
      %v1368 = vsel %vm1360, %v1347, %v1367
      %v1369 = vpack.c.b16 %v1361, %v1361
      %v1370 = vpack.c.b16 %v1368, %v1368
      %v1437 = vunpack.c.l.b16 %v1252
      %v1438 = vunpack.c.h.b16 %v1252
      %v1439 = vunpack.c.l.b16 %v1253
      %v1440 = vunpack.c.h.b16 %v1253
      %v1441 = vunpack.c.l.b16 %v1254
      %v1442 = vunpack.c.h.b16 %v1254
      %v1443 = vunpack.c.l.b16 %v1255
      %v1444 = vunpack.c.h.b16 %v1255
      %v1445 = vunpack.c.l.b16 %v1256
      %v1446 = vunpack.c.h.b16 %v1256
      %v1447 = vunpack.c.l.b16 %v1257
      %v1448 = vunpack.c.h.b16 %v1257
      %v1449 = vunpack.c.l.b16 %v1258
      %v1450 = vunpack.c.h.b16 %v1258
      %v1451 = vunpack.c.l.b16 %v1259
      %v1452 = vunpack.c.h.b16 %v1259
      %v1453 = vunpack.c.l.b16 %v1260
      %v1454 = vunpack.c.h.b16 %v1260
      %v1455 = vunpack.c.l.b16 %v1261
      %v1456 = vunpack.c.h.b16 %v1261
      %v1457 = vunpack.c.l.b16 %v1262
      %v1458 = vunpack.c.h.b16 %v1262
      %v1459 = vunpack.c.l.b16 %v1263
      %v1460 = vunpack.c.h.b16 %v1263
      %v1461 = vunpack.c.l.b16 %v1264
      %v1462 = vunpack.c.h.b16 %v1264
      %v1463 = vunpack.c.l.b16 %v1265
      %v1464 = vunpack.c.h.b16 %v1265
      %v1465 = vunpack.c.l.b16 %v1266
      %v1466 = vunpack.c.h.b16 %v1266
      %v1467 = vunpack.c.l.b16 %v1267
      %v1468 = vunpack.c.h.b16 %v1267
      %v1469 = vunpack.c.l.b16 %v1268
      %v1470 = vunpack.c.h.b16 %v1268
      %v1471 = vunpack.c.l.b16 %v1269
      %v1472 = vunpack.c.h.b16 %v1269
      %v1473 = vunpack.c.l.b16 %v1270
      %v1474 = vunpack.c.h.b16 %v1270
      %v1475 = vunpack.c.l.b16 %v1271
      %v1476 = vunpack.c.h.b16 %v1271
      %v1477 = vunpack.c.l.b16 %v1272
      %v1478 = vunpack.c.h.b16 %v1272
      %v1479 = vunpack.c.l.b16 %v1273
      %v1480 = vunpack.c.h.b16 %v1273
      %v1481 = vunpack.c.l.b16 %v1274
      %v1482 = vunpack.c.h.b16 %v1274
      %v1483 = vunpack.c.l.b16 %v1275
      %v1484 = vunpack.c.h.b16 %v1275
      %v1485 = vunpack.c.l.b16 %v1276
      %v1486 = vunpack.c.h.b16 %v1276
      %v1487 = vunpack.c.l.b16 %v1277
      %v1488 = vunpack.c.h.b16 %v1277
      %v1489 = vunpack.c.l.b16 %v1278
      %v1490 = vunpack.c.h.b16 %v1278
      %v1491 = vunpack.c.l.b16 %v1279
      %v1492 = vunpack.c.h.b16 %v1279
      %v1493 = vunpack.c.l.b16 %v1280
      %v1494 = vunpack.c.h.b16 %v1280
      %v1495 = vunpack.c.l.b16 %v1281
      %v1496 = vunpack.c.h.b16 %v1281
      %v1497 = vunpack.c.l.b16 %v1282
      %v1498 = vunpack.c.h.b16 %v1282
      %v1499 = vunpack.c.l.b16 %v1283
      %v1500 = vunpack.c.h.b16 %v1283
      %v1501 = vunpack.c.l.b16 %v1284
      %v1502 = vunpack.c.h.b16 %v1284
      %v1503 = vunpack.c.l.b16 %v1285
      %v1504 = vunpack.c.h.b16 %v1285
      %v1505 = vunpack.c.l.b16 %v1286
      %v1506 = vunpack.c.h.b16 %v1286
      %v1507 = vunpack.c.l.b16 %v1287
      %v1508 = vunpack.c.h.b16 %v1287
      %v1509 = vunpack.c.l.b16 %v1288
      %v1510 = vunpack.c.h.b16 %v1288
      %v1511 = vunpack.c.l.b16 %v1289
      %v1512 = vunpack.c.h.b16 %v1289
      %v1513 = vunpack.c.l.b16 %v1290
      %v1514 = vunpack.c.h.b16 %v1290
      %v1515 = vunpack.c.l.b16 %v1291
      %v1516 = vunpack.c.h.b16 %v1291
      %v1517 = vunpack.c.l.b16 %v1292
      %v1518 = vunpack.c.h.b16 %v1292
      %v1519 = vunpack.c.l.b16 %v1293
      %v1520 = vunpack.c.h.b16 %v1293
      %v1521 = vunpack.c.l.b16 %v1294
      %v1522 = vunpack.c.h.b16 %v1294
      %v1523 = vunpack.c.l.b16 %v1295
      %v1524 = vunpack.c.h.b16 %v1295
      %v1525 = vunpack.c.l.b16 %v1296
      %v1526 = vunpack.c.h.b16 %v1296
      %v1527 = vunpack.c.l.b16 %v1297
      %v1528 = vunpack.c.h.b16 %v1297
      %v1529 = vunpack.c.l.b16 %v1298
      %v1530 = vunpack.c.h.b16 %v1298
      %v1531 = vunpack.c.l.b16 %v1299
      %v1532 = vunpack.c.h.b16 %v1299
      %v1533 = vunpack.c.l.b16 %v1300
      %v1534 = vunpack.c.h.b16 %v1300
      %v1535 = vunpack.c.l.b16 %v1301
      %v1536 = vunpack.c.h.b16 %v1301
      %v1537 = vunpack.c.l.b16 %v1302
      %v1538 = vunpack.c.h.b16 %v1302
      %v1539 = vunpack.c.l.b16 %v1303
      %v1540 = vunpack.c.h.b16 %v1303
      %v1541 = vunpack.c.l.b16 %v1304
      %v1542 = vunpack.c.h.b16 %v1304
      %v1543 = vunpack.c.l.b16 %v1305
      %v1544 = vunpack.c.h.b16 %v1305
      %v1545 = vunpack.c.l.b16 %v1306
      %v1546 = vunpack.c.h.b16 %v1306
      %v1547 = vunpack.c.l.b16 %v1307
      %v1548 = vunpack.c.h.b16 %v1307
      %v1549 = vunpack.c.l.b16 %v1308
      %v1550 = vunpack.c.h.b16 %v1308
      %v1551 = vunpack.c.l.b16 %v1309
      %v1552 = vunpack.c.h.b16 %v1309
      %v1553 = vunpack.c.l.b16 %v1310
      %v1554 = vunpack.c.h.b16 %v1310
      %v1555 = vunpack.c.l.b16 %v1311
      %v1556 = vunpack.c.h.b16 %v1311
      %v1557 = vunpack.c.l.b16 %v1312
      %v1558 = vunpack.c.h.b16 %v1312
      %v1559 = vunpack.c.l.b16 %v1313
      %v1560 = vunpack.c.h.b16 %v1313
      %v1561 = vunpack.c.l.b16 %v1314
      %v1562 = vunpack.c.h.b16 %v1314
      %v1563 = vunpack.c.l.b16 %v1315
      %v1564 = vunpack.c.h.b16 %v1315
      %v1565 = vpack.c.b16 %v1441, %v1437
      %v1566 = vpack.c.b16 %v1442, %v1438
      %v1567 = vpack.c.b16 %v1443, %v1439
      %v1568 = vpack.c.b16 %v1444, %v1440
      %v1569 = vpack.c.b16 %v1449, %v1445
      %v1570 = vpack.c.b16 %v1450, %v1446
      %v1571 = vpack.c.b16 %v1451, %v1447
      %v1572 = vpack.c.b16 %v1452, %v1448
      %v1573 = vpack.c.b16 %v1457, %v1453
      %v1574 = vpack.c.b16 %v1458, %v1454
      %v1575 = vpack.c.b16 %v1459, %v1455
      %v1576 = vpack.c.b16 %v1460, %v1456
      %v1577 = vpack.c.b16 %v1465, %v1461
      %v1578 = vpack.c.b16 %v1466, %v1462
      %v1579 = vpack.c.b16 %v1467, %v1463
      %v1580 = vpack.c.b16 %v1468, %v1464
      %v1581 = vpack.c.b16 %v1473, %v1469
      %v1582 = vpack.c.b16 %v1474, %v1470
      %v1583 = vpack.c.b16 %v1475, %v1471
      %v1584 = vpack.c.b16 %v1476, %v1472
      %v1585 = vpack.c.b16 %v1481, %v1477
      %v1586 = vpack.c.b16 %v1482, %v1478
      %v1587 = vpack.c.b16 %v1483, %v1479
      %v1588 = vpack.c.b16 %v1484, %v1480
      %v1589 = vpack.c.b16 %v1489, %v1485
      %v1590 = vpack.c.b16 %v1490, %v1486
      %v1591 = vpack.c.b16 %v1491, %v1487
      %v1592 = vpack.c.b16 %v1492, %v1488
      %v1593 = vpack.c.b16 %v1497, %v1493
      %v1594 = vpack.c.b16 %v1498, %v1494
      %v1595 = vpack.c.b16 %v1499, %v1495
      %v1596 = vpack.c.b16 %v1500, %v1496
      %v1597 = vpack.c.b16 %v1505, %v1501
      %v1598 = vpack.c.b16 %v1506, %v1502
      %v1599 = vpack.c.b16 %v1507, %v1503
      %v1600 = vpack.c.b16 %v1508, %v1504
      %v1601 = vpack.c.b16 %v1513, %v1509
      %v1602 = vpack.c.b16 %v1514, %v1510
      %v1603 = vpack.c.b16 %v1515, %v1511
      %v1604 = vpack.c.b16 %v1516, %v1512
      %v1605 = vpack.c.b16 %v1521, %v1517
      %v1606 = vpack.c.b16 %v1522, %v1518
      %v1607 = vpack.c.b16 %v1523, %v1519
      %v1608 = vpack.c.b16 %v1524, %v1520
      %v1609 = vpack.c.b16 %v1529, %v1525
      %v1610 = vpack.c.b16 %v1530, %v1526
      %v1611 = vpack.c.b16 %v1531, %v1527
      %v1612 = vpack.c.b16 %v1532, %v1528
      %v1613 = vpack.c.b16 %v1537, %v1533
      %v1614 = vpack.c.b16 %v1538, %v1534
      %v1615 = vpack.c.b16 %v1539, %v1535
      %v1616 = vpack.c.b16 %v1540, %v1536
      %v1617 = vpack.c.b16 %v1545, %v1541
      %v1618 = vpack.c.b16 %v1546, %v1542
      %v1619 = vpack.c.b16 %v1547, %v1543
      %v1620 = vpack.c.b16 %v1548, %v1544
      %v1621 = vpack.c.b16 %v1553, %v1549
      %v1622 = vpack.c.b16 %v1554, %v1550
      %v1623 = vpack.c.b16 %v1555, %v1551
      %v1624 = vpack.c.b16 %v1556, %v1552
      %v1625 = vpack.c.b16 %v1561, %v1557
      %v1626 = vpack.c.b16 %v1562, %v1558
      %v1627 = vpack.c.b16 %v1563, %v1559
      %v1628 = vpack.c.b16 %v1564, %v1560
      %1693 = vmatprep.subr.bf16.mxu0 %v1566
      %1694 = vmatpush1.bf16.msra.mxu0 %v1565
      %1695 = vmatprep.subr.bf16.mxu0 %v1570
      %1696 = vmatpush1.bf16.msra.mxu0 %v1569
      %1697 = vmatprep.subr.bf16.mxu0 %v1574
      %1698 = vmatpush1.bf16.msra.mxu0 %v1573
      %1699 = vmatprep.subr.bf16.mxu0 %v1578
      %1700 = vmatpush1.bf16.msra.mxu0 %v1577
      %1701 = vmatprep.subr.bf16.mxu0 %v1582
      %1702 = vmatpush1.bf16.msra.mxu0 %v1581
      %1703 = vmatprep.subr.bf16.mxu0 %v1586
      %1704 = vmatpush1.bf16.msra.mxu0 %v1585
      %1705 = vmatprep.subr.bf16.mxu0 %v1590
      %1706 = vmatpush1.bf16.msra.mxu0 %v1589
      %1707 = vmatprep.subr.bf16.mxu0 %v1594
      %1708 = vmatpush1.bf16.msra.mxu0 %v1593
      %1709 = vmatprep.subr.bf16.mxu0 %v1598
      %1710 = vmatpush1.bf16.msra.mxu0 %v1597
      %1711 = vmatprep.subr.bf16.mxu0 %v1602
      %1712 = vmatpush1.bf16.msra.mxu0 %v1601
      %1713 = vmatprep.subr.bf16.mxu0 %v1606
      %1714 = vmatpush1.bf16.msra.mxu0 %v1605
      %1715 = vmatprep.subr.bf16.mxu0 %v1610
      %1716 = vmatpush1.bf16.msra.mxu0 %v1609
      %1717 = vmatprep.subr.bf16.mxu0 %v1614
      %1718 = vmatpush1.bf16.msra.mxu0 %v1613
      %1719 = vmatprep.subr.bf16.mxu0 %v1618
      %1720 = vmatpush1.bf16.msra.mxu0 %v1617
      %1721 = vmatprep.subr.bf16.mxu0 %v1622
      %1722 = vmatpush1.bf16.msra.mxu0 %v1621
      %1723 = vmatprep.subr.bf16.mxu0 %v1626
      %1724 = vmatpush1.bf16.msra.mxu0 %v1625
      %1725 = vmatprep.mubr.bf16.mxu0 %v1370
      %1726 = vmatmul.mubr.bf16.gmra.mrb[0].mxu0 %v1369
      %v1727 = vpop.f32.mrb[0].mxu0
      %v1728 = vadd.f32 0.0, %v1727
      %v1729 = vpop.f32.mrb[0].mxu0
      %v1730 = vadd.f32 0.0, %v1729
      %v1731 = vpop.f32.mrb[0].mxu0
      %v1732 = vpop.f32.mrb[0].mxu0
      %1733 = vdwg.mxu0
      %1734 = vmatprep.subr.bf16.mxu0 %v1568
      %1735 = vmatpush1.bf16.msra.mxu0 %v1567
      %1736 = vmatprep.subr.bf16.mxu0 %v1572
      %1737 = vmatpush1.bf16.msra.mxu0 %v1571
      %1738 = vmatprep.subr.bf16.mxu0 %v1576
      %1739 = vmatpush1.bf16.msra.mxu0 %v1575
      %1740 = vmatprep.subr.bf16.mxu0 %v1580
      %1741 = vmatpush1.bf16.msra.mxu0 %v1579
      %1742 = vmatprep.subr.bf16.mxu0 %v1584
      %1743 = vmatpush1.bf16.msra.mxu0 %v1583
      %1744 = vmatprep.subr.bf16.mxu0 %v1588
      %1745 = vmatpush1.bf16.msra.mxu0 %v1587
      %1746 = vmatprep.subr.bf16.mxu0 %v1592
      %1747 = vmatpush1.bf16.msra.mxu0 %v1591
      %1748 = vmatprep.subr.bf16.mxu0 %v1596
      %1749 = vmatpush1.bf16.msra.mxu0 %v1595
      %1750 = vmatprep.subr.bf16.mxu0 %v1600
      %1751 = vmatpush1.bf16.msra.mxu0 %v1599
      %1752 = vmatprep.subr.bf16.mxu0 %v1604
      %1753 = vmatpush1.bf16.msra.mxu0 %v1603
      %1754 = vmatprep.subr.bf16.mxu0 %v1608
      %1755 = vmatpush1.bf16.msra.mxu0 %v1607
      %1756 = vmatprep.subr.bf16.mxu0 %v1612
      %1757 = vmatpush1.bf16.msra.mxu0 %v1611
      %1758 = vmatprep.subr.bf16.mxu0 %v1616
      %1759 = vmatpush1.bf16.msra.mxu0 %v1615
      %1760 = vmatprep.subr.bf16.mxu0 %v1620
      %1761 = vmatpush1.bf16.msra.mxu0 %v1619
      %1762 = vmatprep.subr.bf16.mxu0 %v1624
      %1763 = vmatpush1.bf16.msra.mxu0 %v1623
      %1764 = vmatprep.subr.bf16.mxu0 %v1628
      %1765 = vmatpush1.bf16.msra.mxu0 %v1627
      %1766 = vmatprep.mubr.bf16.mxu0 %v1370
      %1767 = vmatmul.mubr.bf16.gmra.mrb[0].mxu0 %v1369
      %v1768 = vpop.f32.mrb[0].mxu0
      %v1769 = vadd.f32 0.0, %v1768
      %v1770 = vpop.f32.mrb[0].mxu0
      %v1771 = vadd.f32 0.0, %v1770
      %v1772 = vpop.f32.mrb[0].mxu0
      %v1773 = vpop.f32.mrb[0].mxu0
      %1774 = vdwg.mxu0
      %v1775 = vpack.c.bf16 %v1050, %v1046
      %v1776 = vpack.c.bf16 %v1052, %v1048
      %v1777 = vpack.c.bf16 %v1060, %v1056
      %v1778 = vpack.c.bf16 %v1062, %v1058
      %v1779 = vpack.c.bf16 %v1070, %v1066
      %v1780 = vpack.c.bf16 %v1072, %v1068
      %v1781 = vpack.c.bf16 %v1080, %v1076
      %v1782 = vpack.c.bf16 %v1082, %v1078
      %v1783 = vpack.c.bf16 %v1090, %v1086
      %v1784 = vpack.c.bf16 %v1092, %v1088
      %v1785 = vpack.c.bf16 %v1100, %v1096
      %v1786 = vpack.c.bf16 %v1102, %v1098
      %v1787 = vpack.c.bf16 %v1110, %v1106
      %v1788 = vpack.c.bf16 %v1112, %v1108
      %v1789 = vpack.c.bf16 %v1120, %v1116
      %v1790 = vpack.c.bf16 %v1122, %v1118
      %v1791 = vld [vmem:[%s9] sm:$0xff]
      %v1792 = vld [vmem:[%s9 + $0x8] sm:$0xff]
      %v1793 = vld [vmem:[%s9 + $0x10] sm:$0xff]
      %v1794 = vld [vmem:[%s9 + $0x18] sm:$0xff]
      %v1795 = vld [vmem:[%s9 + $0x20] sm:$0xff]
      %v1796 = vld [vmem:[%s9 + $0x28] sm:$0xff]
      %v1797 = vld [vmem:[%s9 + $0x30] sm:$0xff]
      %v1798 = vld [vmem:[%s9 + $0x38] sm:$0xff]
      %v1799 = vld [vmem:[%s9 + $0x40] sm:$0xff]
      %v1800 = vld [vmem:[%s9 + $0x48] sm:$0xff]
      %v1801 = vld [vmem:[%s9 + $0x50] sm:$0xff]
      %v1802 = vld [vmem:[%s9 + $0x58] sm:$0xff]
      %v1803 = vld [vmem:[%s9 + $0x60] sm:$0xff]
      %v1804 = vld [vmem:[%s9 + $0x68] sm:$0xff]
      %v1805 = vld [vmem:[%s9 + $0x70] sm:$0xff]
      %v1806 = vld [vmem:[%s9 + $0x78] sm:$0xff]
      %v1807 = vld [vmem:[%s9 + $0x80] sm:$0xff]
      %v1808 = vld [vmem:[%s9 + $0x88] sm:$0xff]
      %v1809 = vld [vmem:[%s9 + $0x90] sm:$0xff]
      %v1810 = vld [vmem:[%s9 + $0x98] sm:$0xff]
      %v1811 = vld [vmem:[%s9 + $0xa0] sm:$0xff]
      %v1812 = vld [vmem:[%s9 + $0xa8] sm:$0xff]
      %v1813 = vld [vmem:[%s9 + $0xb0] sm:$0xff]
      %v1814 = vld [vmem:[%s9 + $0xb8] sm:$0xff]
      %v1815 = vld [vmem:[%s9 + $0xc0] sm:$0xff]
      %v1816 = vld [vmem:[%s9 + $0xc8] sm:$0xff]
      %v1817 = vld [vmem:[%s9 + $0xd0] sm:$0xff]
      %v1818 = vld [vmem:[%s9 + $0xd8] sm:$0xff]
      %v1819 = vld [vmem:[%s9 + $0xe0] sm:$0xff]
      %v1820 = vld [vmem:[%s9 + $0xe8] sm:$0xff]
      %v1821 = vld [vmem:[%s9 + $0xf0] sm:$0xff]
      %v1822 = vld [vmem:[%s9 + $0xf8] sm:$0xff]
      %v1823 = vld [vmem:[%s9 + $0x100] sm:$0xff]
      %v1824 = vld [vmem:[%s9 + $0x108] sm:$0xff]
      %v1825 = vld [vmem:[%s9 + $0x110] sm:$0xff]
      %v1826 = vld [vmem:[%s9 + $0x118] sm:$0xff]
      %v1827 = vld [vmem:[%s9 + $0x120] sm:$0xff]
      %v1828 = vld [vmem:[%s9 + $0x128] sm:$0xff]
      %v1829 = vld [vmem:[%s9 + $0x130] sm:$0xff]
      %v1830 = vld [vmem:[%s9 + $0x138] sm:$0xff]
      %v1831 = vld [vmem:[%s9 + $0x140] sm:$0xff]
      %v1832 = vld [vmem:[%s9 + $0x148] sm:$0xff]
      %v1833 = vld [vmem:[%s9 + $0x150] sm:$0xff]
      %v1834 = vld [vmem:[%s9 + $0x158] sm:$0xff]
      %v1835 = vld [vmem:[%s9 + $0x160] sm:$0xff]
      %v1836 = vld [vmem:[%s9 + $0x168] sm:$0xff]
      %v1837 = vld [vmem:[%s9 + $0x170] sm:$0xff]
      %v1838 = vld [vmem:[%s9 + $0x178] sm:$0xff]
      %v1839 = vld [vmem:[%s9 + $0x180] sm:$0xff]
      %v1840 = vld [vmem:[%s9 + $0x188] sm:$0xff]
      %v1841 = vld [vmem:[%s9 + $0x190] sm:$0xff]
      %v1842 = vld [vmem:[%s9 + $0x198] sm:$0xff]
      %v1843 = vld [vmem:[%s9 + $0x1a0] sm:$0xff]
      %v1844 = vld [vmem:[%s9 + $0x1a8] sm:$0xff]
      %v1845 = vld [vmem:[%s9 + $0x1b0] sm:$0xff]
      %v1846 = vld [vmem:[%s9 + $0x1b8] sm:$0xff]
      %v1847 = vld [vmem:[%s9 + $0x1c0] sm:$0xff]
      %v1848 = vld [vmem:[%s9 + $0x1c8] sm:$0xff]
      %v1849 = vld [vmem:[%s9 + $0x1d0] sm:$0xff]
      %v1850 = vld [vmem:[%s9 + $0x1d8] sm:$0xff]
      %v1851 = vld [vmem:[%s9 + $0x1e0] sm:$0xff]
      %v1852 = vld [vmem:[%s9 + $0x1e8] sm:$0xff]
      %v1853 = vld [vmem:[%s9 + $0x1f0] sm:$0xff]
      %v1854 = vld [vmem:[%s9 + $0x1f8] sm:$0xff]
      %v1919 = vunpack.c.l.b16 %v1791
      %v1920 = vunpack.c.h.b16 %v1791
      %v1921 = vunpack.c.l.b16 %v1792
      %v1922 = vunpack.c.h.b16 %v1792
      %v1923 = vunpack.c.l.b16 %v1793
      %v1924 = vunpack.c.h.b16 %v1793
      %v1925 = vunpack.c.l.b16 %v1794
      %v1926 = vunpack.c.h.b16 %v1794
      %v1927 = vunpack.c.l.b16 %v1795
      %v1928 = vunpack.c.h.b16 %v1795
      %v1929 = vunpack.c.l.b16 %v1796
      %v1930 = vunpack.c.h.b16 %v1796
      %v1931 = vunpack.c.l.b16 %v1797
      %v1932 = vunpack.c.h.b16 %v1797
      %v1933 = vunpack.c.l.b16 %v1798
      %v1934 = vunpack.c.h.b16 %v1798
      %v1935 = vunpack.c.l.b16 %v1799
      %v1936 = vunpack.c.h.b16 %v1799
      %v1937 = vunpack.c.l.b16 %v1800
      %v1938 = vunpack.c.h.b16 %v1800
      %v1939 = vunpack.c.l.b16 %v1801
      %v1940 = vunpack.c.h.b16 %v1801
      %v1941 = vunpack.c.l.b16 %v1802
      %v1942 = vunpack.c.h.b16 %v1802
      %v1943 = vunpack.c.l.b16 %v1803
      %v1944 = vunpack.c.h.b16 %v1803
      %v1945 = vunpack.c.l.b16 %v1804
      %v1946 = vunpack.c.h.b16 %v1804
      %v1947 = vunpack.c.l.b16 %v1805
      %v1948 = vunpack.c.h.b16 %v1805
      %v1949 = vunpack.c.l.b16 %v1806
      %v1950 = vunpack.c.h.b16 %v1806
      %v1951 = vunpack.c.l.b16 %v1807
      %v1952 = vunpack.c.h.b16 %v1807
      %v1953 = vunpack.c.l.b16 %v1808
      %v1954 = vunpack.c.h.b16 %v1808
      %v1955 = vunpack.c.l.b16 %v1809
      %v1956 = vunpack.c.h.b16 %v1809
      %v1957 = vunpack.c.l.b16 %v1810
      %v1958 = vunpack.c.h.b16 %v1810
      %v1959 = vunpack.c.l.b16 %v1811
      %v1960 = vunpack.c.h.b16 %v1811
      %v1961 = vunpack.c.l.b16 %v1812
      %v1962 = vunpack.c.h.b16 %v1812
      %v1963 = vunpack.c.l.b16 %v1813
      %v1964 = vunpack.c.h.b16 %v1813
      %v1965 = vunpack.c.l.b16 %v1814
      %v1966 = vunpack.c.h.b16 %v1814
      %v1967 = vunpack.c.l.b16 %v1815
      %v1968 = vunpack.c.h.b16 %v1815
      %v1969 = vunpack.c.l.b16 %v1816
      %v1970 = vunpack.c.h.b16 %v1816
      %v1971 = vunpack.c.l.b16 %v1817
      %v1972 = vunpack.c.h.b16 %v1817
      %v1973 = vunpack.c.l.b16 %v1818
      %v1974 = vunpack.c.h.b16 %v1818
      %v1975 = vunpack.c.l.b16 %v1819
      %v1976 = vunpack.c.h.b16 %v1819
      %v1977 = vunpack.c.l.b16 %v1820
      %v1978 = vunpack.c.h.b16 %v1820
      %v1979 = vunpack.c.l.b16 %v1821
      %v1980 = vunpack.c.h.b16 %v1821
      %v1981 = vunpack.c.l.b16 %v1822
      %v1982 = vunpack.c.h.b16 %v1822
      %v1983 = vunpack.c.l.b16 %v1823
      %v1984 = vunpack.c.h.b16 %v1823
      %v1985 = vunpack.c.l.b16 %v1824
      %v1986 = vunpack.c.h.b16 %v1824
      %v1987 = vunpack.c.l.b16 %v1825
      %v1988 = vunpack.c.h.b16 %v1825
      %v1989 = vunpack.c.l.b16 %v1826
      %v1990 = vunpack.c.h.b16 %v1826
      %v1991 = vunpack.c.l.b16 %v1827
      %v1992 = vunpack.c.h.b16 %v1827
      %v1993 = vunpack.c.l.b16 %v1828
      %v1994 = vunpack.c.h.b16 %v1828
      %v1995 = vunpack.c.l.b16 %v1829
      %v1996 = vunpack.c.h.b16 %v1829
      %v1997 = vunpack.c.l.b16 %v1830
      %v1998 = vunpack.c.h.b16 %v1830
      %v1999 = vunpack.c.l.b16 %v1831
      %v2000 = vunpack.c.h.b16 %v1831
      %v2001 = vunpack.c.l.b16 %v1832
      %v2002 = vunpack.c.h.b16 %v1832
      %v2003 = vunpack.c.l.b16 %v1833
      %v2004 = vunpack.c.h.b16 %v1833
      %v2005 = vunpack.c.l.b16 %v1834
      %v2006 = vunpack.c.h.b16 %v1834
      %v2007 = vunpack.c.l.b16 %v1835
      %v2008 = vunpack.c.h.b16 %v1835
      %v2009 = vunpack.c.l.b16 %v1836
      %v2010 = vunpack.c.h.b16 %v1836
      %v2011 = vunpack.c.l.b16 %v1837
      %v2012 = vunpack.c.h.b16 %v1837
      %v2013 = vunpack.c.l.b16 %v1838
      %v2014 = vunpack.c.h.b16 %v1838
      %v2015 = vunpack.c.l.b16 %v1839
      %v2016 = vunpack.c.h.b16 %v1839
      %v2017 = vunpack.c.l.b16 %v1840
      %v2018 = vunpack.c.h.b16 %v1840
      %v2019 = vunpack.c.l.b16 %v1841
      %v2020 = vunpack.c.h.b16 %v1841
      %v2021 = vunpack.c.l.b16 %v1842
      %v2022 = vunpack.c.h.b16 %v1842
      %v2023 = vunpack.c.l.b16 %v1843
      %v2024 = vunpack.c.h.b16 %v1843
      %v2025 = vunpack.c.l.b16 %v1844
      %v2026 = vunpack.c.h.b16 %v1844
      %v2027 = vunpack.c.l.b16 %v1845
      %v2028 = vunpack.c.h.b16 %v1845
      %v2029 = vunpack.c.l.b16 %v1846
      %v2030 = vunpack.c.h.b16 %v1846
      %v2031 = vunpack.c.l.b16 %v1847
      %v2032 = vunpack.c.h.b16 %v1847
      %v2033 = vunpack.c.l.b16 %v1848
      %v2034 = vunpack.c.h.b16 %v1848
      %v2035 = vunpack.c.l.b16 %v1849
      %v2036 = vunpack.c.h.b16 %v1849
      %v2037 = vunpack.c.l.b16 %v1850
      %v2038 = vunpack.c.h.b16 %v1850
      %v2039 = vunpack.c.l.b16 %v1851
      %v2040 = vunpack.c.h.b16 %v1851
      %v2041 = vunpack.c.l.b16 %v1852
      %v2042 = vunpack.c.h.b16 %v1852
      %v2043 = vunpack.c.l.b16 %v1853
      %v2044 = vunpack.c.h.b16 %v1853
      %v2045 = vunpack.c.l.b16 %v1854
      %v2046 = vunpack.c.h.b16 %v1854
      %v2047 = vpack.c.b16 %v1923, %v1919
      %v2048 = vpack.c.b16 %v1924, %v1920
      %v2049 = vpack.c.b16 %v1925, %v1921
      %v2050 = vpack.c.b16 %v1926, %v1922
      %v2051 = vpack.c.b16 %v1931, %v1927
      %v2052 = vpack.c.b16 %v1932, %v1928
      %v2053 = vpack.c.b16 %v1933, %v1929
      %v2054 = vpack.c.b16 %v1934, %v1930
      %v2055 = vpack.c.b16 %v1939, %v1935
      %v2056 = vpack.c.b16 %v1940, %v1936
      %v2057 = vpack.c.b16 %v1941, %v1937
      %v2058 = vpack.c.b16 %v1942, %v1938
      %v2059 = vpack.c.b16 %v1947, %v1943
      %v2060 = vpack.c.b16 %v1948, %v1944
      %v2061 = vpack.c.b16 %v1949, %v1945
      %v2062 = vpack.c.b16 %v1950, %v1946
      %v2063 = vpack.c.b16 %v1955, %v1951
      %v2064 = vpack.c.b16 %v1956, %v1952
      %v2065 = vpack.c.b16 %v1957, %v1953
      %v2066 = vpack.c.b16 %v1958, %v1954
      %v2067 = vpack.c.b16 %v1963, %v1959
      %v2068 = vpack.c.b16 %v1964, %v1960
      %v2069 = vpack.c.b16 %v1965, %v1961
      %v2070 = vpack.c.b16 %v1966, %v1962
      %v2071 = vpack.c.b16 %v1971, %v1967
      %v2072 = vpack.c.b16 %v1972, %v1968
      %v2073 = vpack.c.b16 %v1973, %v1969
      %v2074 = vpack.c.b16 %v1974, %v1970
      %v2075 = vpack.c.b16 %v1979, %v1975
      %v2076 = vpack.c.b16 %v1980, %v1976
      %v2077 = vpack.c.b16 %v1981, %v1977
      %v2078 = vpack.c.b16 %v1982, %v1978
      %v2079 = vpack.c.b16 %v1987, %v1983
      %v2080 = vpack.c.b16 %v1988, %v1984
      %v2081 = vpack.c.b16 %v1989, %v1985
      %v2082 = vpack.c.b16 %v1990, %v1986
      %v2083 = vpack.c.b16 %v1995, %v1991
      %v2084 = vpack.c.b16 %v1996, %v1992
      %v2085 = vpack.c.b16 %v1997, %v1993
      %v2086 = vpack.c.b16 %v1998, %v1994
      %v2087 = vpack.c.b16 %v2003, %v1999
      %v2088 = vpack.c.b16 %v2004, %v2000
      %v2089 = vpack.c.b16 %v2005, %v2001
      %v2090 = vpack.c.b16 %v2006, %v2002
      %v2091 = vpack.c.b16 %v2011, %v2007
      %v2092 = vpack.c.b16 %v2012, %v2008
      %v2093 = vpack.c.b16 %v2013, %v2009
      %v2094 = vpack.c.b16 %v2014, %v2010
      %v2095 = vpack.c.b16 %v2019, %v2015
      %v2096 = vpack.c.b16 %v2020, %v2016
      %v2097 = vpack.c.b16 %v2021, %v2017
      %v2098 = vpack.c.b16 %v2022, %v2018
      %v2099 = vpack.c.b16 %v2027, %v2023
      %v2100 = vpack.c.b16 %v2028, %v2024
      %v2101 = vpack.c.b16 %v2029, %v2025
      %v2102 = vpack.c.b16 %v2030, %v2026
      %v2103 = vpack.c.b16 %v2035, %v2031
      %v2104 = vpack.c.b16 %v2036, %v2032
      %v2105 = vpack.c.b16 %v2037, %v2033
      %v2106 = vpack.c.b16 %v2038, %v2034
      %v2107 = vpack.c.b16 %v2043, %v2039
      %v2108 = vpack.c.b16 %v2044, %v2040
      %v2109 = vpack.c.b16 %v2045, %v2041
      %v2110 = vpack.c.b16 %v2046, %v2042
      %2175 = vmatprep.subr.bf16.mxu0 %v2048
      %2176 = vmatpush1.bf16.msra.mxu0 %v2047
      %2177 = vmatprep.subr.bf16.mxu0 %v2052
      %2178 = vmatpush1.bf16.msra.mxu0 %v2051
      %2179 = vmatprep.subr.bf16.mxu0 %v2056
      %2180 = vmatpush1.bf16.msra.mxu0 %v2055
      %2181 = vmatprep.subr.bf16.mxu0 %v2060
      %2182 = vmatpush1.bf16.msra.mxu0 %v2059
      %2183 = vmatprep.subr.bf16.mxu0 %v2064
      %2184 = vmatpush1.bf16.msra.mxu0 %v2063
      %2185 = vmatprep.subr.bf16.mxu0 %v2068
      %2186 = vmatpush1.bf16.msra.mxu0 %v2067
      %2187 = vmatprep.subr.bf16.mxu0 %v2072
      %2188 = vmatpush1.bf16.msra.mxu0 %v2071
      %2189 = vmatprep.subr.bf16.mxu0 %v2076
      %2190 = vmatpush1.bf16.msra.mxu0 %v2075
      %2191 = vmatprep.subr.bf16.mxu0 %v2080
      %2192 = vmatpush1.bf16.msra.mxu0 %v2079
      %2193 = vmatprep.subr.bf16.mxu0 %v2084
      %2194 = vmatpush1.bf16.msra.mxu0 %v2083
      %2195 = vmatprep.subr.bf16.mxu0 %v2088
      %2196 = vmatpush1.bf16.msra.mxu0 %v2087
      %2197 = vmatprep.subr.bf16.mxu0 %v2092
      %2198 = vmatpush1.bf16.msra.mxu0 %v2091
      %2199 = vmatprep.subr.bf16.mxu0 %v2096
      %2200 = vmatpush1.bf16.msra.mxu0 %v2095
      %2201 = vmatprep.subr.bf16.mxu0 %v2100
      %2202 = vmatpush1.bf16.msra.mxu0 %v2099
      %2203 = vmatprep.subr.bf16.mxu0 %v2104
      %2204 = vmatpush1.bf16.msra.mxu0 %v2103
      %2205 = vmatprep.subr.bf16.mxu0 %v2108
      %2206 = vmatpush1.bf16.msra.mxu0 %v2107
      %2207 = vmatprep.mubr.bf16.mxu0 %v1776
      %2208 = vmatmul.mubr.bf16.gmra.mrb[0].mxu0 %v1775
      %v2209 = vpop.f32.mrb[0].mxu0
      %v2210 = vadd.f32 0.0, %v2209
      %v2211 = vpop.f32.mrb[0].mxu0
      %v2212 = vadd.f32 0.0, %v2211
      %v2213 = vpop.f32.mrb[0].mxu0
      %v2214 = vadd.f32 0.0, %v2213
      %v2215 = vpop.f32.mrb[0].mxu0
      %v2216 = vadd.f32 0.0, %v2215
      %2217 = vmatprep.mubr.bf16.mxu0 %v1778
      %2218 = vmatmul.mubr.bf16.gmra.mrb[0].mxu0 %v1777
      %v2219 = vpop.f32.mrb[0].mxu0
      %v2220 = vadd.f32 0.0, %v2219
      %v2221 = vpop.f32.mrb[0].mxu0
      %v2222 = vadd.f32 0.0, %v2221
      %v2223 = vpop.f32.mrb[0].mxu0
      %v2224 = vadd.f32 0.0, %v2223
      %v2225 = vpop.f32.mrb[0].mxu0
      %v2226 = vadd.f32 0.0, %v2225
      %2227 = vmatprep.mubr.bf16.mxu0 %v1780
      %2228 = vmatmul.mubr.bf16.gmra.mrb[0].mxu0 %v1779
      %v2229 = vpop.f32.mrb[0].mxu0
      %v2230 = vadd.f32 0.0, %v2229
      %v2231 = vpop.f32.mrb[0].mxu0
      %v2232 = vadd.f32 0.0, %v2231
      %v2233 = vpop.f32.mrb[0].mxu0
      %v2234 = vadd.f32 0.0, %v2233
      %v2235 = vpop.f32.mrb[0].mxu0
      %v2236 = vadd.f32 0.0, %v2235
      %2237 = vmatprep.mubr.bf16.mxu0 %v1782
      %2238 = vmatmul.mubr.bf16.gmra.mrb[0].mxu0 %v1781
      %v2239 = vpop.f32.mrb[0].mxu0
      %v2240 = vadd.f32 0.0, %v2239
      %v2241 = vpop.f32.mrb[0].mxu0
      %v2242 = vadd.f32 0.0, %v2241
      %v2243 = vpop.f32.mrb[0].mxu0
      %v2244 = vadd.f32 0.0, %v2243
      %v2245 = vpop.f32.mrb[0].mxu0
      %v2246 = vadd.f32 0.0, %v2245
      %2247 = vmatprep.mubr.bf16.mxu0 %v1784
      %2248 = vmatmul.mubr.bf16.gmra.mrb[0].mxu0 %v1783
      %v2249 = vpop.f32.mrb[0].mxu0
      %v2250 = vadd.f32 0.0, %v2249
      %v2251 = vpop.f32.mrb[0].mxu0
      %v2252 = vadd.f32 0.0, %v2251
      %v2253 = vpop.f32.mrb[0].mxu0
      %v2254 = vadd.f32 0.0, %v2253
      %v2255 = vpop.f32.mrb[0].mxu0
      %v2256 = vadd.f32 0.0, %v2255
      %2257 = vmatprep.mubr.bf16.mxu0 %v1786
      %2258 = vmatmul.mubr.bf16.gmra.mrb[0].mxu0 %v1785
      %v2259 = vpop.f32.mrb[0].mxu0
      %v2260 = vadd.f32 0.0, %v2259
      %v2261 = vpop.f32.mrb[0].mxu0
      %v2262 = vadd.f32 0.0, %v2261
      %v2263 = vpop.f32.mrb[0].mxu0
      %v2264 = vadd.f32 0.0, %v2263
      %v2265 = vpop.f32.mrb[0].mxu0
      %v2266 = vadd.f32 0.0, %v2265
      %2267 = vmatprep.mubr.bf16.mxu0 %v1788
      %2268 = vmatmul.mubr.bf16.gmra.mrb[0].mxu0 %v1787
      %v2269 = vpop.f32.mrb[0].mxu0
      %v2270 = vadd.f32 0.0, %v2269
      %v2271 = vpop.f32.mrb[0].mxu0
      %v2272 = vadd.f32 0.0, %v2271
      %v2273 = vpop.f32.mrb[0].mxu0
      %v2274 = vadd.f32 0.0, %v2273
      %v2275 = vpop.f32.mrb[0].mxu0
      %v2276 = vadd.f32 0.0, %v2275
      %2277 = vmatprep.mubr.bf16.mxu0 %v1790
      %2278 = vmatmul.mubr.bf16.gmra.mrb[0].mxu0 %v1789
      %v2279 = vpop.f32.mrb[0].mxu0
      %v2280 = vadd.f32 0.0, %v2279
      %v2281 = vpop.f32.mrb[0].mxu0
      %v2282 = vadd.f32 0.0, %v2281
      %v2283 = vpop.f32.mrb[0].mxu0
      %v2284 = vadd.f32 0.0, %v2283
      %v2285 = vpop.f32.mrb[0].mxu0
      %v2286 = vadd.f32 0.0, %v2285
      %2287 = vdwg.mxu0
      %2288 = vmatprep.subr.bf16.mxu0 %v2050
      %2289 = vmatpush1.bf16.msra.mxu0 %v2049
      %2290 = vmatprep.subr.bf16.mxu0 %v2054
      %2291 = vmatpush1.bf16.msra.mxu0 %v2053
      %2292 = vmatprep.subr.bf16.mxu0 %v2058
      %2293 = vmatpush1.bf16.msra.mxu0 %v2057
      %2294 = vmatprep.subr.bf16.mxu0 %v2062
      %2295 = vmatpush1.bf16.msra.mxu0 %v2061
      %2296 = vmatprep.subr.bf16.mxu0 %v2066
      %2297 = vmatpush1.bf16.msra.mxu0 %v2065
      %2298 = vmatprep.subr.bf16.mxu0 %v2070
      %2299 = vmatpush1.bf16.msra.mxu0 %v2069
      %2300 = vmatprep.subr.bf16.mxu0 %v2074
      %2301 = vmatpush1.bf16.msra.mxu0 %v2073
      %2302 = vmatprep.subr.bf16.mxu0 %v2078
      %2303 = vmatpush1.bf16.msra.mxu0 %v2077
      %2304 = vmatprep.subr.bf16.mxu0 %v2082
      %2305 = vmatpush1.bf16.msra.mxu0 %v2081
      %2306 = vmatprep.subr.bf16.mxu0 %v2086
      %2307 = vmatpush1.bf16.msra.mxu0 %v2085
      %2308 = vmatprep.subr.bf16.mxu0 %v2090
      %2309 = vmatpush1.bf16.msra.mxu0 %v2089
      %2310 = vmatprep.subr.bf16.mxu0 %v2094
      %2311 = vmatpush1.bf16.msra.mxu0 %v2093
      %2312 = vmatprep.subr.bf16.mxu0 %v2098
      %2313 = vmatpush1.bf16.msra.mxu0 %v2097
      %2314 = vmatprep.subr.bf16.mxu0 %v2102
      %2315 = vmatpush1.bf16.msra.mxu0 %v2101
      %2316 = vmatprep.subr.bf16.mxu0 %v2106
      %2317 = vmatpush1.bf16.msra.mxu0 %v2105
      %2318 = vmatprep.subr.bf16.mxu0 %v2110
      %2319 = vmatpush1.bf16.msra.mxu0 %v2109
      %2320 = vmatprep.mubr.bf16.mxu0 %v1776
      %2321 = vmatmul.mubr.bf16.gmra.mrb[0].mxu0 %v1775
      %v2322 = vpop.f32.mrb[0].mxu0
      %v2323 = vadd.f32 0.0, %v2322
      %v2324 = vpop.f32.mrb[0].mxu0
      %v2325 = vadd.f32 0.0, %v2324
      %v2326 = vpop.f32.mrb[0].mxu0
      %v2327 = vadd.f32 0.0, %v2326
      %v2328 = vpop.f32.mrb[0].mxu0
      %v2329 = vadd.f32 0.0, %v2328
      %2330 = vmatprep.mubr.bf16.mxu0 %v1778
      %2331 = vmatmul.mubr.bf16.gmra.mrb[0].mxu0 %v1777
      %v2332 = vpop.f32.mrb[0].mxu0
      %v2333 = vadd.f32 0.0, %v2332
      %v2334 = vpop.f32.mrb[0].mxu0
      %v2335 = vadd.f32 0.0, %v2334
      %v2336 = vpop.f32.mrb[0].mxu0
      %v2337 = vadd.f32 0.0, %v2336
      %v2338 = vpop.f32.mrb[0].mxu0
      %v2339 = vadd.f32 0.0, %v2338
      %2340 = vmatprep.mubr.bf16.mxu0 %v1780
      %2341 = vmatmul.mubr.bf16.gmra.mrb[0].mxu0 %v1779
      %v2342 = vpop.f32.mrb[0].mxu0
      %v2343 = vadd.f32 0.0, %v2342
      %v2344 = vpop.f32.mrb[0].mxu0
      %v2345 = vadd.f32 0.0, %v2344
      %v2346 = vpop.f32.mrb[0].mxu0
      %v2347 = vadd.f32 0.0, %v2346
      %v2348 = vpop.f32.mrb[0].mxu0
      %v2349 = vadd.f32 0.0, %v2348
      %2350 = vmatprep.mubr.bf16.mxu0 %v1782
      %2351 = vmatmul.mubr.bf16.gmra.mrb[0].mxu0 %v1781
      %v2352 = vpop.f32.mrb[0].mxu0
      %v2353 = vadd.f32 0.0, %v2352
      %v2354 = vpop.f32.mrb[0].mxu0
      %v2355 = vadd.f32 0.0, %v2354
      %v2356 = vpop.f32.mrb[0].mxu0
      %v2357 = vadd.f32 0.0, %v2356
      %v2358 = vpop.f32.mrb[0].mxu0
      %v2359 = vadd.f32 0.0, %v2358
      %2360 = vmatprep.mubr.bf16.mxu0 %v1784
      %2361 = vmatmul.mubr.bf16.gmra.mrb[0].mxu0 %v1783
      %v2362 = vpop.f32.mrb[0].mxu0
      %v2363 = vadd.f32 0.0, %v2362
      %v2364 = vpop.f32.mrb[0].mxu0
      %v2365 = vadd.f32 0.0, %v2364
      %v2366 = vpop.f32.mrb[0].mxu0
      %v2367 = vadd.f32 0.0, %v2366
      %v2368 = vpop.f32.mrb[0].mxu0
      %v2369 = vadd.f32 0.0, %v2368
      %2370 = vmatprep.mubr.bf16.mxu0 %v1786
      %2371 = vmatmul.mubr.bf16.gmra.mrb[0].mxu0 %v1785
      %v2372 = vpop.f32.mrb[0].mxu0
      %v2373 = vadd.f32 0.0, %v2372
      %v2374 = vpop.f32.mrb[0].mxu0
      %v2375 = vadd.f32 0.0, %v2374
      %v2376 = vpop.f32.mrb[0].mxu0
      %v2377 = vadd.f32 0.0, %v2376
      %v2378 = vpop.f32.mrb[0].mxu0
      %v2379 = vadd.f32 0.0, %v2378
      %2380 = vmatprep.mubr.bf16.mxu0 %v1788
      %2381 = vmatmul.mubr.bf16.gmra.mrb[0].mxu0 %v1787
      %v2382 = vpop.f32.mrb[0].mxu0
      %v2383 = vadd.f32 0.0, %v2382
      %v2384 = vpop.f32.mrb[0].mxu0
      %v2385 = vadd.f32 0.0, %v2384
      %v2386 = vpop.f32.mrb[0].mxu0
      %v2387 = vadd.f32 0.0, %v2386
      %v2388 = vpop.f32.mrb[0].mxu0
      %v2389 = vadd.f32 0.0, %v2388
      %2390 = vmatprep.mubr.bf16.mxu0 %v1790
      %2391 = vmatmul.mubr.bf16.gmra.mrb[0].mxu0 %v1789
      %v2392 = vpop.f32.mrb[0].mxu0
      %v2393 = vadd.f32 0.0, %v2392
      %v2394 = vpop.f32.mrb[0].mxu0
      %v2395 = vadd.f32 0.0, %v2394
      %v2396 = vpop.f32.mrb[0].mxu0
      %v2397 = vadd.f32 0.0, %v2396
      %v2398 = vpop.f32.mrb[0].mxu0
      %v2399 = vadd.f32 0.0, %v2398
      %2400 = vdwg.mxu0
      %v2405 = vcombine.low %v1728, %v1730
      %v2406 = vcombine.high %v1728, %v1730
      %v2407 = vcombine.low %v1769, %v1771
      %v2408 = vcombine.high %v1769, %v1771
      %v2410 = vunpack.c.l.s4 1966171168
      %v2411 = vunpack.c.0.s8 %v2410
      %v2412 = vlaneseq
      %v2413 = vshrl.u32 %v2412, 7
      %v2414 = vsub.s32 %v2411, %v2413
      %v2415 = vrot.slane %v2405, %v2414
      %v2417 = vunpack.c.l.s4 1966171168
      %v2418 = vunpack.c.0.s8 %v2417
      %v2419 = vlaneseq
      %v2420 = vshrl.u32 %v2419, 7
      %v2421 = vsub.s32 %v2418, %v2420
      %v2422 = vrot.slane %v2406, %v2421
      %v2424 = vunpack.c.l.s4 1966171168
      %v2425 = vunpack.c.0.s8 %v2424
      %v2426 = vlaneseq
      %v2427 = vshrl.u32 %v2426, 7
      %v2428 = vsub.s32 %v2425, %v2427
      %v2429 = vrot.slane %v2407, %v2428
      %v2431 = vunpack.c.l.s4 1966171168
      %v2432 = vunpack.c.0.s8 %v2431
      %v2433 = vlaneseq
      %v2434 = vshrl.u32 %v2433, 7
      %v2435 = vsub.s32 %v2432, %v2434
      %v2436 = vrot.slane %v2408, %v2435
      %v2437 = vcombine.low %v2415, %v2429
      %v2438 = vcombine.high %v2415, %v2429
      %v2439 = vcombine.low %v2422, %v2436
      %v2440 = vcombine.high %v2422, %v2436
      %v2442 = vunpack.c.l.s4 1966171168
      %v2443 = vunpack.c.0.s8 %v2442
      %v2444 = vlaneseq
      %v2445 = vshrl.u32 %v2444, 7
      %v2446 = vsub.s32 %v2443, %v2445
      %v2447 = vrot.slane %v2437, %v2446
      %v2449 = vunpack.c.l.s4 1966171168
      %v2450 = vunpack.c.0.s8 %v2449
      %v2451 = vlaneseq
      %v2452 = vshrl.u32 %v2451, 7
      %v2453 = vsub.s32 %v2450, %v2452
      %v2454 = vrot.slane %v2439, %v2453
      %v2456 = vunpack.c.l.s4 1966171168
      %v2457 = vunpack.c.0.s8 %v2456
      %v2458 = vlaneseq
      %v2459 = vshrl.u32 %v2458, 7
      %v2460 = vsub.s32 %v2457, %v2459
      %v2461 = vrot.slane %v2438, %v2460
      %v2463 = vunpack.c.l.s4 1966171168
      %v2464 = vunpack.c.0.s8 %v2463
      %v2465 = vlaneseq
      %v2466 = vshrl.u32 %v2465, 7
      %v2467 = vsub.s32 %v2464, %v2466
      %v2468 = vrot.slane %v2440, %v2467
      %v2469 = vcombine.high %v2447, %v2447
      %v2470 = vcombine.high %v2454, %v2454
      %v2471 = vcombine.high %v2461, %v2461
      %v2472 = vcombine.high %v2468, %v2468
      %v2473 = vlaneseq
      %v2474 = vshrl.u32 %v2473, 7
      %v2475 = vsub.s32 0, %v2474
      %v2476 = vrot.slane %v2447, %v2475
      %v2477 = vlaneseq
      %v2478 = vshrl.u32 %v2477, 7
      %v2479 = vsub.s32 1, %v2478
      %v2480 = vrot.slane %v2447, %v2479
      %v2481 = vlaneseq
      %v2482 = vshrl.u32 %v2481, 7
      %v2483 = vsub.s32 2, %v2482
      %v2484 = vrot.slane %v2447, %v2483
      %v2485 = vlaneseq
      %v2486 = vshrl.u32 %v2485, 7
      %v2487 = vsub.s32 3, %v2486
      %v2488 = vrot.slane %v2447, %v2487
      %v2489 = vlaneseq
      %v2490 = vshrl.u32 %v2489, 7
      %v2491 = vsub.s32 0, %v2490
      %v2492 = vrot.slane %v2461, %v2491
      %v2493 = vlaneseq
      %v2494 = vshrl.u32 %v2493, 7
      %v2495 = vsub.s32 1, %v2494
      %v2496 = vrot.slane %v2461, %v2495
      %v2497 = vlaneseq
      %v2498 = vshrl.u32 %v2497, 7
      %v2499 = vsub.s32 2, %v2498
      %v2500 = vrot.slane %v2461, %v2499
      %v2501 = vlaneseq
      %v2502 = vshrl.u32 %v2501, 7
      %v2503 = vsub.s32 3, %v2502
      %v2504 = vrot.slane %v2461, %v2503
      %v2505 = vlaneseq
      %v2506 = vshrl.u32 %v2505, 7
      %v2507 = vsub.s32 0, %v2506
      %v2508 = vrot.slane %v2469, %v2507
      %v2509 = vlaneseq
      %v2510 = vshrl.u32 %v2509, 7
      %v2511 = vsub.s32 1, %v2510
      %v2512 = vrot.slane %v2469, %v2511
      %v2513 = vlaneseq
      %v2514 = vshrl.u32 %v2513, 7
      %v2515 = vsub.s32 2, %v2514
      %v2516 = vrot.slane %v2469, %v2515
      %v2517 = vlaneseq
      %v2518 = vshrl.u32 %v2517, 7
      %v2519 = vsub.s32 3, %v2518
      %v2520 = vrot.slane %v2469, %v2519
      %v2521 = vlaneseq
      %v2522 = vshrl.u32 %v2521, 7
      %v2523 = vsub.s32 0, %v2522
      %v2524 = vrot.slane %v2471, %v2523
      %v2525 = vlaneseq
      %v2526 = vshrl.u32 %v2525, 7
      %v2527 = vsub.s32 1, %v2526
      %v2528 = vrot.slane %v2471, %v2527
      %v2529 = vlaneseq
      %v2530 = vshrl.u32 %v2529, 7
      %v2531 = vsub.s32 2, %v2530
      %v2532 = vrot.slane %v2471, %v2531
      %v2533 = vlaneseq
      %v2534 = vshrl.u32 %v2533, 7
      %v2535 = vsub.s32 3, %v2534
      %v2536 = vrot.slane %v2471, %v2535
      %v2537 = vlaneseq
      %v2538 = vshrl.u32 %v2537, 7
      %v2539 = vsub.s32 0, %v2538
      %v2540 = vrot.slane %v2454, %v2539
      %v2541 = vlaneseq
      %v2542 = vshrl.u32 %v2541, 7
      %v2543 = vsub.s32 1, %v2542
      %v2544 = vrot.slane %v2454, %v2543
      %v2545 = vlaneseq
      %v2546 = vshrl.u32 %v2545, 7
      %v2547 = vsub.s32 2, %v2546
      %v2548 = vrot.slane %v2454, %v2547
      %v2549 = vlaneseq
      %v2550 = vshrl.u32 %v2549, 7
      %v2551 = vsub.s32 3, %v2550
      %v2552 = vrot.slane %v2454, %v2551
      %v2553 = vlaneseq
      %v2554 = vshrl.u32 %v2553, 7
      %v2555 = vsub.s32 0, %v2554
      %v2556 = vrot.slane %v2468, %v2555
      %v2557 = vlaneseq
      %v2558 = vshrl.u32 %v2557, 7
      %v2559 = vsub.s32 1, %v2558
      %v2560 = vrot.slane %v2468, %v2559
      %v2561 = vlaneseq
      %v2562 = vshrl.u32 %v2561, 7
      %v2563 = vsub.s32 2, %v2562
      %v2564 = vrot.slane %v2468, %v2563
      %v2565 = vlaneseq
      %v2566 = vshrl.u32 %v2565, 7
      %v2567 = vsub.s32 3, %v2566
      %v2568 = vrot.slane %v2468, %v2567
      %v2569 = vlaneseq
      %v2570 = vshrl.u32 %v2569, 7
      %v2571 = vsub.s32 0, %v2570
      %v2572 = vrot.slane %v2470, %v2571
      %v2573 = vlaneseq
      %v2574 = vshrl.u32 %v2573, 7
      %v2575 = vsub.s32 1, %v2574
      %v2576 = vrot.slane %v2470, %v2575
      %v2577 = vlaneseq
      %v2578 = vshrl.u32 %v2577, 7
      %v2579 = vsub.s32 2, %v2578
      %v2580 = vrot.slane %v2470, %v2579
      %v2581 = vlaneseq
      %v2582 = vshrl.u32 %v2581, 7
      %v2583 = vsub.s32 3, %v2582
      %v2584 = vrot.slane %v2470, %v2583
      %v2585 = vlaneseq
      %v2586 = vshrl.u32 %v2585, 7
      %v2587 = vsub.s32 0, %v2586
      %v2588 = vrot.slane %v2472, %v2587
      %v2589 = vlaneseq
      %v2590 = vshrl.u32 %v2589, 7
      %v2591 = vsub.s32 1, %v2590
      %v2592 = vrot.slane %v2472, %v2591
      %v2593 = vlaneseq
      %v2594 = vshrl.u32 %v2593, 7
      %v2595 = vsub.s32 2, %v2594
      %v2596 = vrot.slane %v2472, %v2595
      %v2597 = vlaneseq
      %v2598 = vshrl.u32 %v2597, 7
      %v2599 = vsub.s32 3, %v2598
      %v2600 = vrot.slane %v2472, %v2599
      %v2633 = vadd.f32 %v2210, %v2476
      %v2634 = vadd.f32 %v2212, %v2480
      %v2635 = vadd.f32 %v2323, %v2484
      %v2636 = vadd.f32 %v2325, %v2488
      %v2637 = vadd.f32 %v2214, %v2476
      %v2638 = vadd.f32 %v2216, %v2480
      %v2639 = vadd.f32 %v2327, %v2484
      %v2640 = vadd.f32 %v2329, %v2488
      %v2641 = vadd.f32 %v2220, %v2492
      %v2642 = vadd.f32 %v2222, %v2496
      %v2643 = vadd.f32 %v2333, %v2500
      %v2644 = vadd.f32 %v2335, %v2504
      %v2645 = vadd.f32 %v2224, %v2492
      %v2646 = vadd.f32 %v2226, %v2496
      %v2647 = vadd.f32 %v2337, %v2500
      %v2648 = vadd.f32 %v2339, %v2504
      %v2649 = vadd.f32 %v2230, %v2508
      %v2650 = vadd.f32 %v2232, %v2512
      %v2651 = vadd.f32 %v2343, %v2516
      %v2652 = vadd.f32 %v2345, %v2520
      %v2653 = vadd.f32 %v2234, %v2508
      %v2654 = vadd.f32 %v2236, %v2512
      %v2655 = vadd.f32 %v2347, %v2516
      %v2656 = vadd.f32 %v2349, %v2520
      %v2657 = vadd.f32 %v2240, %v2524
      %v2658 = vadd.f32 %v2242, %v2528
      %v2659 = vadd.f32 %v2353, %v2532
      %v2660 = vadd.f32 %v2355, %v2536
      %v2661 = vadd.f32 %v2244, %v2524
      %v2662 = vadd.f32 %v2246, %v2528
      %v2663 = vadd.f32 %v2357, %v2532
      %v2664 = vadd.f32 %v2359, %v2536
      %v2665 = vadd.f32 %v2250, %v2540
      %v2666 = vadd.f32 %v2252, %v2544
      %v2667 = vadd.f32 %v2363, %v2548
      %v2668 = vadd.f32 %v2365, %v2552
      %v2669 = vadd.f32 %v2254, %v2540
      %v2670 = vadd.f32 %v2256, %v2544
      %v2671 = vadd.f32 %v2367, %v2548
      %v2672 = vadd.f32 %v2369, %v2552
      %v2673 = vadd.f32 %v2260, %v2556
      %v2674 = vadd.f32 %v2262, %v2560
      %v2675 = vadd.f32 %v2373, %v2564
      %v2676 = vadd.f32 %v2375, %v2568
      %v2677 = vadd.f32 %v2264, %v2556
      %v2678 = vadd.f32 %v2266, %v2560
      %v2679 = vadd.f32 %v2377, %v2564
      %v2680 = vadd.f32 %v2379, %v2568
      %v2681 = vadd.f32 %v2270, %v2572
      %v2682 = vadd.f32 %v2272, %v2576
      %v2683 = vadd.f32 %v2383, %v2580
      %v2684 = vadd.f32 %v2385, %v2584
      %v2685 = vadd.f32 %v2274, %v2572
      %v2686 = vadd.f32 %v2276, %v2576
      %v2687 = vadd.f32 %v2387, %v2580
      %v2688 = vadd.f32 %v2389, %v2584
      %v2689 = vadd.f32 %v2280, %v2588
      %v2690 = vadd.f32 %v2282, %v2592
      %v2691 = vadd.f32 %v2393, %v2596
      %v2692 = vadd.f32 %v2395, %v2600
      %v2693 = vadd.f32 %v2284, %v2588
      %v2694 = vadd.f32 %v2286, %v2592
      %v2695 = vadd.f32 %v2397, %v2596
      %v2696 = vadd.f32 %v2399, %v2600
      %v2697 = vld [vmem:[%s10] sm:$0xf]
      %v2699 = vlaneseq
      %v2700 = vshrl.u32 %v2699, 7
      %v2701 = vsub.s32 0, %v2700
      %v2702 = vrot.slane %v2697, %v2701
      %v2703 = vlaneseq
      %v2704 = vshrl.u32 %v2703, 7
      %v2705 = vsub.s32 1, %v2704
      %v2706 = vrot.slane %v2697, %v2705
      %v2707 = vlaneseq
      %v2708 = vshrl.u32 %v2707, 7
      %v2709 = vsub.s32 2, %v2708
      %v2710 = vrot.slane %v2697, %v2709
      %v2711 = vlaneseq
      %v2712 = vshrl.u32 %v2711, 7
      %v2713 = vsub.s32 3, %v2712
      %v2714 = vrot.slane %v2697, %v2713
      %v2719 = vadd.f32 %v2633, %v2702
      %v2720 = vadd.f32 %v2634, %v2706
      %v2721 = vadd.f32 %v2635, %v2710
      %v2722 = vadd.f32 %v2636, %v2714
      %v2723 = vadd.f32 %v2637, %v2702
      %v2724 = vadd.f32 %v2638, %v2706
      %v2725 = vadd.f32 %v2639, %v2710
      %v2726 = vadd.f32 %v2640, %v2714
      %v2727 = vadd.f32 %v2641, %v2702
      %v2728 = vadd.f32 %v2642, %v2706
      %v2729 = vadd.f32 %v2643, %v2710
      %v2730 = vadd.f32 %v2644, %v2714
      %v2731 = vadd.f32 %v2645, %v2702
      %v2732 = vadd.f32 %v2646, %v2706
      %v2733 = vadd.f32 %v2647, %v2710
      %v2734 = vadd.f32 %v2648, %v2714
      %v2735 = vadd.f32 %v2649, %v2702
      %v2736 = vadd.f32 %v2650, %v2706
      %v2737 = vadd.f32 %v2651, %v2710
      %v2738 = vadd.f32 %v2652, %v2714
      %v2739 = vadd.f32 %v2653, %v2702
      %v2740 = vadd.f32 %v2654, %v2706
      %v2741 = vadd.f32 %v2655, %v2710
      %v2742 = vadd.f32 %v2656, %v2714
      %v2743 = vadd.f32 %v2657, %v2702
      %v2744 = vadd.f32 %v2658, %v2706
      %v2745 = vadd.f32 %v2659, %v2710
      %v2746 = vadd.f32 %v2660, %v2714
      %v2747 = vadd.f32 %v2661, %v2702
      %v2748 = vadd.f32 %v2662, %v2706
      %v2749 = vadd.f32 %v2663, %v2710
      %v2750 = vadd.f32 %v2664, %v2714
      %v2751 = vadd.f32 %v2665, %v2702
      %v2752 = vadd.f32 %v2666, %v2706
      %v2753 = vadd.f32 %v2667, %v2710
      %v2754 = vadd.f32 %v2668, %v2714
      %v2755 = vadd.f32 %v2669, %v2702
      %v2756 = vadd.f32 %v2670, %v2706
      %v2757 = vadd.f32 %v2671, %v2710
      %v2758 = vadd.f32 %v2672, %v2714
      %v2759 = vadd.f32 %v2673, %v2702
      %v2760 = vadd.f32 %v2674, %v2706
      %v2761 = vadd.f32 %v2675, %v2710
      %v2762 = vadd.f32 %v2676, %v2714
      %v2763 = vadd.f32 %v2677, %v2702
      %v2764 = vadd.f32 %v2678, %v2706
      %v2765 = vadd.f32 %v2679, %v2710
      %v2766 = vadd.f32 %v2680, %v2714
      %v2767 = vadd.f32 %v2681, %v2702
      %v2768 = vadd.f32 %v2682, %v2706
      %v2769 = vadd.f32 %v2683, %v2710
      %v2770 = vadd.f32 %v2684, %v2714
      %v2771 = vadd.f32 %v2685, %v2702
      %v2772 = vadd.f32 %v2686, %v2706
      %v2773 = vadd.f32 %v2687, %v2710
      %v2774 = vadd.f32 %v2688, %v2714
      %v2775 = vadd.f32 %v2689, %v2702
      %v2776 = vadd.f32 %v2690, %v2706
      %v2777 = vadd.f32 %v2691, %v2710
      %v2778 = vadd.f32 %v2692, %v2714
      %v2779 = vadd.f32 %v2693, %v2702
      %v2780 = vadd.f32 %v2694, %v2706
      %v2781 = vadd.f32 %v2695, %v2710
      %v2782 = vadd.f32 %v2696, %v2714
      %v2783 = vld [vmem:[%s11] sm:$0xf]
      %v2785 = vlaneseq
      %v2786 = vshrl.u32 %v2785, 7
      %v2787 = vsub.s32 0, %v2786
      %v2788 = vrot.slane %v2783, %v2787
      %v2789 = vlaneseq
      %v2790 = vshrl.u32 %v2789, 7
      %v2791 = vsub.s32 1, %v2790
      %v2792 = vrot.slane %v2783, %v2791
      %v2793 = vlaneseq
      %v2794 = vshrl.u32 %v2793, 7
      %v2795 = vsub.s32 2, %v2794
      %v2796 = vrot.slane %v2783, %v2795
      %v2797 = vlaneseq
      %v2798 = vshrl.u32 %v2797, 7
      %v2799 = vsub.s32 3, %v2798
      %v2800 = vrot.slane %v2783, %v2799
      %v2805 = vmul.f32 %v2719, %v2788
      %v2806 = vmul.f32 %v2720, %v2792
      %v2807 = vmul.f32 %v2721, %v2796
      %v2808 = vmul.f32 %v2722, %v2800
      %v2809 = vmul.f32 %v2723, %v2788
      %v2810 = vmul.f32 %v2724, %v2792
      %v2811 = vmul.f32 %v2725, %v2796
      %v2812 = vmul.f32 %v2726, %v2800
      %v2813 = vmul.f32 %v2727, %v2788
      %v2814 = vmul.f32 %v2728, %v2792
      %v2815 = vmul.f32 %v2729, %v2796
      %v2816 = vmul.f32 %v2730, %v2800
      %v2817 = vmul.f32 %v2731, %v2788
      %v2818 = vmul.f32 %v2732, %v2792
      %v2819 = vmul.f32 %v2733, %v2796
      %v2820 = vmul.f32 %v2734, %v2800
      %v2821 = vmul.f32 %v2735, %v2788
      %v2822 = vmul.f32 %v2736, %v2792
      %v2823 = vmul.f32 %v2737, %v2796
      %v2824 = vmul.f32 %v2738, %v2800
      %v2825 = vmul.f32 %v2739, %v2788
      %v2826 = vmul.f32 %v2740, %v2792
      %v2827 = vmul.f32 %v2741, %v2796
      %v2828 = vmul.f32 %v2742, %v2800
      %v2829 = vmul.f32 %v2743, %v2788
      %v2830 = vmul.f32 %v2744, %v2792
      %v2831 = vmul.f32 %v2745, %v2796
      %v2832 = vmul.f32 %v2746, %v2800
      %v2833 = vmul.f32 %v2747, %v2788
      %v2834 = vmul.f32 %v2748, %v2792
      %v2835 = vmul.f32 %v2749, %v2796
      %v2836 = vmul.f32 %v2750, %v2800
      %v2837 = vmul.f32 %v2751, %v2788
      %v2838 = vmul.f32 %v2752, %v2792
      %v2839 = vmul.f32 %v2753, %v2796
      %v2840 = vmul.f32 %v2754, %v2800
      %v2841 = vmul.f32 %v2755, %v2788
      %v2842 = vmul.f32 %v2756, %v2792
      %v2843 = vmul.f32 %v2757, %v2796
      %v2844 = vmul.f32 %v2758, %v2800
      %v2845 = vmul.f32 %v2759, %v2788
      %v2846 = vmul.f32 %v2760, %v2792
      %v2847 = vmul.f32 %v2761, %v2796
      %v2848 = vmul.f32 %v2762, %v2800
      %v2849 = vmul.f32 %v2763, %v2788
      %v2850 = vmul.f32 %v2764, %v2792
      %v2851 = vmul.f32 %v2765, %v2796
      %v2852 = vmul.f32 %v2766, %v2800
      %v2853 = vmul.f32 %v2767, %v2788
      %v2854 = vmul.f32 %v2768, %v2792
      %v2855 = vmul.f32 %v2769, %v2796
      %v2856 = vmul.f32 %v2770, %v2800
      %v2857 = vmul.f32 %v2771, %v2788
      %v2858 = vmul.f32 %v2772, %v2792
      %v2859 = vmul.f32 %v2773, %v2796
      %v2860 = vmul.f32 %v2774, %v2800
      %v2861 = vmul.f32 %v2775, %v2788
      %v2862 = vmul.f32 %v2776, %v2792
      %v2863 = vmul.f32 %v2777, %v2796
      %v2864 = vmul.f32 %v2778, %v2800
      %v2865 = vmul.f32 %v2779, %v2788
      %v2866 = vmul.f32 %v2780, %v2792
      %v2867 = vmul.f32 %v2781, %v2796
      %v2868 = vmul.f32 %v2782, %v2800
      %v2869 = vld [vmem:[%s12] sm:$0xf]
      %v2871 = vlaneseq
      %v2872 = vshrl.u32 %v2871, 7
      %v2873 = vsub.s32 0, %v2872
      %v2874 = vrot.slane %v2869, %v2873
      %v2875 = vlaneseq
      %v2876 = vshrl.u32 %v2875, 7
      %v2877 = vsub.s32 1, %v2876
      %v2878 = vrot.slane %v2869, %v2877
      %v2879 = vlaneseq
      %v2880 = vshrl.u32 %v2879, 7
      %v2881 = vsub.s32 2, %v2880
      %v2882 = vrot.slane %v2869, %v2881
      %v2883 = vlaneseq
      %v2884 = vshrl.u32 %v2883, 7
      %v2885 = vsub.s32 3, %v2884
      %v2886 = vrot.slane %v2869, %v2885
      %v2891 = vadd.f32 %v2805, %v2874
      %v2892 = vadd.f32 %v2806, %v2878
      %v2893 = vadd.f32 %v2807, %v2882
      %v2894 = vadd.f32 %v2808, %v2886
      %v2895 = vadd.f32 %v2809, %v2874
      %v2896 = vadd.f32 %v2810, %v2878
      %v2897 = vadd.f32 %v2811, %v2882
      %v2898 = vadd.f32 %v2812, %v2886
      %v2899 = vadd.f32 %v2813, %v2874
      %v2900 = vadd.f32 %v2814, %v2878
      %v2901 = vadd.f32 %v2815, %v2882
      %v2902 = vadd.f32 %v2816, %v2886
      %v2903 = vadd.f32 %v2817, %v2874
      %v2904 = vadd.f32 %v2818, %v2878
      %v2905 = vadd.f32 %v2819, %v2882
      %v2906 = vadd.f32 %v2820, %v2886
      %v2907 = vadd.f32 %v2821, %v2874
      %v2908 = vadd.f32 %v2822, %v2878
      %v2909 = vadd.f32 %v2823, %v2882
      %v2910 = vadd.f32 %v2824, %v2886
      %v2911 = vadd.f32 %v2825, %v2874
      %v2912 = vadd.f32 %v2826, %v2878
      %v2913 = vadd.f32 %v2827, %v2882
      %v2914 = vadd.f32 %v2828, %v2886
      %v2915 = vadd.f32 %v2829, %v2874
      %v2916 = vadd.f32 %v2830, %v2878
      %v2917 = vadd.f32 %v2831, %v2882
      %v2918 = vadd.f32 %v2832, %v2886
      %v2919 = vadd.f32 %v2833, %v2874
      %v2920 = vadd.f32 %v2834, %v2878
      %v2921 = vadd.f32 %v2835, %v2882
      %v2922 = vadd.f32 %v2836, %v2886
      %v2923 = vadd.f32 %v2837, %v2874
      %v2924 = vadd.f32 %v2838, %v2878
      %v2925 = vadd.f32 %v2839, %v2882
      %v2926 = vadd.f32 %v2840, %v2886
      %v2927 = vadd.f32 %v2841, %v2874
      %v2928 = vadd.f32 %v2842, %v2878
      %v2929 = vadd.f32 %v2843, %v2882
      %v2930 = vadd.f32 %v2844, %v2886
      %v2931 = vadd.f32 %v2845, %v2874
      %v2932 = vadd.f32 %v2846, %v2878
      %v2933 = vadd.f32 %v2847, %v2882
      %v2934 = vadd.f32 %v2848, %v2886
      %v2935 = vadd.f32 %v2849, %v2874
      %v2936 = vadd.f32 %v2850, %v2878
      %v2937 = vadd.f32 %v2851, %v2882
      %v2938 = vadd.f32 %v2852, %v2886
      %v2939 = vadd.f32 %v2853, %v2874
      %v2940 = vadd.f32 %v2854, %v2878
      %v2941 = vadd.f32 %v2855, %v2882
      %v2942 = vadd.f32 %v2856, %v2886
      %v2943 = vadd.f32 %v2857, %v2874
      %v2944 = vadd.f32 %v2858, %v2878
      %v2945 = vadd.f32 %v2859, %v2882
      %v2946 = vadd.f32 %v2860, %v2886
      %v2947 = vadd.f32 %v2861, %v2874
      %v2948 = vadd.f32 %v2862, %v2878
      %v2949 = vadd.f32 %v2863, %v2882
      %v2950 = vadd.f32 %v2864, %v2886
      %v2951 = vadd.f32 %v2865, %v2874
      %v2952 = vadd.f32 %v2866, %v2878
      %v2953 = vadd.f32 %v2867, %v2882
      %v2954 = vadd.f32 %v2868, %v2886
      %v2955 = vmax.f32 %v2891, 0.0
      %v2956 = vmax.f32 %v2892, 0.0
      %v2957 = vmax.f32 %v2893, 0.0
      %v2958 = vmax.f32 %v2894, 0.0
      %v2959 = vmax.f32 %v2895, 0.0
      %v2960 = vmax.f32 %v2896, 0.0
      %v2961 = vmax.f32 %v2897, 0.0
      %v2962 = vmax.f32 %v2898, 0.0
      %v2963 = vmax.f32 %v2899, 0.0
      %v2964 = vmax.f32 %v2900, 0.0
      %v2965 = vmax.f32 %v2901, 0.0
      %v2966 = vmax.f32 %v2902, 0.0
      %v2967 = vmax.f32 %v2903, 0.0
      %v2968 = vmax.f32 %v2904, 0.0
      %v2969 = vmax.f32 %v2905, 0.0
      %v2970 = vmax.f32 %v2906, 0.0
      %v2971 = vmax.f32 %v2907, 0.0
      %v2972 = vmax.f32 %v2908, 0.0
      %v2973 = vmax.f32 %v2909, 0.0
      %v2974 = vmax.f32 %v2910, 0.0
      %v2975 = vmax.f32 %v2911, 0.0
      %v2976 = vmax.f32 %v2912, 0.0
      %v2977 = vmax.f32 %v2913, 0.0
      %v2978 = vmax.f32 %v2914, 0.0
      %v2979 = vmax.f32 %v2915, 0.0
      %v2980 = vmax.f32 %v2916, 0.0
      %v2981 = vmax.f32 %v2917, 0.0
      %v2982 = vmax.f32 %v2918, 0.0
      %v2983 = vmax.f32 %v2919, 0.0
      %v2984 = vmax.f32 %v2920, 0.0
      %v2985 = vmax.f32 %v2921, 0.0
      %v2986 = vmax.f32 %v2922, 0.0
      %v2987 = vmax.f32 %v2923, 0.0
      %v2988 = vmax.f32 %v2924, 0.0
      %v2989 = vmax.f32 %v2925, 0.0
      %v2990 = vmax.f32 %v2926, 0.0
      %v2991 = vmax.f32 %v2927, 0.0
      %v2992 = vmax.f32 %v2928, 0.0
      %v2993 = vmax.f32 %v2929, 0.0
      %v2994 = vmax.f32 %v2930, 0.0
      %v2995 = vmax.f32 %v2931, 0.0
      %v2996 = vmax.f32 %v2932, 0.0
      %v2997 = vmax.f32 %v2933, 0.0
      %v2998 = vmax.f32 %v2934, 0.0
      %v2999 = vmax.f32 %v2935, 0.0
      %v3000 = vmax.f32 %v2936, 0.0
      %v3001 = vmax.f32 %v2937, 0.0
      %v3002 = vmax.f32 %v2938, 0.0
      %v3003 = vmax.f32 %v2939, 0.0
      %v3004 = vmax.f32 %v2940, 0.0
      %v3005 = vmax.f32 %v2941, 0.0
      %v3006 = vmax.f32 %v2942, 0.0
      %v3007 = vmax.f32 %v2943, 0.0
      %v3008 = vmax.f32 %v2944, 0.0
      %v3009 = vmax.f32 %v2945, 0.0
      %v3010 = vmax.f32 %v2946, 0.0
      %v3011 = vmax.f32 %v2947, 0.0
      %v3012 = vmax.f32 %v2948, 0.0
      %v3013 = vmax.f32 %v2949, 0.0
      %v3014 = vmax.f32 %v2950, 0.0
      %v3015 = vmax.f32 %v2951, 0.0
      %v3016 = vmax.f32 %v2952, 0.0
      %v3017 = vmax.f32 %v2953, 0.0
      %v3018 = vmax.f32 %v2954, 0.0
      %v3019 = vpack.c.bf16 %v2959, %v2955
      %v3020 = vpack.c.bf16 %v2960, %v2956
      %v3021 = vpack.c.bf16 %v2961, %v2957
      %v3022 = vpack.c.bf16 %v2962, %v2958
      %v3023 = vpack.c.bf16 %v2967, %v2963
      %v3024 = vpack.c.bf16 %v2968, %v2964
      %v3025 = vpack.c.bf16 %v2969, %v2965
      %v3026 = vpack.c.bf16 %v2970, %v2966
      %v3027 = vpack.c.bf16 %v2975, %v2971
      %v3028 = vpack.c.bf16 %v2976, %v2972
      %v3029 = vpack.c.bf16 %v2977, %v2973
      %v3030 = vpack.c.bf16 %v2978, %v2974
      %v3031 = vpack.c.bf16 %v2983, %v2979
      %v3032 = vpack.c.bf16 %v2984, %v2980
      %v3033 = vpack.c.bf16 %v2985, %v2981
      %v3034 = vpack.c.bf16 %v2986, %v2982
      %v3035 = vpack.c.bf16 %v2991, %v2987
      %v3036 = vpack.c.bf16 %v2992, %v2988
      %v3037 = vpack.c.bf16 %v2993, %v2989
      %v3038 = vpack.c.bf16 %v2994, %v2990
      %v3039 = vpack.c.bf16 %v2999, %v2995
      %v3040 = vpack.c.bf16 %v3000, %v2996
      %v3041 = vpack.c.bf16 %v3001, %v2997
      %v3042 = vpack.c.bf16 %v3002, %v2998
      %v3043 = vpack.c.bf16 %v3007, %v3003
      %v3044 = vpack.c.bf16 %v3008, %v3004
      %v3045 = vpack.c.bf16 %v3009, %v3005
      %v3046 = vpack.c.bf16 %v3010, %v3006
      %v3047 = vpack.c.bf16 %v3015, %v3011
      %v3048 = vpack.c.bf16 %v3016, %v3012
      %v3049 = vpack.c.bf16 %v3017, %v3013
      %v3050 = vpack.c.bf16 %v3018, %v3014
      %v3051 = vld [vmem:[%s13] sm:$0xff]
      %v3052 = vld [vmem:[%s13 + $0x8] sm:$0xff]
      %v3053 = vld [vmem:[%s13 + $0x10] sm:$0xff]
      %v3054 = vld [vmem:[%s13 + $0x18] sm:$0xff]
      %v3055 = vld [vmem:[%s13 + $0x20] sm:$0xff]
      %v3056 = vld [vmem:[%s13 + $0x28] sm:$0xff]
      %v3057 = vld [vmem:[%s13 + $0x30] sm:$0xff]
      %v3058 = vld [vmem:[%s13 + $0x38] sm:$0xff]
      %v3059 = vld [vmem:[%s13 + $0x40] sm:$0xff]
      %v3060 = vld [vmem:[%s13 + $0x48] sm:$0xff]
      %v3061 = vld [vmem:[%s13 + $0x50] sm:$0xff]
      %v3062 = vld [vmem:[%s13 + $0x58] sm:$0xff]
      %v3063 = vld [vmem:[%s13 + $0x60] sm:$0xff]
      %v3064 = vld [vmem:[%s13 + $0x68] sm:$0xff]
      %v3065 = vld [vmem:[%s13 + $0x70] sm:$0xff]
      %v3066 = vld [vmem:[%s13 + $0x78] sm:$0xff]
      %v3067 = vld [vmem:[%s13 + $0x80] sm:$0xff]
      %v3068 = vld [vmem:[%s13 + $0x88] sm:$0xff]
      %v3069 = vld [vmem:[%s13 + $0x90] sm:$0xff]
      %v3070 = vld [vmem:[%s13 + $0x98] sm:$0xff]
      %v3071 = vld [vmem:[%s13 + $0xa0] sm:$0xff]
      %v3072 = vld [vmem:[%s13 + $0xa8] sm:$0xff]
      %v3073 = vld [vmem:[%s13 + $0xb0] sm:$0xff]
      %v3074 = vld [vmem:[%s13 + $0xb8] sm:$0xff]
      %v3075 = vld [vmem:[%s13 + $0xc0] sm:$0xff]
      %v3076 = vld [vmem:[%s13 + $0xc8] sm:$0xff]
      %v3077 = vld [vmem:[%s13 + $0xd0] sm:$0xff]
      %v3078 = vld [vmem:[%s13 + $0xd8] sm:$0xff]
      %v3079 = vld [vmem:[%s13 + $0xe0] sm:$0xff]
      %v3080 = vld [vmem:[%s13 + $0xe8] sm:$0xff]
      %v3081 = vld [vmem:[%s13 + $0xf0] sm:$0xff]
      %v3082 = vld [vmem:[%s13 + $0xf8] sm:$0xff]
      %v3083 = vld [vmem:[%s13 + $0x100] sm:$0xff]
      %v3084 = vld [vmem:[%s13 + $0x108] sm:$0xff]
      %v3085 = vld [vmem:[%s13 + $0x110] sm:$0xff]
      %v3086 = vld [vmem:[%s13 + $0x118] sm:$0xff]
      %v3087 = vld [vmem:[%s13 + $0x120] sm:$0xff]
      %v3088 = vld [vmem:[%s13 + $0x128] sm:$0xff]
      %v3089 = vld [vmem:[%s13 + $0x130] sm:$0xff]
      %v3090 = vld [vmem:[%s13 + $0x138] sm:$0xff]
      %v3091 = vld [vmem:[%s13 + $0x140] sm:$0xff]
      %v3092 = vld [vmem:[%s13 + $0x148] sm:$0xff]
      %v3093 = vld [vmem:[%s13 + $0x150] sm:$0xff]
      %v3094 = vld [vmem:[%s13 + $0x158] sm:$0xff]
      %v3095 = vld [vmem:[%s13 + $0x160] sm:$0xff]
      %v3096 = vld [vmem:[%s13 + $0x168] sm:$0xff]
      %v3097 = vld [vmem:[%s13 + $0x170] sm:$0xff]
      %v3098 = vld [vmem:[%s13 + $0x178] sm:$0xff]
      %v3099 = vld [vmem:[%s13 + $0x180] sm:$0xff]
      %v3100 = vld [vmem:[%s13 + $0x188] sm:$0xff]
      %v3101 = vld [vmem:[%s13 + $0x190] sm:$0xff]
      %v3102 = vld [vmem:[%s13 + $0x198] sm:$0xff]
      %v3103 = vld [vmem:[%s13 + $0x1a0] sm:$0xff]
      %v3104 = vld [vmem:[%s13 + $0x1a8] sm:$0xff]
      %v3105 = vld [vmem:[%s13 + $0x1b0] sm:$0xff]
      %v3106 = vld [vmem:[%s13 + $0x1b8] sm:$0xff]
      %v3107 = vld [vmem:[%s13 + $0x1c0] sm:$0xff]
      %v3108 = vld [vmem:[%s13 + $0x1c8] sm:$0xff]
      %v3109 = vld [vmem:[%s13 + $0x1d0] sm:$0xff]
      %v3110 = vld [vmem:[%s13 + $0x1d8] sm:$0xff]
      %v3111 = vld [vmem:[%s13 + $0x1e0] sm:$0xff]
      %v3112 = vld [vmem:[%s13 + $0x1e8] sm:$0xff]
      %v3113 = vld [vmem:[%s13 + $0x1f0] sm:$0xff]
      %v3114 = vld [vmem:[%s13 + $0x1f8] sm:$0xff]
      %v3115 = vld [vmem:[%s13 + $0x200] sm:$0xff]
      %v3116 = vld [vmem:[%s13 + $0x208] sm:$0xff]
      %v3117 = vld [vmem:[%s13 + $0x210] sm:$0xff]
      %v3118 = vld [vmem:[%s13 + $0x218] sm:$0xff]
      %v3119 = vld [vmem:[%s13 + $0x220] sm:$0xff]
      %v3120 = vld [vmem:[%s13 + $0x228] sm:$0xff]
      %v3121 = vld [vmem:[%s13 + $0x230] sm:$0xff]
      %v3122 = vld [vmem:[%s13 + $0x238] sm:$0xff]
      %v3123 = vld [vmem:[%s13 + $0x240] sm:$0xff]
      %v3124 = vld [vmem:[%s13 + $0x248] sm:$0xff]
      %v3125 = vld [vmem:[%s13 + $0x250] sm:$0xff]
      %v3126 = vld [vmem:[%s13 + $0x258] sm:$0xff]
      %v3127 = vld [vmem:[%s13 + $0x260] sm:$0xff]
      %v3128 = vld [vmem:[%s13 + $0x268] sm:$0xff]
      %v3129 = vld [vmem:[%s13 + $0x270] sm:$0xff]
      %v3130 = vld [vmem:[%s13 + $0x278] sm:$0xff]
      %v3131 = vld [vmem:[%s13 + $0x280] sm:$0xff]
      %v3132 = vld [vmem:[%s13 + $0x288] sm:$0xff]
      %v3133 = vld [vmem:[%s13 + $0x290] sm:$0xff]
      %v3134 = vld [vmem:[%s13 + $0x298] sm:$0xff]
      %v3135 = vld [vmem:[%s13 + $0x2a0] sm:$0xff]
      %v3136 = vld [vmem:[%s13 + $0x2a8] sm:$0xff]
      %v3137 = vld [vmem:[%s13 + $0x2b0] sm:$0xff]
      %v3138 = vld [vmem:[%s13 + $0x2b8] sm:$0xff]
      %v3139 = vld [vmem:[%s13 + $0x2c0] sm:$0xff]
      %v3140 = vld [vmem:[%s13 + $0x2c8] sm:$0xff]
      %v3141 = vld [vmem:[%s13 + $0x2d0] sm:$0xff]
      %v3142 = vld [vmem:[%s13 + $0x2d8] sm:$0xff]
      %v3143 = vld [vmem:[%s13 + $0x2e0] sm:$0xff]
      %v3144 = vld [vmem:[%s13 + $0x2e8] sm:$0xff]
      %v3145 = vld [vmem:[%s13 + $0x2f0] sm:$0xff]
      %v3146 = vld [vmem:[%s13 + $0x2f8] sm:$0xff]
      %v3147 = vld [vmem:[%s13 + $0x300] sm:$0xff]
      %v3148 = vld [vmem:[%s13 + $0x308] sm:$0xff]
      %v3149 = vld [vmem:[%s13 + $0x310] sm:$0xff]
      %v3150 = vld [vmem:[%s13 + $0x318] sm:$0xff]
      %v3151 = vld [vmem:[%s13 + $0x320] sm:$0xff]
      %v3152 = vld [vmem:[%s13 + $0x328] sm:$0xff]
      %v3153 = vld [vmem:[%s13 + $0x330] sm:$0xff]
      %v3154 = vld [vmem:[%s13 + $0x338] sm:$0xff]
      %v3155 = vld [vmem:[%s13 + $0x340] sm:$0xff]
      %v3156 = vld [vmem:[%s13 + $0x348] sm:$0xff]
      %v3157 = vld [vmem:[%s13 + $0x350] sm:$0xff]
      %v3158 = vld [vmem:[%s13 + $0x358] sm:$0xff]
      %v3159 = vld [vmem:[%s13 + $0x360] sm:$0xff]
      %v3160 = vld [vmem:[%s13 + $0x368] sm:$0xff]
      %v3161 = vld [vmem:[%s13 + $0x370] sm:$0xff]
      %v3162 = vld [vmem:[%s13 + $0x378] sm:$0xff]
      %v3163 = vld [vmem:[%s13 + $0x380] sm:$0xff]
      %v3164 = vld [vmem:[%s13 + $0x388] sm:$0xff]
      %v3165 = vld [vmem:[%s13 + $0x390] sm:$0xff]
      %v3166 = vld [vmem:[%s13 + $0x398] sm:$0xff]
      %v3167 = vld [vmem:[%s13 + $0x3a0] sm:$0xff]
      %v3168 = vld [vmem:[%s13 + $0x3a8] sm:$0xff]
      %v3169 = vld [vmem:[%s13 + $0x3b0] sm:$0xff]
      %v3170 = vld [vmem:[%s13 + $0x3b8] sm:$0xff]
      %v3171 = vld [vmem:[%s13 + $0x3c0] sm:$0xff]
      %v3172 = vld [vmem:[%s13 + $0x3c8] sm:$0xff]
      %v3173 = vld [vmem:[%s13 + $0x3d0] sm:$0xff]
      %v3174 = vld [vmem:[%s13 + $0x3d8] sm:$0xff]
      %v3175 = vld [vmem:[%s13 + $0x3e0] sm:$0xff]
      %v3176 = vld [vmem:[%s13 + $0x3e8] sm:$0xff]
      %v3177 = vld [vmem:[%s13 + $0x3f0] sm:$0xff]
      %v3178 = vld [vmem:[%s13 + $0x3f8] sm:$0xff]
      %v3179 = vld [vmem:[%s14] sm:$0xf]
      %v3181 = vlaneseq
      %v3182 = vshrl.u32 %v3181, 7
      %v3183 = vsub.s32 0, %v3182
      %v3184 = vrot.slane %v3179, %v3183
      %v3185 = vlaneseq
      %v3186 = vshrl.u32 %v3185, 7
      %v3187 = vsub.s32 1, %v3186
      %v3188 = vrot.slane %v3179, %v3187
      %v3189 = vlaneseq
      %v3190 = vshrl.u32 %v3189, 7
      %v3191 = vsub.s32 2, %v3190
      %v3192 = vrot.slane %v3179, %v3191
      %v3193 = vlaneseq
      %v3194 = vshrl.u32 %v3193, 7
      %v3195 = vsub.s32 3, %v3194
      %v3196 = vrot.slane %v3179, %v3195
      %v3329 = vunpack.c.l.b16 %v3051
      %v3330 = vunpack.c.h.b16 %v3051
      %v3331 = vunpack.c.l.b16 %v3052
      %v3332 = vunpack.c.h.b16 %v3052
      %v3333 = vunpack.c.l.b16 %v3053
      %v3334 = vunpack.c.h.b16 %v3053
      %v3335 = vunpack.c.l.b16 %v3054
      %v3336 = vunpack.c.h.b16 %v3054
      %v3337 = vunpack.c.l.b16 %v3055
      %v3338 = vunpack.c.h.b16 %v3055
      %v3339 = vunpack.c.l.b16 %v3056
      %v3340 = vunpack.c.h.b16 %v3056
      %v3341 = vunpack.c.l.b16 %v3057
      %v3342 = vunpack.c.h.b16 %v3057
      %v3343 = vunpack.c.l.b16 %v3058
      %v3344 = vunpack.c.h.b16 %v3058
      %v3345 = vunpack.c.l.b16 %v3059
      %v3346 = vunpack.c.h.b16 %v3059
      %v3347 = vunpack.c.l.b16 %v3060
      %v3348 = vunpack.c.h.b16 %v3060
      %v3349 = vunpack.c.l.b16 %v3061
      %v3350 = vunpack.c.h.b16 %v3061
      %v3351 = vunpack.c.l.b16 %v3062
      %v3352 = vunpack.c.h.b16 %v3062
      %v3353 = vunpack.c.l.b16 %v3063
      %v3354 = vunpack.c.h.b16 %v3063
      %v3355 = vunpack.c.l.b16 %v3064
      %v3356 = vunpack.c.h.b16 %v3064
      %v3357 = vunpack.c.l.b16 %v3065
      %v3358 = vunpack.c.h.b16 %v3065
      %v3359 = vunpack.c.l.b16 %v3066
      %v3360 = vunpack.c.h.b16 %v3066
      %v3361 = vunpack.c.l.b16 %v3067
      %v3362 = vunpack.c.h.b16 %v3067
      %v3363 = vunpack.c.l.b16 %v3068
      %v3364 = vunpack.c.h.b16 %v3068
      %v3365 = vunpack.c.l.b16 %v3069
      %v3366 = vunpack.c.h.b16 %v3069
      %v3367 = vunpack.c.l.b16 %v3070
      %v3368 = vunpack.c.h.b16 %v3070
      %v3369 = vunpack.c.l.b16 %v3071
      %v3370 = vunpack.c.h.b16 %v3071
      %v3371 = vunpack.c.l.b16 %v3072
      %v3372 = vunpack.c.h.b16 %v3072
      %v3373 = vunpack.c.l.b16 %v3073
      %v3374 = vunpack.c.h.b16 %v3073
      %v3375 = vunpack.c.l.b16 %v3074
      %v3376 = vunpack.c.h.b16 %v3074
      %v3377 = vunpack.c.l.b16 %v3075
      %v3378 = vunpack.c.h.b16 %v3075
      %v3379 = vunpack.c.l.b16 %v3076
      %v3380 = vunpack.c.h.b16 %v3076
      %v3381 = vunpack.c.l.b16 %v3077
      %v3382 = vunpack.c.h.b16 %v3077
      %v3383 = vunpack.c.l.b16 %v3078
      %v3384 = vunpack.c.h.b16 %v3078
      %v3385 = vunpack.c.l.b16 %v3079
      %v3386 = vunpack.c.h.b16 %v3079
      %v3387 = vunpack.c.l.b16 %v3080
      %v3388 = vunpack.c.h.b16 %v3080
      %v3389 = vunpack.c.l.b16 %v3081
      %v3390 = vunpack.c.h.b16 %v3081
      %v3391 = vunpack.c.l.b16 %v3082
      %v3392 = vunpack.c.h.b16 %v3082
      %v3393 = vunpack.c.l.b16 %v3083
      %v3394 = vunpack.c.h.b16 %v3083
      %v3395 = vunpack.c.l.b16 %v3084
      %v3396 = vunpack.c.h.b16 %v3084
      %v3397 = vunpack.c.l.b16 %v3085
      %v3398 = vunpack.c.h.b16 %v3085
      %v3399 = vunpack.c.l.b16 %v3086
      %v3400 = vunpack.c.h.b16 %v3086
      %v3401 = vunpack.c.l.b16 %v3087
      %v3402 = vunpack.c.h.b16 %v3087
      %v3403 = vunpack.c.l.b16 %v3088
      %v3404 = vunpack.c.h.b16 %v3088
      %v3405 = vunpack.c.l.b16 %v3089
      %v3406 = vunpack.c.h.b16 %v3089
      %v3407 = vunpack.c.l.b16 %v3090
      %v3408 = vunpack.c.h.b16 %v3090
      %v3409 = vunpack.c.l.b16 %v3091
      %v3410 = vunpack.c.h.b16 %v3091
      %v3411 = vunpack.c.l.b16 %v3092
      %v3412 = vunpack.c.h.b16 %v3092
      %v3413 = vunpack.c.l.b16 %v3093
      %v3414 = vunpack.c.h.b16 %v3093
      %v3415 = vunpack.c.l.b16 %v3094
      %v3416 = vunpack.c.h.b16 %v3094
      %v3417 = vunpack.c.l.b16 %v3095
      %v3418 = vunpack.c.h.b16 %v3095
      %v3419 = vunpack.c.l.b16 %v3096
      %v3420 = vunpack.c.h.b16 %v3096
      %v3421 = vunpack.c.l.b16 %v3097
      %v3422 = vunpack.c.h.b16 %v3097
      %v3423 = vunpack.c.l.b16 %v3098
      %v3424 = vunpack.c.h.b16 %v3098
      %v3425 = vunpack.c.l.b16 %v3099
      %v3426 = vunpack.c.h.b16 %v3099
      %v3427 = vunpack.c.l.b16 %v3100
      %v3428 = vunpack.c.h.b16 %v3100
      %v3429 = vunpack.c.l.b16 %v3101
      %v3430 = vunpack.c.h.b16 %v3101
      %v3431 = vunpack.c.l.b16 %v3102
      %v3432 = vunpack.c.h.b16 %v3102
      %v3433 = vunpack.c.l.b16 %v3103
      %v3434 = vunpack.c.h.b16 %v3103
      %v3435 = vunpack.c.l.b16 %v3104
      %v3436 = vunpack.c.h.b16 %v3104
      %v3437 = vunpack.c.l.b16 %v3105
      %v3438 = vunpack.c.h.b16 %v3105
      %v3439 = vunpack.c.l.b16 %v3106
      %v3440 = vunpack.c.h.b16 %v3106
      %v3441 = vunpack.c.l.b16 %v3107
      %v3442 = vunpack.c.h.b16 %v3107
      %v3443 = vunpack.c.l.b16 %v3108
      %v3444 = vunpack.c.h.b16 %v3108
      %v3445 = vunpack.c.l.b16 %v3109
      %v3446 = vunpack.c.h.b16 %v3109
      %v3447 = vunpack.c.l.b16 %v3110
      %v3448 = vunpack.c.h.b16 %v3110
      %v3449 = vunpack.c.l.b16 %v3111
      %v3450 = vunpack.c.h.b16 %v3111
      %v3451 = vunpack.c.l.b16 %v3112
      %v3452 = vunpack.c.h.b16 %v3112
      %v3453 = vunpack.c.l.b16 %v3113
      %v3454 = vunpack.c.h.b16 %v3113
      %v3455 = vunpack.c.l.b16 %v3114
      %v3456 = vunpack.c.h.b16 %v3114
      %v3457 = vunpack.c.l.b16 %v3115
      %v3458 = vunpack.c.h.b16 %v3115
      %v3459 = vunpack.c.l.b16 %v3116
      %v3460 = vunpack.c.h.b16 %v3116
      %v3461 = vunpack.c.l.b16 %v3117
      %v3462 = vunpack.c.h.b16 %v3117
      %v3463 = vunpack.c.l.b16 %v3118
      %v3464 = vunpack.c.h.b16 %v3118
      %v3465 = vunpack.c.l.b16 %v3119
      %v3466 = vunpack.c.h.b16 %v3119
      %v3467 = vunpack.c.l.b16 %v3120
      %v3468 = vunpack.c.h.b16 %v3120
      %v3469 = vunpack.c.l.b16 %v3121
      %v3470 = vunpack.c.h.b16 %v3121
      %v3471 = vunpack.c.l.b16 %v3122
      %v3472 = vunpack.c.h.b16 %v3122
      %v3473 = vunpack.c.l.b16 %v3123
      %v3474 = vunpack.c.h.b16 %v3123
      %v3475 = vunpack.c.l.b16 %v3124
      %v3476 = vunpack.c.h.b16 %v3124
      %v3477 = vunpack.c.l.b16 %v3125
      %v3478 = vunpack.c.h.b16 %v3125
      %v3479 = vunpack.c.l.b16 %v3126
      %v3480 = vunpack.c.h.b16 %v3126
      %v3481 = vunpack.c.l.b16 %v3127
      %v3482 = vunpack.c.h.b16 %v3127
      %v3483 = vunpack.c.l.b16 %v3128
      %v3484 = vunpack.c.h.b16 %v3128
      %v3485 = vunpack.c.l.b16 %v3129
      %v3486 = vunpack.c.h.b16 %v3129
      %v3487 = vunpack.c.l.b16 %v3130
      %v3488 = vunpack.c.h.b16 %v3130
      %v3489 = vunpack.c.l.b16 %v3131
      %v3490 = vunpack.c.h.b16 %v3131
      %v3491 = vunpack.c.l.b16 %v3132
      %v3492 = vunpack.c.h.b16 %v3132
      %v3493 = vunpack.c.l.b16 %v3133
      %v3494 = vunpack.c.h.b16 %v3133
      %v3495 = vunpack.c.l.b16 %v3134
      %v3496 = vunpack.c.h.b16 %v3134
      %v3497 = vunpack.c.l.b16 %v3135
      %v3498 = vunpack.c.h.b16 %v3135
      %v3499 = vunpack.c.l.b16 %v3136
      %v3500 = vunpack.c.h.b16 %v3136
      %v3501 = vunpack.c.l.b16 %v3137
      %v3502 = vunpack.c.h.b16 %v3137
      %v3503 = vunpack.c.l.b16 %v3138
      %v3504 = vunpack.c.h.b16 %v3138
      %v3505 = vunpack.c.l.b16 %v3139
      %v3506 = vunpack.c.h.b16 %v3139
      %v3507 = vunpack.c.l.b16 %v3140
      %v3508 = vunpack.c.h.b16 %v3140
      %v3509 = vunpack.c.l.b16 %v3141
      %v3510 = vunpack.c.h.b16 %v3141
      %v3511 = vunpack.c.l.b16 %v3142
      %v3512 = vunpack.c.h.b16 %v3142
      %v3513 = vunpack.c.l.b16 %v3143
      %v3514 = vunpack.c.h.b16 %v3143
      %v3515 = vunpack.c.l.b16 %v3144
      %v3516 = vunpack.c.h.b16 %v3144
      %v3517 = vunpack.c.l.b16 %v3145
      %v3518 = vunpack.c.h.b16 %v3145
      %v3519 = vunpack.c.l.b16 %v3146
      %v3520 = vunpack.c.h.b16 %v3146
      %v3521 = vunpack.c.l.b16 %v3147
      %v3522 = vunpack.c.h.b16 %v3147
      %v3523 = vunpack.c.l.b16 %v3148
      %v3524 = vunpack.c.h.b16 %v3148
      %v3525 = vunpack.c.l.b16 %v3149
      %v3526 = vunpack.c.h.b16 %v3149
      %v3527 = vunpack.c.l.b16 %v3150
      %v3528 = vunpack.c.h.b16 %v3150
      %v3529 = vunpack.c.l.b16 %v3151
      %v3530 = vunpack.c.h.b16 %v3151
      %v3531 = vunpack.c.l.b16 %v3152
      %v3532 = vunpack.c.h.b16 %v3152
      %v3533 = vunpack.c.l.b16 %v3153
      %v3534 = vunpack.c.h.b16 %v3153
      %v3535 = vunpack.c.l.b16 %v3154
      %v3536 = vunpack.c.h.b16 %v3154
      %v3537 = vunpack.c.l.b16 %v3155
      %v3538 = vunpack.c.h.b16 %v3155
      %v3539 = vunpack.c.l.b16 %v3156
      %v3540 = vunpack.c.h.b16 %v3156
      %v3541 = vunpack.c.l.b16 %v3157
      %v3542 = vunpack.c.h.b16 %v3157
      %v3543 = vunpack.c.l.b16 %v3158
      %v3544 = vunpack.c.h.b16 %v3158
      %v3545 = vunpack.c.l.b16 %v3159
      %v3546 = vunpack.c.h.b16 %v3159
      %v3547 = vunpack.c.l.b16 %v3160
      %v3548 = vunpack.c.h.b16 %v3160
      %v3549 = vunpack.c.l.b16 %v3161
      %v3550 = vunpack.c.h.b16 %v3161
      %v3551 = vunpack.c.l.b16 %v3162
      %v3552 = vunpack.c.h.b16 %v3162
      %v3553 = vunpack.c.l.b16 %v3163
      %v3554 = vunpack.c.h.b16 %v3163
      %v3555 = vunpack.c.l.b16 %v3164
      %v3556 = vunpack.c.h.b16 %v3164
      %v3557 = vunpack.c.l.b16 %v3165
      %v3558 = vunpack.c.h.b16 %v3165
      %v3559 = vunpack.c.l.b16 %v3166
      %v3560 = vunpack.c.h.b16 %v3166
      %v3561 = vunpack.c.l.b16 %v3167
      %v3562 = vunpack.c.h.b16 %v3167
      %v3563 = vunpack.c.l.b16 %v3168
      %v3564 = vunpack.c.h.b16 %v3168
      %v3565 = vunpack.c.l.b16 %v3169
      %v3566 = vunpack.c.h.b16 %v3169
      %v3567 = vunpack.c.l.b16 %v3170
      %v3568 = vunpack.c.h.b16 %v3170
      %v3569 = vunpack.c.l.b16 %v3171
      %v3570 = vunpack.c.h.b16 %v3171
      %v3571 = vunpack.c.l.b16 %v3172
      %v3572 = vunpack.c.h.b16 %v3172
      %v3573 = vunpack.c.l.b16 %v3173
      %v3574 = vunpack.c.h.b16 %v3173
      %v3575 = vunpack.c.l.b16 %v3174
      %v3576 = vunpack.c.h.b16 %v3174
      %v3577 = vunpack.c.l.b16 %v3175
      %v3578 = vunpack.c.h.b16 %v3175
      %v3579 = vunpack.c.l.b16 %v3176
      %v3580 = vunpack.c.h.b16 %v3176
      %v3581 = vunpack.c.l.b16 %v3177
      %v3582 = vunpack.c.h.b16 %v3177
      %v3583 = vunpack.c.l.b16 %v3178
      %v3584 = vunpack.c.h.b16 %v3178
      %v3585 = vpack.c.b16 %v3333, %v3329
      %v3586 = vpack.c.b16 %v3334, %v3330
      %v3587 = vpack.c.b16 %v3335, %v3331
      %v3588 = vpack.c.b16 %v3336, %v3332
      %v3589 = vpack.c.b16 %v3341, %v3337
      %v3590 = vpack.c.b16 %v3342, %v3338
      %v3591 = vpack.c.b16 %v3343, %v3339
      %v3592 = vpack.c.b16 %v3344, %v3340
      %v3593 = vpack.c.b16 %v3349, %v3345
      %v3594 = vpack.c.b16 %v3350, %v3346
      %v3595 = vpack.c.b16 %v3351, %v3347
      %v3596 = vpack.c.b16 %v3352, %v3348
      %v3597 = vpack.c.b16 %v3357, %v3353
      %v3598 = vpack.c.b16 %v3358, %v3354
      %v3599 = vpack.c.b16 %v3359, %v3355
      %v3600 = vpack.c.b16 %v3360, %v3356
      %v3601 = vpack.c.b16 %v3365, %v3361
      %v3602 = vpack.c.b16 %v3366, %v3362
      %v3603 = vpack.c.b16 %v3367, %v3363
      %v3604 = vpack.c.b16 %v3368, %v3364
      %v3605 = vpack.c.b16 %v3373, %v3369
      %v3606 = vpack.c.b16 %v3374, %v3370
      %v3607 = vpack.c.b16 %v3375, %v3371
      %v3608 = vpack.c.b16 %v3376, %v3372
      %v3609 = vpack.c.b16 %v3381, %v3377
      %v3610 = vpack.c.b16 %v3382, %v3378
      %v3611 = vpack.c.b16 %v3383, %v3379
      %v3612 = vpack.c.b16 %v3384, %v3380
      %v3613 = vpack.c.b16 %v3389, %v3385
      %v3614 = vpack.c.b16 %v3390, %v3386
      %v3615 = vpack.c.b16 %v3391, %v3387
      %v3616 = vpack.c.b16 %v3392, %v3388
      %v3617 = vpack.c.b16 %v3397, %v3393
      %v3618 = vpack.c.b16 %v3398, %v3394
      %v3619 = vpack.c.b16 %v3399, %v3395
      %v3620 = vpack.c.b16 %v3400, %v3396
      %v3621 = vpack.c.b16 %v3405, %v3401
      %v3622 = vpack.c.b16 %v3406, %v3402
      %v3623 = vpack.c.b16 %v3407, %v3403
      %v3624 = vpack.c.b16 %v3408, %v3404
      %v3625 = vpack.c.b16 %v3413, %v3409
      %v3626 = vpack.c.b16 %v3414, %v3410
      %v3627 = vpack.c.b16 %v3415, %v3411
      %v3628 = vpack.c.b16 %v3416, %v3412
      %v3629 = vpack.c.b16 %v3421, %v3417
      %v3630 = vpack.c.b16 %v3422, %v3418
      %v3631 = vpack.c.b16 %v3423, %v3419
      %v3632 = vpack.c.b16 %v3424, %v3420
      %v3633 = vpack.c.b16 %v3429, %v3425
      %v3634 = vpack.c.b16 %v3430, %v3426
      %v3635 = vpack.c.b16 %v3431, %v3427
      %v3636 = vpack.c.b16 %v3432, %v3428
      %v3637 = vpack.c.b16 %v3437, %v3433
      %v3638 = vpack.c.b16 %v3438, %v3434
      %v3639 = vpack.c.b16 %v3439, %v3435
      %v3640 = vpack.c.b16 %v3440, %v3436
      %v3641 = vpack.c.b16 %v3445, %v3441
      %v3642 = vpack.c.b16 %v3446, %v3442
      %v3643 = vpack.c.b16 %v3447, %v3443
      %v3644 = vpack.c.b16 %v3448, %v3444
      %v3645 = vpack.c.b16 %v3453, %v3449
      %v3646 = vpack.c.b16 %v3454, %v3450
      %v3647 = vpack.c.b16 %v3455, %v3451
      %v3648 = vpack.c.b16 %v3456, %v3452
      %v3649 = vpack.c.b16 %v3461, %v3457
      %v3650 = vpack.c.b16 %v3462, %v3458
      %v3651 = vpack.c.b16 %v3463, %v3459
      %v3652 = vpack.c.b16 %v3464, %v3460
      %v3653 = vpack.c.b16 %v3469, %v3465
      %v3654 = vpack.c.b16 %v3470, %v3466
      %v3655 = vpack.c.b16 %v3471, %v3467
      %v3656 = vpack.c.b16 %v3472, %v3468
      %v3657 = vpack.c.b16 %v3477, %v3473
      %v3658 = vpack.c.b16 %v3478, %v3474
      %v3659 = vpack.c.b16 %v3479, %v3475
      %v3660 = vpack.c.b16 %v3480, %v3476
      %v3661 = vpack.c.b16 %v3485, %v3481
      %v3662 = vpack.c.b16 %v3486, %v3482
      %v3663 = vpack.c.b16 %v3487, %v3483
      %v3664 = vpack.c.b16 %v3488, %v3484
      %v3665 = vpack.c.b16 %v3493, %v3489
      %v3666 = vpack.c.b16 %v3494, %v3490
      %v3667 = vpack.c.b16 %v3495, %v3491
      %v3668 = vpack.c.b16 %v3496, %v3492
      %v3669 = vpack.c.b16 %v3501, %v3497
      %v3670 = vpack.c.b16 %v3502, %v3498
      %v3671 = vpack.c.b16 %v3503, %v3499
      %v3672 = vpack.c.b16 %v3504, %v3500
      %v3673 = vpack.c.b16 %v3509, %v3505
      %v3674 = vpack.c.b16 %v3510, %v3506
      %v3675 = vpack.c.b16 %v3511, %v3507
      %v3676 = vpack.c.b16 %v3512, %v3508
      %v3677 = vpack.c.b16 %v3517, %v3513
      %v3678 = vpack.c.b16 %v3518, %v3514
      %v3679 = vpack.c.b16 %v3519, %v3515
      %v3680 = vpack.c.b16 %v3520, %v3516
      %v3681 = vpack.c.b16 %v3525, %v3521
      %v3682 = vpack.c.b16 %v3526, %v3522
      %v3683 = vpack.c.b16 %v3527, %v3523
      %v3684 = vpack.c.b16 %v3528, %v3524
      %v3685 = vpack.c.b16 %v3533, %v3529
      %v3686 = vpack.c.b16 %v3534, %v3530
      %v3687 = vpack.c.b16 %v3535, %v3531
      %v3688 = vpack.c.b16 %v3536, %v3532
      %v3689 = vpack.c.b16 %v3541, %v3537
      %v3690 = vpack.c.b16 %v3542, %v3538
      %v3691 = vpack.c.b16 %v3543, %v3539
      %v3692 = vpack.c.b16 %v3544, %v3540
      %v3693 = vpack.c.b16 %v3549, %v3545
      %v3694 = vpack.c.b16 %v3550, %v3546
      %v3695 = vpack.c.b16 %v3551, %v3547
      %v3696 = vpack.c.b16 %v3552, %v3548
      %v3697 = vpack.c.b16 %v3557, %v3553
      %v3698 = vpack.c.b16 %v3558, %v3554
      %v3699 = vpack.c.b16 %v3559, %v3555
      %v3700 = vpack.c.b16 %v3560, %v3556
      %v3701 = vpack.c.b16 %v3565, %v3561
      %v3702 = vpack.c.b16 %v3566, %v3562
      %v3703 = vpack.c.b16 %v3567, %v3563
      %v3704 = vpack.c.b16 %v3568, %v3564
      %v3705 = vpack.c.b16 %v3573, %v3569
      %v3706 = vpack.c.b16 %v3574, %v3570
      %v3707 = vpack.c.b16 %v3575, %v3571
      %v3708 = vpack.c.b16 %v3576, %v3572
      %v3709 = vpack.c.b16 %v3581, %v3577
      %v3710 = vpack.c.b16 %v3582, %v3578
      %v3711 = vpack.c.b16 %v3583, %v3579
      %v3712 = vpack.c.b16 %v3584, %v3580
      %3841 = vmatprep.subr.bf16.mxu0 %v3586
      %3842 = vmatpush1.bf16.msra.mxu0 %v3585
      %3843 = vmatprep.subr.bf16.mxu0 %v3590
      %3844 = vmatpush1.bf16.msra.mxu0 %v3589
      %3845 = vmatprep.subr.bf16.mxu0 %v3594
      %3846 = vmatpush1.bf16.msra.mxu0 %v3593
      %3847 = vmatprep.subr.bf16.mxu0 %v3598
      %3848 = vmatpush1.bf16.msra.mxu0 %v3597
      %3849 = vmatprep.subr.bf16.mxu0 %v3602
      %3850 = vmatpush1.bf16.msra.mxu0 %v3601
      %3851 = vmatprep.subr.bf16.mxu0 %v3606
      %3852 = vmatpush1.bf16.msra.mxu0 %v3605
      %3853 = vmatprep.subr.bf16.mxu0 %v3610
      %3854 = vmatpush1.bf16.msra.mxu0 %v3609
      %3855 = vmatprep.subr.bf16.mxu0 %v3614
      %3856 = vmatpush1.bf16.msra.mxu0 %v3613
      %3857 = vmatprep.subr.bf16.mxu0 %v3618
      %3858 = vmatpush1.bf16.msra.mxu0 %v3617
      %3859 = vmatprep.subr.bf16.mxu0 %v3622
      %3860 = vmatpush1.bf16.msra.mxu0 %v3621
      %3861 = vmatprep.subr.bf16.mxu0 %v3626
      %3862 = vmatpush1.bf16.msra.mxu0 %v3625
      %3863 = vmatprep.subr.bf16.mxu0 %v3630
      %3864 = vmatpush1.bf16.msra.mxu0 %v3629
      %3865 = vmatprep.subr.bf16.mxu0 %v3634
      %3866 = vmatpush1.bf16.msra.mxu0 %v3633
      %3867 = vmatprep.subr.bf16.mxu0 %v3638
      %3868 = vmatpush1.bf16.msra.mxu0 %v3637
      %3869 = vmatprep.subr.bf16.mxu0 %v3642
      %3870 = vmatpush1.bf16.msra.mxu0 %v3641
      %3871 = vmatprep.subr.bf16.mxu0 %v3646
      %3872 = vmatpush1.bf16.msra.mxu0 %v3645
      %3873 = vmatprep.mubr.bf16.mxu0 %v3020
      %3874 = vmatmul.mubr.bf16.gmra.mrb[0].mxu0 %v3019
      %v3875 = vpop.f32.mrb[0].mxu0
      %v3876 = vadd.f32 %v3184, %v3875
      %v3877 = vpop.f32.mrb[0].mxu0
      %v3878 = vadd.f32 %v3188, %v3877
      %v3879 = vpop.f32.mrb[0].mxu0
      %v3880 = vadd.f32 %v3184, %v3879
      %v3881 = vpop.f32.mrb[0].mxu0
      %v3882 = vadd.f32 %v3188, %v3881
      %3883 = vmatprep.mubr.bf16.mxu0 %v3024
      %3884 = vmatmul.mubr.bf16.gmra.mrb[0].mxu0 %v3023
      %v3885 = vpop.f32.mrb[0].mxu0
      %v3886 = vadd.f32 %v3184, %v3885
      %v3887 = vpop.f32.mrb[0].mxu0
      %v3888 = vadd.f32 %v3188, %v3887
      %v3889 = vpop.f32.mrb[0].mxu0
      %v3890 = vadd.f32 %v3184, %v3889
      %v3891 = vpop.f32.mrb[0].mxu0
      %v3892 = vadd.f32 %v3188, %v3891
      %3893 = vmatprep.mubr.bf16.mxu0 %v3028
      %3894 = vmatmul.mubr.bf16.gmra.mrb[0].mxu0 %v3027
      %v3895 = vpop.f32.mrb[0].mxu0
      %v3896 = vadd.f32 %v3184, %v3895
      %v3897 = vpop.f32.mrb[0].mxu0
      %v3898 = vadd.f32 %v3188, %v3897
      %v3899 = vpop.f32.mrb[0].mxu0
      %v3900 = vadd.f32 %v3184, %v3899
      %v3901 = vpop.f32.mrb[0].mxu0
      %v3902 = vadd.f32 %v3188, %v3901
      %3903 = vmatprep.mubr.bf16.mxu0 %v3032
      %3904 = vmatmul.mubr.bf16.gmra.mrb[0].mxu0 %v3031
      %v3905 = vpop.f32.mrb[0].mxu0
      %v3906 = vadd.f32 %v3184, %v3905
      %v3907 = vpop.f32.mrb[0].mxu0
      %v3908 = vadd.f32 %v3188, %v3907
      %v3909 = vpop.f32.mrb[0].mxu0
      %v3910 = vadd.f32 %v3184, %v3909
      %v3911 = vpop.f32.mrb[0].mxu0
      %v3912 = vadd.f32 %v3188, %v3911
      %3913 = vmatprep.mubr.bf16.mxu0 %v3036
      %3914 = vmatmul.mubr.bf16.gmra.mrb[0].mxu0 %v3035
      %v3915 = vpop.f32.mrb[0].mxu0
      %v3916 = vadd.f32 %v3184, %v3915
      %v3917 = vpop.f32.mrb[0].mxu0
      %v3918 = vadd.f32 %v3188, %v3917
      %v3919 = vpop.f32.mrb[0].mxu0
      %v3920 = vadd.f32 %v3184, %v3919
      %v3921 = vpop.f32.mrb[0].mxu0
      %v3922 = vadd.f32 %v3188, %v3921
      %3923 = vmatprep.mubr.bf16.mxu0 %v3040
      %3924 = vmatmul.mubr.bf16.gmra.mrb[0].mxu0 %v3039
      %v3925 = vpop.f32.mrb[0].mxu0
      %v3926 = vadd.f32 %v3184, %v3925
      %v3927 = vpop.f32.mrb[0].mxu0
      %v3928 = vadd.f32 %v3188, %v3927
      %v3929 = vpop.f32.mrb[0].mxu0
      %v3930 = vadd.f32 %v3184, %v3929
      %v3931 = vpop.f32.mrb[0].mxu0
      %v3932 = vadd.f32 %v3188, %v3931
      %3933 = vmatprep.mubr.bf16.mxu0 %v3044
      %3934 = vmatmul.mubr.bf16.gmra.mrb[0].mxu0 %v3043
      %v3935 = vpop.f32.mrb[0].mxu0
      %v3936 = vadd.f32 %v3184, %v3935
      %v3937 = vpop.f32.mrb[0].mxu0
      %v3938 = vadd.f32 %v3188, %v3937
      %v3939 = vpop.f32.mrb[0].mxu0
      %v3940 = vadd.f32 %v3184, %v3939
      %v3941 = vpop.f32.mrb[0].mxu0
      %v3942 = vadd.f32 %v3188, %v3941
      %3943 = vmatprep.mubr.bf16.mxu0 %v3048
      %3944 = vmatmul.mubr.bf16.gmra.mrb[0].mxu0 %v3047
      %v3945 = vpop.f32.mrb[0].mxu0
      %v3946 = vadd.f32 %v3184, %v3945
      %v3947 = vpop.f32.mrb[0].mxu0
      %v3948 = vadd.f32 %v3188, %v3947
      %v3949 = vpop.f32.mrb[0].mxu0
      %v3950 = vadd.f32 %v3184, %v3949
      %v3951 = vpop.f32.mrb[0].mxu0
      %v3952 = vadd.f32 %v3188, %v3951
      %3953 = vdwg.mxu0
      %3954 = vmatprep.subr.bf16.mxu0 %v3650
      %3955 = vmatpush1.bf16.msra.mxu0 %v3649
      %3956 = vmatprep.subr.bf16.mxu0 %v3654
      %3957 = vmatpush1.bf16.msra.mxu0 %v3653
      %3958 = vmatprep.subr.bf16.mxu0 %v3658
      %3959 = vmatpush1.bf16.msra.mxu0 %v3657
      %3960 = vmatprep.subr.bf16.mxu0 %v3662
      %3961 = vmatpush1.bf16.msra.mxu0 %v3661
      %3962 = vmatprep.subr.bf16.mxu0 %v3666
      %3963 = vmatpush1.bf16.msra.mxu0 %v3665
      %3964 = vmatprep.subr.bf16.mxu0 %v3670
      %3965 = vmatpush1.bf16.msra.mxu0 %v3669
      %3966 = vmatprep.subr.bf16.mxu0 %v3674
      %3967 = vmatpush1.bf16.msra.mxu0 %v3673
      %3968 = vmatprep.subr.bf16.mxu0 %v3678
      %3969 = vmatpush1.bf16.msra.mxu0 %v3677
      %3970 = vmatprep.subr.bf16.mxu0 %v3682
      %3971 = vmatpush1.bf16.msra.mxu0 %v3681
      %3972 = vmatprep.subr.bf16.mxu0 %v3686
      %3973 = vmatpush1.bf16.msra.mxu0 %v3685
      %3974 = vmatprep.subr.bf16.mxu0 %v3690
      %3975 = vmatpush1.bf16.msra.mxu0 %v3689
      %3976 = vmatprep.subr.bf16.mxu0 %v3694
      %3977 = vmatpush1.bf16.msra.mxu0 %v3693
      %3978 = vmatprep.subr.bf16.mxu0 %v3698
      %3979 = vmatpush1.bf16.msra.mxu0 %v3697
      %3980 = vmatprep.subr.bf16.mxu0 %v3702
      %3981 = vmatpush1.bf16.msra.mxu0 %v3701
      %3982 = vmatprep.subr.bf16.mxu0 %v3706
      %3983 = vmatpush1.bf16.msra.mxu0 %v3705
      %3984 = vmatprep.subr.bf16.mxu0 %v3710
      %3985 = vmatpush1.bf16.msra.mxu0 %v3709
      %3986 = vmatprep.mubr.bf16.mxu0 %v3022
      %3987 = vmatmul.mubr.bf16.gmra.mrb[0].mxu0 %v3021
      %v3988 = vpop.f32.mrb[0].mxu0
      %v3989 = vadd.f32 %v3876, %v3988
      %v3990 = vpop.f32.mrb[0].mxu0
      %v3991 = vadd.f32 %v3878, %v3990
      %v3992 = vpop.f32.mrb[0].mxu0
      %v3993 = vadd.f32 %v3880, %v3992
      %v3994 = vpop.f32.mrb[0].mxu0
      %v3995 = vadd.f32 %v3882, %v3994
      %3996 = vmatprep.mubr.bf16.mxu0 %v3026
      %3997 = vmatmul.mubr.bf16.gmra.mrb[0].mxu0 %v3025
      %v3998 = vpop.f32.mrb[0].mxu0
      %v3999 = vadd.f32 %v3886, %v3998
      %v4000 = vpop.f32.mrb[0].mxu0
      %v4001 = vadd.f32 %v3888, %v4000
      %v4002 = vpop.f32.mrb[0].mxu0
      %v4003 = vadd.f32 %v3890, %v4002
      %v4004 = vpop.f32.mrb[0].mxu0
      %v4005 = vadd.f32 %v3892, %v4004
      %4006 = vmatprep.mubr.bf16.mxu0 %v3030
      %4007 = vmatmul.mubr.bf16.gmra.mrb[0].mxu0 %v3029
      %v4008 = vpop.f32.mrb[0].mxu0
      %v4009 = vadd.f32 %v3896, %v4008
      %v4010 = vpop.f32.mrb[0].mxu0
      %v4011 = vadd.f32 %v3898, %v4010
      %v4012 = vpop.f32.mrb[0].mxu0
      %v4013 = vadd.f32 %v3900, %v4012
      %v4014 = vpop.f32.mrb[0].mxu0
      %v4015 = vadd.f32 %v3902, %v4014
      %4016 = vmatprep.mubr.bf16.mxu0 %v3034
      %4017 = vmatmul.mubr.bf16.gmra.mrb[0].mxu0 %v3033
      %v4018 = vpop.f32.mrb[0].mxu0
      %v4019 = vadd.f32 %v3906, %v4018
      %v4020 = vpop.f32.mrb[0].mxu0
      %v4021 = vadd.f32 %v3908, %v4020
      %v4022 = vpop.f32.mrb[0].mxu0
      %v4023 = vadd.f32 %v3910, %v4022
      %v4024 = vpop.f32.mrb[0].mxu0
      %v4025 = vadd.f32 %v3912, %v4024
      %4026 = vmatprep.mubr.bf16.mxu0 %v3038
      %4027 = vmatmul.mubr.bf16.gmra.mrb[0].mxu0 %v3037
      %v4028 = vpop.f32.mrb[0].mxu0
      %v4029 = vadd.f32 %v3916, %v4028
      %v4030 = vpop.f32.mrb[0].mxu0
      %v4031 = vadd.f32 %v3918, %v4030
      %v4032 = vpop.f32.mrb[0].mxu0
      %v4033 = vadd.f32 %v3920, %v4032
      %v4034 = vpop.f32.mrb[0].mxu0
      %v4035 = vadd.f32 %v3922, %v4034
      %4036 = vmatprep.mubr.bf16.mxu0 %v3042
      %4037 = vmatmul.mubr.bf16.gmra.mrb[0].mxu0 %v3041
      %v4038 = vpop.f32.mrb[0].mxu0
      %v4039 = vadd.f32 %v3926, %v4038
      %v4040 = vpop.f32.mrb[0].mxu0
      %v4041 = vadd.f32 %v3928, %v4040
      %v4042 = vpop.f32.mrb[0].mxu0
      %v4043 = vadd.f32 %v3930, %v4042
      %v4044 = vpop.f32.mrb[0].mxu0
      %v4045 = vadd.f32 %v3932, %v4044
      %4046 = vmatprep.mubr.bf16.mxu0 %v3046
      %4047 = vmatmul.mubr.bf16.gmra.mrb[0].mxu0 %v3045
      %v4048 = vpop.f32.mrb[0].mxu0
      %v4049 = vadd.f32 %v3936, %v4048
      %v4050 = vpop.f32.mrb[0].mxu0
      %v4051 = vadd.f32 %v3938, %v4050
      %v4052 = vpop.f32.mrb[0].mxu0
      %v4053 = vadd.f32 %v3940, %v4052
      %v4054 = vpop.f32.mrb[0].mxu0
      %v4055 = vadd.f32 %v3942, %v4054
      %4056 = vmatprep.mubr.bf16.mxu0 %v3050
      %4057 = vmatmul.mubr.bf16.gmra.mrb[0].mxu0 %v3049
      %v4058 = vpop.f32.mrb[0].mxu0
      %v4059 = vadd.f32 %v3946, %v4058
      %v4060 = vpop.f32.mrb[0].mxu0
      %v4061 = vadd.f32 %v3948, %v4060
      %v4062 = vpop.f32.mrb[0].mxu0
      %v4063 = vadd.f32 %v3950, %v4062
      %v4064 = vpop.f32.mrb[0].mxu0
      %v4065 = vadd.f32 %v3952, %v4064
      %4066 = vdwg.mxu0
      %4067 = vmatprep.subr.bf16.mxu0 %v3588
      %4068 = vmatpush1.bf16.msra.mxu0 %v3587
      %4069 = vmatprep.subr.bf16.mxu0 %v3592
      %4070 = vmatpush1.bf16.msra.mxu0 %v3591
      %4071 = vmatprep.subr.bf16.mxu0 %v3596
      %4072 = vmatpush1.bf16.msra.mxu0 %v3595
      %4073 = vmatprep.subr.bf16.mxu0 %v3600
      %4074 = vmatpush1.bf16.msra.mxu0 %v3599
      %4075 = vmatprep.subr.bf16.mxu0 %v3604
      %4076 = vmatpush1.bf16.msra.mxu0 %v3603
      %4077 = vmatprep.subr.bf16.mxu0 %v3608
      %4078 = vmatpush1.bf16.msra.mxu0 %v3607
      %4079 = vmatprep.subr.bf16.mxu0 %v3612
      %4080 = vmatpush1.bf16.msra.mxu0 %v3611
      %4081 = vmatprep.subr.bf16.mxu0 %v3616
      %4082 = vmatpush1.bf16.msra.mxu0 %v3615
      %4083 = vmatprep.subr.bf16.mxu0 %v3620
      %4084 = vmatpush1.bf16.msra.mxu0 %v3619
      %4085 = vmatprep.subr.bf16.mxu0 %v3624
      %4086 = vmatpush1.bf16.msra.mxu0 %v3623
      %4087 = vmatprep.subr.bf16.mxu0 %v3628
      %4088 = vmatpush1.bf16.msra.mxu0 %v3627
      %4089 = vmatprep.subr.bf16.mxu0 %v3632
      %4090 = vmatpush1.bf16.msra.mxu0 %v3631
      %4091 = vmatprep.subr.bf16.mxu0 %v3636
      %4092 = vmatpush1.bf16.msra.mxu0 %v3635
      %4093 = vmatprep.subr.bf16.mxu0 %v3640
      %4094 = vmatpush1.bf16.msra.mxu0 %v3639
      %4095 = vmatprep.subr.bf16.mxu0 %v3644
      %4096 = vmatpush1.bf16.msra.mxu0 %v3643
      %4097 = vmatprep.subr.bf16.mxu0 %v3648
      %4098 = vmatpush1.bf16.msra.mxu0 %v3647
      %4099 = vmatprep.mubr.bf16.mxu0 %v3020
      %4100 = vmatmul.mubr.bf16.gmra.mrb[0].mxu0 %v3019
      %v4101 = vpop.f32.mrb[0].mxu0
      %v4102 = vadd.f32 %v3192, %v4101
      %v4103 = vpop.f32.mrb[0].mxu0
      %v4104 = vadd.f32 %v3196, %v4103
      %v4105 = vpop.f32.mrb[0].mxu0
      %v4106 = vadd.f32 %v3192, %v4105
      %v4107 = vpop.f32.mrb[0].mxu0
      %v4108 = vadd.f32 %v3196, %v4107
      %4109 = vmatprep.mubr.bf16.mxu0 %v3024
      %4110 = vmatmul.mubr.bf16.gmra.mrb[0].mxu0 %v3023
      %v4111 = vpop.f32.mrb[0].mxu0
      %v4112 = vadd.f32 %v3192, %v4111
      %v4113 = vpop.f32.mrb[0].mxu0
      %v4114 = vadd.f32 %v3196, %v4113
      %v4115 = vpop.f32.mrb[0].mxu0
      %v4116 = vadd.f32 %v3192, %v4115
      %v4117 = vpop.f32.mrb[0].mxu0
      %v4118 = vadd.f32 %v3196, %v4117
      %4119 = vmatprep.mubr.bf16.mxu0 %v3028
      %4120 = vmatmul.mubr.bf16.gmra.mrb[0].mxu0 %v3027
      %v4121 = vpop.f32.mrb[0].mxu0
      %v4122 = vadd.f32 %v3192, %v4121
      %v4123 = vpop.f32.mrb[0].mxu0
      %v4124 = vadd.f32 %v3196, %v4123
      %v4125 = vpop.f32.mrb[0].mxu0
      %v4126 = vadd.f32 %v3192, %v4125
      %v4127 = vpop.f32.mrb[0].mxu0
      %v4128 = vadd.f32 %v3196, %v4127
      %4129 = vmatprep.mubr.bf16.mxu0 %v3032
      %4130 = vmatmul.mubr.bf16.gmra.mrb[0].mxu0 %v3031
      %v4131 = vpop.f32.mrb[0].mxu0
      %v4132 = vadd.f32 %v3192, %v4131
      %v4133 = vpop.f32.mrb[0].mxu0
      %v4134 = vadd.f32 %v3196, %v4133
      %v4135 = vpop.f32.mrb[0].mxu0
      %v4136 = vadd.f32 %v3192, %v4135
      %v4137 = vpop.f32.mrb[0].mxu0
      %v4138 = vadd.f32 %v3196, %v4137
      %4139 = vmatprep.mubr.bf16.mxu0 %v3036
      %4140 = vmatmul.mubr.bf16.gmra.mrb[0].mxu0 %v3035
      %v4141 = vpop.f32.mrb[0].mxu0
      %v4142 = vadd.f32 %v3192, %v4141
      %v4143 = vpop.f32.mrb[0].mxu0
      %v4144 = vadd.f32 %v3196, %v4143
      %v4145 = vpop.f32.mrb[0].mxu0
      %v4146 = vadd.f32 %v3192, %v4145
      %v4147 = vpop.f32.mrb[0].mxu0
      %v4148 = vadd.f32 %v3196, %v4147
      %4149 = vmatprep.mubr.bf16.mxu0 %v3040
      %4150 = vmatmul.mubr.bf16.gmra.mrb[0].mxu0 %v3039
      %v4151 = vpop.f32.mrb[0].mxu0
      %v4152 = vadd.f32 %v3192, %v4151
      %v4153 = vpop.f32.mrb[0].mxu0
      %v4154 = vadd.f32 %v3196, %v4153
      %v4155 = vpop.f32.mrb[0].mxu0
      %v4156 = vadd.f32 %v3192, %v4155
      %v4157 = vpop.f32.mrb[0].mxu0
      %v4158 = vadd.f32 %v3196, %v4157
      %4159 = vmatprep.mubr.bf16.mxu0 %v3044
      %4160 = vmatmul.mubr.bf16.gmra.mrb[0].mxu0 %v3043
      %v4161 = vpop.f32.mrb[0].mxu0
      %v4162 = vadd.f32 %v3192, %v4161
      %v4163 = vpop.f32.mrb[0].mxu0
      %v4164 = vadd.f32 %v3196, %v4163
      %v4165 = vpop.f32.mrb[0].mxu0
      %v4166 = vadd.f32 %v3192, %v4165
      %v4167 = vpop.f32.mrb[0].mxu0
      %v4168 = vadd.f32 %v3196, %v4167
      %4169 = vmatprep.mubr.bf16.mxu0 %v3048
      %4170 = vmatmul.mubr.bf16.gmra.mrb[0].mxu0 %v3047
      %v4171 = vpop.f32.mrb[0].mxu0
      %v4172 = vadd.f32 %v3192, %v4171
      %v4173 = vpop.f32.mrb[0].mxu0
      %v4174 = vadd.f32 %v3196, %v4173
      %v4175 = vpop.f32.mrb[0].mxu0
      %v4176 = vadd.f32 %v3192, %v4175
      %v4177 = vpop.f32.mrb[0].mxu0
      %v4178 = vadd.f32 %v3196, %v4177
      %4179 = vdwg.mxu0
      %4180 = vmatprep.subr.bf16.mxu0 %v3652
      %4181 = vmatpush1.bf16.msra.mxu0 %v3651
      %4182 = vmatprep.subr.bf16.mxu0 %v3656
      %4183 = vmatpush1.bf16.msra.mxu0 %v3655
      %4184 = vmatprep.subr.bf16.mxu0 %v3660
      %4185 = vmatpush1.bf16.msra.mxu0 %v3659
      %4186 = vmatprep.subr.bf16.mxu0 %v3664
      %4187 = vmatpush1.bf16.msra.mxu0 %v3663
      %4188 = vmatprep.subr.bf16.mxu0 %v3668
      %4189 = vmatpush1.bf16.msra.mxu0 %v3667
      %4190 = vmatprep.subr.bf16.mxu0 %v3672
      %4191 = vmatpush1.bf16.msra.mxu0 %v3671
      %4192 = vmatprep.subr.bf16.mxu0 %v3676
      %4193 = vmatpush1.bf16.msra.mxu0 %v3675
      %4194 = vmatprep.subr.bf16.mxu0 %v3680
      %4195 = vmatpush1.bf16.msra.mxu0 %v3679
      %4196 = vmatprep.subr.bf16.mxu0 %v3684
      %4197 = vmatpush1.bf16.msra.mxu0 %v3683
      %4198 = vmatprep.subr.bf16.mxu0 %v3688
      %4199 = vmatpush1.bf16.msra.mxu0 %v3687
      %4200 = vmatprep.subr.bf16.mxu0 %v3692
      %4201 = vmatpush1.bf16.msra.mxu0 %v3691
      %4202 = vmatprep.subr.bf16.mxu0 %v3696
      %4203 = vmatpush1.bf16.msra.mxu0 %v3695
      %4204 = vmatprep.subr.bf16.mxu0 %v3700
      %4205 = vmatpush1.bf16.msra.mxu0 %v3699
      %4206 = vmatprep.subr.bf16.mxu0 %v3704
      %4207 = vmatpush1.bf16.msra.mxu0 %v3703
      %4208 = vmatprep.subr.bf16.mxu0 %v3708
      %4209 = vmatpush1.bf16.msra.mxu0 %v3707
      %4210 = vmatprep.subr.bf16.mxu0 %v3712
      %4211 = vmatpush1.bf16.msra.mxu0 %v3711
      %4212 = vmatprep.mubr.bf16.mxu0 %v3022
      %4213 = vmatmul.mubr.bf16.gmra.mrb[0].mxu0 %v3021
      %v4214 = vpop.f32.mrb[0].mxu0
      %v4215 = vadd.f32 %v4102, %v4214
      %v4216 = vpop.f32.mrb[0].mxu0
      %v4217 = vadd.f32 %v4104, %v4216
      %v4218 = vpop.f32.mrb[0].mxu0
      %v4219 = vadd.f32 %v4106, %v4218
      %v4220 = vpop.f32.mrb[0].mxu0
      %v4221 = vadd.f32 %v4108, %v4220
      %4222 = vmatprep.mubr.bf16.mxu0 %v3026
      %4223 = vmatmul.mubr.bf16.gmra.mrb[0].mxu0 %v3025
      %v4224 = vpop.f32.mrb[0].mxu0
      %v4225 = vadd.f32 %v4112, %v4224
      %v4226 = vpop.f32.mrb[0].mxu0
      %v4227 = vadd.f32 %v4114, %v4226
      %v4228 = vpop.f32.mrb[0].mxu0
      %v4229 = vadd.f32 %v4116, %v4228
      %v4230 = vpop.f32.mrb[0].mxu0
      %v4231 = vadd.f32 %v4118, %v4230
      %4232 = vmatprep.mubr.bf16.mxu0 %v3030
      %4233 = vmatmul.mubr.bf16.gmra.mrb[0].mxu0 %v3029
      %v4234 = vpop.f32.mrb[0].mxu0
      %v4235 = vadd.f32 %v4122, %v4234
      %v4236 = vpop.f32.mrb[0].mxu0
      %v4237 = vadd.f32 %v4124, %v4236
      %v4238 = vpop.f32.mrb[0].mxu0
      %v4239 = vadd.f32 %v4126, %v4238
      %v4240 = vpop.f32.mrb[0].mxu0
      %v4241 = vadd.f32 %v4128, %v4240
      %4242 = vmatprep.mubr.bf16.mxu0 %v3034
      %4243 = vmatmul.mubr.bf16.gmra.mrb[0].mxu0 %v3033
      %v4244 = vpop.f32.mrb[0].mxu0
      %v4245 = vadd.f32 %v4132, %v4244
      %v4246 = vpop.f32.mrb[0].mxu0
      %v4247 = vadd.f32 %v4134, %v4246
      %v4248 = vpop.f32.mrb[0].mxu0
      %v4249 = vadd.f32 %v4136, %v4248
      %v4250 = vpop.f32.mrb[0].mxu0
      %v4251 = vadd.f32 %v4138, %v4250
      %4252 = vmatprep.mubr.bf16.mxu0 %v3038
      %4253 = vmatmul.mubr.bf16.gmra.mrb[0].mxu0 %v3037
      %v4254 = vpop.f32.mrb[0].mxu0
      %v4255 = vadd.f32 %v4142, %v4254
      %v4256 = vpop.f32.mrb[0].mxu0
      %v4257 = vadd.f32 %v4144, %v4256
      %v4258 = vpop.f32.mrb[0].mxu0
      %v4259 = vadd.f32 %v4146, %v4258
      %v4260 = vpop.f32.mrb[0].mxu0
      %v4261 = vadd.f32 %v4148, %v4260
      %4262 = vmatprep.mubr.bf16.mxu0 %v3042
      %4263 = vmatmul.mubr.bf16.gmra.mrb[0].mxu0 %v3041
      %v4264 = vpop.f32.mrb[0].mxu0
      %v4265 = vadd.f32 %v4152, %v4264
      %v4266 = vpop.f32.mrb[0].mxu0
      %v4267 = vadd.f32 %v4154, %v4266
      %v4268 = vpop.f32.mrb[0].mxu0
      %v4269 = vadd.f32 %v4156, %v4268
      %v4270 = vpop.f32.mrb[0].mxu0
      %v4271 = vadd.f32 %v4158, %v4270
      %4272 = vmatprep.mubr.bf16.mxu0 %v3046
      %4273 = vmatmul.mubr.bf16.gmra.mrb[0].mxu0 %v3045
      %v4274 = vpop.f32.mrb[0].mxu0
      %v4275 = vadd.f32 %v4162, %v4274
      %v4276 = vpop.f32.mrb[0].mxu0
      %v4277 = vadd.f32 %v4164, %v4276
      %v4278 = vpop.f32.mrb[0].mxu0
      %v4279 = vadd.f32 %v4166, %v4278
      %v4280 = vpop.f32.mrb[0].mxu0
      %v4281 = vadd.f32 %v4168, %v4280
      %4282 = vmatprep.mubr.bf16.mxu0 %v3050
      %4283 = vmatmul.mubr.bf16.gmra.mrb[0].mxu0 %v3049
      %v4284 = vpop.f32.mrb[0].mxu0
      %v4285 = vadd.f32 %v4172, %v4284
      %v4286 = vpop.f32.mrb[0].mxu0
      %v4287 = vadd.f32 %v4174, %v4286
      %v4288 = vpop.f32.mrb[0].mxu0
      %v4289 = vadd.f32 %v4176, %v4288
      %v4290 = vpop.f32.mrb[0].mxu0
      %v4291 = vadd.f32 %v4178, %v4290
      %4292 = vdwg.mxu0
      %v4293 = vmax.f32 %v3989, %v3993
      %v4294 = vrot.slane %v4293, 4
      %v4295 = vmax.f32 %v4293, %v4294
      %v4296 = vrot.slane %v4295, 2
      %v4297 = vmax.f32 %v4295, %v4296
      %v4298 = vrot.slane %v4297, 1
      %v4299 = vmax.f32 %v4297, %v4298
      %v4300 = vmax.f32 %v3991, %v3995
      %v4301 = vrot.slane %v4300, 4
      %v4302 = vmax.f32 %v4300, %v4301
      %v4303 = vrot.slane %v4302, 2
      %v4304 = vmax.f32 %v4302, %v4303
      %v4305 = vrot.slane %v4304, 1
      %v4306 = vmax.f32 %v4304, %v4305
      %v4307 = vmax.f32 %v4215, %v4219
      %v4308 = vrot.slane %v4307, 4
      %v4309 = vmax.f32 %v4307, %v4308
      %v4310 = vrot.slane %v4309, 2
      %v4311 = vmax.f32 %v4309, %v4310
      %v4312 = vrot.slane %v4311, 1
      %v4313 = vmax.f32 %v4311, %v4312
      %v4314 = vmax.f32 %v4217, %v4221
      %v4315 = vrot.slane %v4314, 4
      %v4316 = vmax.f32 %v4314, %v4315
      %v4317 = vrot.slane %v4316, 2
      %v4318 = vmax.f32 %v4316, %v4317
      %v4319 = vrot.slane %v4318, 1
      %v4320 = vmax.f32 %v4318, %v4319
      %v4321 = vmax.f32 %v3999, %v4003
      %v4322 = vrot.slane %v4321, 4
      %v4323 = vmax.f32 %v4321, %v4322
      %v4324 = vrot.slane %v4323, 2
      %v4325 = vmax.f32 %v4323, %v4324
      %v4326 = vrot.slane %v4325, 1
      %v4327 = vmax.f32 %v4325, %v4326
      %v4328 = vmax.f32 %v4001, %v4005
      %v4329 = vrot.slane %v4328, 4
      %v4330 = vmax.f32 %v4328, %v4329
      %v4331 = vrot.slane %v4330, 2
      %v4332 = vmax.f32 %v4330, %v4331
      %v4333 = vrot.slane %v4332, 1
      %v4334 = vmax.f32 %v4332, %v4333
      %v4335 = vmax.f32 %v4225, %v4229
      %v4336 = vrot.slane %v4335, 4
      %v4337 = vmax.f32 %v4335, %v4336
      %v4338 = vrot.slane %v4337, 2
      %v4339 = vmax.f32 %v4337, %v4338
      %v4340 = vrot.slane %v4339, 1
      %v4341 = vmax.f32 %v4339, %v4340
      %v4342 = vmax.f32 %v4227, %v4231
      %v4343 = vrot.slane %v4342, 4
      %v4344 = vmax.f32 %v4342, %v4343
      %v4345 = vrot.slane %v4344, 2
      %v4346 = vmax.f32 %v4344, %v4345
      %v4347 = vrot.slane %v4346, 1
      %v4348 = vmax.f32 %v4346, %v4347
      %v4349 = vmax.f32 %v4009, %v4013
      %v4350 = vrot.slane %v4349, 4
      %v4351 = vmax.f32 %v4349, %v4350
      %v4352 = vrot.slane %v4351, 2
      %v4353 = vmax.f32 %v4351, %v4352
      %v4354 = vrot.slane %v4353, 1
      %v4355 = vmax.f32 %v4353, %v4354
      %v4356 = vmax.f32 %v4011, %v4015
      %v4357 = vrot.slane %v4356, 4
      %v4358 = vmax.f32 %v4356, %v4357
      %v4359 = vrot.slane %v4358, 2
      %v4360 = vmax.f32 %v4358, %v4359
      %v4361 = vrot.slane %v4360, 1
      %v4362 = vmax.f32 %v4360, %v4361
      %v4363 = vmax.f32 %v4235, %v4239
      %v4364 = vrot.slane %v4363, 4
      %v4365 = vmax.f32 %v4363, %v4364
      %v4366 = vrot.slane %v4365, 2
      %v4367 = vmax.f32 %v4365, %v4366
      %v4368 = vrot.slane %v4367, 1
      %v4369 = vmax.f32 %v4367, %v4368
      %v4370 = vmax.f32 %v4237, %v4241
      %v4371 = vrot.slane %v4370, 4
      %v4372 = vmax.f32 %v4370, %v4371
      %v4373 = vrot.slane %v4372, 2
      %v4374 = vmax.f32 %v4372, %v4373
      %v4375 = vrot.slane %v4374, 1
      %v4376 = vmax.f32 %v4374, %v4375
      %v4377 = vmax.f32 %v4019, %v4023
      %v4378 = vrot.slane %v4377, 4
      %v4379 = vmax.f32 %v4377, %v4378
      %v4380 = vrot.slane %v4379, 2
      %v4381 = vmax.f32 %v4379, %v4380
      %v4382 = vrot.slane %v4381, 1
      %v4383 = vmax.f32 %v4381, %v4382
      %v4384 = vmax.f32 %v4021, %v4025
      %v4385 = vrot.slane %v4384, 4
      %v4386 = vmax.f32 %v4384, %v4385
      %v4387 = vrot.slane %v4386, 2
      %v4388 = vmax.f32 %v4386, %v4387
      %v4389 = vrot.slane %v4388, 1
      %v4390 = vmax.f32 %v4388, %v4389
      %v4391 = vmax.f32 %v4245, %v4249
      %v4392 = vrot.slane %v4391, 4
      %v4393 = vmax.f32 %v4391, %v4392
      %v4394 = vrot.slane %v4393, 2
      %v4395 = vmax.f32 %v4393, %v4394
      %v4396 = vrot.slane %v4395, 1
      %v4397 = vmax.f32 %v4395, %v4396
      %v4398 = vmax.f32 %v4247, %v4251
      %v4399 = vrot.slane %v4398, 4
      %v4400 = vmax.f32 %v4398, %v4399
      %v4401 = vrot.slane %v4400, 2
      %v4402 = vmax.f32 %v4400, %v4401
      %v4403 = vrot.slane %v4402, 1
      %v4404 = vmax.f32 %v4402, %v4403
      %v4405 = vmax.f32 %v4029, %v4033
      %v4406 = vrot.slane %v4405, 4
      %v4407 = vmax.f32 %v4405, %v4406
      %v4408 = vrot.slane %v4407, 2
      %v4409 = vmax.f32 %v4407, %v4408
      %v4410 = vrot.slane %v4409, 1
      %v4411 = vmax.f32 %v4409, %v4410
      %v4412 = vmax.f32 %v4031, %v4035
      %v4413 = vrot.slane %v4412, 4
      %v4414 = vmax.f32 %v4412, %v4413
      %v4415 = vrot.slane %v4414, 2
      %v4416 = vmax.f32 %v4414, %v4415
      %v4417 = vrot.slane %v4416, 1
      %v4418 = vmax.f32 %v4416, %v4417
      %v4419 = vmax.f32 %v4255, %v4259
      %v4420 = vrot.slane %v4419, 4
      %v4421 = vmax.f32 %v4419, %v4420
      %v4422 = vrot.slane %v4421, 2
      %v4423 = vmax.f32 %v4421, %v4422
      %v4424 = vrot.slane %v4423, 1
      %v4425 = vmax.f32 %v4423, %v4424
      %v4426 = vmax.f32 %v4257, %v4261
      %v4427 = vrot.slane %v4426, 4
      %v4428 = vmax.f32 %v4426, %v4427
      %v4429 = vrot.slane %v4428, 2
      %v4430 = vmax.f32 %v4428, %v4429
      %v4431 = vrot.slane %v4430, 1
      %v4432 = vmax.f32 %v4430, %v4431
      %v4433 = vmax.f32 %v4039, %v4043
      %v4434 = vrot.slane %v4433, 4
      %v4435 = vmax.f32 %v4433, %v4434
      %v4436 = vrot.slane %v4435, 2
      %v4437 = vmax.f32 %v4435, %v4436
      %v4438 = vrot.slane %v4437, 1
      %v4439 = vmax.f32 %v4437, %v4438
      %v4440 = vmax.f32 %v4041, %v4045
      %v4441 = vrot.slane %v4440, 4
      %v4442 = vmax.f32 %v4440, %v4441
      %v4443 = vrot.slane %v4442, 2
      %v4444 = vmax.f32 %v4442, %v4443
      %v4445 = vrot.slane %v4444, 1
      %v4446 = vmax.f32 %v4444, %v4445
      %v4447 = vmax.f32 %v4265, %v4269
      %v4448 = vrot.slane %v4447, 4
      %v4449 = vmax.f32 %v4447, %v4448
      %v4450 = vrot.slane %v4449, 2
      %v4451 = vmax.f32 %v4449, %v4450
      %v4452 = vrot.slane %v4451, 1
      %v4453 = vmax.f32 %v4451, %v4452
      %v4454 = vmax.f32 %v4267, %v4271
      %v4455 = vrot.slane %v4454, 4
      %v4456 = vmax.f32 %v4454, %v4455
      %v4457 = vrot.slane %v4456, 2
      %v4458 = vmax.f32 %v4456, %v4457
      %v4459 = vrot.slane %v4458, 1
      %v4460 = vmax.f32 %v4458, %v4459
      %v4461 = vmax.f32 %v4049, %v4053
      %v4462 = vrot.slane %v4461, 4
      %v4463 = vmax.f32 %v4461, %v4462
      %v4464 = vrot.slane %v4463, 2
      %v4465 = vmax.f32 %v4463, %v4464
      %v4466 = vrot.slane %v4465, 1
      %v4467 = vmax.f32 %v4465, %v4466
      %v4468 = vmax.f32 %v4051, %v4055
      %v4469 = vrot.slane %v4468, 4
      %v4470 = vmax.f32 %v4468, %v4469
      %v4471 = vrot.slane %v4470, 2
      %v4472 = vmax.f32 %v4470, %v4471
      %v4473 = vrot.slane %v4472, 1
      %v4474 = vmax.f32 %v4472, %v4473
      %v4475 = vmax.f32 %v4275, %v4279
      %v4476 = vrot.slane %v4475, 4
      %v4477 = vmax.f32 %v4475, %v4476
      %v4478 = vrot.slane %v4477, 2
      %v4479 = vmax.f32 %v4477, %v4478
      %v4480 = vrot.slane %v4479, 1
      %v4481 = vmax.f32 %v4479, %v4480
      %v4482 = vmax.f32 %v4277, %v4281
      %v4483 = vrot.slane %v4482, 4
      %v4484 = vmax.f32 %v4482, %v4483
      %v4485 = vrot.slane %v4484, 2
      %v4486 = vmax.f32 %v4484, %v4485
      %v4487 = vrot.slane %v4486, 1
      %v4488 = vmax.f32 %v4486, %v4487
      %v4489 = vmax.f32 %v4059, %v4063
      %v4490 = vrot.slane %v4489, 4
      %v4491 = vmax.f32 %v4489, %v4490
      %v4492 = vrot.slane %v4491, 2
      %v4493 = vmax.f32 %v4491, %v4492
      %v4494 = vrot.slane %v4493, 1
      %v4495 = vmax.f32 %v4493, %v4494
      %v4496 = vmax.f32 %v4061, %v4065
      %v4497 = vrot.slane %v4496, 4
      %v4498 = vmax.f32 %v4496, %v4497
      %v4499 = vrot.slane %v4498, 2
      %v4500 = vmax.f32 %v4498, %v4499
      %v4501 = vrot.slane %v4500, 1
      %v4502 = vmax.f32 %v4500, %v4501
      %v4503 = vmax.f32 %v4285, %v4289
      %v4504 = vrot.slane %v4503, 4
      %v4505 = vmax.f32 %v4503, %v4504
      %v4506 = vrot.slane %v4505, 2
      %v4507 = vmax.f32 %v4505, %v4506
      %v4508 = vrot.slane %v4507, 1
      %v4509 = vmax.f32 %v4507, %v4508
      %v4510 = vmax.f32 %v4287, %v4291
      %v4511 = vrot.slane %v4510, 4
      %v4512 = vmax.f32 %v4510, %v4511
      %v4513 = vrot.slane %v4512, 2
      %v4514 = vmax.f32 %v4512, %v4513
      %v4515 = vrot.slane %v4514, 1
      %v4516 = vmax.f32 %v4514, %v4515
      %v4517 = vpack.c.bf16 %v4299, %v4299
      %v4518 = vpack.c.bf16 %v4306, %v4306
      %v4519 = vpack.c.bf16 %v4313, %v4313
      %v4520 = vpack.c.bf16 %v4320, %v4320
      %v4521 = vpack.c.bf16 %v4327, %v4327
      %v4522 = vpack.c.bf16 %v4334, %v4334
      %v4523 = vpack.c.bf16 %v4341, %v4341
      %v4524 = vpack.c.bf16 %v4348, %v4348
      %v4525 = vpack.c.bf16 %v4355, %v4355
      %v4526 = vpack.c.bf16 %v4362, %v4362
      %v4527 = vpack.c.bf16 %v4369, %v4369
      %v4528 = vpack.c.bf16 %v4376, %v4376
      %v4529 = vpack.c.bf16 %v4383, %v4383
      %v4530 = vpack.c.bf16 %v4390, %v4390
      %v4531 = vpack.c.bf16 %v4397, %v4397
      %v4532 = vpack.c.bf16 %v4404, %v4404
      %v4533 = vpack.c.bf16 %v4411, %v4411
      %v4534 = vpack.c.bf16 %v4418, %v4418
      %v4535 = vpack.c.bf16 %v4425, %v4425
      %v4536 = vpack.c.bf16 %v4432, %v4432
      %v4537 = vpack.c.bf16 %v4439, %v4439
      %v4538 = vpack.c.bf16 %v4446, %v4446
      %v4539 = vpack.c.bf16 %v4453, %v4453
      %v4540 = vpack.c.bf16 %v4460, %v4460
      %v4541 = vpack.c.bf16 %v4467, %v4467
      %v4542 = vpack.c.bf16 %v4474, %v4474
      %v4543 = vpack.c.bf16 %v4481, %v4481
      %v4544 = vpack.c.bf16 %v4488, %v4488
      %v4545 = vpack.c.bf16 %v4495, %v4495
      %v4546 = vpack.c.bf16 %v4502, %v4502
      %v4547 = vpack.c.bf16 %v4509, %v4509
      %v4548 = vpack.c.bf16 %v4516, %v4516
      %v4549 = vld [vmem:[%s15] sm:$0xf]
      %v4550 = vld [vmem:[%s15 + $0x4] sm:$0xf]
      %v4551 = vld [vmem:[%s15 + $0x8] sm:$0xf]
      %v4552 = vld [vmem:[%s15 + $0xc] sm:$0xf]
      %v4553 = vld [vmem:[%s15 + $0x10] sm:$0xf]
      %v4554 = vld [vmem:[%s15 + $0x14] sm:$0xf]
      %v4555 = vld [vmem:[%s15 + $0x18] sm:$0xf]
      %v4556 = vld [vmem:[%s15 + $0x1c] sm:$0xf]
      %v4557 = vld [vmem:[%s15 + $0x20] sm:$0xf]
      %v4558 = vld [vmem:[%s15 + $0x24] sm:$0xf]
      %v4559 = vld [vmem:[%s15 + $0x28] sm:$0xf]
      %v4560 = vld [vmem:[%s15 + $0x2c] sm:$0xf]
      %v4561 = vld [vmem:[%s15 + $0x30] sm:$0xf]
      %v4562 = vld [vmem:[%s15 + $0x34] sm:$0xf]
      %v4563 = vld [vmem:[%s15 + $0x38] sm:$0xf]
      %v4564 = vld [vmem:[%s15 + $0x3c] sm:$0xf]
      %v4565 = vld [vmem:[%s15 + $0x40] sm:$0xf]
      %v4566 = vld [vmem:[%s15 + $0x44] sm:$0xf]
      %v4567 = vld [vmem:[%s15 + $0x48] sm:$0xf]
      %v4568 = vld [vmem:[%s15 + $0x4c] sm:$0xf]
      %v4569 = vld [vmem:[%s15 + $0x50] sm:$0xf]
      %v4570 = vld [vmem:[%s15 + $0x54] sm:$0xf]
      %v4571 = vld [vmem:[%s15 + $0x58] sm:$0xf]
      %v4572 = vld [vmem:[%s15 + $0x5c] sm:$0xf]
      %v4573 = vld [vmem:[%s15 + $0x60] sm:$0xf]
      %v4574 = vld [vmem:[%s15 + $0x64] sm:$0xf]
      %v4575 = vld [vmem:[%s15 + $0x68] sm:$0xf]
      %v4576 = vld [vmem:[%s15 + $0x6c] sm:$0xf]
      %v4577 = vld [vmem:[%s15 + $0x70] sm:$0xf]
      %v4578 = vld [vmem:[%s15 + $0x74] sm:$0xf]
      %v4579 = vld [vmem:[%s15 + $0x78] sm:$0xf]
      %v4580 = vld [vmem:[%s15 + $0x7c] sm:$0xf]
      %v4581 = vld [vmem:[%s15 + $0x80] sm:$0xf]
      %v4582 = vld [vmem:[%s15 + $0x84] sm:$0xf]
      %v4583 = vld [vmem:[%s15 + $0x88] sm:$0xf]
      %v4584 = vld [vmem:[%s15 + $0x8c] sm:$0xf]
      %v4585 = vld [vmem:[%s15 + $0x90] sm:$0xf]
      %v4586 = vld [vmem:[%s15 + $0x94] sm:$0xf]
      %v4587 = vld [vmem:[%s15 + $0x98] sm:$0xf]
      %v4588 = vld [vmem:[%s15 + $0x9c] sm:$0xf]
      %v4589 = vld [vmem:[%s15 + $0xa0] sm:$0xf]
      %v4590 = vld [vmem:[%s15 + $0xa4] sm:$0xf]
      %v4591 = vld [vmem:[%s15 + $0xa8] sm:$0xf]
      %v4592 = vld [vmem:[%s15 + $0xac] sm:$0xf]
      %v4593 = vld [vmem:[%s15 + $0xb0] sm:$0xf]
      %v4594 = vld [vmem:[%s15 + $0xb4] sm:$0xf]
      %v4595 = vld [vmem:[%s15 + $0xb8] sm:$0xf]
      %v4596 = vld [vmem:[%s15 + $0xbc] sm:$0xf]
      %v4597 = vld [vmem:[%s15 + $0xc0] sm:$0xf]
      %v4598 = vld [vmem:[%s15 + $0xc4] sm:$0xf]
      %v4599 = vld [vmem:[%s15 + $0xc8] sm:$0xf]
      %v4600 = vld [vmem:[%s15 + $0xcc] sm:$0xf]
      %v4601 = vld [vmem:[%s15 + $0xd0] sm:$0xf]
      %v4602 = vld [vmem:[%s15 + $0xd4] sm:$0xf]
      %v4603 = vld [vmem:[%s15 + $0xd8] sm:$0xf]
      %v4604 = vld [vmem:[%s15 + $0xdc] sm:$0xf]
      %v4605 = vld [vmem:[%s15 + $0xe0] sm:$0xf]
      %v4606 = vld [vmem:[%s15 + $0xe4] sm:$0xf]
      %v4607 = vld [vmem:[%s15 + $0xe8] sm:$0xf]
      %v4608 = vld [vmem:[%s15 + $0xec] sm:$0xf]
      %v4609 = vld [vmem:[%s15 + $0xf0] sm:$0xf]
      %v4610 = vld [vmem:[%s15 + $0xf4] sm:$0xf]
      %v4611 = vld [vmem:[%s15 + $0xf8] sm:$0xf]
      %v4612 = vld [vmem:[%s15 + $0xfc] sm:$0xf]
      %v4613 = vld [vmem:[%s16] sm:$0x1]
      %v4615 = vlaneseq
      %v4616 = vshrl.u32 %v4615, 7
      %v4617 = vsub.s32 0, %v4616
      %v4618 = vrot.slane %v4613, %v4617
      %v4652 = vunpack.c.l.b16 %v4517
      %v4653 = vunpack.c.l.b16 %v4518
      %v4654 = vunpack.c.l.b16 %v4519
      %v4655 = vunpack.c.l.b16 %v4520
      %v4656 = vunpack.c.l.b16 %v4521
      %v4657 = vunpack.c.l.b16 %v4522
      %v4658 = vunpack.c.l.b16 %v4523
      %v4659 = vunpack.c.l.b16 %v4524
      %v4660 = vunpack.c.l.b16 %v4525
      %v4661 = vunpack.c.l.b16 %v4526
      %v4662 = vunpack.c.l.b16 %v4527
      %v4663 = vunpack.c.l.b16 %v4528
      %v4664 = vunpack.c.l.b16 %v4529
      %v4665 = vunpack.c.l.b16 %v4530
      %v4666 = vunpack.c.l.b16 %v4531
      %v4667 = vunpack.c.l.b16 %v4532
      %v4668 = vunpack.c.l.b16 %v4533
      %v4669 = vunpack.c.l.b16 %v4534
      %v4670 = vunpack.c.l.b16 %v4535
      %v4671 = vunpack.c.l.b16 %v4536
      %v4672 = vunpack.c.l.b16 %v4537
      %v4673 = vunpack.c.l.b16 %v4538
      %v4674 = vunpack.c.l.b16 %v4539
      %v4675 = vunpack.c.l.b16 %v4540
      %v4676 = vunpack.c.l.b16 %v4541
      %v4677 = vunpack.c.l.b16 %v4542
      %v4678 = vunpack.c.l.b16 %v4543
      %v4679 = vunpack.c.l.b16 %v4544
      %v4680 = vunpack.c.l.b16 %v4545
      %v4681 = vunpack.c.l.b16 %v4546
      %v4682 = vunpack.c.l.b16 %v4547
      %v4683 = vunpack.c.l.b16 %v4548
      %v4684 = vsel %vm1348, %v4656, %v4652
      %v4685 = vsel %vm1350, %v4660, %v4684
      %v4686 = vsel %vm1352, %v4664, %v4685
      %v4687 = vsel %vm1354, %v4668, %v4686
      %v4688 = vsel %vm1356, %v4672, %v4687
      %v4689 = vsel %vm1358, %v4676, %v4688
      %v4690 = vsel %vm1360, %v4680, %v4689
      %v4691 = vsel %vm1348, %v4657, %v4653
      %v4692 = vsel %vm1350, %v4661, %v4691
      %v4693 = vsel %vm1352, %v4665, %v4692
      %v4694 = vsel %vm1354, %v4669, %v4693
      %v4695 = vsel %vm1356, %v4673, %v4694
      %v4696 = vsel %vm1358, %v4677, %v4695
      %v4697 = vsel %vm1360, %v4681, %v4696
      %v4698 = vsel %vm1348, %v4658, %v4654
      %v4699 = vsel %vm1350, %v4662, %v4698
      %v4700 = vsel %vm1352, %v4666, %v4699
      %v4701 = vsel %vm1354, %v4670, %v4700
      %v4702 = vsel %vm1356, %v4674, %v4701
      %v4703 = vsel %vm1358, %v4678, %v4702
      %v4704 = vsel %vm1360, %v4682, %v4703
      %v4705 = vsel %vm1348, %v4659, %v4655
      %v4706 = vsel %vm1350, %v4663, %v4705
      %v4707 = vsel %vm1352, %v4667, %v4706
      %v4708 = vsel %vm1354, %v4671, %v4707
      %v4709 = vsel %vm1356, %v4675, %v4708
      %v4710 = vsel %vm1358, %v4679, %v4709
      %v4711 = vsel %vm1360, %v4683, %v4710
      %v4712 = vpack.c.b16 %v4690, %v4690
      %v4713 = vpack.c.b16 %v4697, %v4697
      %v4714 = vpack.c.b16 %v4704, %v4704
      %v4715 = vpack.c.b16 %v4711, %v4711
      %v4784 = vunpack.c.l.b16 %v4549
      %v4785 = vunpack.c.l.b16 %v4550
      %v4786 = vunpack.c.l.b16 %v4551
      %v4787 = vunpack.c.l.b16 %v4552
      %v4788 = vunpack.c.l.b16 %v4553
      %v4789 = vunpack.c.l.b16 %v4554
      %v4790 = vunpack.c.l.b16 %v4555
      %v4791 = vunpack.c.l.b16 %v4556
      %v4792 = vunpack.c.l.b16 %v4557
      %v4793 = vunpack.c.l.b16 %v4558
      %v4794 = vunpack.c.l.b16 %v4559
      %v4795 = vunpack.c.l.b16 %v4560
      %v4796 = vunpack.c.l.b16 %v4561
      %v4797 = vunpack.c.l.b16 %v4562
      %v4798 = vunpack.c.l.b16 %v4563
      %v4799 = vunpack.c.l.b16 %v4564
      %v4800 = vunpack.c.l.b16 %v4565
      %v4801 = vunpack.c.l.b16 %v4566
      %v4802 = vunpack.c.l.b16 %v4567
      %v4803 = vunpack.c.l.b16 %v4568
      %v4804 = vunpack.c.l.b16 %v4569
      %v4805 = vunpack.c.l.b16 %v4570
      %v4806 = vunpack.c.l.b16 %v4571
      %v4807 = vunpack.c.l.b16 %v4572
      %v4808 = vunpack.c.l.b16 %v4573
      %v4809 = vunpack.c.l.b16 %v4574
      %v4810 = vunpack.c.l.b16 %v4575
      %v4811 = vunpack.c.l.b16 %v4576
      %v4812 = vunpack.c.l.b16 %v4577
      %v4813 = vunpack.c.l.b16 %v4578
      %v4814 = vunpack.c.l.b16 %v4579
      %v4815 = vunpack.c.l.b16 %v4580
      %v4816 = vunpack.c.l.b16 %v4581
      %v4817 = vunpack.c.l.b16 %v4582
      %v4818 = vunpack.c.l.b16 %v4583
      %v4819 = vunpack.c.l.b16 %v4584
      %v4820 = vunpack.c.l.b16 %v4585
      %v4821 = vunpack.c.l.b16 %v4586
      %v4822 = vunpack.c.l.b16 %v4587
      %v4823 = vunpack.c.l.b16 %v4588
      %v4824 = vunpack.c.l.b16 %v4589
      %v4825 = vunpack.c.l.b16 %v4590
      %v4826 = vunpack.c.l.b16 %v4591
      %v4827 = vunpack.c.l.b16 %v4592
      %v4828 = vunpack.c.l.b16 %v4593
      %v4829 = vunpack.c.l.b16 %v4594
      %v4830 = vunpack.c.l.b16 %v4595
      %v4831 = vunpack.c.l.b16 %v4596
      %v4832 = vunpack.c.l.b16 %v4597
      %v4833 = vunpack.c.l.b16 %v4598
      %v4834 = vunpack.c.l.b16 %v4599
      %v4835 = vunpack.c.l.b16 %v4600
      %v4836 = vunpack.c.l.b16 %v4601
      %v4837 = vunpack.c.l.b16 %v4602
      %v4838 = vunpack.c.l.b16 %v4603
      %v4839 = vunpack.c.l.b16 %v4604
      %v4840 = vunpack.c.l.b16 %v4605
      %v4841 = vunpack.c.l.b16 %v4606
      %v4842 = vunpack.c.l.b16 %v4607
      %v4843 = vunpack.c.l.b16 %v4608
      %v4844 = vunpack.c.l.b16 %v4609
      %v4845 = vunpack.c.l.b16 %v4610
      %v4846 = vunpack.c.l.b16 %v4611
      %v4847 = vunpack.c.l.b16 %v4612
      %v4848 = vpack.c.b16 %v4785, %v4784
      %v4849 = vpack.c.b16 %v4787, %v4786
      %v4850 = vpack.c.b16 %v4789, %v4788
      %v4851 = vpack.c.b16 %v4791, %v4790
      %v4852 = vpack.c.b16 %v4793, %v4792
      %v4853 = vpack.c.b16 %v4795, %v4794
      %v4854 = vpack.c.b16 %v4797, %v4796
      %v4855 = vpack.c.b16 %v4799, %v4798
      %v4856 = vpack.c.b16 %v4801, %v4800
      %v4857 = vpack.c.b16 %v4803, %v4802
      %v4858 = vpack.c.b16 %v4805, %v4804
      %v4859 = vpack.c.b16 %v4807, %v4806
      %v4860 = vpack.c.b16 %v4809, %v4808
      %v4861 = vpack.c.b16 %v4811, %v4810
      %v4862 = vpack.c.b16 %v4813, %v4812
      %v4863 = vpack.c.b16 %v4815, %v4814
      %v4864 = vpack.c.b16 %v4817, %v4816
      %v4865 = vpack.c.b16 %v4819, %v4818
      %v4866 = vpack.c.b16 %v4821, %v4820
      %v4867 = vpack.c.b16 %v4823, %v4822
      %v4868 = vpack.c.b16 %v4825, %v4824
      %v4869 = vpack.c.b16 %v4827, %v4826
      %v4870 = vpack.c.b16 %v4829, %v4828
      %v4871 = vpack.c.b16 %v4831, %v4830
      %v4872 = vpack.c.b16 %v4833, %v4832
      %v4873 = vpack.c.b16 %v4835, %v4834
      %v4874 = vpack.c.b16 %v4837, %v4836
      %v4875 = vpack.c.b16 %v4839, %v4838
      %v4876 = vpack.c.b16 %v4841, %v4840
      %v4877 = vpack.c.b16 %v4843, %v4842
      %v4878 = vpack.c.b16 %v4845, %v4844
      %v4879 = vpack.c.b16 %v4847, %v4846
      %4912 = vmatprep.subr.bf16.mxu0 0
      %4913 = vmatpush1.bf16.msra.mxu0 %v4848
      %4914 = vmatprep.subr.bf16.mxu0 0
      %4915 = vmatpush1.bf16.msra.mxu0 %v4849
      %4916 = vmatprep.subr.bf16.mxu0 0
      %4917 = vmatpush1.bf16.msra.mxu0 %v4850
      %4918 = vmatprep.subr.bf16.mxu0 0
      %4919 = vmatpush1.bf16.msra.mxu0 %v4851
      %4920 = vmatprep.subr.bf16.mxu0 0
      %4921 = vmatpush1.bf16.msra.mxu0 %v4852
      %4922 = vmatprep.subr.bf16.mxu0 0
      %4923 = vmatpush1.bf16.msra.mxu0 %v4853
      %4924 = vmatprep.subr.bf16.mxu0 0
      %4925 = vmatpush1.bf16.msra.mxu0 %v4854
      %4926 = vmatprep.subr.bf16.mxu0 0
      %4927 = vmatpush1.bf16.msra.mxu0 %v4855
      %4928 = vmatprep.subr.bf16.mxu0 0
      %4929 = vmatpush1.bf16.msra.mxu0 %v4856
      %4930 = vmatprep.subr.bf16.mxu0 0
      %4931 = vmatpush1.bf16.msra.mxu0 %v4857
      %4932 = vmatprep.subr.bf16.mxu0 0
      %4933 = vmatpush1.bf16.msra.mxu0 %v4858
      %4934 = vmatprep.subr.bf16.mxu0 0
      %4935 = vmatpush1.bf16.msra.mxu0 %v4859
      %4936 = vmatprep.subr.bf16.mxu0 0
      %4937 = vmatpush1.bf16.msra.mxu0 %v4860
      %4938 = vmatprep.subr.bf16.mxu0 0
      %4939 = vmatpush1.bf16.msra.mxu0 %v4861
      %4940 = vmatprep.subr.bf16.mxu0 0
      %4941 = vmatpush1.bf16.msra.mxu0 %v4862
      %4942 = vmatprep.subr.bf16.mxu0 0
      %4943 = vmatpush1.bf16.msra.mxu0 %v4863
      %4944 = vmatprep.mubr.bf16.mxu0 %v4713
      %4945 = vmatmul.mubr.bf16.gmra.mrb[0].mxu0 %v4712
      %v4946 = vpop.f32.mrb[0].mxu0
      %v4947 = vadd.f32 %v4618, %v4946
      %v4948 = vpop.f32.mrb[0].mxu0
      %v4949 = vpop.f32.mrb[0].mxu0
      %v4950 = vpop.f32.mrb[0].mxu0
      %4951 = vdwg.mxu0
      %4952 = vmatprep.subr.bf16.mxu0 0
      %4953 = vmatpush1.bf16.msra.mxu0 %v4864
      %4954 = vmatprep.subr.bf16.mxu0 0
      %4955 = vmatpush1.bf16.msra.mxu0 %v4865
      %4956 = vmatprep.subr.bf16.mxu0 0
      %4957 = vmatpush1.bf16.msra.mxu0 %v4866
      %4958 = vmatprep.subr.bf16.mxu0 0
      %4959 = vmatpush1.bf16.msra.mxu0 %v4867
      %4960 = vmatprep.subr.bf16.mxu0 0
      %4961 = vmatpush1.bf16.msra.mxu0 %v4868
      %4962 = vmatprep.subr.bf16.mxu0 0
      %4963 = vmatpush1.bf16.msra.mxu0 %v4869
      %4964 = vmatprep.subr.bf16.mxu0 0
      %4965 = vmatpush1.bf16.msra.mxu0 %v4870
      %4966 = vmatprep.subr.bf16.mxu0 0
      %4967 = vmatpush1.bf16.msra.mxu0 %v4871
      %4968 = vmatprep.subr.bf16.mxu0 0
      %4969 = vmatpush1.bf16.msra.mxu0 %v4872
      %4970 = vmatprep.subr.bf16.mxu0 0
      %4971 = vmatpush1.bf16.msra.mxu0 %v4873
      %4972 = vmatprep.subr.bf16.mxu0 0
      %4973 = vmatpush1.bf16.msra.mxu0 %v4874
      %4974 = vmatprep.subr.bf16.mxu0 0
      %4975 = vmatpush1.bf16.msra.mxu0 %v4875
      %4976 = vmatprep.subr.bf16.mxu0 0
      %4977 = vmatpush1.bf16.msra.mxu0 %v4876
      %4978 = vmatprep.subr.bf16.mxu0 0
      %4979 = vmatpush1.bf16.msra.mxu0 %v4877
      %4980 = vmatprep.subr.bf16.mxu0 0
      %4981 = vmatpush1.bf16.msra.mxu0 %v4878
      %4982 = vmatprep.subr.bf16.mxu0 0
      %4983 = vmatpush1.bf16.msra.mxu0 %v4879
      %4984 = vmatprep.mubr.bf16.mxu0 %v4715
      %4985 = vmatmul.mubr.bf16.gmra.mrb[0].mxu0 %v4714
      %v4986 = vpop.f32.mrb[0].mxu0
      %v4987 = vadd.f32 %v4947, %v4986
      %v4988 = vpop.f32.mrb[0].mxu0
      %v4989 = vpop.f32.mrb[0].mxu0
      %v4990 = vpop.f32.mrb[0].mxu0
      %4991 = vdwg.mxu0
      %v4992 = vld [vmem:[%s669] sm:$0xff]
      %v4993 = vpack.c.bf16 %v4992, %v4992
      %v4994 = vld [vmem:[%s17] sm:$0xf]
      %v4995 = vld [vmem:[%s18] sm:$0x1]
      %v4997 = vlaneseq
      %v4998 = vshrl.u32 %v4997, 7
      %v4999 = vsub.s32 0, %v4998
      %v5000 = vrot.slane %v4995, %v4999
      %vm5002 = vcmask 64512
      %v5004 = vsel %vm5002, %v4993, 0
      %vm5006 = vcmask 1043456
      %v5008 = vsel %vm5006, %v4994, 0
      %5010 = vmatprep.subr.bf16.mxu0 0
      %5011 = vmatpush1.bf16.msra.mxu0 %v5008
      %5012 = vmatprep.subr.bf16.mxu0 0
      %5013 = vmatpush1.bf16.msra.mxu0 0
      %5014 = vmatprep.subr.bf16.mxu0 0
      %5015 = vmatpush1.bf16.msra.mxu0 0
      %5016 = vmatprep.subr.bf16.mxu0 0
      %5017 = vmatpush1.bf16.msra.mxu0 0
      %5018 = vmatprep.subr.bf16.mxu0 0
      %5019 = vmatpush1.bf16.msra.mxu0 0
      %5020 = vmatprep.subr.bf16.mxu0 0
      %5021 = vmatpush1.bf16.msra.mxu0 0
      %5022 = vmatprep.subr.bf16.mxu0 0
      %5023 = vmatpush1.bf16.msra.mxu0 0
      %5024 = vmatprep.subr.bf16.mxu0 0
      %5025 = vmatpush1.bf16.msra.mxu0 0
      %5026 = vmatprep.subr.bf16.mxu0 0
      %5027 = vmatpush1.bf16.msra.mxu0 0
      %5028 = vmatprep.subr.bf16.mxu0 0
      %5029 = vmatpush1.bf16.msra.mxu0 0
      %5030 = vmatprep.subr.bf16.mxu0 0
      %5031 = vmatpush1.bf16.msra.mxu0 0
      %5032 = vmatprep.subr.bf16.mxu0 0
      %5033 = vmatpush1.bf16.msra.mxu0 0
      %5034 = vmatprep.subr.bf16.mxu0 0
      %5035 = vmatpush1.bf16.msra.mxu0 0
      %5036 = vmatprep.subr.bf16.mxu0 0
      %5037 = vmatpush1.bf16.msra.mxu0 0
      %5038 = vmatprep.subr.bf16.mxu0 0
      %5039 = vmatpush1.bf16.msra.mxu0 0
      %5040 = vmatprep.subr.bf16.mxu0 0
      %5041 = vmatpush1.bf16.msra.mxu0 0
      %5042 = vmatprep.mubr.bf16.mxu0 0
      %5043 = vmatmul.mubr.bf16.gmra.mrb[0].mxu0 %v5004
      %v5044 = vpop.f32.mrb[0].mxu0
      %v5045 = vadd.f32 %v5000, %v5044
      %v5046 = vpop.f32.mrb[0].mxu0
      %v5047 = vpop.f32.mrb[0].mxu0
      %v5048 = vpop.f32.mrb[0].mxu0
      %5049 = vdwg.mxu0
      %v5050 = vmul.f32 %v5045, %v5045
      %v5051 = vmul.f32 %v5045, %v5050
      %v5052 = vmul.f32 %v5051, 0.044715
      %v5053 = vadd.f32 %v5045, %v5052
      %v5054 = vmul.f32 %v5053, 0.7978846
      %v5055 = vtanh.pop %v5054
      %v5056 = vadd.f32 %v5055, 1.0
      %v5057 = vmul.f32 %v5056, 0.5
      %v5058 = vmul.f32 %v5045, %v5057
      %v5059 = vpack.c.bf16 %v5058, %v5058
      %v5060 = vld [vmem:[%s19] sm:$0xf]
      %v5061 = vld [vmem:[%s19 + $0x4] sm:$0xf]
      %v5062 = vld [vmem:[%s19 + $0x8] sm:$0xf]
      %v5063 = vld [vmem:[%s19 + $0xc] sm:$0xf]
      %v5064 = vld [vmem:[%s19 + $0x10] sm:$0xf]
      %v5065 = vld [vmem:[%s19 + $0x14] sm:$0xf]
      %v5066 = vld [vmem:[%s19 + $0x18] sm:$0xf]
      %v5067 = vld [vmem:[%s19 + $0x1c] sm:$0xf]
      %v5068 = vld [vmem:[%s19 + $0x20] sm:$0xf]
      %v5069 = vld [vmem:[%s19 + $0x24] sm:$0xf]
      %v5070 = vld [vmem:[%s19 + $0x28] sm:$0xf]
      %v5071 = vld [vmem:[%s19 + $0x2c] sm:$0xf]
      %v5072 = vld [vmem:[%s19 + $0x30] sm:$0xf]
      %v5073 = vld [vmem:[%s19 + $0x34] sm:$0xf]
      %v5074 = vld [vmem:[%s19 + $0x38] sm:$0xf]
      %v5075 = vld [vmem:[%s19 + $0x3c] sm:$0xf]
      %v5076 = vld [vmem:[%s20] sm:$0x1]
      %v5078 = vlaneseq
      %v5079 = vshrl.u32 %v5078, 7
      %v5080 = vsub.s32 0, %v5079
      %v5081 = vrot.slane %v5076, %v5080
      %v5099 = vunpack.c.l.b16 %v5060
      %v5100 = vunpack.c.l.b16 %v5061
      %v5101 = vunpack.c.l.b16 %v5062
      %v5102 = vunpack.c.l.b16 %v5063
      %v5103 = vunpack.c.l.b16 %v5064
      %v5104 = vunpack.c.l.b16 %v5065
      %v5105 = vunpack.c.l.b16 %v5066
      %v5106 = vunpack.c.l.b16 %v5067
      %v5107 = vunpack.c.l.b16 %v5068
      %v5108 = vunpack.c.l.b16 %v5069
      %v5109 = vunpack.c.l.b16 %v5070
      %v5110 = vunpack.c.l.b16 %v5071
      %v5111 = vunpack.c.l.b16 %v5072
      %v5112 = vunpack.c.l.b16 %v5073
      %v5113 = vunpack.c.l.b16 %v5074
      %v5114 = vunpack.c.l.b16 %v5075
      %v5115 = vpack.c.b16 %v5100, %v5099
      %v5116 = vpack.c.b16 %v5102, %v5101
      %v5117 = vpack.c.b16 %v5104, %v5103
      %v5118 = vpack.c.b16 %v5106, %v5105
      %v5119 = vpack.c.b16 %v5108, %v5107
      %v5120 = vpack.c.b16 %v5110, %v5109
      %v5121 = vpack.c.b16 %v5112, %v5111
      %v5122 = vpack.c.b16 %v5114, %v5113
      %5131 = vmatprep.subr.bf16.mxu0 0
      %5132 = vmatpush1.bf16.msra.mxu0 %v5115
      %5133 = vmatprep.subr.bf16.mxu0 0
      %5134 = vmatpush1.bf16.msra.mxu0 %v5116
      %5135 = vmatprep.subr.bf16.mxu0 0
      %5136 = vmatpush1.bf16.msra.mxu0 %v5117
      %5137 = vmatprep.subr.bf16.mxu0 0
      %5138 = vmatpush1.bf16.msra.mxu0 %v5118
      %5139 = vmatprep.subr.bf16.mxu0 0
      %5140 = vmatpush1.bf16.msra.mxu0 %v5119
      %5141 = vmatprep.subr.bf16.mxu0 0
      %5142 = vmatpush1.bf16.msra.mxu0 %v5120
      %5143 = vmatprep.subr.bf16.mxu0 0
      %5144 = vmatpush1.bf16.msra.mxu0 %v5121
      %5145 = vmatprep.subr.bf16.mxu0 0
      %5146 = vmatpush1.bf16.msra.mxu0 %v5122
      %5147 = vmatprep.subr.bf16.mxu0 0
      %5148 = vmatpush1.bf16.msra.mxu0 0
      %5149 = vmatprep.subr.bf16.mxu0 0
      %5150 = vmatpush1.bf16.msra.mxu0 0
      %5151 = vmatprep.subr.bf16.mxu0 0
      %5152 = vmatpush1.bf16.msra.mxu0 0
      %5153 = vmatprep.subr.bf16.mxu0 0
      %5154 = vmatpush1.bf16.msra.mxu0 0
      %5155 = vmatprep.subr.bf16.mxu0 0
      %5156 = vmatpush1.bf16.msra.mxu0 0
      %5157 = vmatprep.subr.bf16.mxu0 0
      %5158 = vmatpush1.bf16.msra.mxu0 0
      %5159 = vmatprep.subr.bf16.mxu0 0
      %5160 = vmatpush1.bf16.msra.mxu0 0
      %5161 = vmatprep.subr.bf16.mxu0 0
      %5162 = vmatpush1.bf16.msra.mxu0 0
      %5163 = vmatprep.mubr.bf16.mxu0 0
      %5164 = vmatmul.mubr.bf16.gmra.mrb[0].mxu0 %v5059
      %v5165 = vpop.f32.mrb[0].mxu0
      %v5166 = vadd.f32 %v5081, %v5165
      %v5167 = vpop.f32.mrb[0].mxu0
      %v5168 = vpop.f32.mrb[0].mxu0
      %v5169 = vpop.f32.mrb[0].mxu0
      %5170 = vdwg.mxu0
      %v5171 = vadd.f32 %v4987, %v5166
      %vm5172 = vcmask 523264
      %5173 = vst.msk [vmem:[%s673] sm:$0xff] %vm5172, %v5171
      %p5174 = scmp.lt.s32.totalorder %s32, 1
      %s5175 = scalar_select %p5174, %s32, 1
      %s5176 = smul.addr %s5175, 8
      %s5177 = scalar_lea.vmem %s21, %s5176
      // Predicated region
      $region105: #{pointcloud_encoder_forward.4} parent=103 // pred_check
        %p5178 = pneg %p501
      $region106: #{pointcloud_encoder_forward.4} parent=103 // pred_check_branch
        %5180 = sbr.rel (%p5178) target = $region108
      $region107: #{pointcloud_encoder_forward.4} parent=103 // pred_region
        _
      $region108: #{pointcloud_encoder_forward.4} parent=103 // pred_fallthru
        _
    $region104: #{pointcloud_encoder_forward.4} parent=5 // pred_fallthru
      _
    %p5181 = scmp.le.s32.totalorder 2, %s27
    // Predicated region
    $region109: #{pointcloud_encoder_forward.4} parent=5 // pred_check
      %p5182 = pneg %p5181
    $region110: #{pointcloud_encoder_forward.4} parent=5 // pred_check_branch
      %5184 = sbr.rel (%p5182) target = $region112
    $region111: #{pointcloud_encoder_forward.4} parent=5 // pred_region
      %s5185 = ssub.s32 %s27, 2
      // Predicated region
      $region113: #{pointcloud_encoder_forward.4} parent=111 // pred_check
        %p5186 = pneg %p507
      $region114: #{pointcloud_encoder_forward.4} parent=111 // pred_check_branch
        %5188 = sbr.rel (%p5186) target = $region116
      $region115: #{pointcloud_encoder_forward.4} parent=111 // pred_region
        %p5189 = scmp.lt.s32.totalorder %s33, 1
        %s5190 = scalar_select %p5189, %s33, 1
        %s5191 = smul.addr %s5190, 8
        %s5192 = scalar_lea.vmem %s21, %s5191
      $region116: #{pointcloud_encoder_forward.4} parent=111 // pred_fallthru
        _
    $region112: #{pointcloud_encoder_forward.4} parent=5 // pred_fallthru
      _
  $region6: #{pointcloud_encoder_forward.4} parent=0 // loop_footer
    %s31 = sadd.s32 1, %s27
  $region7: #{pointcloud_encoder_forward.4} parent=0 // loop_footer_branch
    %26 = sbr.rel target = $region3
  $region8: #{pointcloud_encoder_forward.4} parent=0 // loop_exit
    _

</llo_original>
